<compile_context>
chip_gen: v5e
topology: v5e:2x2
jax: 0.10.0
libtpu: 0.0.40
codegen_flags: <defaults>
</compile_context>

<pallas_src>
import functools

import jax
import jax.numpy as jnp
from jax.experimental import pallas as pl
from jax.experimental.pallas import tpu as pltpu

EPS = 1e-5
VMEM_LIMIT = 32 * 1024 * 1024  # tiles here are tiny; safe on v5e/v6e/v7x


def _round_up(x, m):
    return (x + m - 1) // m * m


# ------------------------------ GEMM kernels ---------------------------------

def _gemm_stats_kernel(a_ref, w_ref, b_ref, o_ref, sum_ref, ssq_ref):
    """o = a @ w + b (single K step, f32 MXU accumulation) plus per-tile column
    sum / sum-of-squares of the pre-activation output (BatchNorm statistics)."""
    y = jnp.dot(a_ref[...], w_ref[...],
                preferred_element_type=jnp.float32) + b_ref[...]
    o_ref[...] = y.astype(o_ref.dtype)
    sum_ref[...] = jnp.sum(y, axis=0, keepdims=True)[None]
    ssq_ref[...] = jnp.sum(y * y, axis=0, keepdims=True)[None]


def _gemm_act_kernel(a_ref, w_ref, b_ref, o_ref, *, act):
    """o = act(a @ w + b) (single K step)."""
    y = jnp.dot(a_ref[...], w_ref[...],
                preferred_element_type=jnp.float32) + b_ref[...]
    if act == "sigmoid":
        y = jax.nn.sigmoid(y)
    elif act == "swish":
        y = y * jax.nn.sigmoid(y)
    o_ref[...] = y.astype(o_ref.dtype)


def pallas_gemm(a, w, b, *, act=None, want_stats=False, out_dtype=jnp.bfloat16):
    """y = act(a @ w + b).  K is small (<= 576 for every layer of this model),
    so the whole K block is kept resident (no K grid axis, no accumulator
    scratch).  Optionally emits per-M-tile column sum / sum-of-squares of the
    pre-activation output so the following BatchNorm needs no extra read pass.

    Returns (y_padded (Mp, Np), col_sum (Np,)|None, col_ssq (Np,)|None,
             (M, N, Mp, Np))."""
    M, K = a.shape
    K2, N = w.shape
    assert K == K2 and K <= 1024, "single-K-step GEMM only"

    tm = min(256, _round_up(M, 8))   # >=2 M-programs once M >= 512 (v7x 2 TCs)
    tn = 128                         # lane-dense, unmasked stores
    Mp, Np = _round_up(M, tm), _round_up(N, tn)

    a_p = a.astype(jnp.bfloat16)
    if Mp != M:
        a_p = jnp.pad(a_p, ((0, Mp - M), (0, 0)))
    w_p = jnp.pad(w.astype(jnp.bfloat16), ((0, 0), (0, Np - N)))
    b_p = jnp.pad(b.astype(jnp.float32).reshape(1, N), ((0, 0), (0, Np - N)))

    grid = (Mp // tm, Np // tn)
    in_specs = [pl.BlockSpec((tm, K), lambda i, j: (i, 0)),
                pl.BlockSpec((K, tn), lambda i, j: (0, j)),
                pl.BlockSpec((1, tn), lambda i, j: (0, j))]
    y_shape = jax.ShapeDtypeStruct((Mp, Np), out_dtype)
    y_spec = pl.BlockSpec((tm, tn), lambda i, j: (i, j))
    cparams = pltpu.CompilerParams(
        dimension_semantics=("parallel", "parallel"),
        vmem_limit_bytes=VMEM_LIMIT)
    cost = pl.CostEstimate(
        flops=2 * Mp * Np * K,
        transcendentals=Mp * Np if act else 0,
        bytes_accessed=(Mp * K + K * Np) * 2
                       + Mp * Np * jnp.dtype(out_dtype).itemsize)

    if want_stats:
        y, psum, pssq = pl.pallas_call(
            _gemm_stats_kernel,
            out_shape=(y_shape,
                       jax.ShapeDtypeStruct((grid[0], 1, Np), jnp.float32),
                       jax.ShapeDtypeStruct((grid[0], 1, Np), jnp.float32)),
            grid_spec=pltpu.PrefetchScalarGridSpec(
                num_scalar_prefetch=0, grid=grid, in_specs=in_specs,
                out_specs=[y_spec,
                           pl.BlockSpec((1, 1, tn), lambda i, j: (i, 0, j)),
                           pl.BlockSpec((1, 1, tn), lambda i, j: (i, 0, j))]),
            compiler_params=cparams, cost_estimate=cost,
        )(a_p, w_p, b_p)
        # Fold M-tile partials; remove the contribution of zero-padded A rows
        # (their pre-activation output is exactly the bias, in f32).
        pad_rows = Mp - M
        col_sum = psum.sum(axis=(0, 1)) - pad_rows * b_p[0]
        col_ssq = pssq.sum(axis=(0, 1)) - pad_rows * b_p[0] * b_p[0]
        return y, col_sum, col_ssq, (M, N, Mp, Np)

    y = pl.pallas_call(
        functools.partial(_gemm_act_kernel, act=act),
        out_shape=y_shape,
        grid_spec=pltpu.PrefetchScalarGridSpec(
            num_scalar_prefetch=0, grid=grid, in_specs=in_specs,
            out_specs=y_spec),
        compiler_params=cparams, cost_estimate=cost,
    )(a_p, w_p, b_p)
    return y, None, None, (M, N, Mp, Np)


# ----------------------- BN apply (+Swish) on the GEMM slab ------------------

def _bn_act_kernel(y_ref, s_ref, t_ref, o_ref, *, act):
    z = y_ref[...].astype(jnp.float32) * s_ref[...] + t_ref[...]
    if act == "swish":
        z = z * jax.nn.sigmoid(z)
    o_ref[...] = z.astype(o_ref.dtype)


def pallas_affine_act(y_padded, scale_row, shift_row, act=None,
                      out_dtype=jnp.bfloat16):
    """Per-column affine (+ optional Swish) over the lane-dense (Mp, Np) GEMM
    output slab.  scale_row / shift_row are (1, Np) f32."""
    Mp, Np = y_padded.shape
    tm = min(256, Mp)
    tn = 128
    grid = (Mp // tm, Np // tn)
    return pl.pallas_call(
        functools.partial(_bn_act_kernel, act=act),
        out_shape=jax.ShapeDtypeStruct((Mp, Np), out_dtype),
        grid_spec=pltpu.PrefetchScalarGridSpec(
            num_scalar_prefetch=0, grid=grid,
            in_specs=[pl.BlockSpec((tm, tn), lambda i, j: (i, j)),
                      pl.BlockSpec((1, tn), lambda i, j: (0, j)),
                      pl.BlockSpec((1, tn), lambda i, j: (0, j))],
            out_specs=pl.BlockSpec((tm, tn), lambda i, j: (i, j))),
        compiler_params=pltpu.CompilerParams(
            dimension_semantics=("parallel", "parallel"),
            vmem_limit_bytes=VMEM_LIMIT),
    )(y_padded, scale_row, shift_row)


# --------------------------- input channel stats -----------------------------

def _row_stats_kernel(x_ref, sum_ref, ssq_ref):
    x = x_ref[...].astype(jnp.float32)
    sum_ref[...] = jnp.sum(x, axis=0, keepdims=True)
    ssq_ref[...] = jnp.sum(x * x, axis=0, keepdims=True)


def input_channel_stats(x_nhwc):
    """Per-channel batch mean / biased var of the (N,H,W,C) input, computed on
    a lane-dense (N, H*W*C) view (single block — the input is small)."""
    N, H, W, C = x_nhwc.shape
    L = H * W * C
    x2 = x_nhwc.reshape(N, L)
    ssum, sssq = pl.pallas_call(
        _row_stats_kernel,
        out_shape=(jax.ShapeDtypeStruct((1, L), jnp.float32),
                   jax.ShapeDtypeStruct((1, L), jnp.float32)),
        grid_spec=pltpu.PrefetchScalarGridSpec(
            num_scalar_prefetch=0, grid=(1,),
            in_specs=[pl.BlockSpec((N, L), lambda i: (0, 0))],
            out_specs=[pl.BlockSpec((1, L), lambda i: (0, 0)),
                       pl.BlockSpec((1, L), lambda i: (0, 0))]),
        compiler_params=pltpu.CompilerParams(vmem_limit_bytes=VMEM_LIMIT),
    )(x2)
    count = N * H * W
    ch_sum = ssum.reshape(H * W, C).sum(axis=0)
    ch_ssq = sssq.reshape(H * W, C).sum(axis=0)
    mean = ch_sum / count
    var = jnp.maximum(ch_ssq / count - mean * mean, 0.0)
    return mean, var


def bn_scale_shift(col_sum, col_ssq, count, gamma, beta):
    mean = col_sum / count
    var = jnp.maximum(col_ssq / count - mean * mean, 0.0)
    scale = gamma * jax.lax.rsqrt(var + EPS)
    shift = beta - mean * scale
    return scale, shift


def _pad_cols(v, Np):
    v = v.astype(jnp.float32)
    return jnp.pad(v, (0, Np - v.shape[0])).reshape(1, Np)


# --------------------------- conv / deconv glue -------------------------------

def _im2col(x_nhwc, KH, KW, stride, padding, pad_value=None):
    N, H, W, C = x_nhwc.shape
    if padding > 0:
        if pad_value is None:
            xp = jnp.pad(x_nhwc, ((0, 0), (padding, padding),
                                  (padding, padding), (0, 0)))
        else:
            # per-channel constant border (exact BN-fold at the boundary)
            xp = jnp.broadcast_to(pad_value.astype(x_nhwc.dtype),
                                  (N, H + 2 * padding, W + 2 * padding, C))
            xp = xp.at[:, padding:padding + H, padding:padding + W, :].set(x_nhwc)
    else:
        xp = x_nhwc
    OH = (H + 2 * padding - KH) // stride + 1
    OW = (W + 2 * padding - KW) // stride + 1
    cols = []
    for kh in range(KH):
        for kw in range(KW):
            cols.append(xp[:, kh:kh + stride * OH:stride,
                           kw:kw + stride * OW:stride, :])
    patches = jnp.concatenate(cols, axis=-1)               # (N, OH, OW, KH*KW*C)
    return patches.reshape(N * OH * OW, KH * KW * C), OH, OW


def conv2d(x_nhwc, w_oihw, b, stride=1, padding=0, *, act=None,
           in_scale=None, in_shift=None, want_stats=False,
           out_dtype=jnp.bfloat16):
    """PyTorch Conv2d on an NHWC activation (weight (OC,IC,KH,KW)).
    If (in_scale, in_shift) are given, a preceding activation-free per-channel
    affine (BatchNorm) is folded in: weights absorb the scale, bias absorbs
    shift * sum(w), and the spatial zero-padding becomes the compensating
    per-channel constant so border pixels match exactly.  (Degenerate gamma==0
    channels would pad with 0 — harmless for real BN parameters.)"""
    OC, IC, KH, KW = w_oihw.shape
    Nb = x_nhwc.shape[0]
    wf = w_oihw.astype(jnp.float32)
    bias = b.astype(jnp.float32)
    pad_value = None
    if in_scale is not None:
        bias = bias + jnp.einsum("oikl,i->o", wf, in_shift)
        wf = wf * in_scale.reshape(1, IC, 1, 1)
        safe = jnp.where(in_scale == 0, 1.0, in_scale)
        pad_value = jnp.where(in_scale != 0, -in_shift / safe, 0.0)
    a, OH, OW = _im2col(x_nhwc, KH, KW, stride, padding, pad_value)
    w_mat = jnp.transpose(wf, (2, 3, 1, 0)).reshape(KH * KW * IC, OC)
    y, s, q, dims = pallas_gemm(a, w_mat, bias, act=act,
                                want_stats=want_stats, out_dtype=out_dtype)
    return y, s, q, dims, (Nb, OH, OW, OC)


def slab_to_nhwc(y_padded, dims, shape):
    M, Ncols, Mp, Np = dims
    Nb, OH, OW, OC = shape
    return y_padded[:M, :OC].reshape(Nb, OH, OW, OC)


def conv_transpose2d_s1(x_nhwc, w_iohw, b, padding, *, in_scale=None,
                        in_shift=None, want_stats=False):
    """stride-1 ConvTranspose2d == Conv2d with the spatially-flipped,
    channel-swapped kernel and padding (K-1-padding)."""
    IC, OC, KH, KW = w_iohw.shape
    w_conv = jnp.transpose(w_iohw[:, :, ::-1, ::-1], (1, 0, 2, 3))
    return conv2d(x_nhwc, w_conv, b, stride=1, padding=KH - 1 - padding,
                  act=None, in_scale=in_scale, in_shift=in_shift,
                  want_stats=want_stats)


def conv_transpose2d_s2(x_nhwc, w_iohw, b, *, want_stats=True):
    """ConvTranspose2d(kernel=3, stride=2, padding=1, output_padding=1) via the
    stride^2 sub-filter decomposition: one GEMM over 2x2 input patches to
    4*OC columns (one block per output-pixel parity), then depth-to-space.
    ~4x fewer MACs and no zero-inflated intermediate vs. zero-insertion."""
    IC, OC, KH, KW = w_iohw.shape
    assert KH == 3 and KW == 3
    Nb, H, W, C = x_nhwc.shape
    assert C == IC
    # one zero row/col at bottom/right: odd output positions read x[m+1]
    xp = jnp.pad(x_nhwc, ((0, 0), (0, 1), (0, 1), (0, 0)))
    cols = [xp[:, ty:ty + H, tx:tx + W, :] for ty in (0, 1) for tx in (0, 1)]
    a = jnp.concatenate(cols, axis=-1).reshape(Nb * H * W, 4 * C)
    # weight matrix (4*C, 4*OC): tap (ty,tx) row-block, parity (py,px) col-block,
    # kernel index ky = py - 2*ty + 1, kx = px - 2*tx + 1 (zero if out of range).
    wf = w_iohw.astype(jnp.float32)
    row_blocks = []
    for ty in (0, 1):
        for tx in (0, 1):
            cols_w = []
            for py in (0, 1):
                for px in (0, 1):
                    ky = py - 2 * ty + 1
                    kx = px - 2 * tx + 1
                    if 0 <= ky < 3 and 0 <= kx < 3:
                        cols_w.append(wf[:, :, ky, kx])            # (IC, OC)
                    else:
                        cols_w.append(jnp.zeros((IC, OC), jnp.float32))
            row_blocks.append(jnp.concatenate(cols_w, axis=1))     # (IC, 4*OC)
    w_mat = jnp.concatenate(row_blocks, axis=0)                    # (4*IC, 4*OC)
    bias4 = jnp.tile(b.astype(jnp.float32), 4)
    y, s, q, dims = pallas_gemm(a, w_mat, bias4, want_stats=want_stats)
    return y, s, q, dims, (Nb, H, W, OC)


def deconv_slab_to_nhwc(y_padded, dims, shape):
    M, Ncols, Mp, Np = dims
    Nb, H, W, OC = shape
    y = y_padded[:M, :Ncols].reshape(Nb, H, W, 2, 2, OC)
    # parity p = py*2 + px  ->  out[2m+py, 2w+px]
    return jnp.transpose(y, (0, 1, 3, 2, 4, 5)).reshape(Nb, 2 * H, 2 * W, OC)


# ------------------------------ parameters ------------------------------------

def _conv_w(key, oc, ic, k):
    fan_in = ic * k * k
    return jax.random.normal(key, (oc, ic, k, k), jnp.float32) / jnp.sqrt(fan_in)


def _deconv_w(key, ic, oc, k):
    fan_in = ic * k * k
    return jax.random.normal(key, (ic, oc, k, k), jnp.float32) / jnp.sqrt(fan_in)


def _bias(key, c):
    return 0.01 * jax.random.normal(key, (c,), jnp.float32)


def _bn(key, c):
    kg, kb = jax.random.split(key)
    gamma = 1.0 + 0.1 * jax.random.normal(kg, (c,), jnp.float32)
    beta = 0.1 * jax.random.normal(kb, (c,), jnp.float32)
    return gamma, beta


def init_params(key):
    keys = jax.random.split(key, 32)
    p = {}
    # Encoder
    p["e_bn1"] = _bn(keys[0], 3)
    p["e_conv1_w"], p["e_conv1_b"] = _conv_w(keys[1], 16, 3, 3), _bias(keys[2], 16)
    p["e_bn2"] = _bn(keys[3], 16)
    p["e_conv2_w"], p["e_conv2_b"] = _conv_w(keys[4], 32, 16, 3), _bias(keys[5], 32)
    p["e_bn3"] = _bn(keys[6], 32)
    p["e_conv3_w"], p["e_conv3_b"] = _conv_w(keys[7], 64, 32, 3), _bias(keys[8], 64)
    p["e_bn4"] = _bn(keys[9], 64)
    # Decoder
    p["d_bn1"] = _bn(keys[10], 64)
    p["d_deconv1_w"], p["d_deconv1_b"] = _deconv_w(keys[11], 64, 64, 3), _bias(keys[12], 64)
    p["d_bn2"] = _bn(keys[13], 64)
    p["d_deconv2_w"], p["d_deconv2_b"] = _deconv_w(keys[14], 64, 32, 3), _bias(keys[15], 32)
    p["d_bn3"] = _bn(keys[16], 32)
    p["d_deconv3_w"], p["d_deconv3_b"] = _deconv_w(keys[17], 32, 16, 3), _bias(keys[18], 16)
    p["d_bn4"] = _bn(keys[19], 16)
    p["d_conv1_w"], p["d_conv1_b"] = _conv_w(keys[20], 3, 16, 3), _bias(keys[21], 3)
    return p


# ------------------------------ forward pass -----------------------------------

def autoencoder_forward(params, x_nchw):
    # NCHW -> NHWC; bf16 activations between layers.
    x = jnp.transpose(x_nchw, (0, 2, 3, 1)).astype(jnp.bfloat16)

    # ------------------------------ Encoder -----------------------------------
    # e_bn1 (no activation) is folded into conv1; only its stats need a pass.
    g0, b0 = params["e_bn1"]
    mean0, var0 = input_channel_stats(x)
    s0 = g0 * jax.lax.rsqrt(var0 + EPS)
    t0 = b0 - mean0 * s0

    # conv1 (e_bn1 folded), BN stats from the GEMM epilogue
    y1, sum1, ssq1, d1, sh1 = conv2d(x, params["e_conv1_w"], params["e_conv1_b"],
                                     stride=1, padding=1,
                                     in_scale=s0, in_shift=t0, want_stats=True)
    g, b_ = params["e_bn2"]
    sc, sh_ = bn_scale_shift(sum1[:sh1[3]], ssq1[:sh1[3]], d1[0], g, b_)
    y1 = pallas_affine_act(y1, _pad_cols(sc, d1[3]), _pad_cols(sh_, d1[3]),
                           act="swish")                               # bn2 + swish
    x = slab_to_nhwc(y1, d1, sh1)

    y2, sum2, ssq2, d2, sh2 = conv2d(x, params["e_conv2_w"], params["e_conv2_b"],
                                     stride=2, padding=1, want_stats=True)
    g, b_ = params["e_bn3"]
    sc, sh_ = bn_scale_shift(sum2[:sh2[3]], ssq2[:sh2[3]], d2[0], g, b_)
    y2 = pallas_affine_act(y2, _pad_cols(sc, d2[3]), _pad_cols(sh_, d2[3]),
                           act="swish")                               # bn3 + swish
    x = slab_to_nhwc(y2, d2, sh2)

    y3, sum3, ssq3, d3, sh3 = conv2d(x, params["e_conv3_w"], params["e_conv3_b"],
                                     stride=2, padding=1, want_stats=True)
    x = slab_to_nhwc(y3, d3, sh3)

    # -------- e_bn4 -> d_bn1 analytic merge (both activation-free) ------------
    OC3, count3 = sh3[3], d3[0]
    mean3 = sum3[:OC3] / count3
    var3 = jnp.maximum(ssq3[:OC3] / count3 - mean3 * mean3, 0.0)
    g1, b1 = params["e_bn4"]
    g2, b2 = params["d_bn1"]
    s1 = g1 * jax.lax.rsqrt(var3 + EPS)
    t1 = b1 - mean3 * s1
    var_mid = s1 * s1 * var3                      # var of e_bn4 output (mean = b1)
    s2 = g2 * jax.lax.rsqrt(var_mid + EPS)
    t2 = b2 - b1 * s2
    s_comb = s1 * s2
    t_comb = s2 * t1 + t2

    # ------------------------------ Decoder ------------------------------------
    # merged bn fold into d_deconv1 (stride-1 transposed conv == flipped conv)
    y4, sum4, ssq4, d4, sh4 = conv_transpose2d_s1(
        x, params["d_deconv1_w"], params["d_deconv1_b"], padding=1,
        in_scale=s_comb, in_shift=t_comb, want_stats=True)
    g, b_ = params["d_bn2"]
    sc, sh_ = bn_scale_shift(sum4[:sh4[3]], ssq4[:sh4[3]], d4[0], g, b_)
    y4 = pallas_affine_act(y4, _pad_cols(sc, d4[3]), _pad_cols(sh_, d4[3]),
                           act="swish")                               # bn2 + swish
    x = slab_to_nhwc(y4, d4, sh4)

    # deconv2 (stride 2): sub-filter GEMM; bn3 + swish applied on the 4*OC slab
    y5, sum5, ssq5, d5, sh5 = conv_transpose2d_s2(
        x, params["d_deconv2_w"], params["d_deconv2_b"])
    OC5 = sh5[3]
    csum = sum5[:4 * OC5].reshape(4, OC5).sum(0)
    cssq = ssq5[:4 * OC5].reshape(4, OC5).sum(0)
    g, b_ = params["d_bn3"]
    sc, sh_ = bn_scale_shift(csum, cssq, 4 * d5[0], g, b_)
    y5 = pallas_affine_act(y5, _pad_cols(jnp.tile(sc, 4), d5[3]),
                           _pad_cols(jnp.tile(sh_, 4), d5[3]), act="swish")
    x = deconv_slab_to_nhwc(y5, d5, sh5)

    # deconv3 (stride 2): sub-filter GEMM; bn4 + swish on the 4*OC slab
    y6, sum6, ssq6, d6, sh6 = conv_transpose2d_s2(
        x, params["d_deconv3_w"], params["d_deconv3_b"])
    OC6 = sh6[3]
    csum = sum6[:4 * OC6].reshape(4, OC6).sum(0)
    cssq = ssq6[:4 * OC6].reshape(4, OC6).sum(0)
    g, b_ = params["d_bn4"]
    sc, sh_ = bn_scale_shift(csum, cssq, 4 * d6[0], g, b_)
    y6 = pallas_affine_act(y6, _pad_cols(jnp.tile(sc, 4), d6[3]),
                           _pad_cols(jnp.tile(sh_, 4), d6[3]), act="swish")
    x = deconv_slab_to_nhwc(y6, d6, sh6)

    # final conv: sigmoid fused into the GEMM epilogue, f32 output
    y7, _, _, d7, sh7 = conv2d(x, params["d_conv1_w"], params["d_conv1_b"],
                               stride=1, padding=1, act="sigmoid",
                               want_stats=False, out_dtype=jnp.float32)
    out = slab_to_nhwc(y7, d7, sh7)
    return jnp.transpose(out, (0, 3, 1, 2))                   # NHWC -> NCHW


if __name__ == "__main__":
    key = jax.random.PRNGKey(0)
    k_params, k_x = jax.random.split(key)
    params = init_params(k_params)

    # Small shapes consistent with the module's conv stack (H, W divisible by 4).
    x = jax.random.normal(k_x, (2, 3, 16, 16), jnp.float32)

    fwd = jax.jit(autoencoder_forward)
    out = fwd(params, x)
    out = jax.block_until_ready(out)

    assert out.shape == (2, 3, 16, 16), out.shape
    assert bool(jnp.all(jnp.isfinite(out)))
    assert bool(jnp.all((out >= 0.0) & (out <= 1.0)))  # final sigmoid range
    print("KERNEL_OK")
</pallas_src>

<mosaic_0001>
module attributes {stable_mosaic.version = 11 : i64} {
  func.func @_row_stats_kernel(%arg0: i32, %arg1: memref<2x768xbf16, #tpu.memory_space<vmem>>, %arg2: memref<1x768xf32, #tpu.memory_space<vmem>>, %arg3: memref<1x768xf32, #tpu.memory_space<vmem>>) attributes {dimension_semantics = [#tpu.dimension_semantics<arbitrary>], iteration_bounds = array<i64: 1>, scalar_prefetch = 0 : i64, scratch_operands = 0 : i64, tpu.core_type = #tpu.core_type<tc>, window_params = [{pipeline_mode = #tpu.pipeline_mode<synchronous>, transform_indices = @transform_0, window_bounds = array<i64: 2, 768>}, {pipeline_mode = #tpu.pipeline_mode<synchronous>, transform_indices = @transform_1, window_bounds = array<i64: 1, 768>}, {pipeline_mode = #tpu.pipeline_mode<synchronous>, transform_indices = @transform_2, window_bounds = array<i64: 1, 768>}]} {
    %c0 = arith.constant 0 : index
    %c0_0 = arith.constant 0 : index
    %0 = vector.load %arg1[%c0, %c0_0] : memref<2x768xbf16, #tpu.memory_space<vmem>>, vector<2x768xbf16>
    %1 = arith.extf %0 : vector<2x768xbf16> to vector<2x768xf32>
    %cst = arith.constant dense<0.000000e+00> : vector<768xf32>
    %2 = vector.multi_reduction <add>, %1, %cst [0] : vector<2x768xf32> to vector<768xf32>
    %3 = vector.shape_cast %2 : vector<768xf32> to vector<1x768xf32>
    %c0_1 = arith.constant 0 : index
    %c0_2 = arith.constant 0 : index
    %4 = vector.load %arg2[%c0_1, %c0_2] : memref<1x768xf32, #tpu.memory_space<vmem>>, vector<1x768xf32>
    tpu.vector_store %arg2[%c0_1, %c0_2], %3 {strides = array<i32>} : memref<1x768xf32, #tpu.memory_space<vmem>>, vector<1x768xf32>,
    %5 = arith.mulf %1, %1 : vector<2x768xf32>
    %cst_3 = arith.constant dense<0.000000e+00> : vector<768xf32>
    %6 = vector.multi_reduction <add>, %5, %cst_3 [0] : vector<2x768xf32> to vector<768xf32>
    %7 = vector.shape_cast %6 : vector<768xf32> to vector<1x768xf32>
    %c0_4 = arith.constant 0 : index
    %c0_5 = arith.constant 0 : index
    %8 = vector.load %arg3[%c0_4, %c0_5] : memref<1x768xf32, #tpu.memory_space<vmem>>, vector<1x768xf32>
    tpu.vector_store %arg3[%c0_4, %c0_5], %7 {strides = array<i32>} : memref<1x768xf32, #tpu.memory_space<vmem>>, vector<1x768xf32>,
    return
  }
  func.func @transform_0(%arg0: i32) -> (i32, i32) {
    %c0_i32 = arith.constant 0 : i32
    %c0_i32_0 = arith.constant 0 : i32
    %c0_i32_1 = arith.constant 0 : i32
    return %c0_i32, %c0_i32_0 : i32, i32
  }
  func.func @transform_1(%arg0: i32) -> (i32, i32) {
    %c0_i32 = arith.constant 0 : i32
    %c0_i32_0 = arith.constant 0 : i32
    %c0_i32_1 = arith.constant 0 : i32
    return %c0_i32, %c0_i32_0 : i32, i32
  }
  func.func @transform_2(%arg0: i32) -> (i32, i32) {
    %c0_i32 = arith.constant 0 : i32
    %c0_i32_0 = arith.constant 0 : i32
    %c0_i32_1 = arith.constant 0 : i32
    return %c0_i32, %c0_i32_0 : i32, i32
  }
}

module attributes {stable_mosaic.version = 11 : i64} {
  func.func @_gemm_stats_kernel(%arg0: i32, %arg1: i32, %arg2: memref<256x27xbf16, #tpu.memory_space<vmem>>, %arg3: memref<27x128xbf16, #tpu.memory_space<vmem>>, %arg4: memref<1x128xf32, #tpu.memory_space<vmem>>, %arg5: memref<256x128xbf16, #tpu.memory_space<vmem>>, %arg6: memref<1x1x128xf32, #tpu.memory_space<vmem>>, %arg7: memref<1x1x128xf32, #tpu.memory_space<vmem>>) attributes {dimension_semantics = [#tpu.dimension_semantics<parallel>, #tpu.dimension_semantics<parallel>], iteration_bounds = array<i64: 2, 1>, scalar_prefetch = 0 : i64, scratch_operands = 0 : i64, tpu.core_type = #tpu.core_type<tc>, window_params = [{transform_indices = @transform_0, window_bounds = array<i64: 256, 27>}, {transform_indices = @transform_1, window_bounds = array<i64: 27, 128>}, {transform_indices = @transform_2, window_bounds = array<i64: 1, 128>}, {transform_indices = @transform_3, window_bounds = array<i64: 256, 128>}, {transform_indices = @transform_4, window_bounds = array<i64: 1, 1, 128>}, {transform_indices = @transform_5, window_bounds = array<i64: 1, 1, 128>}]} {
    %c0 = arith.constant 0 : index
    %c0_0 = arith.constant 0 : index
    %0 = vector.load %arg2[%c0, %c0_0] : memref<256x27xbf16, #tpu.memory_space<vmem>>, vector<256x27xbf16>
    %c0_1 = arith.constant 0 : index
    %c0_2 = arith.constant 0 : index
    %1 = vector.load %arg3[%c0_1, %c0_2] : memref<27x128xbf16, #tpu.memory_space<vmem>>, vector<27x128xbf16>
    %cst = arith.constant dense<0.000000e+00> : vector<256x128xf32>
    %2 = tpu.matmul %0, %1, %cst {dimension_numbers = #tpu.dot_dimension_numbers<[1], [0], [0], [1], [0, 0, 1, 1], [], []>} : vector<256x27xbf16>, vector<27x128xbf16>, vector<256x128xf32> -> vector<256x128xf32>
    %c0_3 = arith.constant 0 : index
    %c0_4 = arith.constant 0 : index
    %3 = vector.load %arg4[%c0_3, %c0_4] : memref<1x128xf32, #tpu.memory_space<vmem>>, vector<1x128xf32>
    %4 = vector.broadcast %3 : vector<1x128xf32> to vector<256x128xf32>
    %5 = arith.addf %2, %4 : vector<256x128xf32>
    %6 = arith.truncf %5 : vector<256x128xf32> to vector<256x128xbf16>
    %c0_5 = arith.constant 0 : index
    %c0_6 = arith.constant 0 : index
    %7 = vector.load %arg5[%c0_5, %c0_6] : memref<256x128xbf16, #tpu.memory_space<vmem>>, vector<256x128xbf16>
    tpu.vector_store %arg5[%c0_5, %c0_6], %6 {strides = array<i32>} : memref<256x128xbf16, #tpu.memory_space<vmem>>, vector<256x128xbf16>,
    %cst_7 = arith.constant dense<0.000000e+00> : vector<128xf32>
    %8 = vector.multi_reduction <add>, %5, %cst_7 [0] : vector<256x128xf32> to vector<128xf32>
    %9 = vector.shape_cast %8 : vector<128xf32> to vector<1x128xf32>
    %10 = vector.shape_cast %9 : vector<1x128xf32> to vector<1x1x128xf32>
    %c0_8 = arith.constant 0 : index
    %c0_9 = arith.constant 0 : index
    %c0_10 = arith.constant 0 : index
    %11 = vector.load %arg6[%c0_8, %c0_9, %c0_10] : memref<1x1x128xf32, #tpu.memory_space<vmem>>, vector<1x1x128xf32>
    tpu.vector_store %arg6[%c0_8, %c0_9, %c0_10], %10 {strides = array<i32>} : memref<1x1x128xf32, #tpu.memory_space<vmem>>, vector<1x1x128xf32>,
    %12 = arith.mulf %5, %5 : vector<256x128xf32>
    %cst_11 = arith.constant dense<0.000000e+00> : vector<128xf32>
    %13 = vector.multi_reduction <add>, %12, %cst_11 [0] : vector<256x128xf32> to vector<128xf32>
    %14 = vector.shape_cast %13 : vector<128xf32> to vector<1x128xf32>
    %15 = vector.shape_cast %14 : vector<1x128xf32> to vector<1x1x128xf32>
    %c0_12 = arith.constant 0 : index
    %c0_13 = arith.constant 0 : index
    %c0_14 = arith.constant 0 : index
    %16 = vector.load %arg7[%c0_12, %c0_13, %c0_14] : memref<1x1x128xf32, #tpu.memory_space<vmem>>, vector<1x1x128xf32>
    tpu.vector_store %arg7[%c0_12, %c0_13, %c0_14], %15 {strides = array<i32>} : memref<1x1x128xf32, #tpu.memory_space<vmem>>, vector<1x1x128xf32>,
    return
  }
  func.func @transform_0(%arg0: i32, %arg1: i32) -> (i32, i32) {
    %c0_i32 = arith.constant 0 : i32
    %c0_i32_0 = arith.constant 0 : i32
    return %arg0, %c0_i32 : i32, i32
  }
  func.func @transform_1(%arg0: i32, %arg1: i32) -> (i32, i32) {
    %c0_i32 = arith.constant 0 : i32
    %c0_i32_0 = arith.constant 0 : i32
    return %c0_i32, %arg1 : i32, i32
  }
  func.func @transform_2(%arg0: i32, %arg1: i32) -> (i32, i32) {
    %c0_i32 = arith.constant 0 : i32
    %c0_i32_0 = arith.constant 0 : i32
    return %c0_i32, %arg1 : i32, i32
  }
  func.func @transform_3(%arg0: i32, %arg1: i32) -> (i32, i32) {
    %c0_i32 = arith.constant 0 : i32
    return %arg0, %arg1 : i32, i32
  }
  func.func @transform_4(%arg0: i32, %arg1: i32) -> (i32, i32, i32) {
    %c0_i32 = arith.constant 0 : i32
    %c0_i32_0 = arith.constant 0 : i32
    return %arg0, %c0_i32, %arg1 : i32, i32, i32
  }
  func.func @transform_5(%arg0: i32, %arg1: i32) -> (i32, i32, i32) {
    %c0_i32 = arith.constant 0 : i32
    %c0_i32_0 = arith.constant 0 : i32
    return %arg0, %c0_i32, %arg1 : i32, i32, i32
  }
}

module attributes {stable_mosaic.version = 11 : i64} {
  func.func @_bn_act_kernel(%arg0: i32, %arg1: i32, %arg2: memref<256x128xbf16, #tpu.memory_space<vmem>>, %arg3: memref<1x128xf32, #tpu.memory_space<vmem>>, %arg4: memref<1x128xf32, #tpu.memory_space<vmem>>, %arg5: memref<256x128xbf16, #tpu.memory_space<vmem>>) attributes {dimension_semantics = [#tpu.dimension_semantics<parallel>, #tpu.dimension_semantics<parallel>], iteration_bounds = array<i64: 2, 1>, scalar_prefetch = 0 : i64, scratch_operands = 0 : i64, tpu.core_type = #tpu.core_type<tc>, window_params = [{transform_indices = @transform_0, window_bounds = array<i64: 256, 128>}, {transform_indices = @transform_1, window_bounds = array<i64: 1, 128>}, {transform_indices = @transform_2, window_bounds = array<i64: 1, 128>}, {transform_indices = @transform_3, window_bounds = array<i64: 256, 128>}]} {
    %c0 = arith.constant 0 : index
    %c0_0 = arith.constant 0 : index
    %0 = vector.load %arg2[%c0, %c0_0] : memref<256x128xbf16, #tpu.memory_space<vmem>>, vector<256x128xbf16>
    %1 = arith.extf %0 : vector<256x128xbf16> to vector<256x128xf32>
    %c0_1 = arith.constant 0 : index
    %c0_2 = arith.constant 0 : index
    %2 = vector.load %arg3[%c0_1, %c0_2] : memref<1x128xf32, #tpu.memory_space<vmem>>, vector<1x128xf32>
    %3 = vector.broadcast %2 : vector<1x128xf32> to vector<256x128xf32>
    %4 = arith.mulf %1, %3 : vector<256x128xf32>
    %c0_3 = arith.constant 0 : index
    %c0_4 = arith.constant 0 : index
    %5 = vector.load %arg4[%c0_3, %c0_4] : memref<1x128xf32, #tpu.memory_space<vmem>>, vector<1x128xf32>
    %6 = vector.broadcast %5 : vector<1x128xf32> to vector<256x128xf32>
    %7 = arith.addf %4, %6 : vector<256x128xf32>
    %8 = arith.negf %7 : vector<256x128xf32>
    %9 = math.exp %8 : vector<256x128xf32>
    %cst = arith.constant 1.000000e+00 : f32
    %10 = vector.broadcast %cst : f32 to vector<256x128xf32>
    %11 = arith.addf %10, %9 : vector<256x128xf32>
    %12 = arith.divf %10, %11 : vector<256x128xf32>
    %13 = arith.mulf %7, %12 : vector<256x128xf32>
    %14 = arith.truncf %13 : vector<256x128xf32> to vector<256x128xbf16>
    %c0_5 = arith.constant 0 : index
    %c0_6 = arith.constant 0 : index
    %15 = vector.load %arg5[%c0_5, %c0_6] : memref<256x128xbf16, #tpu.memory_space<vmem>>, vector<256x128xbf16>
    tpu.vector_store %arg5[%c0_5, %c0_6], %14 {strides = array<i32>} : memref<256x128xbf16, #tpu.memory_space<vmem>>, vector<256x128xbf16>,
    return
  }
  func.func @transform_0(%arg0: i32, %arg1: i32) -> (i32, i32) {
    %c0_i32 = arith.constant 0 : i32
    return %arg0, %arg1 : i32, i32
  }
  func.func @transform_1(%arg0: i32, %arg1: i32) -> (i32, i32) {
    %c0_i32 = arith.constant 0 : i32
    %c0_i32_0 = arith.constant 0 : i32
    return %c0_i32, %arg1 : i32, i32
  }
  func.func @transform_2(%arg0: i32, %arg1: i32) -> (i32, i32) {
    %c0_i32 = arith.constant 0 : i32
    %c0_i32_0 = arith.constant 0 : i32
    return %c0_i32, %arg1 : i32, i32
  }
  func.func @transform_3(%arg0: i32, %arg1: i32) -> (i32, i32) {
    %c0_i32 = arith.constant 0 : i32
    return %arg0, %arg1 : i32, i32
  }
}

module attributes {stable_mosaic.version = 11 : i64} {
  func.func @_gemm_stats_kernel(%arg0: i32, %arg1: i32, %arg2: memref<128x144xbf16, #tpu.memory_space<vmem>>, %arg3: memref<144x128xbf16, #tpu.memory_space<vmem>>, %arg4: memref<1x128xf32, #tpu.memory_space<vmem>>, %arg5: memref<128x128xbf16, #tpu.memory_space<vmem>>, %arg6: memref<1x1x128xf32, #tpu.memory_space<vmem>>, %arg7: memref<1x1x128xf32, #tpu.memory_space<vmem>>) attributes {dimension_semantics = [#tpu.dimension_semantics<parallel>, #tpu.dimension_semantics<parallel>], iteration_bounds = array<i64: 1, 1>, scalar_prefetch = 0 : i64, scratch_operands = 0 : i64, tpu.core_type = #tpu.core_type<tc>, window_params = [{transform_indices = @transform_0, window_bounds = array<i64: 128, 144>}, {transform_indices = @transform_1, window_bounds = array<i64: 144, 128>}, {transform_indices = @transform_2, window_bounds = array<i64: 1, 128>}, {transform_indices = @transform_3, window_bounds = array<i64: 128, 128>}, {transform_indices = @transform_4, window_bounds = array<i64: 1, 1, 128>}, {transform_indices = @transform_5, window_bounds = array<i64: 1, 1, 128>}]} {
    %c0 = arith.constant 0 : index
    %c0_0 = arith.constant 0 : index
    %0 = vector.load %arg2[%c0, %c0_0] : memref<128x144xbf16, #tpu.memory_space<vmem>>, vector<128x144xbf16>
    %c0_1 = arith.constant 0 : index
    %c0_2 = arith.constant 0 : index
    %1 = vector.load %arg3[%c0_1, %c0_2] : memref<144x128xbf16, #tpu.memory_space<vmem>>, vector<144x128xbf16>
    %cst = arith.constant dense<0.000000e+00> : vector<128x128xf32>
    %2 = tpu.matmul %0, %1, %cst {dimension_numbers = #tpu.dot_dimension_numbers<[1], [0], [0], [1], [0, 0, 1, 1], [], []>} : vector<128x144xbf16>, vector<144x128xbf16>, vector<128x128xf32> -> vector<128x128xf32>
    %c0_3 = arith.constant 0 : index
    %c0_4 = arith.constant 0 : index
    %3 = vector.load %arg4[%c0_3, %c0_4] : memref<1x128xf32, #tpu.memory_space<vmem>>, vector<1x128xf32>
    %4 = vector.broadcast %3 : vector<1x128xf32> to vector<128x128xf32>
    %5 = arith.addf %2, %4 : vector<128x128xf32>
    %6 = arith.truncf %5 : vector<128x128xf32> to vector<128x128xbf16>
    %c0_5 = arith.constant 0 : index
    %c0_6 = arith.constant 0 : index
    %7 = vector.load %arg5[%c0_5, %c0_6] : memref<128x128xbf16, #tpu.memory_space<vmem>>, vector<128x128xbf16>
    tpu.vector_store %arg5[%c0_5, %c0_6], %6 {strides = array<i32>} : memref<128x128xbf16, #tpu.memory_space<vmem>>, vector<128x128xbf16>,
    %cst_7 = arith.constant dense<0.000000e+00> : vector<128xf32>
    %8 = vector.multi_reduction <add>, %5, %cst_7 [0] : vector<128x128xf32> to vector<128xf32>
    %9 = vector.shape_cast %8 : vector<128xf32> to vector<1x128xf32>
    %10 = vector.shape_cast %9 : vector<1x128xf32> to vector<1x1x128xf32>
    %c0_8 = arith.constant 0 : index
    %c0_9 = arith.constant 0 : index
    %c0_10 = arith.constant 0 : index
    %11 = vector.load %arg6[%c0_8, %c0_9, %c0_10] : memref<1x1x128xf32, #tpu.memory_space<vmem>>, vector<1x1x128xf32>
    tpu.vector_store %arg6[%c0_8, %c0_9, %c0_10], %10 {strides = array<i32>} : memref<1x1x128xf32, #tpu.memory_space<vmem>>, vector<1x1x128xf32>,
    %12 = arith.mulf %5, %5 : vector<128x128xf32>
    %cst_11 = arith.constant dense<0.000000e+00> : vector<128xf32>
    %13 = vector.multi_reduction <add>, %12, %cst_11 [0] : vector<128x128xf32> to vector<128xf32>
    %14 = vector.shape_cast %13 : vector<128xf32> to vector<1x128xf32>
    %15 = vector.shape_cast %14 : vector<1x128xf32> to vector<1x1x128xf32>
    %c0_12 = arith.constant 0 : index
    %c0_13 = arith.constant 0 : index
    %c0_14 = arith.constant 0 : index
    %16 = vector.load %arg7[%c0_12, %c0_13, %c0_14] : memref<1x1x128xf32, #tpu.memory_space<vmem>>, vector<1x1x128xf32>
    tpu.vector_store %arg7[%c0_12, %c0_13, %c0_14], %15 {strides = array<i32>} : memref<1x1x128xf32, #tpu.memory_space<vmem>>, vector<1x1x128xf32>,
    return
  }
  func.func @transform_0(%arg0: i32, %arg1: i32) -> (i32, i32) {
    %c0_i32 = arith.constant 0 : i32
    %c0_i32_0 = arith.constant 0 : i32
    return %arg0, %c0_i32 : i32, i32
  }
  func.func @transform_1(%arg0: i32, %arg1: i32) -> (i32, i32) {
    %c0_i32 = arith.constant 0 : i32
    %c0_i32_0 = arith.constant 0 : i32
    return %c0_i32, %arg1 : i32, i32
  }
  func.func @transform_2(%arg0: i32, %arg1: i32) -> (i32, i32) {
    %c0_i32 = arith.constant 0 : i32
    %c0_i32_0 = arith.constant 0 : i32
    return %c0_i32, %arg1 : i32, i32
  }
  func.func @transform_3(%arg0: i32, %arg1: i32) -> (i32, i32) {
    %c0_i32 = arith.constant 0 : i32
    return %arg0, %arg1 : i32, i32
  }
  func.func @transform_4(%arg0: i32, %arg1: i32) -> (i32, i32, i32) {
    %c0_i32 = arith.constant 0 : i32
    %c0_i32_0 = arith.constant 0 : i32
    return %arg0, %c0_i32, %arg1 : i32, i32, i32
  }
  func.func @transform_5(%arg0: i32, %arg1: i32) -> (i32, i32, i32) {
    %c0_i32 = arith.constant 0 : i32
    %c0_i32_0 = arith.constant 0 : i32
    return %arg0, %c0_i32, %arg1 : i32, i32, i32
  }
}

module attributes {stable_mosaic.version = 11 : i64} {
  func.func @_bn_act_kernel(%arg0: i32, %arg1: i32, %arg2: memref<128x128xbf16, #tpu.memory_space<vmem>>, %arg3: memref<1x128xf32, #tpu.memory_space<vmem>>, %arg4: memref<1x128xf32, #tpu.memory_space<vmem>>, %arg5: memref<128x128xbf16, #tpu.memory_space<vmem>>) attributes {dimension_semantics = [#tpu.dimension_semantics<parallel>, #tpu.dimension_semantics<parallel>], iteration_bounds = array<i64: 1, 1>, scalar_prefetch = 0 : i64, scratch_operands = 0 : i64, tpu.core_type = #tpu.core_type<tc>, window_params = [{transform_indices = @transform_0, window_bounds = array<i64: 128, 128>}, {transform_indices = @transform_1, window_bounds = array<i64: 1, 128>}, {transform_indices = @transform_2, window_bounds = array<i64: 1, 128>}, {transform_indices = @transform_3, window_bounds = array<i64: 128, 128>}]} {
    %c0 = arith.constant 0 : index
    %c0_0 = arith.constant 0 : index
    %0 = vector.load %arg2[%c0, %c0_0] : memref<128x128xbf16, #tpu.memory_space<vmem>>, vector<128x128xbf16>
    %1 = arith.extf %0 : vector<128x128xbf16> to vector<128x128xf32>
    %c0_1 = arith.constant 0 : index
    %c0_2 = arith.constant 0 : index
    %2 = vector.load %arg3[%c0_1, %c0_2] : memref<1x128xf32, #tpu.memory_space<vmem>>, vector<1x128xf32>
    %3 = vector.broadcast %2 : vector<1x128xf32> to vector<128x128xf32>
    %4 = arith.mulf %1, %3 : vector<128x128xf32>
    %c0_3 = arith.constant 0 : index
    %c0_4 = arith.constant 0 : index
    %5 = vector.load %arg4[%c0_3, %c0_4] : memref<1x128xf32, #tpu.memory_space<vmem>>, vector<1x128xf32>
    %6 = vector.broadcast %5 : vector<1x128xf32> to vector<128x128xf32>
    %7 = arith.addf %4, %6 : vector<128x128xf32>
    %8 = arith.negf %7 : vector<128x128xf32>
    %9 = math.exp %8 : vector<128x128xf32>
    %cst = arith.constant 1.000000e+00 : f32
    %10 = vector.broadcast %cst : f32 to vector<128x128xf32>
    %11 = arith.addf %10, %9 : vector<128x128xf32>
    %12 = arith.divf %10, %11 : vector<128x128xf32>
    %13 = arith.mulf %7, %12 : vector<128x128xf32>
    %14 = arith.truncf %13 : vector<128x128xf32> to vector<128x128xbf16>
    %c0_5 = arith.constant 0 : index
    %c0_6 = arith.constant 0 : index
    %15 = vector.load %arg5[%c0_5, %c0_6] : memref<128x128xbf16, #tpu.memory_space<vmem>>, vector<128x128xbf16>
    tpu.vector_store %arg5[%c0_5, %c0_6], %14 {strides = array<i32>} : memref<128x128xbf16, #tpu.memory_space<vmem>>, vector<128x128xbf16>,
    return
  }
  func.func @transform_0(%arg0: i32, %arg1: i32) -> (i32, i32) {
    %c0_i32 = arith.constant 0 : i32
    return %arg0, %arg1 : i32, i32
  }
  func.func @transform_1(%arg0: i32, %arg1: i32) -> (i32, i32) {
    %c0_i32 = arith.constant 0 : i32
    %c0_i32_0 = arith.constant 0 : i32
    return %c0_i32, %arg1 : i32, i32
  }
  func.func @transform_2(%arg0: i32, %arg1: i32) -> (i32, i32) {
    %c0_i32 = arith.constant 0 : i32
    %c0_i32_0 = arith.constant 0 : i32
    return %c0_i32, %arg1 : i32, i32
  }
  func.func @transform_3(%arg0: i32, %arg1: i32) -> (i32, i32) {
    %c0_i32 = arith.constant 0 : i32
    return %arg0, %arg1 : i32, i32
  }
}

module attributes {stable_mosaic.version = 11 : i64} {
  func.func @_gemm_stats_kernel(%arg0: i32, %arg1: i32, %arg2: memref<32x288xbf16, #tpu.memory_space<vmem>>, %arg3: memref<288x128xbf16, #tpu.memory_space<vmem>>, %arg4: memref<1x128xf32, #tpu.memory_space<vmem>>, %arg5: memref<32x128xbf16, #tpu.memory_space<vmem>>, %arg6: memref<1x1x128xf32, #tpu.memory_space<vmem>>, %arg7: memref<1x1x128xf32, #tpu.memory_space<vmem>>) attributes {dimension_semantics = [#tpu.dimension_semantics<parallel>, #tpu.dimension_semantics<parallel>], iteration_bounds = array<i64: 1, 1>, scalar_prefetch = 0 : i64, scratch_operands = 0 : i64, tpu.core_type = #tpu.core_type<tc>, window_params = [{transform_indices = @transform_0, window_bounds = array<i64: 32, 288>}, {transform_indices = @transform_1, window_bounds = array<i64: 288, 128>}, {transform_indices = @transform_2, window_bounds = array<i64: 1, 128>}, {transform_indices = @transform_3, window_bounds = array<i64: 32, 128>}, {transform_indices = @transform_4, window_bounds = array<i64: 1, 1, 128>}, {transform_indices = @transform_5, window_bounds = array<i64: 1, 1, 128>}]} {
    %c0 = arith.constant 0 : index
    %c0_0 = arith.constant 0 : index
    %0 = vector.load %arg2[%c0, %c0_0] : memref<32x288xbf16, #tpu.memory_space<vmem>>, vector<32x288xbf16>
    %c0_1 = arith.constant 0 : index
    %c0_2 = arith.constant 0 : index
    %1 = vector.load %arg3[%c0_1, %c0_2] : memref<288x128xbf16, #tpu.memory_space<vmem>>, vector<288x128xbf16>
    %cst = arith.constant dense<0.000000e+00> : vector<32x128xf32>
    %2 = tpu.matmul %0, %1, %cst {dimension_numbers = #tpu.dot_dimension_numbers<[1], [0], [0], [1], [0, 0, 1, 1], [], []>} : vector<32x288xbf16>, vector<288x128xbf16>, vector<32x128xf32> -> vector<32x128xf32>
    %c0_3 = arith.constant 0 : index
    %c0_4 = arith.constant 0 : index
    %3 = vector.load %arg4[%c0_3, %c0_4] : memref<1x128xf32, #tpu.memory_space<vmem>>, vector<1x128xf32>
    %4 = vector.broadcast %3 : vector<1x128xf32> to vector<32x128xf32>
    %5 = arith.addf %2, %4 : vector<32x128xf32>
    %6 = arith.truncf %5 : vector<32x128xf32> to vector<32x128xbf16>
    %c0_5 = arith.constant 0 : index
    %c0_6 = arith.constant 0 : index
    %7 = vector.load %arg5[%c0_5, %c0_6] : memref<32x128xbf16, #tpu.memory_space<vmem>>, vector<32x128xbf16>
    tpu.vector_store %arg5[%c0_5, %c0_6], %6 {strides = array<i32>} : memref<32x128xbf16, #tpu.memory_space<vmem>>, vector<32x128xbf16>,
    %cst_7 = arith.constant dense<0.000000e+00> : vector<128xf32>
    %8 = vector.multi_reduction <add>, %5, %cst_7 [0] : vector<32x128xf32> to vector<128xf32>
    %9 = vector.shape_cast %8 : vector<128xf32> to vector<1x128xf32>
    %10 = vector.shape_cast %9 : vector<1x128xf32> to vector<1x1x128xf32>
    %c0_8 = arith.constant 0 : index
    %c0_9 = arith.constant 0 : index
    %c0_10 = arith.constant 0 : index
    %11 = vector.load %arg6[%c0_8, %c0_9, %c0_10] : memref<1x1x128xf32, #tpu.memory_space<vmem>>, vector<1x1x128xf32>
    tpu.vector_store %arg6[%c0_8, %c0_9, %c0_10], %10 {strides = array<i32>} : memref<1x1x128xf32, #tpu.memory_space<vmem>>, vector<1x1x128xf32>,
    %12 = arith.mulf %5, %5 : vector<32x128xf32>
    %cst_11 = arith.constant dense<0.000000e+00> : vector<128xf32>
    %13 = vector.multi_reduction <add>, %12, %cst_11 [0] : vector<32x128xf32> to vector<128xf32>
    %14 = vector.shape_cast %13 : vector<128xf32> to vector<1x128xf32>
    %15 = vector.shape_cast %14 : vector<1x128xf32> to vector<1x1x128xf32>
    %c0_12 = arith.constant 0 : index
    %c0_13 = arith.constant 0 : index
    %c0_14 = arith.constant 0 : index
    %16 = vector.load %arg7[%c0_12, %c0_13, %c0_14] : memref<1x1x128xf32, #tpu.memory_space<vmem>>, vector<1x1x128xf32>
    tpu.vector_store %arg7[%c0_12, %c0_13, %c0_14], %15 {strides = array<i32>} : memref<1x1x128xf32, #tpu.memory_space<vmem>>, vector<1x1x128xf32>,
    return
  }
  func.func @transform_0(%arg0: i32, %arg1: i32) -> (i32, i32) {
    %c0_i32 = arith.constant 0 : i32
    %c0_i32_0 = arith.constant 0 : i32
    return %arg0, %c0_i32 : i32, i32
  }
  func.func @transform_1(%arg0: i32, %arg1: i32) -> (i32, i32) {
    %c0_i32 = arith.constant 0 : i32
    %c0_i32_0 = arith.constant 0 : i32
    return %c0_i32, %arg1 : i32, i32
  }
  func.func @transform_2(%arg0: i32, %arg1: i32) -> (i32, i32) {
    %c0_i32 = arith.constant 0 : i32
    %c0_i32_0 = arith.constant 0 : i32
    return %c0_i32, %arg1 : i32, i32
  }
  func.func @transform_3(%arg0: i32, %arg1: i32) -> (i32, i32) {
    %c0_i32 = arith.constant 0 : i32
    return %arg0, %arg1 : i32, i32
  }
  func.func @transform_4(%arg0: i32, %arg1: i32) -> (i32, i32, i32) {
    %c0_i32 = arith.constant 0 : i32
    %c0_i32_0 = arith.constant 0 : i32
    return %arg0, %c0_i32, %arg1 : i32, i32, i32
  }
  func.func @transform_5(%arg0: i32, %arg1: i32) -> (i32, i32, i32) {
    %c0_i32 = arith.constant 0 : i32
    %c0_i32_0 = arith.constant 0 : i32
    return %arg0, %c0_i32, %arg1 : i32, i32, i32
  }
}

module attributes {stable_mosaic.version = 11 : i64} {
  func.func @_gemm_stats_kernel(%arg0: i32, %arg1: i32, %arg2: memref<32x576xbf16, #tpu.memory_space<vmem>>, %arg3: memref<576x128xbf16, #tpu.memory_space<vmem>>, %arg4: memref<1x128xf32, #tpu.memory_space<vmem>>, %arg5: memref<32x128xbf16, #tpu.memory_space<vmem>>, %arg6: memref<1x1x128xf32, #tpu.memory_space<vmem>>, %arg7: memref<1x1x128xf32, #tpu.memory_space<vmem>>) attributes {dimension_semantics = [#tpu.dimension_semantics<parallel>, #tpu.dimension_semantics<parallel>], iteration_bounds = array<i64: 1, 1>, scalar_prefetch = 0 : i64, scratch_operands = 0 : i64, tpu.core_type = #tpu.core_type<tc>, window_params = [{transform_indices = @transform_0, window_bounds = array<i64: 32, 576>}, {transform_indices = @transform_1, window_bounds = array<i64: 576, 128>}, {transform_indices = @transform_2, window_bounds = array<i64: 1, 128>}, {transform_indices = @transform_3, window_bounds = array<i64: 32, 128>}, {transform_indices = @transform_4, window_bounds = array<i64: 1, 1, 128>}, {transform_indices = @transform_5, window_bounds = array<i64: 1, 1, 128>}]} {
    %c0 = arith.constant 0 : index
    %c0_0 = arith.constant 0 : index
    %0 = vector.load %arg2[%c0, %c0_0] : memref<32x576xbf16, #tpu.memory_space<vmem>>, vector<32x576xbf16>
    %c0_1 = arith.constant 0 : index
    %c0_2 = arith.constant 0 : index
    %1 = vector.load %arg3[%c0_1, %c0_2] : memref<576x128xbf16, #tpu.memory_space<vmem>>, vector<576x128xbf16>
    %cst = arith.constant dense<0.000000e+00> : vector<32x128xf32>
    %2 = tpu.matmul %0, %1, %cst {dimension_numbers = #tpu.dot_dimension_numbers<[1], [0], [0], [1], [0, 0, 1, 1], [], []>} : vector<32x576xbf16>, vector<576x128xbf16>, vector<32x128xf32> -> vector<32x128xf32>
    %c0_3 = arith.constant 0 : index
    %c0_4 = arith.constant 0 : index
    %3 = vector.load %arg4[%c0_3, %c0_4] : memref<1x128xf32, #tpu.memory_space<vmem>>, vector<1x128xf32>
    %4 = vector.broadcast %3 : vector<1x128xf32> to vector<32x128xf32>
    %5 = arith.addf %2, %4 : vector<32x128xf32>
    %6 = arith.truncf %5 : vector<32x128xf32> to vector<32x128xbf16>
    %c0_5 = arith.constant 0 : index
    %c0_6 = arith.constant 0 : index
    %7 = vector.load %arg5[%c0_5, %c0_6] : memref<32x128xbf16, #tpu.memory_space<vmem>>, vector<32x128xbf16>
    tpu.vector_store %arg5[%c0_5, %c0_6], %6 {strides = array<i32>} : memref<32x128xbf16, #tpu.memory_space<vmem>>, vector<32x128xbf16>,
    %cst_7 = arith.constant dense<0.000000e+00> : vector<128xf32>
    %8 = vector.multi_reduction <add>, %5, %cst_7 [0] : vector<32x128xf32> to vector<128xf32>
    %9 = vector.shape_cast %8 : vector<128xf32> to vector<1x128xf32>
    %10 = vector.shape_cast %9 : vector<1x128xf32> to vector<1x1x128xf32>
    %c0_8 = arith.constant 0 : index
    %c0_9 = arith.constant 0 : index
    %c0_10 = arith.constant 0 : index
    %11 = vector.load %arg6[%c0_8, %c0_9, %c0_10] : memref<1x1x128xf32, #tpu.memory_space<vmem>>, vector<1x1x128xf32>
    tpu.vector_store %arg6[%c0_8, %c0_9, %c0_10], %10 {strides = array<i32>} : memref<1x1x128xf32, #tpu.memory_space<vmem>>, vector<1x1x128xf32>,
    %12 = arith.mulf %5, %5 : vector<32x128xf32>
    %cst_11 = arith.constant dense<0.000000e+00> : vector<128xf32>
    %13 = vector.multi_reduction <add>, %12, %cst_11 [0] : vector<32x128xf32> to vector<128xf32>
    %14 = vector.shape_cast %13 : vector<128xf32> to vector<1x128xf32>
    %15 = vector.shape_cast %14 : vector<1x128xf32> to vector<1x1x128xf32>
    %c0_12 = arith.constant 0 : index
    %c0_13 = arith.constant 0 : index
    %c0_14 = arith.constant 0 : index
    %16 = vector.load %arg7[%c0_12, %c0_13, %c0_14] : memref<1x1x128xf32, #tpu.memory_space<vmem>>, vector<1x1x128xf32>
    tpu.vector_store %arg7[%c0_12, %c0_13, %c0_14], %15 {strides = array<i32>} : memref<1x1x128xf32, #tpu.memory_space<vmem>>, vector<1x1x128xf32>,
    return
  }
  func.func @transform_0(%arg0: i32, %arg1: i32) -> (i32, i32) {
    %c0_i32 = arith.constant 0 : i32
    %c0_i32_0 = arith.constant 0 : i32
    return %arg0, %c0_i32 : i32, i32
  }
  func.func @transform_1(%arg0: i32, %arg1: i32) -> (i32, i32) {
    %c0_i32 = arith.constant 0 : i32
    %c0_i32_0 = arith.constant 0 : i32
    return %c0_i32, %arg1 : i32, i32
  }
  func.func @transform_2(%arg0: i32, %arg1: i32) -> (i32, i32) {
    %c0_i32 = arith.constant 0 : i32
    %c0_i32_0 = arith.constant 0 : i32
    return %c0_i32, %arg1 : i32, i32
  }
  func.func @transform_3(%arg0: i32, %arg1: i32) -> (i32, i32) {
    %c0_i32 = arith.constant 0 : i32
    return %arg0, %arg1 : i32, i32
  }
  func.func @transform_4(%arg0: i32, %arg1: i32) -> (i32, i32, i32) {
    %c0_i32 = arith.constant 0 : i32
    %c0_i32_0 = arith.constant 0 : i32
    return %arg0, %c0_i32, %arg1 : i32, i32, i32
  }
  func.func @transform_5(%arg0: i32, %arg1: i32) -> (i32, i32, i32) {
    %c0_i32 = arith.constant 0 : i32
    %c0_i32_0 = arith.constant 0 : i32
    return %arg0, %c0_i32, %arg1 : i32, i32, i32
  }
}

module attributes {stable_mosaic.version = 11 : i64} {
  func.func @_bn_act_kernel(%arg0: i32, %arg1: i32, %arg2: memref<32x128xbf16, #tpu.memory_space<vmem>>, %arg3: memref<1x128xf32, #tpu.memory_space<vmem>>, %arg4: memref<1x128xf32, #tpu.memory_space<vmem>>, %arg5: memref<32x128xbf16, #tpu.memory_space<vmem>>) attributes {dimension_semantics = [#tpu.dimension_semantics<parallel>, #tpu.dimension_semantics<parallel>], iteration_bounds = array<i64: 1, 1>, scalar_prefetch = 0 : i64, scratch_operands = 0 : i64, tpu.core_type = #tpu.core_type<tc>, window_params = [{transform_indices = @transform_0, window_bounds = array<i64: 32, 128>}, {transform_indices = @transform_1, window_bounds = array<i64: 1, 128>}, {transform_indices = @transform_2, window_bounds = array<i64: 1, 128>}, {transform_indices = @transform_3, window_bounds = array<i64: 32, 128>}]} {
    %c0 = arith.constant 0 : index
    %c0_0 = arith.constant 0 : index
    %0 = vector.load %arg2[%c0, %c0_0] : memref<32x128xbf16, #tpu.memory_space<vmem>>, vector<32x128xbf16>
    %1 = arith.extf %0 : vector<32x128xbf16> to vector<32x128xf32>
    %c0_1 = arith.constant 0 : index
    %c0_2 = arith.constant 0 : index
    %2 = vector.load %arg3[%c0_1, %c0_2] : memref<1x128xf32, #tpu.memory_space<vmem>>, vector<1x128xf32>
    %3 = vector.broadcast %2 : vector<1x128xf32> to vector<32x128xf32>
    %4 = arith.mulf %1, %3 : vector<32x128xf32>
    %c0_3 = arith.constant 0 : index
    %c0_4 = arith.constant 0 : index
    %5 = vector.load %arg4[%c0_3, %c0_4] : memref<1x128xf32, #tpu.memory_space<vmem>>, vector<1x128xf32>
    %6 = vector.broadcast %5 : vector<1x128xf32> to vector<32x128xf32>
    %7 = arith.addf %4, %6 : vector<32x128xf32>
    %8 = arith.negf %7 : vector<32x128xf32>
    %9 = math.exp %8 : vector<32x128xf32>
    %cst = arith.constant 1.000000e+00 : f32
    %10 = vector.broadcast %cst : f32 to vector<32x128xf32>
    %11 = arith.addf %10, %9 : vector<32x128xf32>
    %12 = arith.divf %10, %11 : vector<32x128xf32>
    %13 = arith.mulf %7, %12 : vector<32x128xf32>
    %14 = arith.truncf %13 : vector<32x128xf32> to vector<32x128xbf16>
    %c0_5 = arith.constant 0 : index
    %c0_6 = arith.constant 0 : index
    %15 = vector.load %arg5[%c0_5, %c0_6] : memref<32x128xbf16, #tpu.memory_space<vmem>>, vector<32x128xbf16>
    tpu.vector_store %arg5[%c0_5, %c0_6], %14 {strides = array<i32>} : memref<32x128xbf16, #tpu.memory_space<vmem>>, vector<32x128xbf16>,
    return
  }
  func.func @transform_0(%arg0: i32, %arg1: i32) -> (i32, i32) {
    %c0_i32 = arith.constant 0 : i32
    return %arg0, %arg1 : i32, i32
  }
  func.func @transform_1(%arg0: i32, %arg1: i32) -> (i32, i32) {
    %c0_i32 = arith.constant 0 : i32
    %c0_i32_0 = arith.constant 0 : i32
    return %c0_i32, %arg1 : i32, i32
  }
  func.func @transform_2(%arg0: i32, %arg1: i32) -> (i32, i32) {
    %c0_i32 = arith.constant 0 : i32
    %c0_i32_0 = arith.constant 0 : i32
    return %c0_i32, %arg1 : i32, i32
  }
  func.func @transform_3(%arg0: i32, %arg1: i32) -> (i32, i32) {
    %c0_i32 = arith.constant 0 : i32
    return %arg0, %arg1 : i32, i32
  }
}

module attributes {stable_mosaic.version = 11 : i64} {
  func.func @_gemm_stats_kernel(%arg0: i32, %arg1: i32, %arg2: memref<32x256xbf16, #tpu.memory_space<vmem>>, %arg3: memref<256x128xbf16, #tpu.memory_space<vmem>>, %arg4: memref<1x128xf32, #tpu.memory_space<vmem>>, %arg5: memref<32x128xbf16, #tpu.memory_space<vmem>>, %arg6: memref<1x1x128xf32, #tpu.memory_space<vmem>>, %arg7: memref<1x1x128xf32, #tpu.memory_space<vmem>>) attributes {dimension_semantics = [#tpu.dimension_semantics<parallel>, #tpu.dimension_semantics<parallel>], iteration_bounds = array<i64: 1, 1>, scalar_prefetch = 0 : i64, scratch_operands = 0 : i64, tpu.core_type = #tpu.core_type<tc>, window_params = [{transform_indices = @transform_0, window_bounds = array<i64: 32, 256>}, {transform_indices = @transform_1, window_bounds = array<i64: 256, 128>}, {transform_indices = @transform_2, window_bounds = array<i64: 1, 128>}, {transform_indices = @transform_3, window_bounds = array<i64: 32, 128>}, {transform_indices = @transform_4, window_bounds = array<i64: 1, 1, 128>}, {transform_indices = @transform_5, window_bounds = array<i64: 1, 1, 128>}]} {
    %c0 = arith.constant 0 : index
    %c0_0 = arith.constant 0 : index
    %0 = vector.load %arg2[%c0, %c0_0] : memref<32x256xbf16, #tpu.memory_space<vmem>>, vector<32x256xbf16>
    %c0_1 = arith.constant 0 : index
    %c0_2 = arith.constant 0 : index
    %1 = vector.load %arg3[%c0_1, %c0_2] : memref<256x128xbf16, #tpu.memory_space<vmem>>, vector<256x128xbf16>
    %cst = arith.constant dense<0.000000e+00> : vector<32x128xf32>
    %2 = tpu.matmul %0, %1, %cst {dimension_numbers = #tpu.dot_dimension_numbers<[1], [0], [0], [1], [0, 0, 1, 1], [], []>} : vector<32x256xbf16>, vector<256x128xbf16>, vector<32x128xf32> -> vector<32x128xf32>
    %c0_3 = arith.constant 0 : index
    %c0_4 = arith.constant 0 : index
    %3 = vector.load %arg4[%c0_3, %c0_4] : memref<1x128xf32, #tpu.memory_space<vmem>>, vector<1x128xf32>
    %4 = vector.broadcast %3 : vector<1x128xf32> to vector<32x128xf32>
    %5 = arith.addf %2, %4 : vector<32x128xf32>
    %6 = arith.truncf %5 : vector<32x128xf32> to vector<32x128xbf16>
    %c0_5 = arith.constant 0 : index
    %c0_6 = arith.constant 0 : index
    %7 = vector.load %arg5[%c0_5, %c0_6] : memref<32x128xbf16, #tpu.memory_space<vmem>>, vector<32x128xbf16>
    tpu.vector_store %arg5[%c0_5, %c0_6], %6 {strides = array<i32>} : memref<32x128xbf16, #tpu.memory_space<vmem>>, vector<32x128xbf16>,
    %cst_7 = arith.constant dense<0.000000e+00> : vector<128xf32>
    %8 = vector.multi_reduction <add>, %5, %cst_7 [0] : vector<32x128xf32> to vector<128xf32>
    %9 = vector.shape_cast %8 : vector<128xf32> to vector<1x128xf32>
    %10 = vector.shape_cast %9 : vector<1x128xf32> to vector<1x1x128xf32>
    %c0_8 = arith.constant 0 : index
    %c0_9 = arith.constant 0 : index
    %c0_10 = arith.constant 0 : index
    %11 = vector.load %arg6[%c0_8, %c0_9, %c0_10] : memref<1x1x128xf32, #tpu.memory_space<vmem>>, vector<1x1x128xf32>
    tpu.vector_store %arg6[%c0_8, %c0_9, %c0_10], %10 {strides = array<i32>} : memref<1x1x128xf32, #tpu.memory_space<vmem>>, vector<1x1x128xf32>,
    %12 = arith.mulf %5, %5 : vector<32x128xf32>
    %cst_11 = arith.constant dense<0.000000e+00> : vector<128xf32>
    %13 = vector.multi_reduction <add>, %12, %cst_11 [0] : vector<32x128xf32> to vector<128xf32>
    %14 = vector.shape_cast %13 : vector<128xf32> to vector<1x128xf32>
    %15 = vector.shape_cast %14 : vector<1x128xf32> to vector<1x1x128xf32>
    %c0_12 = arith.constant 0 : index
    %c0_13 = arith.constant 0 : index
    %c0_14 = arith.constant 0 : index
    %16 = vector.load %arg7[%c0_12, %c0_13, %c0_14] : memref<1x1x128xf32, #tpu.memory_space<vmem>>, vector<1x1x128xf32>
    tpu.vector_store %arg7[%c0_12, %c0_13, %c0_14], %15 {strides = array<i32>} : memref<1x1x128xf32, #tpu.memory_space<vmem>>, vector<1x1x128xf32>,
    return
  }
  func.func @transform_0(%arg0: i32, %arg1: i32) -> (i32, i32) {
    %c0_i32 = arith.constant 0 : i32
    %c0_i32_0 = arith.constant 0 : i32
    return %arg0, %c0_i32 : i32, i32
  }
  func.func @transform_1(%arg0: i32, %arg1: i32) -> (i32, i32) {
    %c0_i32 = arith.constant 0 : i32
    %c0_i32_0 = arith.constant 0 : i32
    return %c0_i32, %arg1 : i32, i32
  }
  func.func @transform_2(%arg0: i32, %arg1: i32) -> (i32, i32) {
    %c0_i32 = arith.constant 0 : i32
    %c0_i32_0 = arith.constant 0 : i32
    return %c0_i32, %arg1 : i32, i32
  }
  func.func @transform_3(%arg0: i32, %arg1: i32) -> (i32, i32) {
    %c0_i32 = arith.constant 0 : i32
    return %arg0, %arg1 : i32, i32
  }
  func.func @transform_4(%arg0: i32, %arg1: i32) -> (i32, i32, i32) {
    %c0_i32 = arith.constant 0 : i32
    %c0_i32_0 = arith.constant 0 : i32
    return %arg0, %c0_i32, %arg1 : i32, i32, i32
  }
  func.func @transform_5(%arg0: i32, %arg1: i32) -> (i32, i32, i32) {
    %c0_i32 = arith.constant 0 : i32
    %c0_i32_0 = arith.constant 0 : i32
    return %arg0, %c0_i32, %arg1 : i32, i32, i32
  }
}

module attributes {stable_mosaic.version = 11 : i64} {
  func.func @_gemm_stats_kernel(%arg0: i32, %arg1: i32, %arg2: memref<128x128xbf16, #tpu.memory_space<vmem>>, %arg3: memref<128x128xbf16, #tpu.memory_space<vmem>>, %arg4: memref<1x128xf32, #tpu.memory_space<vmem>>, %arg5: memref<128x128xbf16, #tpu.memory_space<vmem>>, %arg6: memref<1x1x128xf32, #tpu.memory_space<vmem>>, %arg7: memref<1x1x128xf32, #tpu.memory_space<vmem>>) attributes {dimension_semantics = [#tpu.dimension_semantics<parallel>, #tpu.dimension_semantics<parallel>], iteration_bounds = array<i64: 1, 1>, scalar_prefetch = 0 : i64, scratch_operands = 0 : i64, tpu.core_type = #tpu.core_type<tc>, window_params = [{transform_indices = @transform_0, window_bounds = array<i64: 128, 128>}, {transform_indices = @transform_1, window_bounds = array<i64: 128, 128>}, {transform_indices = @transform_2, window_bounds = array<i64: 1, 128>}, {transform_indices = @transform_3, window_bounds = array<i64: 128, 128>}, {transform_indices = @transform_4, window_bounds = array<i64: 1, 1, 128>}, {transform_indices = @transform_5, window_bounds = array<i64: 1, 1, 128>}]} {
    %c0 = arith.constant 0 : index
    %c0_0 = arith.constant 0 : index
    %0 = vector.load %arg2[%c0, %c0_0] : memref<128x128xbf16, #tpu.memory_space<vmem>>, vector<128x128xbf16>
    %c0_1 = arith.constant 0 : index
    %c0_2 = arith.constant 0 : index
    %1 = vector.load %arg3[%c0_1, %c0_2] : memref<128x128xbf16, #tpu.memory_space<vmem>>, vector<128x128xbf16>
    %cst = arith.constant dense<0.000000e+00> : vector<128x128xf32>
    %2 = tpu.matmul %0, %1, %cst {dimension_numbers = #tpu.dot_dimension_numbers<[1], [0], [0], [1], [0, 0, 1, 1], [], []>} : vector<128x128xbf16>, vector<128x128xbf16>, vector<128x128xf32> -> vector<128x128xf32>
    %c0_3 = arith.constant 0 : index
    %c0_4 = arith.constant 0 : index
    %3 = vector.load %arg4[%c0_3, %c0_4] : memref<1x128xf32, #tpu.memory_space<vmem>>, vector<1x128xf32>
    %4 = vector.broadcast %3 : vector<1x128xf32> to vector<128x128xf32>
    %5 = arith.addf %2, %4 : vector<128x128xf32>
    %6 = arith.truncf %5 : vector<128x128xf32> to vector<128x128xbf16>
    %c0_5 = arith.constant 0 : index
    %c0_6 = arith.constant 0 : index
    %7 = vector.load %arg5[%c0_5, %c0_6] : memref<128x128xbf16, #tpu.memory_space<vmem>>, vector<128x128xbf16>
    tpu.vector_store %arg5[%c0_5, %c0_6], %6 {strides = array<i32>} : memref<128x128xbf16, #tpu.memory_space<vmem>>, vector<128x128xbf16>,
    %cst_7 = arith.constant dense<0.000000e+00> : vector<128xf32>
    %8 = vector.multi_reduction <add>, %5, %cst_7 [0] : vector<128x128xf32> to vector<128xf32>
    %9 = vector.shape_cast %8 : vector<128xf32> to vector<1x128xf32>
    %10 = vector.shape_cast %9 : vector<1x128xf32> to vector<1x1x128xf32>
    %c0_8 = arith.constant 0 : index
    %c0_9 = arith.constant 0 : index
    %c0_10 = arith.constant 0 : index
    %11 = vector.load %arg6[%c0_8, %c0_9, %c0_10] : memref<1x1x128xf32, #tpu.memory_space<vmem>>, vector<1x1x128xf32>
    tpu.vector_store %arg6[%c0_8, %c0_9, %c0_10], %10 {strides = array<i32>} : memref<1x1x128xf32, #tpu.memory_space<vmem>>, vector<1x1x128xf32>,
    %12 = arith.mulf %5, %5 : vector<128x128xf32>
    %cst_11 = arith.constant dense<0.000000e+00> : vector<128xf32>
    %13 = vector.multi_reduction <add>, %12, %cst_11 [0] : vector<128x128xf32> to vector<128xf32>
    %14 = vector.shape_cast %13 : vector<128xf32> to vector<1x128xf32>
    %15 = vector.shape_cast %14 : vector<1x128xf32> to vector<1x1x128xf32>
    %c0_12 = arith.constant 0 : index
    %c0_13 = arith.constant 0 : index
    %c0_14 = arith.constant 0 : index
    %16 = vector.load %arg7[%c0_12, %c0_13, %c0_14] : memref<1x1x128xf32, #tpu.memory_space<vmem>>, vector<1x1x128xf32>
    tpu.vector_store %arg7[%c0_12, %c0_13, %c0_14], %15 {strides = array<i32>} : memref<1x1x128xf32, #tpu.memory_space<vmem>>, vector<1x1x128xf32>,
    return
  }
  func.func @transform_0(%arg0: i32, %arg1: i32) -> (i32, i32) {
    %c0_i32 = arith.constant 0 : i32
    %c0_i32_0 = arith.constant 0 : i32
    return %arg0, %c0_i32 : i32, i32
  }
  func.func @transform_1(%arg0: i32, %arg1: i32) -> (i32, i32) {
    %c0_i32 = arith.constant 0 : i32
    %c0_i32_0 = arith.constant 0 : i32
    return %c0_i32, %arg1 : i32, i32
  }
  func.func @transform_2(%arg0: i32, %arg1: i32) -> (i32, i32) {
    %c0_i32 = arith.constant 0 : i32
    %c0_i32_0 = arith.constant 0 : i32
    return %c0_i32, %arg1 : i32, i32
  }
  func.func @transform_3(%arg0: i32, %arg1: i32) -> (i32, i32) {
    %c0_i32 = arith.constant 0 : i32
    return %arg0, %arg1 : i32, i32
  }
  func.func @transform_4(%arg0: i32, %arg1: i32) -> (i32, i32, i32) {
    %c0_i32 = arith.constant 0 : i32
    %c0_i32_0 = arith.constant 0 : i32
    return %arg0, %c0_i32, %arg1 : i32, i32, i32
  }
  func.func @transform_5(%arg0: i32, %arg1: i32) -> (i32, i32, i32) {
    %c0_i32 = arith.constant 0 : i32
    %c0_i32_0 = arith.constant 0 : i32
    return %arg0, %c0_i32, %arg1 : i32, i32, i32
  }
}

module attributes {stable_mosaic.version = 11 : i64} {
  func.func @_gemm_act_kernel(%arg0: i32, %arg1: i32, %arg2: memref<256x144xbf16, #tpu.memory_space<vmem>>, %arg3: memref<144x128xbf16, #tpu.memory_space<vmem>>, %arg4: memref<1x128xf32, #tpu.memory_space<vmem>>, %arg5: memref<256x128xf32, #tpu.memory_space<vmem>>) attributes {dimension_semantics = [#tpu.dimension_semantics<parallel>, #tpu.dimension_semantics<parallel>], iteration_bounds = array<i64: 2, 1>, scalar_prefetch = 0 : i64, scratch_operands = 0 : i64, tpu.core_type = #tpu.core_type<tc>, window_params = [{transform_indices = @transform_0, window_bounds = array<i64: 256, 144>}, {transform_indices = @transform_1, window_bounds = array<i64: 144, 128>}, {transform_indices = @transform_2, window_bounds = array<i64: 1, 128>}, {transform_indices = @transform_3, window_bounds = array<i64: 256, 128>}]} {
    %c0 = arith.constant 0 : index
    %c0_0 = arith.constant 0 : index
    %0 = vector.load %arg2[%c0, %c0_0] : memref<256x144xbf16, #tpu.memory_space<vmem>>, vector<256x144xbf16>
    %c0_1 = arith.constant 0 : index
    %c0_2 = arith.constant 0 : index
    %1 = vector.load %arg3[%c0_1, %c0_2] : memref<144x128xbf16, #tpu.memory_space<vmem>>, vector<144x128xbf16>
    %cst = arith.constant dense<0.000000e+00> : vector<256x128xf32>
    %2 = tpu.matmul %0, %1, %cst {dimension_numbers = #tpu.dot_dimension_numbers<[1], [0], [0], [1], [0, 0, 1, 1], [], []>} : vector<256x144xbf16>, vector<144x128xbf16>, vector<256x128xf32> -> vector<256x128xf32>
    %c0_3 = arith.constant 0 : index
    %c0_4 = arith.constant 0 : index
    %3 = vector.load %arg4[%c0_3, %c0_4] : memref<1x128xf32, #tpu.memory_space<vmem>>, vector<1x128xf32>
    %4 = vector.broadcast %3 : vector<1x128xf32> to vector<256x128xf32>
    %5 = arith.addf %2, %4 : vector<256x128xf32>
    %6 = arith.negf %5 : vector<256x128xf32>
    %7 = math.exp %6 : vector<256x128xf32>
    %cst_5 = arith.constant 1.000000e+00 : f32
    %8 = vector.broadcast %cst_5 : f32 to vector<256x128xf32>
    %9 = arith.addf %8, %7 : vector<256x128xf32>
    %10 = arith.divf %8, %9 : vector<256x128xf32>
    %c0_6 = arith.constant 0 : index
    %c0_7 = arith.constant 0 : index
    %11 = vector.load %arg5[%c0_6, %c0_7] : memref<256x128xf32, #tpu.memory_space<vmem>>, vector<256x128xf32>
    tpu.vector_store %arg5[%c0_6, %c0_7], %10 {strides = array<i32>} : memref<256x128xf32, #tpu.memory_space<vmem>>, vector<256x128xf32>,
    return
  }
  func.func @transform_0(%arg0: i32, %arg1: i32) -> (i32, i32) {
    %c0_i32 = arith.constant 0 : i32
    %c0_i32_0 = arith.constant 0 : i32
    return %arg0, %c0_i32 : i32, i32
  }
  func.func @transform_1(%arg0: i32, %arg1: i32) -> (i32, i32) {
    %c0_i32 = arith.constant 0 : i32
    %c0_i32_0 = arith.constant 0 : i32
    return %c0_i32, %arg1 : i32, i32
  }
  func.func @transform_2(%arg0: i32, %arg1: i32) -> (i32, i32) {
    %c0_i32 = arith.constant 0 : i32
    %c0_i32_0 = arith.constant 0 : i32
    return %c0_i32, %arg1 : i32, i32
  }
  func.func @transform_3(%arg0: i32, %arg1: i32) -> (i32, i32) {
    %c0_i32 = arith.constant 0 : i32
    return %arg0, %arg1 : i32, i32
  }
}

</mosaic_0001>

<llo_original>
// kernel: autoencoder_forward.13
$region0: #{autoencoder_forward.13}
  #allocation0 [shape = 'u32[]', space=smem, size = 0x4, offset = 0x4, fixed_abs, tag = 'smem constant byte address 0x4 - core index']
  #allocation1 [shape = 'u32[72,128]{1,0:T(1,128)}', space=vmem, size = 0x9000, scoped, tag = 'internal scratch']
  %s0 = inlined_call_operand.vmem [shape: bf16[2,768], index: 0, kind: input, shape index: {}]
  %s1 = inlined_call_operand.vmem [shape: f32[1,768], index: 1, kind: output, shape index: {0}]
  %s2 = inlined_call_operand.vmem [shape: f32[1,768], index: 2, kind: output, shape index: {1}]
  %3 = xla_tuple %s1, %s2
  %s4 = sld [smem:[#allocation0]]
  $region22: #{autoencoder_forward.13} parent=0
    _
  %s6 = ssub.s32 1, %s4
  %s7 = scalar_select 0, %s6, %s4
  // Predicated region
  $region2: #{autoencoder_forward.13} parent=0 // pred_check
    _
  $region3: #{autoencoder_forward.13} parent=0 // pred_check_branch
    %9 = sbr.rel (0) target = $region5
  $region4: #{autoencoder_forward.13} parent=0 // pred_region
    _
  $region5: #{autoencoder_forward.13} parent=0 // pred_fallthru
    _
  %v10 = vld [vmem:[%s0] sm:$0x3f]
  %v11 = vunpack.c.l.bf16 %v10
  %v12 = vunpack.c.h.bf16 %v10
  %15 = vst [vmem:[#allocation1] ss:$4 sm:$0xff] %v11
  %s16 = scalar_lea.vmem [#allocation1], 32
  %17 = vst [vmem:[%s16] ss:$4 sm:$0xff] %v12
  %v18 = vld.sshfl [vmem:[#allocation1] sm:$0xff pattern:$0x73625140]
  %v19 = vld.sshfl [vmem:[#allocation1 + $0x8] sm:$0xff pattern:$0x73625140]
  %v20 = vld.sshfl [vmem:[#allocation1 + $0x10] sm:$0xff pattern:$0x73625140]
  %v21 = vld.sshfl [vmem:[#allocation1 + $0x18] sm:$0xff pattern:$0x73625140]
  %v22 = vld.sshfl [vmem:[#allocation1 + $0x20] sm:$0xff pattern:$0x73625140]
  %v23 = vld.sshfl [vmem:[#allocation1 + $0x28] sm:$0xff pattern:$0x73625140]
  %vm30 = vcmask 1041408
  %v31 = vsel %vm30, %v18, 0.0
  %v32 = vrot.slane %v31, 4
  %v33 = vadd.f32 %v31, %v32
  %v34 = vrot.slane %v33, 2
  %v35 = vadd.f32 %v33, %v34
  %v36 = vrot.slane %v35, 1
  %v37 = vadd.f32 %v35, %v36
  %v38 = vsel %vm30, %v19, 0.0
  %v39 = vrot.slane %v38, 4
  %v40 = vadd.f32 %v38, %v39
  %v41 = vrot.slane %v40, 2
  %v42 = vadd.f32 %v40, %v41
  %v43 = vrot.slane %v42, 1
  %v44 = vadd.f32 %v42, %v43
  %v45 = vsel %vm30, %v20, 0.0
  %v46 = vrot.slane %v45, 4
  %v47 = vadd.f32 %v45, %v46
  %v48 = vrot.slane %v47, 2
  %v49 = vadd.f32 %v47, %v48
  %v50 = vrot.slane %v49, 1
  %v51 = vadd.f32 %v49, %v50
  %v52 = vsel %vm30, %v21, 0.0
  %v53 = vrot.slane %v52, 4
  %v54 = vadd.f32 %v52, %v53
  %v55 = vrot.slane %v54, 2
  %v56 = vadd.f32 %v54, %v55
  %v57 = vrot.slane %v56, 1
  %v58 = vadd.f32 %v56, %v57
  %v59 = vsel %vm30, %v22, 0.0
  %v60 = vrot.slane %v59, 4
  %v61 = vadd.f32 %v59, %v60
  %v62 = vrot.slane %v61, 2
  %v63 = vadd.f32 %v61, %v62
  %v64 = vrot.slane %v63, 1
  %v65 = vadd.f32 %v63, %v64
  %v66 = vsel %vm30, %v23, 0.0
  %v67 = vrot.slane %v66, 4
  %v68 = vadd.f32 %v66, %v67
  %v69 = vrot.slane %v68, 2
  %v70 = vadd.f32 %v68, %v69
  %v71 = vrot.slane %v70, 1
  %v72 = vadd.f32 %v70, %v71
  %v79 = vrot.slane %v44, 7
  %v80 = vrot.slane %v51, 6
  %v81 = vrot.slane %v58, 5
  %v82 = vrot.slane %v65, 4
  %v83 = vrot.slane %v72, 3
  %vm84 = vcmask 1040384
  %v85 = vsel %vm84, %v37, %v79
  %v86 = vsel %vm30, %v85, %v80
  %vm87 = vcmask 1043459
  %v88 = vsel %vm87, %v81, %v82
  %vm89 = vcmask 1044483
  %v90 = vsel %vm89, %v88, %v83
  %vm91 = vcmask 1042432
  %v92 = vsel %vm91, %v86, %v90
  %v94 = vlaneseq
  %vm95 = vcmp.ge.s32.totalorder %v94, 0
  %vm96 = vcmp.lt.s32.totalorder %v94, 768
  %vm97 = vmand %vm95, %vm96
  %98 = vst.msk [vmem:[%s1] sm:$0x3f] %vm97, %v92
  %v99 = vmul.f32 %v11, %v11
  %v100 = vmul.f32 %v12, %v12
  %103 = vst [vmem:[#allocation1] ss:$4 sm:$0xff] %v99
  %s104 = scalar_lea.vmem [#allocation1], 32
  %105 = vst [vmem:[%s104] ss:$4 sm:$0xff] %v100
  %v106 = vld.sshfl [vmem:[#allocation1] sm:$0xff pattern:$0x73625140]
  %v107 = vld.sshfl [vmem:[#allocation1 + $0x8] sm:$0xff pattern:$0x73625140]
  %v108 = vld.sshfl [vmem:[#allocation1 + $0x10] sm:$0xff pattern:$0x73625140]
  %v109 = vld.sshfl [vmem:[#allocation1 + $0x18] sm:$0xff pattern:$0x73625140]
  %v110 = vld.sshfl [vmem:[#allocation1 + $0x20] sm:$0xff pattern:$0x73625140]
  %v111 = vld.sshfl [vmem:[#allocation1 + $0x28] sm:$0xff pattern:$0x73625140]
  %v118 = vsel %vm30, %v106, 0.0
  %v119 = vrot.slane %v118, 4
  %v120 = vadd.f32 %v118, %v119
  %v121 = vrot.slane %v120, 2
  %v122 = vadd.f32 %v120, %v121
  %v123 = vrot.slane %v122, 1
  %v124 = vadd.f32 %v122, %v123
  %v125 = vsel %vm30, %v107, 0.0
  %v126 = vrot.slane %v125, 4
  %v127 = vadd.f32 %v125, %v126
  %v128 = vrot.slane %v127, 2
  %v129 = vadd.f32 %v127, %v128
  %v130 = vrot.slane %v129, 1
  %v131 = vadd.f32 %v129, %v130
  %v132 = vsel %vm30, %v108, 0.0
  %v133 = vrot.slane %v132, 4
  %v134 = vadd.f32 %v132, %v133
  %v135 = vrot.slane %v134, 2
  %v136 = vadd.f32 %v134, %v135
  %v137 = vrot.slane %v136, 1
  %v138 = vadd.f32 %v136, %v137
  %v139 = vsel %vm30, %v109, 0.0
  %v140 = vrot.slane %v139, 4
  %v141 = vadd.f32 %v139, %v140
  %v142 = vrot.slane %v141, 2
  %v143 = vadd.f32 %v141, %v142
  %v144 = vrot.slane %v143, 1
  %v145 = vadd.f32 %v143, %v144
  %v146 = vsel %vm30, %v110, 0.0
  %v147 = vrot.slane %v146, 4
  %v148 = vadd.f32 %v146, %v147
  %v149 = vrot.slane %v148, 2
  %v150 = vadd.f32 %v148, %v149
  %v151 = vrot.slane %v150, 1
  %v152 = vadd.f32 %v150, %v151
  %v153 = vsel %vm30, %v111, 0.0
  %v154 = vrot.slane %v153, 4
  %v155 = vadd.f32 %v153, %v154
  %v156 = vrot.slane %v155, 2
  %v157 = vadd.f32 %v155, %v156
  %v158 = vrot.slane %v157, 1
  %v159 = vadd.f32 %v157, %v158
  %v166 = vrot.slane %v131, 7
  %v167 = vrot.slane %v138, 6
  %v168 = vrot.slane %v145, 5
  %v169 = vrot.slane %v152, 4
  %v170 = vrot.slane %v159, 3
  %v171 = vsel %vm84, %v124, %v166
  %v172 = vsel %vm30, %v171, %v167
  %v173 = vsel %vm87, %v168, %v169
  %v174 = vsel %vm89, %v173, %v170
  %v175 = vsel %vm91, %v172, %v174
  %177 = vst.msk [vmem:[%s2] sm:$0x3f] %vm97, %v175
  // Predicated region
  $region6: #{autoencoder_forward.13} parent=0 // pred_check
    _
  $region7: #{autoencoder_forward.13} parent=0 // pred_check_branch
    %179 = sbr.rel (0) target = $region9
  $region8: #{autoencoder_forward.13} parent=0 // pred_region
    _
  $region9: #{autoencoder_forward.13} parent=0 // pred_fallthru
    _
  // Predicated region
  $region10: #{autoencoder_forward.13} parent=0 // pred_check
    _
  $region11: #{autoencoder_forward.13} parent=0 // pred_check_branch
    %181 = sbr.rel (0) target = $region13
  $region12: #{autoencoder_forward.13} parent=0 // pred_region
    _
  $region13: #{autoencoder_forward.13} parent=0 // pred_fallthru
    _
  // Predicated region
  $region14: #{autoencoder_forward.13} parent=0 // pred_check
    _
  $region15: #{autoencoder_forward.13} parent=0 // pred_check_branch
    %183 = sbr.rel (0) target = $region17
  $region16: #{autoencoder_forward.13} parent=0 // pred_region
    _
  $region17: #{autoencoder_forward.13} parent=0 // pred_fallthru
    _
  // Predicated region
  $region18: #{autoencoder_forward.13} parent=0 // pred_check
    _
  $region19: #{autoencoder_forward.13} parent=0 // pred_check_branch
    %185 = sbr.rel (0) target = $region21
  $region20: #{autoencoder_forward.13} parent=0 // pred_region
    _
  $region21: #{autoencoder_forward.13} parent=0 // pred_fallthru
    _

// kernel: autoencoder_forward.14
$region0: #{autoencoder_forward.14}
  #allocation0 [shape = 'u32[]', space=smem, size = 0x4, offset = 0x4, fixed_abs, tag = 'smem constant byte address 0x4 - core index']
  #allocation1 [shape = 'u32[72,128]{1,0:T(1,128)}', space=vmem, size = 0x9000, scoped, tag = 'internal scratch']
  %s0 = inlined_call_operand.vmem [shape: bf16[512,27], index: 0, kind: input, shape index: {}]
  %s1 = inlined_call_operand.vmem [shape: bf16[27,128], index: 1, kind: input, shape index: {}]
  %s2 = inlined_call_operand.vmem [shape: f32[1,128], index: 2, kind: input, shape index: {}]
  %s3 = inlined_call_operand.vmem [shape: bf16[512,128], index: 3, kind: output, shape index: {0}]
  %s4 = inlined_call_operand.vmem [shape: f32[2,1,128], index: 4, kind: output, shape index: {1}]
  %s5 = inlined_call_operand.vmem [shape: f32[2,1,128], index: 5, kind: output, shape index: {2}]
  %6 = xla_tuple %s3, %s4, %s5
  %s7 = sld [smem:[#allocation0]]
  $region61: #{autoencoder_forward.14} parent=0
    _
  %s9 = ssub.s32 1, %s7
  %s10 = scalar_select 0, %s9, %s7
  loop: start=0, step=1, limit=4
  $region2: #{autoencoder_forward.14} parent=0 // loop_pre_header
    _
  $region3: #{autoencoder_forward.14} parent=0 // loop_header
    %s12 = sphi 0, %s16
    %p13 = scmp.ge.s32.totalorder %s12, 4
    %s19 = sphi 0, %s31
    %s20 = sphi 0, %s27
    %s21 = sphi 0, %s19
    %s22 = sphi 0, %s20
    %s23 = sphi 0, %s21
    %s24 = sphi 0, %s22
    %s34 = sphi 0, %s36
    %s37 = sphi 0, %s34
    %s38 = sphi 0, %s37
    %s54 = sphi 0, %s38
    %s60 = sphi 0, %s62
    %s63 = sphi 0, %s60
    %s64 = sphi 0, %s63
    %s80 = sphi 0, %s64
    %s86 = sphi 0, %s88
    %s89 = sphi 0, %s86
    %s90 = sphi 0, %s89
    %s106 = sphi 0, %s90
    %s114 = sphi 0, %s116
    %s117 = sphi 0, %s114
    %s118 = sphi 0, %s117
    %s134 = sphi 0, %s118
    %s142 = sphi 0, %s144
    %s145 = sphi 0, %s142
    %s146 = sphi 0, %s145
    %s162 = sphi 0, %s146
    %s170 = sphi 0, %s172
    %s173 = sphi 0, %s170
    %s174 = sphi 0, %s173
    %s190 = sphi 0, %s174
  $region4: #{autoencoder_forward.14} parent=0 // loop_header_branch
    %15 = sbr.rel (%p13) target = $region8
  $region5: #{autoencoder_forward.14} parent=0 // loop_body
    %s17 = ssub.s32 %s12, 1
    %s18 = ssub.s32 %s12, 2
    %s25 = sadd.s32 1, %s20
    %p26 = scmp.ge.s32.totalorder %s25, 1
    %s27 = scalar_select %p26, 0, %s25
    %s28 = sadd.s32 1, %s19
    %s29 = scalar_select %p26, %s28, %s19
    %p30 = scmp.ge.s32.totalorder %s29, 2
    %s31 = scalar_select %p30, 0, %s29
    %s32 = ssub.s32 %s19, %s31
    %p33 = scmp.eq.s32.totalorder %s32, 0
    %s35 = sadd.s32 %s34, 1
    %s36 = scalar_select %p33, %s34, %s35
    %p39 = pneg %p33
    %p40 = scmp.eq.s32.totalorder %s12, 1
    %p41 = por %p39, %p40
    %p42 = scmp.ne.s32.totalorder %s34, %s37
    %p43 = scmp.eq.s32.totalorder %s12, 0
    %p44 = por %p42, %p43
    %p45 = scmp.ne.s32.totalorder %s34, %s37
    %p46 = scmp.eq.s32.totalorder %s17, 1
    %p47 = por %p45, %p46
    %p48 = scmp.ne.s32.totalorder %s37, %s38
    %p49 = scmp.eq.s32.totalorder %s17, 0
    %p50 = por %p48, %p49
    %p51 = scmp.ne.s32.totalorder %s37, %s38
    %p52 = scmp.eq.s32.totalorder %s18, 1
    %p53 = por %p51, %p52
    %p55 = scmp.ne.s32.totalorder %s38, %s54
    %p56 = scmp.eq.s32.totalorder %s18, 0
    %p57 = por %p55, %p56
    %s58 = ssub.s32 %s20, %s27
    %p59 = scmp.eq.s32.totalorder %s58, 0
    %s61 = sadd.s32 %s60, 1
    %s62 = scalar_select %p59, %s60, %s61
    %p65 = pneg %p59
    %p66 = scmp.eq.s32.totalorder %s12, 1
    %p67 = por %p65, %p66
    %p68 = scmp.ne.s32.totalorder %s60, %s63
    %p69 = scmp.eq.s32.totalorder %s12, 0
    %p70 = por %p68, %p69
    %p71 = scmp.ne.s32.totalorder %s60, %s63
    %p72 = scmp.eq.s32.totalorder %s17, 1
    %p73 = por %p71, %p72
    %p74 = scmp.ne.s32.totalorder %s63, %s64
    %p75 = scmp.eq.s32.totalorder %s17, 0
    %p76 = por %p74, %p75
    %p77 = scmp.ne.s32.totalorder %s63, %s64
    %p78 = scmp.eq.s32.totalorder %s18, 1
    %p79 = por %p77, %p78
    %p81 = scmp.ne.s32.totalorder %s64, %s80
    %p82 = scmp.eq.s32.totalorder %s18, 0
    %p83 = por %p81, %p82
    %s84 = ssub.s32 %s20, %s27
    %p85 = scmp.eq.s32.totalorder %s84, 0
    %s87 = sadd.s32 %s86, 1
    %s88 = scalar_select %p85, %s86, %s87
    %p91 = pneg %p85
    %p92 = scmp.eq.s32.totalorder %s12, 1
    %p93 = por %p91, %p92
    %p94 = scmp.ne.s32.totalorder %s86, %s89
    %p95 = scmp.eq.s32.totalorder %s12, 0
    %p96 = por %p94, %p95
    %p97 = scmp.ne.s32.totalorder %s86, %s89
    %p98 = scmp.eq.s32.totalorder %s17, 1
    %p99 = por %p97, %p98
    %p100 = scmp.ne.s32.totalorder %s89, %s90
    %p101 = scmp.eq.s32.totalorder %s17, 0
    %p102 = por %p100, %p101
    %p103 = scmp.ne.s32.totalorder %s89, %s90
    %p104 = scmp.eq.s32.totalorder %s18, 1
    %p105 = por %p103, %p104
    %p107 = scmp.ne.s32.totalorder %s90, %s106
    %p108 = scmp.eq.s32.totalorder %s18, 0
    %p109 = por %p107, %p108
    %s110 = ssub.s32 %s19, %s31
    %s111 = ssub.s32 %s20, %s27
    %s112 = sor.u32 %s110, %s111
    %p113 = scmp.eq.s32.totalorder %s112, 0
    %s115 = sadd.s32 %s114, 1
    %s116 = scalar_select %p113, %s114, %s115
    %p119 = pneg %p113
    %p120 = scmp.eq.s32.totalorder %s12, 1
    %p121 = por %p119, %p120
    %p122 = scmp.ne.s32.totalorder %s114, %s117
    %p123 = scmp.eq.s32.totalorder %s12, 0
    %p124 = por %p122, %p123
    %p125 = scmp.ne.s32.totalorder %s114, %s117
    %p126 = scmp.eq.s32.totalorder %s17, 1
    %p127 = por %p125, %p126
    %p128 = scmp.ne.s32.totalorder %s117, %s118
    %p129 = scmp.eq.s32.totalorder %s17, 0
    %p130 = por %p128, %p129
    %p131 = scmp.ne.s32.totalorder %s117, %s118
    %p132 = scmp.eq.s32.totalorder %s18, 1
    %p133 = por %p131, %p132
    %p135 = scmp.ne.s32.totalorder %s118, %s134
    %p136 = scmp.eq.s32.totalorder %s18, 0
    %p137 = por %p135, %p136
    %s138 = ssub.s32 %s19, %s31
    %s139 = ssub.s32 %s20, %s27
    %s140 = sor.u32 %s138, %s139
    %p141 = scmp.eq.s32.totalorder %s140, 0
    %s143 = sadd.s32 %s142, 1
    %s144 = scalar_select %p141, %s142, %s143
    %p147 = pneg %p141
    %p148 = scmp.eq.s32.totalorder %s12, 1
    %p149 = por %p147, %p148
    %p150 = scmp.ne.s32.totalorder %s142, %s145
    %p151 = scmp.eq.s32.totalorder %s12, 0
    %p152 = por %p150, %p151
    %p153 = scmp.ne.s32.totalorder %s142, %s145
    %p154 = scmp.eq.s32.totalorder %s17, 1
    %p155 = por %p153, %p154
    %p156 = scmp.ne.s32.totalorder %s145, %s146
    %p157 = scmp.eq.s32.totalorder %s17, 0
    %p158 = por %p156, %p157
    %p159 = scmp.ne.s32.totalorder %s145, %s146
    %p160 = scmp.eq.s32.totalorder %s18, 1
    %p161 = por %p159, %p160
    %p163 = scmp.ne.s32.totalorder %s146, %s162
    %p164 = scmp.eq.s32.totalorder %s18, 0
    %p165 = por %p163, %p164
    %s166 = ssub.s32 %s19, %s31
    %s167 = ssub.s32 %s20, %s27
    %s168 = sor.u32 %s166, %s167
    %p169 = scmp.eq.s32.totalorder %s168, 0
    %s171 = sadd.s32 %s170, 1
    %s172 = scalar_select %p169, %s170, %s171
    %p175 = pneg %p169
    %p176 = scmp.eq.s32.totalorder %s12, 1
    %p177 = por %p175, %p176
    %p178 = scmp.ne.s32.totalorder %s170, %s173
    %p179 = scmp.eq.s32.totalorder %s12, 0
    %p180 = por %p178, %p179
    %p181 = scmp.ne.s32.totalorder %s170, %s173
    %p182 = scmp.eq.s32.totalorder %s17, 1
    %p183 = por %p181, %p182
    %p184 = scmp.ne.s32.totalorder %s173, %s174
    %p185 = scmp.eq.s32.totalorder %s17, 0
    %p186 = por %p184, %p185
    %p187 = scmp.ne.s32.totalorder %s173, %s174
    %p188 = scmp.eq.s32.totalorder %s18, 1
    %p189 = por %p187, %p188
    %p191 = scmp.ne.s32.totalorder %s174, %s190
    %p192 = scmp.eq.s32.totalorder %s18, 0
    %p193 = por %p191, %p192
    %p194 = scmp.le.s32.totalorder 1, %s12
    %p195 = scmp.lt.s32.totalorder %s12, 3
    %p196 = pnand %p194, %p195
    %p197 = pneg %p196
    // Predicated region
    $region9: #{autoencoder_forward.14} parent=5 // pred_check
      _
    $region10: #{autoencoder_forward.14} parent=5 // pred_check_branch
      %199 = sbr.rel (%p196) target = $region12
    $region11: #{autoencoder_forward.14} parent=5 // pred_region
      %s200 = ssub.s32 %s12, 1
      // Predicated region
      $region13: #{autoencoder_forward.14} parent=11 // pred_check
        %p201 = pneg %p76
      $region14: #{autoencoder_forward.14} parent=11 // pred_check_branch
        %203 = sbr.rel (%p201) target = $region16
      $region15: #{autoencoder_forward.14} parent=11 // pred_region
        %p204 = scmp.lt.s32.totalorder %s22, 0
        %s205 = scalar_select %p204, %s22, 0
        %s206 = smul.addr %s205, 4
        %s207 = scalar_lea.vmem %s1, %s206
      $region16: #{autoencoder_forward.14} parent=11 // pred_fallthru
        _
      // Predicated region
      $region17: #{autoencoder_forward.14} parent=11 // pred_check
        %p208 = pneg %p102
      $region18: #{autoencoder_forward.14} parent=11 // pred_check_branch
        %210 = sbr.rel (%p208) target = $region20
      $region19: #{autoencoder_forward.14} parent=11 // pred_region
        %p211 = scmp.lt.s32.totalorder %s22, 0
        %s212 = scalar_select %p211, %s22, 0
        %s213 = scalar_lea.vmem %s2, %s212
      $region20: #{autoencoder_forward.14} parent=11 // pred_fallthru
        _
    $region12: #{autoencoder_forward.14} parent=5 // pred_fallthru
      _
    %p214 = scmp.lt.s32.totalorder %s12, 2
    // Predicated region
    $region21: #{autoencoder_forward.14} parent=5 // pred_check
      %p215 = pneg %p214
    $region22: #{autoencoder_forward.14} parent=5 // pred_check_branch
      %217 = sbr.rel (%p215) target = $region24
    $region23: #{autoencoder_forward.14} parent=5 // pred_region
      // Predicated region
      $region25: #{autoencoder_forward.14} parent=23 // pred_check
        %p218 = pneg %p44
      $region26: #{autoencoder_forward.14} parent=23 // pred_check_branch
        %220 = sbr.rel (%p218) target = $region28
      $region27: #{autoencoder_forward.14} parent=23 // pred_region
        %s221 = smul.u32 32, %s19
        %p222 = scmp.lt.s32.totalorder %s221, 63
        %s223 = scalar_select %p222, %s221, 63
        %s224 = smul.addr %s223, 4
        %s225 = scalar_lea.vmem %s0, %s224
        %s226 = smul.u32 32, %s19
      $region28: #{autoencoder_forward.14} parent=23 // pred_fallthru
        _
    $region24: #{autoencoder_forward.14} parent=5 // pred_fallthru
      _
    %p227 = scmp.le.s32.totalorder 1, %s12
    %p228 = scmp.lt.s32.totalorder %s12, 3
    %p229 = pnand %p227, %p228
    %p230 = pneg %p229
    // Predicated region
    $region29: #{autoencoder_forward.14} parent=5 // pred_check
      _
    $region30: #{autoencoder_forward.14} parent=5 // pred_check_branch
      %232 = sbr.rel (%p229) target = $region32
    $region31: #{autoencoder_forward.14} parent=5 // pred_region
      %s233 = ssub.s32 %s12, 1
      %s234 = smul.u32 32, %s21
      %p235 = scmp.lt.s32.totalorder %s234, 63
      %s236 = scalar_select %p235, %s234, 63
      %s237 = smul.addr %s236, 4
      %s238 = scalar_lea.vmem %s0, %s237
      %p239 = pneg %p50
      %p240 = pneg %p47
      %p241 = scmp.lt.s32.totalorder %s22, 0
      %s242 = scalar_select %p241, %s22, 0
      %s243 = smul.addr %s242, 4
      %s244 = scalar_lea.vmem %s1, %s243
      %p245 = pneg %p76
      %p246 = pneg %p73
      %p247 = scmp.lt.s32.totalorder %s22, 0
      %s248 = scalar_select %p247, %s22, 0
      %s249 = scalar_lea.vmem %s2, %s248
      %p250 = pneg %p102
      %p251 = pneg %p99
      %p252 = pneg %p130
      %p253 = pneg %p127
      %s254 = smul.u32 32, %s21
      %p255 = scmp.lt.s32.totalorder %s254, 63
      %s256 = scalar_select %p255, %s254, 63
      %p257 = scmp.lt.s32.totalorder %s22, 0
      %s258 = scalar_select %p257, %s22, 0
      %s259 = sadd.s32 %s258, %s256
      %s260 = smul.addr %s259, 4
      %s261 = scalar_lea.vmem %s3, %s260
      %p262 = pneg %p158
      %p263 = pneg %p155
      %p264 = scmp.lt.s32.totalorder %s21, 1
      %s265 = scalar_select %p264, %s21, 1
      %p266 = scmp.lt.s32.totalorder %s22, 0
      %s267 = scalar_select %p266, %s22, 0
      %s268 = sadd.s32 %s267, %s265
      %s269 = scalar_lea.vmem %s4, %s268
      %p270 = pneg %p186
      %p271 = pneg %p183
      %p272 = scmp.lt.s32.totalorder %s21, 1
      %s273 = scalar_select %p272, %s21, 1
      %p274 = scmp.lt.s32.totalorder %s22, 0
      %s275 = scalar_select %p274, %s22, 0
      %s276 = sadd.s32 %s275, %s273
      %s277 = scalar_lea.vmem %s5, %s276
      %s278 = smul.u32 32, %s21
      %p279 = scmp.lt.s32.totalorder %s278, 63
      %s280 = scalar_select %p279, %s278, 63
      %s281 = smul.addr %s280, 4
      %s282 = scalar_lea.vmem %s0, %s281
      %s283 = smul.u32 32, %s21
      %p284 = scmp.lt.s32.totalorder %s22, 0
      %s285 = scalar_select %p284, %s22, 0
      %s286 = smul.addr %s285, 4
      %s287 = scalar_lea.vmem %s1, %s286
      %p288 = scmp.lt.s32.totalorder %s22, 0
      %s289 = scalar_select %p288, %s22, 0
      %s290 = scalar_lea.vmem %s2, %s289
      %s291 = smul.u32 32, %s21
      %p292 = scmp.lt.s32.totalorder %s291, 63
      %s293 = scalar_select %p292, %s291, 63
      %p294 = scmp.lt.s32.totalorder %s22, 0
      %s295 = scalar_select %p294, %s22, 0
      %s296 = sadd.s32 %s295, %s293
      %s297 = smul.addr %s296, 4
      %s298 = scalar_lea.vmem %s3, %s297
      %s299 = smul.u32 32, %s21
      %p300 = scmp.lt.s32.totalorder %s21, 1
      %s301 = scalar_select %p300, %s21, 1
      %p302 = scmp.lt.s32.totalorder %s22, 0
      %s303 = scalar_select %p302, %s22, 0
      %s304 = sadd.s32 %s303, %s301
      %s305 = scalar_lea.vmem %s4, %s304
      %p306 = scmp.lt.s32.totalorder %s21, 1
      %s307 = scalar_select %p306, %s21, 1
      %p308 = scmp.lt.s32.totalorder %s22, 0
      %s309 = scalar_select %p308, %s22, 0
      %s310 = sadd.s32 %s309, %s307
      %s311 = scalar_lea.vmem %s5, %s310
      %v313 = vld [vmem:[%s282] sm:$0xf]
      %v314 = vld [vmem:[%s282 + $0x4] sm:$0xf]
      %v315 = vld [vmem:[%s282 + $0x8] sm:$0xf]
      %v316 = vld [vmem:[%s282 + $0xc] sm:$0xf]
      %v317 = vld [vmem:[%s282 + $0x10] sm:$0xf]
      %v318 = vld [vmem:[%s282 + $0x14] sm:$0xf]
      %v319 = vld [vmem:[%s282 + $0x18] sm:$0xf]
      %v320 = vld [vmem:[%s282 + $0x1c] sm:$0xf]
      %v321 = vld [vmem:[%s282 + $0x20] sm:$0xf]
      %v322 = vld [vmem:[%s282 + $0x24] sm:$0xf]
      %v323 = vld [vmem:[%s282 + $0x28] sm:$0xf]
      %v324 = vld [vmem:[%s282 + $0x2c] sm:$0xf]
      %v325 = vld [vmem:[%s282 + $0x30] sm:$0xf]
      %v326 = vld [vmem:[%s282 + $0x34] sm:$0xf]
      %v327 = vld [vmem:[%s282 + $0x38] sm:$0xf]
      %v328 = vld [vmem:[%s282 + $0x3c] sm:$0xf]
      %v329 = vld [vmem:[%s282 + $0x40] sm:$0xf]
      %v330 = vld [vmem:[%s282 + $0x44] sm:$0xf]
      %v331 = vld [vmem:[%s282 + $0x48] sm:$0xf]
      %v332 = vld [vmem:[%s282 + $0x4c] sm:$0xf]
      %v333 = vld [vmem:[%s282 + $0x50] sm:$0xf]
      %v334 = vld [vmem:[%s282 + $0x54] sm:$0xf]
      %v335 = vld [vmem:[%s282 + $0x58] sm:$0xf]
      %v336 = vld [vmem:[%s282 + $0x5c] sm:$0xf]
      %v337 = vld [vmem:[%s282 + $0x60] sm:$0xf]
      %v338 = vld [vmem:[%s282 + $0x64] sm:$0xf]
      %v339 = vld [vmem:[%s282 + $0x68] sm:$0xf]
      %v340 = vld [vmem:[%s282 + $0x6c] sm:$0xf]
      %v341 = vld [vmem:[%s282 + $0x70] sm:$0xf]
      %v342 = vld [vmem:[%s282 + $0x74] sm:$0xf]
      %v343 = vld [vmem:[%s282 + $0x78] sm:$0xf]
      %v344 = vld [vmem:[%s282 + $0x7c] sm:$0xf]
      %v345 = vld [vmem:[%s287] sm:$0xf]
      %v346 = vld [vmem:[%s287 + $0x4] sm:$0xf]
      %v347 = vld [vmem:[%s287 + $0x8] sm:$0xf]
      %v348 = vld [vmem:[%s287 + $0xc] sm:$0x3]
      %v349 = vld [vmem:[%s290] sm:$0x1]
      %v351 = vperm.slane %v349, 0
      %v385 = vunpack.c.l.b16 %v313
      %v386 = vunpack.c.l.b16 %v314
      %v387 = vunpack.c.l.b16 %v315
      %v388 = vunpack.c.l.b16 %v316
      %v389 = vunpack.c.l.b16 %v317
      %v390 = vunpack.c.l.b16 %v318
      %v391 = vunpack.c.l.b16 %v319
      %v392 = vunpack.c.l.b16 %v320
      %v393 = vunpack.c.l.b16 %v321
      %v394 = vunpack.c.l.b16 %v322
      %v395 = vunpack.c.l.b16 %v323
      %v396 = vunpack.c.l.b16 %v324
      %v397 = vunpack.c.l.b16 %v325
      %v398 = vunpack.c.l.b16 %v326
      %v399 = vunpack.c.l.b16 %v327
      %v400 = vunpack.c.l.b16 %v328
      %v401 = vunpack.c.l.b16 %v329
      %v402 = vunpack.c.l.b16 %v330
      %v403 = vunpack.c.l.b16 %v331
      %v404 = vunpack.c.l.b16 %v332
      %v405 = vunpack.c.l.b16 %v333
      %v406 = vunpack.c.l.b16 %v334
      %v407 = vunpack.c.l.b16 %v335
      %v408 = vunpack.c.l.b16 %v336
      %v409 = vunpack.c.l.b16 %v337
      %v410 = vunpack.c.l.b16 %v338
      %v411 = vunpack.c.l.b16 %v339
      %v412 = vunpack.c.l.b16 %v340
      %v413 = vunpack.c.l.b16 %v341
      %v414 = vunpack.c.l.b16 %v342
      %v415 = vunpack.c.l.b16 %v343
      %v416 = vunpack.c.l.b16 %v344
      %v417 = vpack.c.b16 %v386, %v385
      %v418 = vpack.c.b16 %v388, %v387
      %v419 = vpack.c.b16 %v390, %v389
      %v420 = vpack.c.b16 %v392, %v391
      %v421 = vpack.c.b16 %v394, %v393
      %v422 = vpack.c.b16 %v396, %v395
      %v423 = vpack.c.b16 %v398, %v397
      %v424 = vpack.c.b16 %v400, %v399
      %v425 = vpack.c.b16 %v402, %v401
      %v426 = vpack.c.b16 %v404, %v403
      %v427 = vpack.c.b16 %v406, %v405
      %v428 = vpack.c.b16 %v408, %v407
      %v429 = vpack.c.b16 %v410, %v409
      %v430 = vpack.c.b16 %v412, %v411
      %v431 = vpack.c.b16 %v414, %v413
      %v432 = vpack.c.b16 %v416, %v415
      %v437 = vunpack.c.l.b16 %v345
      %v438 = vunpack.c.l.b16 %v346
      %v439 = vunpack.c.l.b16 %v347
      %v440 = vunpack.c.l.b16 %v348
      %v441 = vpack.c.b16 %v438, %v437
      %v442 = vpack.c.b16 %v440, %v439
      %vm444 = vcmask 220160
      %v446 = vsel %vm444, %v417, 0
      %v449 = vsel %vm444, %v418, 0
      %v452 = vsel %vm444, %v419, 0
      %v455 = vsel %vm444, %v420, 0
      %v458 = vsel %vm444, %v421, 0
      %v461 = vsel %vm444, %v422, 0
      %v464 = vsel %vm444, %v423, 0
      %v467 = vsel %vm444, %v424, 0
      %v470 = vsel %vm444, %v425, 0
      %v473 = vsel %vm444, %v426, 0
      %v476 = vsel %vm444, %v427, 0
      %v479 = vsel %vm444, %v428, 0
      %v482 = vsel %vm444, %v429, 0
      %v485 = vsel %vm444, %v430, 0
      %v488 = vsel %vm444, %v431, 0
      %v491 = vsel %vm444, %v432, 0
      %vm493 = vcmask 1044480
      %vm494 = vcmask 1045504
      %v495 = vsel %vm493, 4294967295, 65535
      %v496 = vsel %vm494, %v495, 0
      %v498 = vand.u32 %v442, %v496
      %500 = vmatpush.bf16.msra.mxu0 0
      %501 = vmatpush.bf16.msra.mxu0 0
      %502 = vmatpush.bf16.msra.mxu0 0
      %503 = vmatpush.bf16.msra.mxu0 0
      %504 = vmatpush.bf16.msra.mxu0 0
      %505 = vmatpush.bf16.msra.mxu0 0
      %506 = vmatpush.bf16.msra.mxu0 %v498
      %507 = vmatpush.bf16.msra.mxu0 %v441
      %508 = vmatmul.bf16.gmra.mxu0 %v446
      %v509 = vpop.f32.mrf.mxu0
      %v510 = vadd.f32 %v351, %v509
      %v511 = vpop.f32.mrf.mxu0
      %v512 = vadd.f32 %v351, %v511
      %513 = vmatmul.bf16.gmra.mxu0 %v449
      %v514 = vpop.f32.mrf.mxu0
      %v515 = vadd.f32 %v351, %v514
      %v516 = vpop.f32.mrf.mxu0
      %v517 = vadd.f32 %v351, %v516
      %518 = vmatmul.bf16.gmra.mxu0 %v452
      %v519 = vpop.f32.mrf.mxu0
      %v520 = vadd.f32 %v351, %v519
      %v521 = vpop.f32.mrf.mxu0
      %v522 = vadd.f32 %v351, %v521
      %523 = vmatmul.bf16.gmra.mxu0 %v455
      %v524 = vpop.f32.mrf.mxu0
      %v525 = vadd.f32 %v351, %v524
      %v526 = vpop.f32.mrf.mxu0
      %v527 = vadd.f32 %v351, %v526
      %528 = vmatmul.bf16.gmra.mxu0 %v458
      %v529 = vpop.f32.mrf.mxu0
      %v530 = vadd.f32 %v351, %v529
      %v531 = vpop.f32.mrf.mxu0
      %v532 = vadd.f32 %v351, %v531
      %533 = vmatmul.bf16.gmra.mxu0 %v461
      %v534 = vpop.f32.mrf.mxu0
      %v535 = vadd.f32 %v351, %v534
      %v536 = vpop.f32.mrf.mxu0
      %v537 = vadd.f32 %v351, %v536
      %538 = vmatmul.bf16.gmra.mxu0 %v464
      %v539 = vpop.f32.mrf.mxu0
      %v540 = vadd.f32 %v351, %v539
      %v541 = vpop.f32.mrf.mxu0
      %v542 = vadd.f32 %v351, %v541
      %543 = vmatmul.bf16.gmra.mxu0 %v467
      %v544 = vpop.f32.mrf.mxu0
      %v545 = vadd.f32 %v351, %v544
      %v546 = vpop.f32.mrf.mxu0
      %v547 = vadd.f32 %v351, %v546
      %548 = vmatmul.bf16.gmra.mxu0 %v470
      %v549 = vpop.f32.mrf.mxu0
      %v550 = vadd.f32 %v351, %v549
      %v551 = vpop.f32.mrf.mxu0
      %v552 = vadd.f32 %v351, %v551
      %553 = vmatmul.bf16.gmra.mxu0 %v473
      %v554 = vpop.f32.mrf.mxu0
      %v555 = vadd.f32 %v351, %v554
      %v556 = vpop.f32.mrf.mxu0
      %v557 = vadd.f32 %v351, %v556
      %558 = vmatmul.bf16.gmra.mxu0 %v476
      %v559 = vpop.f32.mrf.mxu0
      %v560 = vadd.f32 %v351, %v559
      %v561 = vpop.f32.mrf.mxu0
      %v562 = vadd.f32 %v351, %v561
      %563 = vmatmul.bf16.gmra.mxu0 %v479
      %v564 = vpop.f32.mrf.mxu0
      %v565 = vadd.f32 %v351, %v564
      %v566 = vpop.f32.mrf.mxu0
      %v567 = vadd.f32 %v351, %v566
      %568 = vmatmul.bf16.gmra.mxu0 %v482
      %v569 = vpop.f32.mrf.mxu0
      %v570 = vadd.f32 %v351, %v569
      %v571 = vpop.f32.mrf.mxu0
      %v572 = vadd.f32 %v351, %v571
      %573 = vmatmul.bf16.gmra.mxu0 %v485
      %v574 = vpop.f32.mrf.mxu0
      %v575 = vadd.f32 %v351, %v574
      %v576 = vpop.f32.mrf.mxu0
      %v577 = vadd.f32 %v351, %v576
      %578 = vmatmul.bf16.gmra.mxu0 %v488
      %v579 = vpop.f32.mrf.mxu0
      %v580 = vadd.f32 %v351, %v579
      %v581 = vpop.f32.mrf.mxu0
      %v582 = vadd.f32 %v351, %v581
      %583 = vmatmul.bf16.gmra.mxu0 %v491
      %v584 = vpop.f32.mrf.mxu0
      %v585 = vadd.f32 %v351, %v584
      %v586 = vpop.f32.mrf.mxu0
      %v587 = vadd.f32 %v351, %v586
      %588 = vdwg.mxu0
      %v589 = vpack.c.bf16 %v510, %v510
      %v590 = vpack.c.bf16 %v512, %v512
      %v591 = vpack.c.bf16 %v515, %v515
      %v592 = vpack.c.bf16 %v517, %v517
      %v593 = vpack.c.bf16 %v520, %v520
      %v594 = vpack.c.bf16 %v522, %v522
      %v595 = vpack.c.bf16 %v525, %v525
      %v596 = vpack.c.bf16 %v527, %v527
      %v597 = vpack.c.bf16 %v530, %v530
      %v598 = vpack.c.bf16 %v532, %v532
      %v599 = vpack.c.bf16 %v535, %v535
      %v600 = vpack.c.bf16 %v537, %v537
      %v601 = vpack.c.bf16 %v540, %v540
      %v602 = vpack.c.bf16 %v542, %v542
      %v603 = vpack.c.bf16 %v545, %v545
      %v604 = vpack.c.bf16 %v547, %v547
      %v605 = vpack.c.bf16 %v550, %v550
      %v606 = vpack.c.bf16 %v552, %v552
      %v607 = vpack.c.bf16 %v555, %v555
      %v608 = vpack.c.bf16 %v557, %v557
      %v609 = vpack.c.bf16 %v560, %v560
      %v610 = vpack.c.bf16 %v562, %v562
      %v611 = vpack.c.bf16 %v565, %v565
      %v612 = vpack.c.bf16 %v567, %v567
      %v613 = vpack.c.bf16 %v570, %v570
      %v614 = vpack.c.bf16 %v572, %v572
      %v615 = vpack.c.bf16 %v575, %v575
      %v616 = vpack.c.bf16 %v577, %v577
      %v617 = vpack.c.bf16 %v580, %v580
      %v618 = vpack.c.bf16 %v582, %v582
      %v619 = vpack.c.bf16 %v585, %v585
      %v620 = vpack.c.bf16 %v587, %v587
      %621 = vst [vmem:[%s298] sm:$0xf] %v589
      %622 = vst [vmem:[%s298 + $0x4] sm:$0xf] %v590
      %623 = vst [vmem:[%s298 + $0x8] sm:$0xf] %v591
      %624 = vst [vmem:[%s298 + $0xc] sm:$0xf] %v592
      %625 = vst [vmem:[%s298 + $0x10] sm:$0xf] %v593
      %626 = vst [vmem:[%s298 + $0x14] sm:$0xf] %v594
      %627 = vst [vmem:[%s298 + $0x18] sm:$0xf] %v595
      %628 = vst [vmem:[%s298 + $0x1c] sm:$0xf] %v596
      %629 = vst [vmem:[%s298 + $0x20] sm:$0xf] %v597
      %630 = vst [vmem:[%s298 + $0x24] sm:$0xf] %v598
      %631 = vst [vmem:[%s298 + $0x28] sm:$0xf] %v599
      %632 = vst [vmem:[%s298 + $0x2c] sm:$0xf] %v600
      %633 = vst [vmem:[%s298 + $0x30] sm:$0xf] %v601
      %634 = vst [vmem:[%s298 + $0x34] sm:$0xf] %v602
      %635 = vst [vmem:[%s298 + $0x38] sm:$0xf] %v603
      %636 = vst [vmem:[%s298 + $0x3c] sm:$0xf] %v604
      %637 = vst [vmem:[%s298 + $0x40] sm:$0xf] %v605
      %638 = vst [vmem:[%s298 + $0x44] sm:$0xf] %v606
      %639 = vst [vmem:[%s298 + $0x48] sm:$0xf] %v607
      %640 = vst [vmem:[%s298 + $0x4c] sm:$0xf] %v608
      %641 = vst [vmem:[%s298 + $0x50] sm:$0xf] %v609
      %642 = vst [vmem:[%s298 + $0x54] sm:$0xf] %v610
      %643 = vst [vmem:[%s298 + $0x58] sm:$0xf] %v611
      %644 = vst [vmem:[%s298 + $0x5c] sm:$0xf] %v612
      %645 = vst [vmem:[%s298 + $0x60] sm:$0xf] %v613
      %646 = vst [vmem:[%s298 + $0x64] sm:$0xf] %v614
      %647 = vst [vmem:[%s298 + $0x68] sm:$0xf] %v615
      %648 = vst [vmem:[%s298 + $0x6c] sm:$0xf] %v616
      %649 = vst [vmem:[%s298 + $0x70] sm:$0xf] %v617
      %650 = vst [vmem:[%s298 + $0x74] sm:$0xf] %v618
      %651 = vst [vmem:[%s298 + $0x78] sm:$0xf] %v619
      %652 = vst [vmem:[%s298 + $0x7c] sm:$0xf] %v620
      %v653 = vadd.f32 %v510, %v512
      %v654 = vadd.f32 %v653, %v515
      %v655 = vadd.f32 %v654, %v517
      %v656 = vadd.f32 %v655, %v520
      %v657 = vadd.f32 %v656, %v522
      %v658 = vadd.f32 %v657, %v525
      %v659 = vadd.f32 %v658, %v527
      %v660 = vadd.f32 %v659, %v530
      %v661 = vadd.f32 %v660, %v532
      %v662 = vadd.f32 %v661, %v535
      %v663 = vadd.f32 %v662, %v537
      %v664 = vadd.f32 %v663, %v540
      %v665 = vadd.f32 %v664, %v542
      %v666 = vadd.f32 %v665, %v545
      %v667 = vadd.f32 %v666, %v547
      %v668 = vadd.f32 %v667, %v550
      %v669 = vadd.f32 %v668, %v552
      %v670 = vadd.f32 %v669, %v555
      %v671 = vadd.f32 %v670, %v557
      %v672 = vadd.f32 %v671, %v560
      %v673 = vadd.f32 %v672, %v562
      %v674 = vadd.f32 %v673, %v565
      %v675 = vadd.f32 %v674, %v567
      %v676 = vadd.f32 %v675, %v570
      %v677 = vadd.f32 %v676, %v572
      %v678 = vadd.f32 %v677, %v575
      %v679 = vadd.f32 %v678, %v577
      %v680 = vadd.f32 %v679, %v580
      %v681 = vadd.f32 %v680, %v582
      %v682 = vadd.f32 %v681, %v585
      %v683 = vadd.f32 %v682, %v587
      %v684 = vrot.slane %v683, 4
      %v685 = vadd.f32 %v683, %v684
      %v686 = vrot.slane %v685, 2
      %v687 = vadd.f32 %v685, %v686
      %v688 = vrot.slane %v687, 1
      %v689 = vadd.f32 %v687, %v688
      %690 = vst [vmem:[%s305] sm:$0x1] %v689
      %v691 = vmul.f32 %v510, %v510
      %v692 = vmul.f32 %v512, %v512
      %v693 = vmul.f32 %v515, %v515
      %v694 = vmul.f32 %v517, %v517
      %v695 = vmul.f32 %v520, %v520
      %v696 = vmul.f32 %v522, %v522
      %v697 = vmul.f32 %v525, %v525
      %v698 = vmul.f32 %v527, %v527
      %v699 = vmul.f32 %v530, %v530
      %v700 = vmul.f32 %v532, %v532
      %v701 = vmul.f32 %v535, %v535
      %v702 = vmul.f32 %v537, %v537
      %v703 = vmul.f32 %v540, %v540
      %v704 = vmul.f32 %v542, %v542
      %v705 = vmul.f32 %v545, %v545
      %v706 = vmul.f32 %v547, %v547
      %v707 = vmul.f32 %v550, %v550
      %v708 = vmul.f32 %v552, %v552
      %v709 = vmul.f32 %v555, %v555
      %v710 = vmul.f32 %v557, %v557
      %v711 = vmul.f32 %v560, %v560
      %v712 = vmul.f32 %v562, %v562
      %v713 = vmul.f32 %v565, %v565
      %v714 = vmul.f32 %v567, %v567
      %v715 = vmul.f32 %v570, %v570
      %v716 = vmul.f32 %v572, %v572
      %v717 = vmul.f32 %v575, %v575
      %v718 = vmul.f32 %v577, %v577
      %v719 = vmul.f32 %v580, %v580
      %v720 = vmul.f32 %v582, %v582
      %v721 = vmul.f32 %v585, %v585
      %v722 = vmul.f32 %v587, %v587
      %v723 = vadd.f32 %v691, %v692
      %v724 = vadd.f32 %v723, %v693
      %v725 = vadd.f32 %v724, %v694
      %v726 = vadd.f32 %v725, %v695
      %v727 = vadd.f32 %v726, %v696
      %v728 = vadd.f32 %v727, %v697
      %v729 = vadd.f32 %v728, %v698
      %v730 = vadd.f32 %v729, %v699
      %v731 = vadd.f32 %v730, %v700
      %v732 = vadd.f32 %v731, %v701
      %v733 = vadd.f32 %v732, %v702
      %v734 = vadd.f32 %v733, %v703
      %v735 = vadd.f32 %v734, %v704
      %v736 = vadd.f32 %v735, %v705
      %v737 = vadd.f32 %v736, %v706
      %v738 = vadd.f32 %v737, %v707
      %v739 = vadd.f32 %v738, %v708
      %v740 = vadd.f32 %v739, %v709
      %v741 = vadd.f32 %v740, %v710
      %v742 = vadd.f32 %v741, %v711
      %v743 = vadd.f32 %v742, %v712
      %v744 = vadd.f32 %v743, %v713
      %v745 = vadd.f32 %v744, %v714
      %v746 = vadd.f32 %v745, %v715
      %v747 = vadd.f32 %v746, %v716
      %v748 = vadd.f32 %v747, %v717
      %v749 = vadd.f32 %v748, %v718
      %v750 = vadd.f32 %v749, %v719
      %v751 = vadd.f32 %v750, %v720
      %v752 = vadd.f32 %v751, %v721
      %v753 = vadd.f32 %v752, %v722
      %v754 = vrot.slane %v753, 4
      %v755 = vadd.f32 %v753, %v754
      %v756 = vrot.slane %v755, 2
      %v757 = vadd.f32 %v755, %v756
      %v758 = vrot.slane %v757, 1
      %v759 = vadd.f32 %v757, %v758
      %760 = vst [vmem:[%s311] sm:$0x1] %v759
      %s761 = smul.u32 32, %s21
      %p762 = scmp.lt.s32.totalorder %s761, 63
      %s763 = scalar_select %p762, %s761, 63
      %p764 = scmp.lt.s32.totalorder %s22, 0
      %s765 = scalar_select %p764, %s22, 0
      %s766 = sadd.s32 %s765, %s763
      %s767 = smul.addr %s766, 4
      %s768 = scalar_lea.vmem %s3, %s767
      %p769 = scmp.lt.s32.totalorder %s21, 1
      %s770 = scalar_select %p769, %s21, 1
      %p771 = scmp.lt.s32.totalorder %s22, 0
      %s772 = scalar_select %p771, %s22, 0
      %s773 = sadd.s32 %s772, %s770
      %s774 = scalar_lea.vmem %s4, %s773
      %p775 = scmp.lt.s32.totalorder %s21, 1
      %s776 = scalar_select %p775, %s21, 1
      %p777 = scmp.lt.s32.totalorder %s22, 0
      %s778 = scalar_select %p777, %s22, 0
      %s779 = sadd.s32 %s778, %s776
      %s780 = scalar_lea.vmem %s5, %s779
      // Predicated region
      $region33: #{autoencoder_forward.14} parent=31 // pred_check
        %p781 = pneg %p127
      $region34: #{autoencoder_forward.14} parent=31 // pred_check_branch
        %783 = sbr.rel (%p781) target = $region36
      $region35: #{autoencoder_forward.14} parent=31 // pred_region
        %s784 = smul.u32 32, %s21
      $region36: #{autoencoder_forward.14} parent=31 // pred_fallthru
        _
      // Predicated region
      $region37: #{autoencoder_forward.14} parent=31 // pred_check
        %p785 = pneg %p155
      $region38: #{autoencoder_forward.14} parent=31 // pred_check_branch
        %787 = sbr.rel (%p785) target = $region40
      $region39: #{autoencoder_forward.14} parent=31 // pred_region
        _
      $region40: #{autoencoder_forward.14} parent=31 // pred_fallthru
        _
      // Predicated region
      $region41: #{autoencoder_forward.14} parent=31 // pred_check
        %p788 = pneg %p183
      $region42: #{autoencoder_forward.14} parent=31 // pred_check_branch
        %790 = sbr.rel (%p788) target = $region44
      $region43: #{autoencoder_forward.14} parent=31 // pred_region
        _
      $region44: #{autoencoder_forward.14} parent=31 // pred_fallthru
        _
    $region32: #{autoencoder_forward.14} parent=5 // pred_fallthru
      _
    %p791 = scmp.le.s32.totalorder 2, %s12
    // Predicated region
    $region45: #{autoencoder_forward.14} parent=5 // pred_check
      %p792 = pneg %p791
    $region46: #{autoencoder_forward.14} parent=5 // pred_check_branch
      %794 = sbr.rel (%p792) target = $region48
    $region47: #{autoencoder_forward.14} parent=5 // pred_region
      %s795 = ssub.s32 %s12, 2
      // Predicated region
      $region49: #{autoencoder_forward.14} parent=47 // pred_check
        %p796 = pneg %p133
      $region50: #{autoencoder_forward.14} parent=47 // pred_check_branch
        %798 = sbr.rel (%p796) target = $region52
      $region51: #{autoencoder_forward.14} parent=47 // pred_region
        %s799 = smul.u32 32, %s23
        %p800 = scmp.lt.s32.totalorder %s799, 63
        %s801 = scalar_select %p800, %s799, 63
        %p802 = scmp.lt.s32.totalorder %s24, 0
        %s803 = scalar_select %p802, %s24, 0
        %s804 = sadd.s32 %s803, %s801
        %s805 = smul.addr %s804, 4
        %s806 = scalar_lea.vmem %s3, %s805
      $region52: #{autoencoder_forward.14} parent=47 // pred_fallthru
        _
      // Predicated region
      $region53: #{autoencoder_forward.14} parent=47 // pred_check
        %p807 = pneg %p161
      $region54: #{autoencoder_forward.14} parent=47 // pred_check_branch
        %809 = sbr.rel (%p807) target = $region56
      $region55: #{autoencoder_forward.14} parent=47 // pred_region
        %p810 = scmp.lt.s32.totalorder %s23, 1
        %s811 = scalar_select %p810, %s23, 1
        %p812 = scmp.lt.s32.totalorder %s24, 0
        %s813 = scalar_select %p812, %s24, 0
        %s814 = sadd.s32 %s813, %s811
        %s815 = scalar_lea.vmem %s4, %s814
      $region56: #{autoencoder_forward.14} parent=47 // pred_fallthru
        _
      // Predicated region
      $region57: #{autoencoder_forward.14} parent=47 // pred_check
        %p816 = pneg %p189
      $region58: #{autoencoder_forward.14} parent=47 // pred_check_branch
        %818 = sbr.rel (%p816) target = $region60
      $region59: #{autoencoder_forward.14} parent=47 // pred_region
        %p819 = scmp.lt.s32.totalorder %s23, 1
        %s820 = scalar_select %p819, %s23, 1
        %p821 = scmp.lt.s32.totalorder %s24, 0
        %s822 = scalar_select %p821, %s24, 0
        %s823 = sadd.s32 %s822, %s820
        %s824 = scalar_lea.vmem %s5, %s823
      $region60: #{autoencoder_forward.14} parent=47 // pred_fallthru
        _
    $region48: #{autoencoder_forward.14} parent=5 // pred_fallthru
      _
  $region6: #{autoencoder_forward.14} parent=0 // loop_footer
    %s16 = sadd.s32 1, %s12
  $region7: #{autoencoder_forward.14} parent=0 // loop_footer_branch
    %11 = sbr.rel target = $region3
  $region8: #{autoencoder_forward.14} parent=0 // loop_exit
    _

// kernel: autoencoder_forward.15
$region0: #{autoencoder_forward.15}
  #allocation0 [shape = 'u32[]', space=smem, size = 0x4, offset = 0x4, fixed_abs, tag = 'smem constant byte address 0x4 - core index']
  #allocation1 [shape = 'u32[72,128]{1,0:T(1,128)}', space=vmem, size = 0x9000, scoped, tag = 'internal scratch']
  %s0 = inlined_call_operand.vmem [shape: bf16[512,128], index: 0, kind: input, shape index: {}]
  %s1 = inlined_call_operand.vmem [shape: f32[1,128], index: 1, kind: input, shape index: {}]
  %s2 = inlined_call_operand.vmem [shape: f32[1,128], index: 2, kind: input, shape index: {}]
  %s3 = inlined_call_operand.vmem [shape: bf16[512,128], index: 3, kind: output, shape index: {}]
  %s4 = sld [smem:[#allocation0]]
  $region45: #{autoencoder_forward.15} parent=0
    _
  %s6 = ssub.s32 1, %s4
  %s7 = scalar_select 0, %s6, %s4
  loop: start=0, step=1, limit=4
  $region2: #{autoencoder_forward.15} parent=0 // loop_pre_header
    _
  $region3: #{autoencoder_forward.15} parent=0 // loop_header
    %s9 = sphi 0, %s13
    %p10 = scmp.ge.s32.totalorder %s9, 4
    %s16 = sphi 0, %s28
    %s17 = sphi 0, %s24
    %s18 = sphi 0, %s16
    %s19 = sphi 0, %s17
    %s20 = sphi 0, %s18
    %s21 = sphi 0, %s19
    %s33 = sphi 0, %s35
    %s36 = sphi 0, %s33
    %s37 = sphi 0, %s36
    %s53 = sphi 0, %s37
    %s59 = sphi 0, %s61
    %s62 = sphi 0, %s59
    %s63 = sphi 0, %s62
    %s79 = sphi 0, %s63
    %s85 = sphi 0, %s87
    %s88 = sphi 0, %s85
    %s89 = sphi 0, %s88
    %s105 = sphi 0, %s89
    %s113 = sphi 0, %s115
    %s116 = sphi 0, %s113
    %s117 = sphi 0, %s116
    %s133 = sphi 0, %s117
  $region4: #{autoencoder_forward.15} parent=0 // loop_header_branch
    %12 = sbr.rel (%p10) target = $region8
  $region5: #{autoencoder_forward.15} parent=0 // loop_body
    %s14 = ssub.s32 %s9, 1
    %s15 = ssub.s32 %s9, 2
    %s22 = sadd.s32 1, %s17
    %p23 = scmp.ge.s32.totalorder %s22, 1
    %s24 = scalar_select %p23, 0, %s22
    %s25 = sadd.s32 1, %s16
    %s26 = scalar_select %p23, %s25, %s16
    %p27 = scmp.ge.s32.totalorder %s26, 2
    %s28 = scalar_select %p27, 0, %s26
    %s29 = ssub.s32 %s16, %s28
    %s30 = ssub.s32 %s17, %s24
    %s31 = sor.u32 %s29, %s30
    %p32 = scmp.eq.s32.totalorder %s31, 0
    %s34 = sadd.s32 %s33, 1
    %s35 = scalar_select %p32, %s33, %s34
    %p38 = pneg %p32
    %p39 = scmp.eq.s32.totalorder %s9, 1
    %p40 = por %p38, %p39
    %p41 = scmp.ne.s32.totalorder %s33, %s36
    %p42 = scmp.eq.s32.totalorder %s9, 0
    %p43 = por %p41, %p42
    %p44 = scmp.ne.s32.totalorder %s33, %s36
    %p45 = scmp.eq.s32.totalorder %s14, 1
    %p46 = por %p44, %p45
    %p47 = scmp.ne.s32.totalorder %s36, %s37
    %p48 = scmp.eq.s32.totalorder %s14, 0
    %p49 = por %p47, %p48
    %p50 = scmp.ne.s32.totalorder %s36, %s37
    %p51 = scmp.eq.s32.totalorder %s15, 1
    %p52 = por %p50, %p51
    %p54 = scmp.ne.s32.totalorder %s37, %s53
    %p55 = scmp.eq.s32.totalorder %s15, 0
    %p56 = por %p54, %p55
    %s57 = ssub.s32 %s17, %s24
    %p58 = scmp.eq.s32.totalorder %s57, 0
    %s60 = sadd.s32 %s59, 1
    %s61 = scalar_select %p58, %s59, %s60
    %p64 = pneg %p58
    %p65 = scmp.eq.s32.totalorder %s9, 1
    %p66 = por %p64, %p65
    %p67 = scmp.ne.s32.totalorder %s59, %s62
    %p68 = scmp.eq.s32.totalorder %s9, 0
    %p69 = por %p67, %p68
    %p70 = scmp.ne.s32.totalorder %s59, %s62
    %p71 = scmp.eq.s32.totalorder %s14, 1
    %p72 = por %p70, %p71
    %p73 = scmp.ne.s32.totalorder %s62, %s63
    %p74 = scmp.eq.s32.totalorder %s14, 0
    %p75 = por %p73, %p74
    %p76 = scmp.ne.s32.totalorder %s62, %s63
    %p77 = scmp.eq.s32.totalorder %s15, 1
    %p78 = por %p76, %p77
    %p80 = scmp.ne.s32.totalorder %s63, %s79
    %p81 = scmp.eq.s32.totalorder %s15, 0
    %p82 = por %p80, %p81
    %s83 = ssub.s32 %s17, %s24
    %p84 = scmp.eq.s32.totalorder %s83, 0
    %s86 = sadd.s32 %s85, 1
    %s87 = scalar_select %p84, %s85, %s86
    %p90 = pneg %p84
    %p91 = scmp.eq.s32.totalorder %s9, 1
    %p92 = por %p90, %p91
    %p93 = scmp.ne.s32.totalorder %s85, %s88
    %p94 = scmp.eq.s32.totalorder %s9, 0
    %p95 = por %p93, %p94
    %p96 = scmp.ne.s32.totalorder %s85, %s88
    %p97 = scmp.eq.s32.totalorder %s14, 1
    %p98 = por %p96, %p97
    %p99 = scmp.ne.s32.totalorder %s88, %s89
    %p100 = scmp.eq.s32.totalorder %s14, 0
    %p101 = por %p99, %p100
    %p102 = scmp.ne.s32.totalorder %s88, %s89
    %p103 = scmp.eq.s32.totalorder %s15, 1
    %p104 = por %p102, %p103
    %p106 = scmp.ne.s32.totalorder %s89, %s105
    %p107 = scmp.eq.s32.totalorder %s15, 0
    %p108 = por %p106, %p107
    %s109 = ssub.s32 %s16, %s28
    %s110 = ssub.s32 %s17, %s24
    %s111 = sor.u32 %s109, %s110
    %p112 = scmp.eq.s32.totalorder %s111, 0
    %s114 = sadd.s32 %s113, 1
    %s115 = scalar_select %p112, %s113, %s114
    %p118 = pneg %p112
    %p119 = scmp.eq.s32.totalorder %s9, 1
    %p120 = por %p118, %p119
    %p121 = scmp.ne.s32.totalorder %s113, %s116
    %p122 = scmp.eq.s32.totalorder %s9, 0
    %p123 = por %p121, %p122
    %p124 = scmp.ne.s32.totalorder %s113, %s116
    %p125 = scmp.eq.s32.totalorder %s14, 1
    %p126 = por %p124, %p125
    %p127 = scmp.ne.s32.totalorder %s116, %s117
    %p128 = scmp.eq.s32.totalorder %s14, 0
    %p129 = por %p127, %p128
    %p130 = scmp.ne.s32.totalorder %s116, %s117
    %p131 = scmp.eq.s32.totalorder %s15, 1
    %p132 = por %p130, %p131
    %p134 = scmp.ne.s32.totalorder %s117, %s133
    %p135 = scmp.eq.s32.totalorder %s15, 0
    %p136 = por %p134, %p135
    %p137 = scmp.le.s32.totalorder 1, %s9
    %p138 = scmp.lt.s32.totalorder %s9, 3
    %p139 = pnand %p137, %p138
    %p140 = pneg %p139
    // Predicated region
    $region9: #{autoencoder_forward.15} parent=5 // pred_check
      _
    $region10: #{autoencoder_forward.15} parent=5 // pred_check_branch
      %142 = sbr.rel (%p139) target = $region12
    $region11: #{autoencoder_forward.15} parent=5 // pred_region
      %s143 = ssub.s32 %s9, 1
      // Predicated region
      $region13: #{autoencoder_forward.15} parent=11 // pred_check
        %p144 = pneg %p75
      $region14: #{autoencoder_forward.15} parent=11 // pred_check_branch
        %146 = sbr.rel (%p144) target = $region16
      $region15: #{autoencoder_forward.15} parent=11 // pred_region
        %p147 = scmp.lt.s32.totalorder %s19, 0
        %s148 = scalar_select %p147, %s19, 0
        %s149 = scalar_lea.vmem %s1, %s148
      $region16: #{autoencoder_forward.15} parent=11 // pred_fallthru
        _
      // Predicated region
      $region17: #{autoencoder_forward.15} parent=11 // pred_check
        %p150 = pneg %p101
      $region18: #{autoencoder_forward.15} parent=11 // pred_check_branch
        %152 = sbr.rel (%p150) target = $region20
      $region19: #{autoencoder_forward.15} parent=11 // pred_region
        %p153 = scmp.lt.s32.totalorder %s19, 0
        %s154 = scalar_select %p153, %s19, 0
        %s155 = scalar_lea.vmem %s2, %s154
      $region20: #{autoencoder_forward.15} parent=11 // pred_fallthru
        _
    $region12: #{autoencoder_forward.15} parent=5 // pred_fallthru
      _
    %p156 = scmp.lt.s32.totalorder %s9, 2
    // Predicated region
    $region21: #{autoencoder_forward.15} parent=5 // pred_check
      %p157 = pneg %p156
    $region22: #{autoencoder_forward.15} parent=5 // pred_check_branch
      %159 = sbr.rel (%p157) target = $region24
    $region23: #{autoencoder_forward.15} parent=5 // pred_region
      // Predicated region
      $region25: #{autoencoder_forward.15} parent=23 // pred_check
        %p160 = pneg %p43
      $region26: #{autoencoder_forward.15} parent=23 // pred_check_branch
        %162 = sbr.rel (%p160) target = $region28
      $region27: #{autoencoder_forward.15} parent=23 // pred_region
        %s163 = smul.u32 32, %s16
        %p164 = scmp.lt.s32.totalorder %s163, 63
        %s165 = scalar_select %p164, %s163, 63
        %p166 = scmp.lt.s32.totalorder %s17, 0
        %s167 = scalar_select %p166, %s17, 0
        %s168 = sadd.s32 %s167, %s165
        %s169 = smul.addr %s168, 4
        %s170 = scalar_lea.vmem %s0, %s169
        %s171 = smul.u32 32, %s16
      $region28: #{autoencoder_forward.15} parent=23 // pred_fallthru
        _
    $region24: #{autoencoder_forward.15} parent=5 // pred_fallthru
      _
    %p172 = scmp.le.s32.totalorder 1, %s9
    %p173 = scmp.lt.s32.totalorder %s9, 3
    %p174 = pnand %p172, %p173
    %p175 = pneg %p174
    // Predicated region
    $region29: #{autoencoder_forward.15} parent=5 // pred_check
      _
    $region30: #{autoencoder_forward.15} parent=5 // pred_check_branch
      %177 = sbr.rel (%p174) target = $region32
    $region31: #{autoencoder_forward.15} parent=5 // pred_region
      %s178 = ssub.s32 %s9, 1
      %s179 = smul.u32 32, %s18
      %p180 = scmp.lt.s32.totalorder %s179, 63
      %s181 = scalar_select %p180, %s179, 63
      %p182 = scmp.lt.s32.totalorder %s19, 0
      %s183 = scalar_select %p182, %s19, 0
      %s184 = sadd.s32 %s183, %s181
      %s185 = smul.addr %s184, 4
      %s186 = scalar_lea.vmem %s0, %s185
      %p187 = pneg %p49
      %p188 = pneg %p46
      %p189 = scmp.lt.s32.totalorder %s19, 0
      %s190 = scalar_select %p189, %s19, 0
      %s191 = scalar_lea.vmem %s1, %s190
      %p192 = pneg %p75
      %p193 = pneg %p72
      %p194 = scmp.lt.s32.totalorder %s19, 0
      %s195 = scalar_select %p194, %s19, 0
      %s196 = scalar_lea.vmem %s2, %s195
      %p197 = pneg %p101
      %p198 = pneg %p98
      %p199 = pneg %p129
      %p200 = pneg %p126
      %s201 = smul.u32 32, %s18
      %p202 = scmp.lt.s32.totalorder %s201, 63
      %s203 = scalar_select %p202, %s201, 63
      %p204 = scmp.lt.s32.totalorder %s19, 0
      %s205 = scalar_select %p204, %s19, 0
      %s206 = sadd.s32 %s205, %s203
      %s207 = smul.addr %s206, 4
      %s208 = scalar_lea.vmem %s3, %s207
      %s209 = smul.u32 32, %s18
      %p210 = scmp.lt.s32.totalorder %s209, 63
      %s211 = scalar_select %p210, %s209, 63
      %p212 = scmp.lt.s32.totalorder %s19, 0
      %s213 = scalar_select %p212, %s19, 0
      %s214 = sadd.s32 %s213, %s211
      %s215 = smul.addr %s214, 4
      %s216 = scalar_lea.vmem %s0, %s215
      %s217 = smul.u32 32, %s18
      %p218 = scmp.lt.s32.totalorder %s19, 0
      %s219 = scalar_select %p218, %s19, 0
      %s220 = scalar_lea.vmem %s1, %s219
      %p221 = scmp.lt.s32.totalorder %s19, 0
      %s222 = scalar_select %p221, %s19, 0
      %s223 = scalar_lea.vmem %s2, %s222
      %s224 = smul.u32 32, %s18
      %p225 = scmp.lt.s32.totalorder %s224, 63
      %s226 = scalar_select %p225, %s224, 63
      %p227 = scmp.lt.s32.totalorder %s19, 0
      %s228 = scalar_select %p227, %s19, 0
      %s229 = sadd.s32 %s228, %s226
      %s230 = smul.addr %s229, 4
      %s231 = scalar_lea.vmem %s3, %s230
      %s232 = smul.u32 32, %s18
      %v233 = vld [vmem:[%s216] sm:$0xf]
      %v234 = vld [vmem:[%s216 + $0x4] sm:$0xf]
      %v235 = vld [vmem:[%s216 + $0x8] sm:$0xf]
      %v236 = vld [vmem:[%s216 + $0xc] sm:$0xf]
      %v237 = vld [vmem:[%s216 + $0x10] sm:$0xf]
      %v238 = vld [vmem:[%s216 + $0x14] sm:$0xf]
      %v239 = vld [vmem:[%s216 + $0x18] sm:$0xf]
      %v240 = vld [vmem:[%s216 + $0x1c] sm:$0xf]
      %v241 = vld [vmem:[%s216 + $0x20] sm:$0xf]
      %v242 = vld [vmem:[%s216 + $0x24] sm:$0xf]
      %v243 = vld [vmem:[%s216 + $0x28] sm:$0xf]
      %v244 = vld [vmem:[%s216 + $0x2c] sm:$0xf]
      %v245 = vld [vmem:[%s216 + $0x30] sm:$0xf]
      %v246 = vld [vmem:[%s216 + $0x34] sm:$0xf]
      %v247 = vld [vmem:[%s216 + $0x38] sm:$0xf]
      %v248 = vld [vmem:[%s216 + $0x3c] sm:$0xf]
      %v249 = vld [vmem:[%s216 + $0x40] sm:$0xf]
      %v250 = vld [vmem:[%s216 + $0x44] sm:$0xf]
      %v251 = vld [vmem:[%s216 + $0x48] sm:$0xf]
      %v252 = vld [vmem:[%s216 + $0x4c] sm:$0xf]
      %v253 = vld [vmem:[%s216 + $0x50] sm:$0xf]
      %v254 = vld [vmem:[%s216 + $0x54] sm:$0xf]
      %v255 = vld [vmem:[%s216 + $0x58] sm:$0xf]
      %v256 = vld [vmem:[%s216 + $0x5c] sm:$0xf]
      %v257 = vld [vmem:[%s216 + $0x60] sm:$0xf]
      %v258 = vld [vmem:[%s216 + $0x64] sm:$0xf]
      %v259 = vld [vmem:[%s216 + $0x68] sm:$0xf]
      %v260 = vld [vmem:[%s216 + $0x6c] sm:$0xf]
      %v261 = vld [vmem:[%s216 + $0x70] sm:$0xf]
      %v262 = vld [vmem:[%s216 + $0x74] sm:$0xf]
      %v263 = vld [vmem:[%s216 + $0x78] sm:$0xf]
      %v264 = vld [vmem:[%s216 + $0x7c] sm:$0xf]
      %v265 = vunpack.c.l.bf16 %v233
      %v266 = vunpack.c.l.bf16 %v234
      %v267 = vunpack.c.l.bf16 %v235
      %v268 = vunpack.c.l.bf16 %v236
      %v269 = vunpack.c.l.bf16 %v237
      %v270 = vunpack.c.l.bf16 %v238
      %v271 = vunpack.c.l.bf16 %v239
      %v272 = vunpack.c.l.bf16 %v240
      %v273 = vunpack.c.l.bf16 %v241
      %v274 = vunpack.c.l.bf16 %v242
      %v275 = vunpack.c.l.bf16 %v243
      %v276 = vunpack.c.l.bf16 %v244
      %v277 = vunpack.c.l.bf16 %v245
      %v278 = vunpack.c.l.bf16 %v246
      %v279 = vunpack.c.l.bf16 %v247
      %v280 = vunpack.c.l.bf16 %v248
      %v281 = vunpack.c.l.bf16 %v249
      %v282 = vunpack.c.l.bf16 %v250
      %v283 = vunpack.c.l.bf16 %v251
      %v284 = vunpack.c.l.bf16 %v252
      %v285 = vunpack.c.l.bf16 %v253
      %v286 = vunpack.c.l.bf16 %v254
      %v287 = vunpack.c.l.bf16 %v255
      %v288 = vunpack.c.l.bf16 %v256
      %v289 = vunpack.c.l.bf16 %v257
      %v290 = vunpack.c.l.bf16 %v258
      %v291 = vunpack.c.l.bf16 %v259
      %v292 = vunpack.c.l.bf16 %v260
      %v293 = vunpack.c.l.bf16 %v261
      %v294 = vunpack.c.l.bf16 %v262
      %v295 = vunpack.c.l.bf16 %v263
      %v296 = vunpack.c.l.bf16 %v264
      %v297 = vld [vmem:[%s220] sm:$0x1]
      %v299 = vperm.slane %v297, 0
      %v301 = vmul.f32 %v265, %v299
      %v302 = vmul.f32 %v266, %v299
      %v303 = vmul.f32 %v267, %v299
      %v304 = vmul.f32 %v268, %v299
      %v305 = vmul.f32 %v269, %v299
      %v306 = vmul.f32 %v270, %v299
      %v307 = vmul.f32 %v271, %v299
      %v308 = vmul.f32 %v272, %v299
      %v309 = vmul.f32 %v273, %v299
      %v310 = vmul.f32 %v274, %v299
      %v311 = vmul.f32 %v275, %v299
      %v312 = vmul.f32 %v276, %v299
      %v313 = vmul.f32 %v277, %v299
      %v314 = vmul.f32 %v278, %v299
      %v315 = vmul.f32 %v279, %v299
      %v316 = vmul.f32 %v280, %v299
      %v317 = vmul.f32 %v281, %v299
      %v318 = vmul.f32 %v282, %v299
      %v319 = vmul.f32 %v283, %v299
      %v320 = vmul.f32 %v284, %v299
      %v321 = vmul.f32 %v285, %v299
      %v322 = vmul.f32 %v286, %v299
      %v323 = vmul.f32 %v287, %v299
      %v324 = vmul.f32 %v288, %v299
      %v325 = vmul.f32 %v289, %v299
      %v326 = vmul.f32 %v290, %v299
      %v327 = vmul.f32 %v291, %v299
      %v328 = vmul.f32 %v292, %v299
      %v329 = vmul.f32 %v293, %v299
      %v330 = vmul.f32 %v294, %v299
      %v331 = vmul.f32 %v295, %v299
      %v332 = vmul.f32 %v296, %v299
      %v333 = vld [vmem:[%s223] sm:$0x1]
      %v335 = vperm.slane %v333, 0
      %v337 = vadd.f32 %v301, %v335
      %v338 = vadd.f32 %v302, %v335
      %v339 = vadd.f32 %v303, %v335
      %v340 = vadd.f32 %v304, %v335
      %v341 = vadd.f32 %v305, %v335
      %v342 = vadd.f32 %v306, %v335
      %v343 = vadd.f32 %v307, %v335
      %v344 = vadd.f32 %v308, %v335
      %v345 = vadd.f32 %v309, %v335
      %v346 = vadd.f32 %v310, %v335
      %v347 = vadd.f32 %v311, %v335
      %v348 = vadd.f32 %v312, %v335
      %v349 = vadd.f32 %v313, %v335
      %v350 = vadd.f32 %v314, %v335
      %v351 = vadd.f32 %v315, %v335
      %v352 = vadd.f32 %v316, %v335
      %v353 = vadd.f32 %v317, %v335
      %v354 = vadd.f32 %v318, %v335
      %v355 = vadd.f32 %v319, %v335
      %v356 = vadd.f32 %v320, %v335
      %v357 = vadd.f32 %v321, %v335
      %v358 = vadd.f32 %v322, %v335
      %v359 = vadd.f32 %v323, %v335
      %v360 = vadd.f32 %v324, %v335
      %v361 = vadd.f32 %v325, %v335
      %v362 = vadd.f32 %v326, %v335
      %v363 = vadd.f32 %v327, %v335
      %v364 = vadd.f32 %v328, %v335
      %v365 = vadd.f32 %v329, %v335
      %v366 = vadd.f32 %v330, %v335
      %v367 = vadd.f32 %v331, %v335
      %v368 = vadd.f32 %v332, %v335
      %v369 = vxor.u32 %v337, 2147483648
      %v370 = vxor.u32 %v338, 2147483648
      %v371 = vxor.u32 %v339, 2147483648
      %v372 = vxor.u32 %v340, 2147483648
      %v373 = vxor.u32 %v341, 2147483648
      %v374 = vxor.u32 %v342, 2147483648
      %v375 = vxor.u32 %v343, 2147483648
      %v376 = vxor.u32 %v344, 2147483648
      %v377 = vxor.u32 %v345, 2147483648
      %v378 = vxor.u32 %v346, 2147483648
      %v379 = vxor.u32 %v347, 2147483648
      %v380 = vxor.u32 %v348, 2147483648
      %v381 = vxor.u32 %v349, 2147483648
      %v382 = vxor.u32 %v350, 2147483648
      %v383 = vxor.u32 %v351, 2147483648
      %v384 = vxor.u32 %v352, 2147483648
      %v385 = vxor.u32 %v353, 2147483648
      %v386 = vxor.u32 %v354, 2147483648
      %v387 = vxor.u32 %v355, 2147483648
      %v388 = vxor.u32 %v356, 2147483648
      %v389 = vxor.u32 %v357, 2147483648
      %v390 = vxor.u32 %v358, 2147483648
      %v391 = vxor.u32 %v359, 2147483648
      %v392 = vxor.u32 %v360, 2147483648
      %v393 = vxor.u32 %v361, 2147483648
      %v394 = vxor.u32 %v362, 2147483648
      %v395 = vxor.u32 %v363, 2147483648
      %v396 = vxor.u32 %v364, 2147483648
      %v397 = vxor.u32 %v365, 2147483648
      %v398 = vxor.u32 %v366, 2147483648
      %v399 = vxor.u32 %v367, 2147483648
      %v400 = vxor.u32 %v368, 2147483648
      %v401 = vmul.f32 %v369, 1.442695
      %v402 = vpow.pop %v401
      %v403 = vmul.f32 %v370, 1.442695
      %v404 = vpow.pop %v403
      %v405 = vmul.f32 %v371, 1.442695
      %v406 = vpow.pop %v405
      %v407 = vmul.f32 %v372, 1.442695
      %v408 = vpow.pop %v407
      %v409 = vmul.f32 %v373, 1.442695
      %v410 = vpow.pop %v409
      %v411 = vmul.f32 %v374, 1.442695
      %v412 = vpow.pop %v411
      %v413 = vmul.f32 %v375, 1.442695
      %v414 = vpow.pop %v413
      %v415 = vmul.f32 %v376, 1.442695
      %v416 = vpow.pop %v415
      %v417 = vmul.f32 %v377, 1.442695
      %v418 = vpow.pop %v417
      %v419 = vmul.f32 %v378, 1.442695
      %v420 = vpow.pop %v419
      %v421 = vmul.f32 %v379, 1.442695
      %v422 = vpow.pop %v421
      %v423 = vmul.f32 %v380, 1.442695
      %v424 = vpow.pop %v423
      %v425 = vmul.f32 %v381, 1.442695
      %v426 = vpow.pop %v425
      %v427 = vmul.f32 %v382, 1.442695
      %v428 = vpow.pop %v427
      %v429 = vmul.f32 %v383, 1.442695
      %v430 = vpow.pop %v429
      %v431 = vmul.f32 %v384, 1.442695
      %v432 = vpow.pop %v431
      %v433 = vmul.f32 %v385, 1.442695
      %v434 = vpow.pop %v433
      %v435 = vmul.f32 %v386, 1.442695
      %v436 = vpow.pop %v435
      %v437 = vmul.f32 %v387, 1.442695
      %v438 = vpow.pop %v437
      %v439 = vmul.f32 %v388, 1.442695
      %v440 = vpow.pop %v439
      %v441 = vmul.f32 %v389, 1.442695
      %v442 = vpow.pop %v441
      %v443 = vmul.f32 %v390, 1.442695
      %v444 = vpow.pop %v443
      %v445 = vmul.f32 %v391, 1.442695
      %v446 = vpow.pop %v445
      %v447 = vmul.f32 %v392, 1.442695
      %v448 = vpow.pop %v447
      %v449 = vmul.f32 %v393, 1.442695
      %v450 = vpow.pop %v449
      %v451 = vmul.f32 %v394, 1.442695
      %v452 = vpow.pop %v451
      %v453 = vmul.f32 %v395, 1.442695
      %v454 = vpow.pop %v453
      %v455 = vmul.f32 %v396, 1.442695
      %v456 = vpow.pop %v455
      %v457 = vmul.f32 %v397, 1.442695
      %v458 = vpow.pop %v457
      %v459 = vmul.f32 %v398, 1.442695
      %v460 = vpow.pop %v459
      %v461 = vmul.f32 %v399, 1.442695
      %v462 = vpow.pop %v461
      %v463 = vmul.f32 %v400, 1.442695
      %v464 = vpow.pop %v463
      %v465 = vadd.f32 %v402, 1.0
      %v466 = vadd.f32 %v404, 1.0
      %v467 = vadd.f32 %v406, 1.0
      %v468 = vadd.f32 %v408, 1.0
      %v469 = vadd.f32 %v410, 1.0
      %v470 = vadd.f32 %v412, 1.0
      %v471 = vadd.f32 %v414, 1.0
      %v472 = vadd.f32 %v416, 1.0
      %v473 = vadd.f32 %v418, 1.0
      %v474 = vadd.f32 %v420, 1.0
      %v475 = vadd.f32 %v422, 1.0
      %v476 = vadd.f32 %v424, 1.0
      %v477 = vadd.f32 %v426, 1.0
      %v478 = vadd.f32 %v428, 1.0
      %v479 = vadd.f32 %v430, 1.0
      %v480 = vadd.f32 %v432, 1.0
      %v481 = vadd.f32 %v434, 1.0
      %v482 = vadd.f32 %v436, 1.0
      %v483 = vadd.f32 %v438, 1.0
      %v484 = vadd.f32 %v440, 1.0
      %v485 = vadd.f32 %v442, 1.0
      %v486 = vadd.f32 %v444, 1.0
      %v487 = vadd.f32 %v446, 1.0
      %v488 = vadd.f32 %v448, 1.0
      %v489 = vadd.f32 %v450, 1.0
      %v490 = vadd.f32 %v452, 1.0
      %v491 = vadd.f32 %v454, 1.0
      %v492 = vadd.f32 %v456, 1.0
      %v493 = vadd.f32 %v458, 1.0
      %v494 = vadd.f32 %v460, 1.0
      %v495 = vadd.f32 %v462, 1.0
      %v496 = vadd.f32 %v464, 1.0
      %v497 = vrcp.pop %v465
      %v498 = vmul.f32 %v465, %v497
      %v499 = vsub.f32 1.0, %v498
      %v500 = vmul.f32 %v497, %v499
      %v501 = vadd.f32 %v497, %v500
      %vm502 = vweird.f32 %v465
      %vm503 = vweird.f32 %v497
      %vm504 = vmor %vm502, %vm503
      %v505 = vsel %vm504, %v497, %v501
      %v506 = vand.u32 2147483647, %v465
      %vm507 = vcmp.eq.f32.partialorder %v506, 8.507059e+37
      %v508 = vand.u32 %v465, 2147483648
      %v509 = vor.u32 1.1754944e-38, %v508
      %v510 = vsel %vm507, %v509, %v505
      %v511 = vmul.f32 1.0, %v510
      %v512 = vrcp.pop %v466
      %v513 = vmul.f32 %v466, %v512
      %v514 = vsub.f32 1.0, %v513
      %v515 = vmul.f32 %v512, %v514
      %v516 = vadd.f32 %v512, %v515
      %vm517 = vweird.f32 %v466
      %vm518 = vweird.f32 %v512
      %vm519 = vmor %vm517, %vm518
      %v520 = vsel %vm519, %v512, %v516
      %v521 = vand.u32 2147483647, %v466
      %vm522 = vcmp.eq.f32.partialorder %v521, 8.507059e+37
      %v523 = vand.u32 %v466, 2147483648
      %v524 = vor.u32 1.1754944e-38, %v523
      %v525 = vsel %vm522, %v524, %v520
      %v526 = vmul.f32 1.0, %v525
      %v527 = vrcp.pop %v467
      %v528 = vmul.f32 %v467, %v527
      %v529 = vsub.f32 1.0, %v528
      %v530 = vmul.f32 %v527, %v529
      %v531 = vadd.f32 %v527, %v530
      %vm532 = vweird.f32 %v467
      %vm533 = vweird.f32 %v527
      %vm534 = vmor %vm532, %vm533
      %v535 = vsel %vm534, %v527, %v531
      %v536 = vand.u32 2147483647, %v467
      %vm537 = vcmp.eq.f32.partialorder %v536, 8.507059e+37
      %v538 = vand.u32 %v467, 2147483648
      %v539 = vor.u32 1.1754944e-38, %v538
      %v540 = vsel %vm537, %v539, %v535
      %v541 = vmul.f32 1.0, %v540
      %v542 = vrcp.pop %v468
      %v543 = vmul.f32 %v468, %v542
      %v544 = vsub.f32 1.0, %v543
      %v545 = vmul.f32 %v542, %v544
      %v546 = vadd.f32 %v542, %v545
      %vm547 = vweird.f32 %v468
      %vm548 = vweird.f32 %v542
      %vm549 = vmor %vm547, %vm548
      %v550 = vsel %vm549, %v542, %v546
      %v551 = vand.u32 2147483647, %v468
      %vm552 = vcmp.eq.f32.partialorder %v551, 8.507059e+37
      %v553 = vand.u32 %v468, 2147483648
      %v554 = vor.u32 1.1754944e-38, %v553
      %v555 = vsel %vm552, %v554, %v550
      %v556 = vmul.f32 1.0, %v555
      %v557 = vrcp.pop %v469
      %v558 = vmul.f32 %v469, %v557
      %v559 = vsub.f32 1.0, %v558
      %v560 = vmul.f32 %v557, %v559
      %v561 = vadd.f32 %v557, %v560
      %vm562 = vweird.f32 %v469
      %vm563 = vweird.f32 %v557
      %vm564 = vmor %vm562, %vm563
      %v565 = vsel %vm564, %v557, %v561
      %v566 = vand.u32 2147483647, %v469
      %vm567 = vcmp.eq.f32.partialorder %v566, 8.507059e+37
      %v568 = vand.u32 %v469, 2147483648
      %v569 = vor.u32 1.1754944e-38, %v568
      %v570 = vsel %vm567, %v569, %v565
      %v571 = vmul.f32 1.0, %v570
      %v572 = vrcp.pop %v470
      %v573 = vmul.f32 %v470, %v572
      %v574 = vsub.f32 1.0, %v573
      %v575 = vmul.f32 %v572, %v574
      %v576 = vadd.f32 %v572, %v575
      %vm577 = vweird.f32 %v470
      %vm578 = vweird.f32 %v572
      %vm579 = vmor %vm577, %vm578
      %v580 = vsel %vm579, %v572, %v576
      %v581 = vand.u32 2147483647, %v470
      %vm582 = vcmp.eq.f32.partialorder %v581, 8.507059e+37
      %v583 = vand.u32 %v470, 2147483648
      %v584 = vor.u32 1.1754944e-38, %v583
      %v585 = vsel %vm582, %v584, %v580
      %v586 = vmul.f32 1.0, %v585
      %v587 = vrcp.pop %v471
      %v588 = vmul.f32 %v471, %v587
      %v589 = vsub.f32 1.0, %v588
      %v590 = vmul.f32 %v587, %v589
      %v591 = vadd.f32 %v587, %v590
      %vm592 = vweird.f32 %v471
      %vm593 = vweird.f32 %v587
      %vm594 = vmor %vm592, %vm593
      %v595 = vsel %vm594, %v587, %v591
      %v596 = vand.u32 2147483647, %v471
      %vm597 = vcmp.eq.f32.partialorder %v596, 8.507059e+37
      %v598 = vand.u32 %v471, 2147483648
      %v599 = vor.u32 1.1754944e-38, %v598
      %v600 = vsel %vm597, %v599, %v595
      %v601 = vmul.f32 1.0, %v600
      %v602 = vrcp.pop %v472
      %v603 = vmul.f32 %v472, %v602
      %v604 = vsub.f32 1.0, %v603
      %v605 = vmul.f32 %v602, %v604
      %v606 = vadd.f32 %v602, %v605
      %vm607 = vweird.f32 %v472
      %vm608 = vweird.f32 %v602
      %vm609 = vmor %vm607, %vm608
      %v610 = vsel %vm609, %v602, %v606
      %v611 = vand.u32 2147483647, %v472
      %vm612 = vcmp.eq.f32.partialorder %v611, 8.507059e+37
      %v613 = vand.u32 %v472, 2147483648
      %v614 = vor.u32 1.1754944e-38, %v613
      %v615 = vsel %vm612, %v614, %v610
      %v616 = vmul.f32 1.0, %v615
      %v617 = vrcp.pop %v473
      %v618 = vmul.f32 %v473, %v617
      %v619 = vsub.f32 1.0, %v618
      %v620 = vmul.f32 %v617, %v619
      %v621 = vadd.f32 %v617, %v620
      %vm622 = vweird.f32 %v473
      %vm623 = vweird.f32 %v617
      %vm624 = vmor %vm622, %vm623
      %v625 = vsel %vm624, %v617, %v621
      %v626 = vand.u32 2147483647, %v473
      %vm627 = vcmp.eq.f32.partialorder %v626, 8.507059e+37
      %v628 = vand.u32 %v473, 2147483648
      %v629 = vor.u32 1.1754944e-38, %v628
      %v630 = vsel %vm627, %v629, %v625
      %v631 = vmul.f32 1.0, %v630
      %v632 = vrcp.pop %v474
      %v633 = vmul.f32 %v474, %v632
      %v634 = vsub.f32 1.0, %v633
      %v635 = vmul.f32 %v632, %v634
      %v636 = vadd.f32 %v632, %v635
      %vm637 = vweird.f32 %v474
      %vm638 = vweird.f32 %v632
      %vm639 = vmor %vm637, %vm638
      %v640 = vsel %vm639, %v632, %v636
      %v641 = vand.u32 2147483647, %v474
      %vm642 = vcmp.eq.f32.partialorder %v641, 8.507059e+37
      %v643 = vand.u32 %v474, 2147483648
      %v644 = vor.u32 1.1754944e-38, %v643
      %v645 = vsel %vm642, %v644, %v640
      %v646 = vmul.f32 1.0, %v645
      %v647 = vrcp.pop %v475
      %v648 = vmul.f32 %v475, %v647
      %v649 = vsub.f32 1.0, %v648
      %v650 = vmul.f32 %v647, %v649
      %v651 = vadd.f32 %v647, %v650
      %vm652 = vweird.f32 %v475
      %vm653 = vweird.f32 %v647
      %vm654 = vmor %vm652, %vm653
      %v655 = vsel %vm654, %v647, %v651
      %v656 = vand.u32 2147483647, %v475
      %vm657 = vcmp.eq.f32.partialorder %v656, 8.507059e+37
      %v658 = vand.u32 %v475, 2147483648
      %v659 = vor.u32 1.1754944e-38, %v658
      %v660 = vsel %vm657, %v659, %v655
      %v661 = vmul.f32 1.0, %v660
      %v662 = vrcp.pop %v476
      %v663 = vmul.f32 %v476, %v662
      %v664 = vsub.f32 1.0, %v663
      %v665 = vmul.f32 %v662, %v664
      %v666 = vadd.f32 %v662, %v665
      %vm667 = vweird.f32 %v476
      %vm668 = vweird.f32 %v662
      %vm669 = vmor %vm667, %vm668
      %v670 = vsel %vm669, %v662, %v666
      %v671 = vand.u32 2147483647, %v476
      %vm672 = vcmp.eq.f32.partialorder %v671, 8.507059e+37
      %v673 = vand.u32 %v476, 2147483648
      %v674 = vor.u32 1.1754944e-38, %v673
      %v675 = vsel %vm672, %v674, %v670
      %v676 = vmul.f32 1.0, %v675
      %v677 = vrcp.pop %v477
      %v678 = vmul.f32 %v477, %v677
      %v679 = vsub.f32 1.0, %v678
      %v680 = vmul.f32 %v677, %v679
      %v681 = vadd.f32 %v677, %v680
      %vm682 = vweird.f32 %v477
      %vm683 = vweird.f32 %v677
      %vm684 = vmor %vm682, %vm683
      %v685 = vsel %vm684, %v677, %v681
      %v686 = vand.u32 2147483647, %v477
      %vm687 = vcmp.eq.f32.partialorder %v686, 8.507059e+37
      %v688 = vand.u32 %v477, 2147483648
      %v689 = vor.u32 1.1754944e-38, %v688
      %v690 = vsel %vm687, %v689, %v685
      %v691 = vmul.f32 1.0, %v690
      %v692 = vrcp.pop %v478
      %v693 = vmul.f32 %v478, %v692
      %v694 = vsub.f32 1.0, %v693
      %v695 = vmul.f32 %v692, %v694
      %v696 = vadd.f32 %v692, %v695
      %vm697 = vweird.f32 %v478
      %vm698 = vweird.f32 %v692
      %vm699 = vmor %vm697, %vm698
      %v700 = vsel %vm699, %v692, %v696
      %v701 = vand.u32 2147483647, %v478
      %vm702 = vcmp.eq.f32.partialorder %v701, 8.507059e+37
      %v703 = vand.u32 %v478, 2147483648
      %v704 = vor.u32 1.1754944e-38, %v703
      %v705 = vsel %vm702, %v704, %v700
      %v706 = vmul.f32 1.0, %v705
      %v707 = vrcp.pop %v479
      %v708 = vmul.f32 %v479, %v707
      %v709 = vsub.f32 1.0, %v708
      %v710 = vmul.f32 %v707, %v709
      %v711 = vadd.f32 %v707, %v710
      %vm712 = vweird.f32 %v479
      %vm713 = vweird.f32 %v707
      %vm714 = vmor %vm712, %vm713
      %v715 = vsel %vm714, %v707, %v711
      %v716 = vand.u32 2147483647, %v479
      %vm717 = vcmp.eq.f32.partialorder %v716, 8.507059e+37
      %v718 = vand.u32 %v479, 2147483648
      %v719 = vor.u32 1.1754944e-38, %v718
      %v720 = vsel %vm717, %v719, %v715
      %v721 = vmul.f32 1.0, %v720
      %v722 = vrcp.pop %v480
      %v723 = vmul.f32 %v480, %v722
      %v724 = vsub.f32 1.0, %v723
      %v725 = vmul.f32 %v722, %v724
      %v726 = vadd.f32 %v722, %v725
      %vm727 = vweird.f32 %v480
      %vm728 = vweird.f32 %v722
      %vm729 = vmor %vm727, %vm728
      %v730 = vsel %vm729, %v722, %v726
      %v731 = vand.u32 2147483647, %v480
      %vm732 = vcmp.eq.f32.partialorder %v731, 8.507059e+37
      %v733 = vand.u32 %v480, 2147483648
      %v734 = vor.u32 1.1754944e-38, %v733
      %v735 = vsel %vm732, %v734, %v730
      %v736 = vmul.f32 1.0, %v735
      %v737 = vrcp.pop %v481
      %v738 = vmul.f32 %v481, %v737
      %v739 = vsub.f32 1.0, %v738
      %v740 = vmul.f32 %v737, %v739
      %v741 = vadd.f32 %v737, %v740
      %vm742 = vweird.f32 %v481
      %vm743 = vweird.f32 %v737
      %vm744 = vmor %vm742, %vm743
      %v745 = vsel %vm744, %v737, %v741
      %v746 = vand.u32 2147483647, %v481
      %vm747 = vcmp.eq.f32.partialorder %v746, 8.507059e+37
      %v748 = vand.u32 %v481, 2147483648
      %v749 = vor.u32 1.1754944e-38, %v748
      %v750 = vsel %vm747, %v749, %v745
      %v751 = vmul.f32 1.0, %v750
      %v752 = vrcp.pop %v482
      %v753 = vmul.f32 %v482, %v752
      %v754 = vsub.f32 1.0, %v753
      %v755 = vmul.f32 %v752, %v754
      %v756 = vadd.f32 %v752, %v755
      %vm757 = vweird.f32 %v482
      %vm758 = vweird.f32 %v752
      %vm759 = vmor %vm757, %vm758
      %v760 = vsel %vm759, %v752, %v756
      %v761 = vand.u32 2147483647, %v482
      %vm762 = vcmp.eq.f32.partialorder %v761, 8.507059e+37
      %v763 = vand.u32 %v482, 2147483648
      %v764 = vor.u32 1.1754944e-38, %v763
      %v765 = vsel %vm762, %v764, %v760
      %v766 = vmul.f32 1.0, %v765
      %v767 = vrcp.pop %v483
      %v768 = vmul.f32 %v483, %v767
      %v769 = vsub.f32 1.0, %v768
      %v770 = vmul.f32 %v767, %v769
      %v771 = vadd.f32 %v767, %v770
      %vm772 = vweird.f32 %v483
      %vm773 = vweird.f32 %v767
      %vm774 = vmor %vm772, %vm773
      %v775 = vsel %vm774, %v767, %v771
      %v776 = vand.u32 2147483647, %v483
      %vm777 = vcmp.eq.f32.partialorder %v776, 8.507059e+37
      %v778 = vand.u32 %v483, 2147483648
      %v779 = vor.u32 1.1754944e-38, %v778
      %v780 = vsel %vm777, %v779, %v775
      %v781 = vmul.f32 1.0, %v780
      %v782 = vrcp.pop %v484
      %v783 = vmul.f32 %v484, %v782
      %v784 = vsub.f32 1.0, %v783
      %v785 = vmul.f32 %v782, %v784
      %v786 = vadd.f32 %v782, %v785
      %vm787 = vweird.f32 %v484
      %vm788 = vweird.f32 %v782
      %vm789 = vmor %vm787, %vm788
      %v790 = vsel %vm789, %v782, %v786
      %v791 = vand.u32 2147483647, %v484
      %vm792 = vcmp.eq.f32.partialorder %v791, 8.507059e+37
      %v793 = vand.u32 %v484, 2147483648
      %v794 = vor.u32 1.1754944e-38, %v793
      %v795 = vsel %vm792, %v794, %v790
      %v796 = vmul.f32 1.0, %v795
      %v797 = vrcp.pop %v485
      %v798 = vmul.f32 %v485, %v797
      %v799 = vsub.f32 1.0, %v798
      %v800 = vmul.f32 %v797, %v799
      %v801 = vadd.f32 %v797, %v800
      %vm802 = vweird.f32 %v485
      %vm803 = vweird.f32 %v797
      %vm804 = vmor %vm802, %vm803
      %v805 = vsel %vm804, %v797, %v801
      %v806 = vand.u32 2147483647, %v485
      %vm807 = vcmp.eq.f32.partialorder %v806, 8.507059e+37
      %v808 = vand.u32 %v485, 2147483648
      %v809 = vor.u32 1.1754944e-38, %v808
      %v810 = vsel %vm807, %v809, %v805
      %v811 = vmul.f32 1.0, %v810
      %v812 = vrcp.pop %v486
      %v813 = vmul.f32 %v486, %v812
      %v814 = vsub.f32 1.0, %v813
      %v815 = vmul.f32 %v812, %v814
      %v816 = vadd.f32 %v812, %v815
      %vm817 = vweird.f32 %v486
      %vm818 = vweird.f32 %v812
      %vm819 = vmor %vm817, %vm818
      %v820 = vsel %vm819, %v812, %v816
      %v821 = vand.u32 2147483647, %v486
      %vm822 = vcmp.eq.f32.partialorder %v821, 8.507059e+37
      %v823 = vand.u32 %v486, 2147483648
      %v824 = vor.u32 1.1754944e-38, %v823
      %v825 = vsel %vm822, %v824, %v820
      %v826 = vmul.f32 1.0, %v825
      %v827 = vrcp.pop %v487
      %v828 = vmul.f32 %v487, %v827
      %v829 = vsub.f32 1.0, %v828
      %v830 = vmul.f32 %v827, %v829
      %v831 = vadd.f32 %v827, %v830
      %vm832 = vweird.f32 %v487
      %vm833 = vweird.f32 %v827
      %vm834 = vmor %vm832, %vm833
      %v835 = vsel %vm834, %v827, %v831
      %v836 = vand.u32 2147483647, %v487
      %vm837 = vcmp.eq.f32.partialorder %v836, 8.507059e+37
      %v838 = vand.u32 %v487, 2147483648
      %v839 = vor.u32 1.1754944e-38, %v838
      %v840 = vsel %vm837, %v839, %v835
      %v841 = vmul.f32 1.0, %v840
      %v842 = vrcp.pop %v488
      %v843 = vmul.f32 %v488, %v842
      %v844 = vsub.f32 1.0, %v843
      %v845 = vmul.f32 %v842, %v844
      %v846 = vadd.f32 %v842, %v845
      %vm847 = vweird.f32 %v488
      %vm848 = vweird.f32 %v842
      %vm849 = vmor %vm847, %vm848
      %v850 = vsel %vm849, %v842, %v846
      %v851 = vand.u32 2147483647, %v488
      %vm852 = vcmp.eq.f32.partialorder %v851, 8.507059e+37
      %v853 = vand.u32 %v488, 2147483648
      %v854 = vor.u32 1.1754944e-38, %v853
      %v855 = vsel %vm852, %v854, %v850
      %v856 = vmul.f32 1.0, %v855
      %v857 = vrcp.pop %v489
      %v858 = vmul.f32 %v489, %v857
      %v859 = vsub.f32 1.0, %v858
      %v860 = vmul.f32 %v857, %v859
      %v861 = vadd.f32 %v857, %v860
      %vm862 = vweird.f32 %v489
      %vm863 = vweird.f32 %v857
      %vm864 = vmor %vm862, %vm863
      %v865 = vsel %vm864, %v857, %v861
      %v866 = vand.u32 2147483647, %v489
      %vm867 = vcmp.eq.f32.partialorder %v866, 8.507059e+37
      %v868 = vand.u32 %v489, 2147483648
      %v869 = vor.u32 1.1754944e-38, %v868
      %v870 = vsel %vm867, %v869, %v865
      %v871 = vmul.f32 1.0, %v870
      %v872 = vrcp.pop %v490
      %v873 = vmul.f32 %v490, %v872
      %v874 = vsub.f32 1.0, %v873
      %v875 = vmul.f32 %v872, %v874
      %v876 = vadd.f32 %v872, %v875
      %vm877 = vweird.f32 %v490
      %vm878 = vweird.f32 %v872
      %vm879 = vmor %vm877, %vm878
      %v880 = vsel %vm879, %v872, %v876
      %v881 = vand.u32 2147483647, %v490
      %vm882 = vcmp.eq.f32.partialorder %v881, 8.507059e+37
      %v883 = vand.u32 %v490, 2147483648
      %v884 = vor.u32 1.1754944e-38, %v883
      %v885 = vsel %vm882, %v884, %v880
      %v886 = vmul.f32 1.0, %v885
      %v887 = vrcp.pop %v491
      %v888 = vmul.f32 %v491, %v887
      %v889 = vsub.f32 1.0, %v888
      %v890 = vmul.f32 %v887, %v889
      %v891 = vadd.f32 %v887, %v890
      %vm892 = vweird.f32 %v491
      %vm893 = vweird.f32 %v887
      %vm894 = vmor %vm892, %vm893
      %v895 = vsel %vm894, %v887, %v891
      %v896 = vand.u32 2147483647, %v491
      %vm897 = vcmp.eq.f32.partialorder %v896, 8.507059e+37
      %v898 = vand.u32 %v491, 2147483648
      %v899 = vor.u32 1.1754944e-38, %v898
      %v900 = vsel %vm897, %v899, %v895
      %v901 = vmul.f32 1.0, %v900
      %v902 = vrcp.pop %v492
      %v903 = vmul.f32 %v492, %v902
      %v904 = vsub.f32 1.0, %v903
      %v905 = vmul.f32 %v902, %v904
      %v906 = vadd.f32 %v902, %v905
      %vm907 = vweird.f32 %v492
      %vm908 = vweird.f32 %v902
      %vm909 = vmor %vm907, %vm908
      %v910 = vsel %vm909, %v902, %v906
      %v911 = vand.u32 2147483647, %v492
      %vm912 = vcmp.eq.f32.partialorder %v911, 8.507059e+37
      %v913 = vand.u32 %v492, 2147483648
      %v914 = vor.u32 1.1754944e-38, %v913
      %v915 = vsel %vm912, %v914, %v910
      %v916 = vmul.f32 1.0, %v915
      %v917 = vrcp.pop %v493
      %v918 = vmul.f32 %v493, %v917
      %v919 = vsub.f32 1.0, %v918
      %v920 = vmul.f32 %v917, %v919
      %v921 = vadd.f32 %v917, %v920
      %vm922 = vweird.f32 %v493
      %vm923 = vweird.f32 %v917
      %vm924 = vmor %vm922, %vm923
      %v925 = vsel %vm924, %v917, %v921
      %v926 = vand.u32 2147483647, %v493
      %vm927 = vcmp.eq.f32.partialorder %v926, 8.507059e+37
      %v928 = vand.u32 %v493, 2147483648
      %v929 = vor.u32 1.1754944e-38, %v928
      %v930 = vsel %vm927, %v929, %v925
      %v931 = vmul.f32 1.0, %v930
      %v932 = vrcp.pop %v494
      %v933 = vmul.f32 %v494, %v932
      %v934 = vsub.f32 1.0, %v933
      %v935 = vmul.f32 %v932, %v934
      %v936 = vadd.f32 %v932, %v935
      %vm937 = vweird.f32 %v494
      %vm938 = vweird.f32 %v932
      %vm939 = vmor %vm937, %vm938
      %v940 = vsel %vm939, %v932, %v936
      %v941 = vand.u32 2147483647, %v494
      %vm942 = vcmp.eq.f32.partialorder %v941, 8.507059e+37
      %v943 = vand.u32 %v494, 2147483648
      %v944 = vor.u32 1.1754944e-38, %v943
      %v945 = vsel %vm942, %v944, %v940
      %v946 = vmul.f32 1.0, %v945
      %v947 = vrcp.pop %v495
      %v948 = vmul.f32 %v495, %v947
      %v949 = vsub.f32 1.0, %v948
      %v950 = vmul.f32 %v947, %v949
      %v951 = vadd.f32 %v947, %v950
      %vm952 = vweird.f32 %v495
      %vm953 = vweird.f32 %v947
      %vm954 = vmor %vm952, %vm953
      %v955 = vsel %vm954, %v947, %v951
      %v956 = vand.u32 2147483647, %v495
      %vm957 = vcmp.eq.f32.partialorder %v956, 8.507059e+37
      %v958 = vand.u32 %v495, 2147483648
      %v959 = vor.u32 1.1754944e-38, %v958
      %v960 = vsel %vm957, %v959, %v955
      %v961 = vmul.f32 1.0, %v960
      %v962 = vrcp.pop %v496
      %v963 = vmul.f32 %v496, %v962
      %v964 = vsub.f32 1.0, %v963
      %v965 = vmul.f32 %v962, %v964
      %v966 = vadd.f32 %v962, %v965
      %vm967 = vweird.f32 %v496
      %vm968 = vweird.f32 %v962
      %vm969 = vmor %vm967, %vm968
      %v970 = vsel %vm969, %v962, %v966
      %v971 = vand.u32 2147483647, %v496
      %vm972 = vcmp.eq.f32.partialorder %v971, 8.507059e+37
      %v973 = vand.u32 %v496, 2147483648
      %v974 = vor.u32 1.1754944e-38, %v973
      %v975 = vsel %vm972, %v974, %v970
      %v976 = vmul.f32 1.0, %v975
      %v977 = vmul.f32 %v337, %v511
      %v978 = vmul.f32 %v338, %v526
      %v979 = vmul.f32 %v339, %v541
      %v980 = vmul.f32 %v340, %v556
      %v981 = vmul.f32 %v341, %v571
      %v982 = vmul.f32 %v342, %v586
      %v983 = vmul.f32 %v343, %v601
      %v984 = vmul.f32 %v344, %v616
      %v985 = vmul.f32 %v345, %v631
      %v986 = vmul.f32 %v346, %v646
      %v987 = vmul.f32 %v347, %v661
      %v988 = vmul.f32 %v348, %v676
      %v989 = vmul.f32 %v349, %v691
      %v990 = vmul.f32 %v350, %v706
      %v991 = vmul.f32 %v351, %v721
      %v992 = vmul.f32 %v352, %v736
      %v993 = vmul.f32 %v353, %v751
      %v994 = vmul.f32 %v354, %v766
      %v995 = vmul.f32 %v355, %v781
      %v996 = vmul.f32 %v356, %v796
      %v997 = vmul.f32 %v357, %v811
      %v998 = vmul.f32 %v358, %v826
      %v999 = vmul.f32 %v359, %v841
      %v1000 = vmul.f32 %v360, %v856
      %v1001 = vmul.f32 %v361, %v871
      %v1002 = vmul.f32 %v362, %v886
      %v1003 = vmul.f32 %v363, %v901
      %v1004 = vmul.f32 %v364, %v916
      %v1005 = vmul.f32 %v365, %v931
      %v1006 = vmul.f32 %v366, %v946
      %v1007 = vmul.f32 %v367, %v961
      %v1008 = vmul.f32 %v368, %v976
      %v1009 = vpack.c.bf16 %v977, %v977
      %v1010 = vpack.c.bf16 %v978, %v978
      %v1011 = vpack.c.bf16 %v979, %v979
      %v1012 = vpack.c.bf16 %v980, %v980
      %v1013 = vpack.c.bf16 %v981, %v981
      %v1014 = vpack.c.bf16 %v982, %v982
      %v1015 = vpack.c.bf16 %v983, %v983
      %v1016 = vpack.c.bf16 %v984, %v984
      %v1017 = vpack.c.bf16 %v985, %v985
      %v1018 = vpack.c.bf16 %v986, %v986
      %v1019 = vpack.c.bf16 %v987, %v987
      %v1020 = vpack.c.bf16 %v988, %v988
      %v1021 = vpack.c.bf16 %v989, %v989
      %v1022 = vpack.c.bf16 %v990, %v990
      %v1023 = vpack.c.bf16 %v991, %v991
      %v1024 = vpack.c.bf16 %v992, %v992
      %v1025 = vpack.c.bf16 %v993, %v993
      %v1026 = vpack.c.bf16 %v994, %v994
      %v1027 = vpack.c.bf16 %v995, %v995
      %v1028 = vpack.c.bf16 %v996, %v996
      %v1029 = vpack.c.bf16 %v997, %v997
      %v1030 = vpack.c.bf16 %v998, %v998
      %v1031 = vpack.c.bf16 %v999, %v999
      %v1032 = vpack.c.bf16 %v1000, %v1000
      %v1033 = vpack.c.bf16 %v1001, %v1001
      %v1034 = vpack.c.bf16 %v1002, %v1002
      %v1035 = vpack.c.bf16 %v1003, %v1003
      %v1036 = vpack.c.bf16 %v1004, %v1004
      %v1037 = vpack.c.bf16 %v1005, %v1005
      %v1038 = vpack.c.bf16 %v1006, %v1006
      %v1039 = vpack.c.bf16 %v1007, %v1007
      %v1040 = vpack.c.bf16 %v1008, %v1008
      %1041 = vst [vmem:[%s231] sm:$0xf] %v1009
      %1042 = vst [vmem:[%s231 + $0x4] sm:$0xf] %v1010
      %1043 = vst [vmem:[%s231 + $0x8] sm:$0xf] %v1011
      %1044 = vst [vmem:[%s231 + $0xc] sm:$0xf] %v1012
      %1045 = vst [vmem:[%s231 + $0x10] sm:$0xf] %v1013
      %1046 = vst [vmem:[%s231 + $0x14] sm:$0xf] %v1014
      %1047 = vst [vmem:[%s231 + $0x18] sm:$0xf] %v1015
      %1048 = vst [vmem:[%s231 + $0x1c] sm:$0xf] %v1016
      %1049 = vst [vmem:[%s231 + $0x20] sm:$0xf] %v1017
      %1050 = vst [vmem:[%s231 + $0x24] sm:$0xf] %v1018
      %1051 = vst [vmem:[%s231 + $0x28] sm:$0xf] %v1019
      %1052 = vst [vmem:[%s231 + $0x2c] sm:$0xf] %v1020
      %1053 = vst [vmem:[%s231 + $0x30] sm:$0xf] %v1021
      %1054 = vst [vmem:[%s231 + $0x34] sm:$0xf] %v1022
      %1055 = vst [vmem:[%s231 + $0x38] sm:$0xf] %v1023
      %1056 = vst [vmem:[%s231 + $0x3c] sm:$0xf] %v1024
      %1057 = vst [vmem:[%s231 + $0x40] sm:$0xf] %v1025
      %1058 = vst [vmem:[%s231 + $0x44] sm:$0xf] %v1026
      %1059 = vst [vmem:[%s231 + $0x48] sm:$0xf] %v1027
      %1060 = vst [vmem:[%s231 + $0x4c] sm:$0xf] %v1028
      %1061 = vst [vmem:[%s231 + $0x50] sm:$0xf] %v1029
      %1062 = vst [vmem:[%s231 + $0x54] sm:$0xf] %v1030
      %1063 = vst [vmem:[%s231 + $0x58] sm:$0xf] %v1031
      %1064 = vst [vmem:[%s231 + $0x5c] sm:$0xf] %v1032
      %1065 = vst [vmem:[%s231 + $0x60] sm:$0xf] %v1033
      %1066 = vst [vmem:[%s231 + $0x64] sm:$0xf] %v1034
      %1067 = vst [vmem:[%s231 + $0x68] sm:$0xf] %v1035
      %1068 = vst [vmem:[%s231 + $0x6c] sm:$0xf] %v1036
      %1069 = vst [vmem:[%s231 + $0x70] sm:$0xf] %v1037
      %1070 = vst [vmem:[%s231 + $0x74] sm:$0xf] %v1038
      %1071 = vst [vmem:[%s231 + $0x78] sm:$0xf] %v1039
      %1072 = vst [vmem:[%s231 + $0x7c] sm:$0xf] %v1040
      %s1073 = smul.u32 32, %s18
      %p1074 = scmp.lt.s32.totalorder %s1073, 63
      %s1075 = scalar_select %p1074, %s1073, 63
      %p1076 = scmp.lt.s32.totalorder %s19, 0
      %s1077 = scalar_select %p1076, %s19, 0
      %s1078 = sadd.s32 %s1077, %s1075
      %s1079 = smul.addr %s1078, 4
      %s1080 = scalar_lea.vmem %s3, %s1079
      // Predicated region
      $region33: #{autoencoder_forward.15} parent=31 // pred_check
        %p1081 = pneg %p126
      $region34: #{autoencoder_forward.15} parent=31 // pred_check_branch
        %1083 = sbr.rel (%p1081) target = $region36
      $region35: #{autoencoder_forward.15} parent=31 // pred_region
        %s1084 = smul.u32 32, %s18
      $region36: #{autoencoder_forward.15} parent=31 // pred_fallthru
        _
    $region32: #{autoencoder_forward.15} parent=5 // pred_fallthru
      _
    %p1085 = scmp.le.s32.totalorder 2, %s9
    // Predicated region
    $region37: #{autoencoder_forward.15} parent=5 // pred_check
      %p1086 = pneg %p1085
    $region38: #{autoencoder_forward.15} parent=5 // pred_check_branch
      %1088 = sbr.rel (%p1086) target = $region40
    $region39: #{autoencoder_forward.15} parent=5 // pred_region
      %s1089 = ssub.s32 %s9, 2
      // Predicated region
      $region41: #{autoencoder_forward.15} parent=39 // pred_check
        %p1090 = pneg %p132
      $region42: #{autoencoder_forward.15} parent=39 // pred_check_branch
        %1092 = sbr.rel (%p1090) target = $region44
      $region43: #{autoencoder_forward.15} parent=39 // pred_region
        %s1093 = smul.u32 32, %s20
        %p1094 = scmp.lt.s32.totalorder %s1093, 63
        %s1095 = scalar_select %p1094, %s1093, 63
        %p1096 = scmp.lt.s32.totalorder %s21, 0
        %s1097 = scalar_select %p1096, %s21, 0
        %s1098 = sadd.s32 %s1097, %s1095
        %s1099 = smul.addr %s1098, 4
        %s1100 = scalar_lea.vmem %s3, %s1099
      $region44: #{autoencoder_forward.15} parent=39 // pred_fallthru
        _
    $region40: #{autoencoder_forward.15} parent=5 // pred_fallthru
      _
  $region6: #{autoencoder_forward.15} parent=0 // loop_footer
    %s13 = sadd.s32 1, %s9
  $region7: #{autoencoder_forward.15} parent=0 // loop_footer_branch
    %8 = sbr.rel target = $region3
  $region8: #{autoencoder_forward.15} parent=0 // loop_exit
    _

// kernel: autoencoder_forward.16
$region0: #{autoencoder_forward.16}
  #allocation0 [shape = 'u32[]', space=smem, size = 0x4, offset = 0x4, fixed_abs, tag = 'smem constant byte address 0x4 - core index']
  #allocation1 [shape = 'u32[72,128]{1,0:T(1,128)}', space=vmem, size = 0x9000, scoped, tag = 'internal scratch']
  %s0 = inlined_call_operand.vmem [shape: bf16[128,144], index: 0, kind: input, shape index: {}]
  %s1 = inlined_call_operand.vmem [shape: bf16[144,128], index: 1, kind: input, shape index: {}]
  %s2 = inlined_call_operand.vmem [shape: f32[1,128], index: 2, kind: input, shape index: {}]
  %s3 = inlined_call_operand.vmem [shape: bf16[128,128], index: 3, kind: output, shape index: {0}]
  %s4 = inlined_call_operand.vmem [shape: f32[1,1,128], index: 4, kind: output, shape index: {1}]
  %s5 = inlined_call_operand.vmem [shape: f32[1,1,128], index: 5, kind: output, shape index: {2}]
  %6 = xla_tuple %s3, %s4, %s5
  %s7 = sld [smem:[#allocation0]]
  $region38: #{autoencoder_forward.16} parent=0
    _
  %s9 = ssub.s32 1, %s7
  %s10 = scalar_select 0, %s9, %s7
  // Predicated region
  $region2: #{autoencoder_forward.16} parent=0 // pred_check
    _
  $region3: #{autoencoder_forward.16} parent=0 // pred_check_branch
    %12 = sbr.rel (0) target = $region5
  $region4: #{autoencoder_forward.16} parent=0 // pred_region
    _
  $region5: #{autoencoder_forward.16} parent=0 // pred_fallthru
    _
  // Predicated region
  $region6: #{autoencoder_forward.16} parent=0 // pred_check
    _
  $region7: #{autoencoder_forward.16} parent=0 // pred_check_branch
    %14 = sbr.rel (0) target = $region9
  $region8: #{autoencoder_forward.16} parent=0 // pred_region
    _
  $region9: #{autoencoder_forward.16} parent=0 // pred_fallthru
    _
  // Predicated region
  $region10: #{autoencoder_forward.16} parent=0 // pred_check
    _
  $region11: #{autoencoder_forward.16} parent=0 // pred_check_branch
    %16 = sbr.rel (0) target = $region13
  $region12: #{autoencoder_forward.16} parent=0 // pred_region
    _
  $region13: #{autoencoder_forward.16} parent=0 // pred_fallthru
    _
  %v18 = vld [vmem:[%s0] sm:$0xff]
  %v19 = vld [vmem:[%s0 + $0x8] sm:$0xff]
  %v20 = vld [vmem:[%s0 + $0x10] sm:$0xff]
  %v21 = vld [vmem:[%s0 + $0x18] sm:$0xff]
  %v22 = vld [vmem:[%s0 + $0x20] sm:$0xff]
  %v23 = vld [vmem:[%s0 + $0x28] sm:$0xff]
  %v24 = vld [vmem:[%s0 + $0x30] sm:$0xff]
  %v25 = vld [vmem:[%s0 + $0x38] sm:$0xff]
  %v26 = vld [vmem:[%s0 + $0x40] sm:$0xff]
  %v27 = vld [vmem:[%s0 + $0x48] sm:$0xff]
  %v28 = vld [vmem:[%s0 + $0x50] sm:$0xff]
  %v29 = vld [vmem:[%s0 + $0x58] sm:$0xff]
  %v30 = vld [vmem:[%s0 + $0x60] sm:$0xff]
  %v31 = vld [vmem:[%s0 + $0x68] sm:$0xff]
  %v32 = vld [vmem:[%s0 + $0x70] sm:$0xff]
  %v33 = vld [vmem:[%s0 + $0x78] sm:$0xff]
  %v34 = vld [vmem:[%s1] sm:$0xf]
  %v35 = vld [vmem:[%s1 + $0x4] sm:$0xf]
  %v36 = vld [vmem:[%s1 + $0x8] sm:$0xf]
  %v37 = vld [vmem:[%s1 + $0xc] sm:$0xf]
  %v38 = vld [vmem:[%s1 + $0x10] sm:$0xf]
  %v39 = vld [vmem:[%s1 + $0x14] sm:$0xf]
  %v40 = vld [vmem:[%s1 + $0x18] sm:$0xf]
  %v41 = vld [vmem:[%s1 + $0x1c] sm:$0xf]
  %v42 = vld [vmem:[%s1 + $0x20] sm:$0xf]
  %v43 = vld [vmem:[%s1 + $0x24] sm:$0xf]
  %v44 = vld [vmem:[%s1 + $0x28] sm:$0xf]
  %v45 = vld [vmem:[%s1 + $0x2c] sm:$0xf]
  %v46 = vld [vmem:[%s1 + $0x30] sm:$0xf]
  %v47 = vld [vmem:[%s1 + $0x34] sm:$0xf]
  %v48 = vld [vmem:[%s1 + $0x38] sm:$0xf]
  %v49 = vld [vmem:[%s1 + $0x3c] sm:$0xf]
  %v50 = vld [vmem:[%s1 + $0x40] sm:$0xf]
  %v51 = vld [vmem:[%s1 + $0x44] sm:$0xf]
  %v52 = vld [vmem:[%s2] sm:$0x1]
  %v54 = vperm.slane %v52, 0
  %v72 = vunpack.c.l.b16 %v18
  %v73 = vunpack.c.h.b16 %v18
  %v74 = vunpack.c.l.b16 %v19
  %v75 = vunpack.c.h.b16 %v19
  %v76 = vunpack.c.l.b16 %v20
  %v77 = vunpack.c.h.b16 %v20
  %v78 = vunpack.c.l.b16 %v21
  %v79 = vunpack.c.h.b16 %v21
  %v80 = vunpack.c.l.b16 %v22
  %v81 = vunpack.c.h.b16 %v22
  %v82 = vunpack.c.l.b16 %v23
  %v83 = vunpack.c.h.b16 %v23
  %v84 = vunpack.c.l.b16 %v24
  %v85 = vunpack.c.h.b16 %v24
  %v86 = vunpack.c.l.b16 %v25
  %v87 = vunpack.c.h.b16 %v25
  %v88 = vunpack.c.l.b16 %v26
  %v89 = vunpack.c.h.b16 %v26
  %v90 = vunpack.c.l.b16 %v27
  %v91 = vunpack.c.h.b16 %v27
  %v92 = vunpack.c.l.b16 %v28
  %v93 = vunpack.c.h.b16 %v28
  %v94 = vunpack.c.l.b16 %v29
  %v95 = vunpack.c.h.b16 %v29
  %v96 = vunpack.c.l.b16 %v30
  %v97 = vunpack.c.h.b16 %v30
  %v98 = vunpack.c.l.b16 %v31
  %v99 = vunpack.c.h.b16 %v31
  %v100 = vunpack.c.l.b16 %v32
  %v101 = vunpack.c.h.b16 %v32
  %v102 = vunpack.c.l.b16 %v33
  %v103 = vunpack.c.h.b16 %v33
  %v104 = vpack.c.b16 %v74, %v72
  %v105 = vpack.c.b16 %v75, %v73
  %v106 = vpack.c.b16 %v78, %v76
  %v107 = vpack.c.b16 %v79, %v77
  %v108 = vpack.c.b16 %v82, %v80
  %v109 = vpack.c.b16 %v83, %v81
  %v110 = vpack.c.b16 %v86, %v84
  %v111 = vpack.c.b16 %v87, %v85
  %v112 = vpack.c.b16 %v90, %v88
  %v113 = vpack.c.b16 %v91, %v89
  %v114 = vpack.c.b16 %v94, %v92
  %v115 = vpack.c.b16 %v95, %v93
  %v116 = vpack.c.b16 %v98, %v96
  %v117 = vpack.c.b16 %v99, %v97
  %v118 = vpack.c.b16 %v102, %v100
  %v119 = vpack.c.b16 %v103, %v101
  %v146 = vunpack.c.l.b16 %v34
  %v147 = vunpack.c.l.b16 %v35
  %v148 = vunpack.c.l.b16 %v36
  %v149 = vunpack.c.l.b16 %v37
  %v150 = vunpack.c.l.b16 %v38
  %v151 = vunpack.c.l.b16 %v39
  %v152 = vunpack.c.l.b16 %v40
  %v153 = vunpack.c.l.b16 %v41
  %v154 = vunpack.c.l.b16 %v42
  %v155 = vunpack.c.l.b16 %v43
  %v156 = vunpack.c.l.b16 %v44
  %v157 = vunpack.c.l.b16 %v45
  %v158 = vunpack.c.l.b16 %v46
  %v159 = vunpack.c.l.b16 %v47
  %v160 = vunpack.c.l.b16 %v48
  %v161 = vunpack.c.l.b16 %v49
  %v162 = vunpack.c.l.b16 %v50
  %v163 = vunpack.c.l.b16 %v51
  %v164 = vpack.c.b16 %v147, %v146
  %v165 = vpack.c.b16 %v149, %v148
  %v166 = vpack.c.b16 %v151, %v150
  %v167 = vpack.c.b16 %v153, %v152
  %v168 = vpack.c.b16 %v155, %v154
  %v169 = vpack.c.b16 %v157, %v156
  %v170 = vpack.c.b16 %v159, %v158
  %v171 = vpack.c.b16 %v161, %v160
  %v172 = vpack.c.b16 %v163, %v162
  %vm182 = vcmask 130048
  %v184 = vsel %vm182, %v105, 0
  %v187 = vsel %vm182, %v107, 0
  %v190 = vsel %vm182, %v109, 0
  %v193 = vsel %vm182, %v111, 0
  %v196 = vsel %vm182, %v113, 0
  %v199 = vsel %vm182, %v115, 0
  %v202 = vsel %vm182, %v117, 0
  %v205 = vsel %vm182, %v119, 0
  %207 = vmatpush.bf16.msra.mxu0 %v171
  %208 = vmatpush.bf16.msra.mxu0 %v170
  %209 = vmatpush.bf16.msra.mxu0 %v169
  %210 = vmatpush.bf16.msra.mxu0 %v168
  %211 = vmatpush.bf16.msra.mxu0 %v167
  %212 = vmatpush.bf16.msra.mxu0 %v166
  %213 = vmatpush.bf16.msra.mxu0 %v165
  %214 = vmatpush.bf16.msra.mxu0 %v164
  %215 = vmatmul.bf16.gmra.mxu0 %v104
  %v216 = vpop.f32.mrf.mxu0
  %v217 = vadd.f32 %v54, %v216
  %v218 = vpop.f32.mrf.mxu0
  %v219 = vadd.f32 %v54, %v218
  %220 = vmatmul.bf16.gmra.mxu0 %v106
  %v221 = vpop.f32.mrf.mxu0
  %v222 = vadd.f32 %v54, %v221
  %v223 = vpop.f32.mrf.mxu0
  %v224 = vadd.f32 %v54, %v223
  %225 = vmatmul.bf16.gmra.mxu0 %v108
  %v226 = vpop.f32.mrf.mxu0
  %v227 = vadd.f32 %v54, %v226
  %v228 = vpop.f32.mrf.mxu0
  %v229 = vadd.f32 %v54, %v228
  %230 = vmatmul.bf16.gmra.mxu0 %v110
  %v231 = vpop.f32.mrf.mxu0
  %v232 = vadd.f32 %v54, %v231
  %v233 = vpop.f32.mrf.mxu0
  %v234 = vadd.f32 %v54, %v233
  %235 = vmatmul.bf16.gmra.mxu0 %v112
  %v236 = vpop.f32.mrf.mxu0
  %v237 = vadd.f32 %v54, %v236
  %v238 = vpop.f32.mrf.mxu0
  %v239 = vadd.f32 %v54, %v238
  %240 = vmatmul.bf16.gmra.mxu0 %v114
  %v241 = vpop.f32.mrf.mxu0
  %v242 = vadd.f32 %v54, %v241
  %v243 = vpop.f32.mrf.mxu0
  %v244 = vadd.f32 %v54, %v243
  %245 = vmatmul.bf16.gmra.mxu0 %v116
  %v246 = vpop.f32.mrf.mxu0
  %v247 = vadd.f32 %v54, %v246
  %v248 = vpop.f32.mrf.mxu0
  %v249 = vadd.f32 %v54, %v248
  %250 = vmatmul.bf16.gmra.mxu0 %v118
  %v251 = vpop.f32.mrf.mxu0
  %v252 = vadd.f32 %v54, %v251
  %v253 = vpop.f32.mrf.mxu0
  %v254 = vadd.f32 %v54, %v253
  %255 = vdwg.mxu0
  %256 = vmatpush.bf16.msra.mxu0 0
  %257 = vmatpush.bf16.msra.mxu0 0
  %258 = vmatpush.bf16.msra.mxu0 0
  %259 = vmatpush.bf16.msra.mxu0 0
  %260 = vmatpush.bf16.msra.mxu0 0
  %261 = vmatpush.bf16.msra.mxu0 0
  %262 = vmatpush.bf16.msra.mxu0 0
  %263 = vmatpush.bf16.msra.mxu0 %v172
  %264 = vmatmul.bf16.gmra.mxu0 %v184
  %v265 = vpop.f32.mrf.mxu0
  %v266 = vadd.f32 %v217, %v265
  %v267 = vpop.f32.mrf.mxu0
  %v268 = vadd.f32 %v219, %v267
  %269 = vmatmul.bf16.gmra.mxu0 %v187
  %v270 = vpop.f32.mrf.mxu0
  %v271 = vadd.f32 %v222, %v270
  %v272 = vpop.f32.mrf.mxu0
  %v273 = vadd.f32 %v224, %v272
  %274 = vmatmul.bf16.gmra.mxu0 %v190
  %v275 = vpop.f32.mrf.mxu0
  %v276 = vadd.f32 %v227, %v275
  %v277 = vpop.f32.mrf.mxu0
  %v278 = vadd.f32 %v229, %v277
  %279 = vmatmul.bf16.gmra.mxu0 %v193
  %v280 = vpop.f32.mrf.mxu0
  %v281 = vadd.f32 %v232, %v280
  %v282 = vpop.f32.mrf.mxu0
  %v283 = vadd.f32 %v234, %v282
  %284 = vmatmul.bf16.gmra.mxu0 %v196
  %v285 = vpop.f32.mrf.mxu0
  %v286 = vadd.f32 %v237, %v285
  %v287 = vpop.f32.mrf.mxu0
  %v288 = vadd.f32 %v239, %v287
  %289 = vmatmul.bf16.gmra.mxu0 %v199
  %v290 = vpop.f32.mrf.mxu0
  %v291 = vadd.f32 %v242, %v290
  %v292 = vpop.f32.mrf.mxu0
  %v293 = vadd.f32 %v244, %v292
  %294 = vmatmul.bf16.gmra.mxu0 %v202
  %v295 = vpop.f32.mrf.mxu0
  %v296 = vadd.f32 %v247, %v295
  %v297 = vpop.f32.mrf.mxu0
  %v298 = vadd.f32 %v249, %v297
  %299 = vmatmul.bf16.gmra.mxu0 %v205
  %v300 = vpop.f32.mrf.mxu0
  %v301 = vadd.f32 %v252, %v300
  %v302 = vpop.f32.mrf.mxu0
  %v303 = vadd.f32 %v254, %v302
  %304 = vdwg.mxu0
  %v305 = vpack.c.bf16 %v266, %v266
  %v306 = vpack.c.bf16 %v268, %v268
  %v307 = vpack.c.bf16 %v271, %v271
  %v308 = vpack.c.bf16 %v273, %v273
  %v309 = vpack.c.bf16 %v276, %v276
  %v310 = vpack.c.bf16 %v278, %v278
  %v311 = vpack.c.bf16 %v281, %v281
  %v312 = vpack.c.bf16 %v283, %v283
  %v313 = vpack.c.bf16 %v286, %v286
  %v314 = vpack.c.bf16 %v288, %v288
  %v315 = vpack.c.bf16 %v291, %v291
  %v316 = vpack.c.bf16 %v293, %v293
  %v317 = vpack.c.bf16 %v296, %v296
  %v318 = vpack.c.bf16 %v298, %v298
  %v319 = vpack.c.bf16 %v301, %v301
  %v320 = vpack.c.bf16 %v303, %v303
  %321 = vst [vmem:[%s3] sm:$0xf] %v305
  %322 = vst [vmem:[%s3 + $0x4] sm:$0xf] %v306
  %323 = vst [vmem:[%s3 + $0x8] sm:$0xf] %v307
  %324 = vst [vmem:[%s3 + $0xc] sm:$0xf] %v308
  %325 = vst [vmem:[%s3 + $0x10] sm:$0xf] %v309
  %326 = vst [vmem:[%s3 + $0x14] sm:$0xf] %v310
  %327 = vst [vmem:[%s3 + $0x18] sm:$0xf] %v311
  %328 = vst [vmem:[%s3 + $0x1c] sm:$0xf] %v312
  %329 = vst [vmem:[%s3 + $0x20] sm:$0xf] %v313
  %330 = vst [vmem:[%s3 + $0x24] sm:$0xf] %v314
  %331 = vst [vmem:[%s3 + $0x28] sm:$0xf] %v315
  %332 = vst [vmem:[%s3 + $0x2c] sm:$0xf] %v316
  %333 = vst [vmem:[%s3 + $0x30] sm:$0xf] %v317
  %334 = vst [vmem:[%s3 + $0x34] sm:$0xf] %v318
  %335 = vst [vmem:[%s3 + $0x38] sm:$0xf] %v319
  %336 = vst [vmem:[%s3 + $0x3c] sm:$0xf] %v320
  %v337 = vadd.f32 %v266, %v268
  %v338 = vadd.f32 %v337, %v271
  %v339 = vadd.f32 %v338, %v273
  %v340 = vadd.f32 %v339, %v276
  %v341 = vadd.f32 %v340, %v278
  %v342 = vadd.f32 %v341, %v281
  %v343 = vadd.f32 %v342, %v283
  %v344 = vadd.f32 %v343, %v286
  %v345 = vadd.f32 %v344, %v288
  %v346 = vadd.f32 %v345, %v291
  %v347 = vadd.f32 %v346, %v293
  %v348 = vadd.f32 %v347, %v296
  %v349 = vadd.f32 %v348, %v298
  %v350 = vadd.f32 %v349, %v301
  %v351 = vadd.f32 %v350, %v303
  %v352 = vrot.slane %v351, 4
  %v353 = vadd.f32 %v351, %v352
  %v354 = vrot.slane %v353, 2
  %v355 = vadd.f32 %v353, %v354
  %v356 = vrot.slane %v355, 1
  %v357 = vadd.f32 %v355, %v356
  %358 = vst [vmem:[%s4] sm:$0x1] %v357
  %v359 = vmul.f32 %v266, %v266
  %v360 = vmul.f32 %v268, %v268
  %v361 = vmul.f32 %v271, %v271
  %v362 = vmul.f32 %v273, %v273
  %v363 = vmul.f32 %v276, %v276
  %v364 = vmul.f32 %v278, %v278
  %v365 = vmul.f32 %v281, %v281
  %v366 = vmul.f32 %v283, %v283
  %v367 = vmul.f32 %v286, %v286
  %v368 = vmul.f32 %v288, %v288
  %v369 = vmul.f32 %v291, %v291
  %v370 = vmul.f32 %v293, %v293
  %v371 = vmul.f32 %v296, %v296
  %v372 = vmul.f32 %v298, %v298
  %v373 = vmul.f32 %v301, %v301
  %v374 = vmul.f32 %v303, %v303
  %v375 = vadd.f32 %v359, %v360
  %v376 = vadd.f32 %v375, %v361
  %v377 = vadd.f32 %v376, %v362
  %v378 = vadd.f32 %v377, %v363
  %v379 = vadd.f32 %v378, %v364
  %v380 = vadd.f32 %v379, %v365
  %v381 = vadd.f32 %v380, %v366
  %v382 = vadd.f32 %v381, %v367
  %v383 = vadd.f32 %v382, %v368
  %v384 = vadd.f32 %v383, %v369
  %v385 = vadd.f32 %v384, %v370
  %v386 = vadd.f32 %v385, %v371
  %v387 = vadd.f32 %v386, %v372
  %v388 = vadd.f32 %v387, %v373
  %v389 = vadd.f32 %v388, %v374
  %v390 = vrot.slane %v389, 4
  %v391 = vadd.f32 %v389, %v390
  %v392 = vrot.slane %v391, 2
  %v393 = vadd.f32 %v391, %v392
  %v394 = vrot.slane %v393, 1
  %v395 = vadd.f32 %v393, %v394
  %396 = vst [vmem:[%s5] sm:$0x1] %v395
  // Predicated region
  $region14: #{autoencoder_forward.16} parent=0 // pred_check
    _
  $region15: #{autoencoder_forward.16} parent=0 // pred_check_branch
    %398 = sbr.rel (0) target = $region17
  $region16: #{autoencoder_forward.16} parent=0 // pred_region
    _
  $region17: #{autoencoder_forward.16} parent=0 // pred_fallthru
    _
  // Predicated region
  $region18: #{autoencoder_forward.16} parent=0 // pred_check
    _
  $region19: #{autoencoder_forward.16} parent=0 // pred_check_branch
    %400 = sbr.rel (0) target = $region21
  $region20: #{autoencoder_forward.16} parent=0 // pred_region
    _
  $region21: #{autoencoder_forward.16} parent=0 // pred_fallthru
    _
  // Predicated region
  $region22: #{autoencoder_forward.16} parent=0 // pred_check
    _
  $region23: #{autoencoder_forward.16} parent=0 // pred_check_branch
    %402 = sbr.rel (0) target = $region25
  $region24: #{autoencoder_forward.16} parent=0 // pred_region
    _
  $region25: #{autoencoder_forward.16} parent=0 // pred_fallthru
    _
  // Predicated region
  $region26: #{autoencoder_forward.16} parent=0 // pred_check
    _
  $region27: #{autoencoder_forward.16} parent=0 // pred_check_branch
    %404 = sbr.rel (0) target = $region29
  $region28: #{autoencoder_forward.16} parent=0 // pred_region
    _
  $region29: #{autoencoder_forward.16} parent=0 // pred_fallthru
    _
  // Predicated region
  $region30: #{autoencoder_forward.16} parent=0 // pred_check
    _
  $region31: #{autoencoder_forward.16} parent=0 // pred_check_branch
    %406 = sbr.rel (0) target = $region33
  $region32: #{autoencoder_forward.16} parent=0 // pred_region
    _
  $region33: #{autoencoder_forward.16} parent=0 // pred_fallthru
    _
  // Predicated region
  $region34: #{autoencoder_forward.16} parent=0 // pred_check
    _
  $region35: #{autoencoder_forward.16} parent=0 // pred_check_branch
    %408 = sbr.rel (0) target = $region37
  $region36: #{autoencoder_forward.16} parent=0 // pred_region
    _
  $region37: #{autoencoder_forward.16} parent=0 // pred_fallthru
    _

// kernel: autoencoder_forward.17
$region0: #{autoencoder_forward.17}
  #allocation0 [shape = 'u32[]', space=smem, size = 0x4, offset = 0x4, fixed_abs, tag = 'smem constant byte address 0x4 - core index']
  #allocation1 [shape = 'u32[72,128]{1,0:T(1,128)}', space=vmem, size = 0x9000, scoped, tag = 'internal scratch']
  %s0 = inlined_call_operand.vmem [shape: bf16[128,128], index: 0, kind: input, shape index: {}]
  %s1 = inlined_call_operand.vmem [shape: f32[1,128], index: 1, kind: input, shape index: {}]
  %s2 = inlined_call_operand.vmem [shape: f32[1,128], index: 2, kind: input, shape index: {}]
  %s3 = inlined_call_operand.vmem [shape: bf16[128,128], index: 3, kind: output, shape index: {}]
  %s4 = sld [smem:[#allocation0]]
  $region22: #{autoencoder_forward.17} parent=0
    _
  %s6 = ssub.s32 1, %s4
  %s7 = scalar_select 0, %s6, %s4
  // Predicated region
  $region2: #{autoencoder_forward.17} parent=0 // pred_check
    _
  $region3: #{autoencoder_forward.17} parent=0 // pred_check_branch
    %9 = sbr.rel (0) target = $region5
  $region4: #{autoencoder_forward.17} parent=0 // pred_region
    _
  $region5: #{autoencoder_forward.17} parent=0 // pred_fallthru
    _
  // Predicated region
  $region6: #{autoencoder_forward.17} parent=0 // pred_check
    _
  $region7: #{autoencoder_forward.17} parent=0 // pred_check_branch
    %11 = sbr.rel (0) target = $region9
  $region8: #{autoencoder_forward.17} parent=0 // pred_region
    _
  $region9: #{autoencoder_forward.17} parent=0 // pred_fallthru
    _
  // Predicated region
  $region10: #{autoencoder_forward.17} parent=0 // pred_check
    _
  $region11: #{autoencoder_forward.17} parent=0 // pred_check_branch
    %13 = sbr.rel (0) target = $region13
  $region12: #{autoencoder_forward.17} parent=0 // pred_region
    _
  $region13: #{autoencoder_forward.17} parent=0 // pred_fallthru
    _
  %v14 = vld [vmem:[%s0] sm:$0xf]
  %v15 = vld [vmem:[%s0 + $0x4] sm:$0xf]
  %v16 = vld [vmem:[%s0 + $0x8] sm:$0xf]
  %v17 = vld [vmem:[%s0 + $0xc] sm:$0xf]
  %v18 = vld [vmem:[%s0 + $0x10] sm:$0xf]
  %v19 = vld [vmem:[%s0 + $0x14] sm:$0xf]
  %v20 = vld [vmem:[%s0 + $0x18] sm:$0xf]
  %v21 = vld [vmem:[%s0 + $0x1c] sm:$0xf]
  %v22 = vld [vmem:[%s0 + $0x20] sm:$0xf]
  %v23 = vld [vmem:[%s0 + $0x24] sm:$0xf]
  %v24 = vld [vmem:[%s0 + $0x28] sm:$0xf]
  %v25 = vld [vmem:[%s0 + $0x2c] sm:$0xf]
  %v26 = vld [vmem:[%s0 + $0x30] sm:$0xf]
  %v27 = vld [vmem:[%s0 + $0x34] sm:$0xf]
  %v28 = vld [vmem:[%s0 + $0x38] sm:$0xf]
  %v29 = vld [vmem:[%s0 + $0x3c] sm:$0xf]
  %v30 = vunpack.c.l.bf16 %v14
  %v31 = vunpack.c.l.bf16 %v15
  %v32 = vunpack.c.l.bf16 %v16
  %v33 = vunpack.c.l.bf16 %v17
  %v34 = vunpack.c.l.bf16 %v18
  %v35 = vunpack.c.l.bf16 %v19
  %v36 = vunpack.c.l.bf16 %v20
  %v37 = vunpack.c.l.bf16 %v21
  %v38 = vunpack.c.l.bf16 %v22
  %v39 = vunpack.c.l.bf16 %v23
  %v40 = vunpack.c.l.bf16 %v24
  %v41 = vunpack.c.l.bf16 %v25
  %v42 = vunpack.c.l.bf16 %v26
  %v43 = vunpack.c.l.bf16 %v27
  %v44 = vunpack.c.l.bf16 %v28
  %v45 = vunpack.c.l.bf16 %v29
  %v46 = vld [vmem:[%s1] sm:$0x1]
  %v48 = vperm.slane %v46, 0
  %v50 = vmul.f32 %v30, %v48
  %v51 = vmul.f32 %v31, %v48
  %v52 = vmul.f32 %v32, %v48
  %v53 = vmul.f32 %v33, %v48
  %v54 = vmul.f32 %v34, %v48
  %v55 = vmul.f32 %v35, %v48
  %v56 = vmul.f32 %v36, %v48
  %v57 = vmul.f32 %v37, %v48
  %v58 = vmul.f32 %v38, %v48
  %v59 = vmul.f32 %v39, %v48
  %v60 = vmul.f32 %v40, %v48
  %v61 = vmul.f32 %v41, %v48
  %v62 = vmul.f32 %v42, %v48
  %v63 = vmul.f32 %v43, %v48
  %v64 = vmul.f32 %v44, %v48
  %v65 = vmul.f32 %v45, %v48
  %v66 = vld [vmem:[%s2] sm:$0x1]
  %v68 = vperm.slane %v66, 0
  %v70 = vadd.f32 %v50, %v68
  %v71 = vadd.f32 %v51, %v68
  %v72 = vadd.f32 %v52, %v68
  %v73 = vadd.f32 %v53, %v68
  %v74 = vadd.f32 %v54, %v68
  %v75 = vadd.f32 %v55, %v68
  %v76 = vadd.f32 %v56, %v68
  %v77 = vadd.f32 %v57, %v68
  %v78 = vadd.f32 %v58, %v68
  %v79 = vadd.f32 %v59, %v68
  %v80 = vadd.f32 %v60, %v68
  %v81 = vadd.f32 %v61, %v68
  %v82 = vadd.f32 %v62, %v68
  %v83 = vadd.f32 %v63, %v68
  %v84 = vadd.f32 %v64, %v68
  %v85 = vadd.f32 %v65, %v68
  %v86 = vxor.u32 %v70, 2147483648
  %v87 = vxor.u32 %v71, 2147483648
  %v88 = vxor.u32 %v72, 2147483648
  %v89 = vxor.u32 %v73, 2147483648
  %v90 = vxor.u32 %v74, 2147483648
  %v91 = vxor.u32 %v75, 2147483648
  %v92 = vxor.u32 %v76, 2147483648
  %v93 = vxor.u32 %v77, 2147483648
  %v94 = vxor.u32 %v78, 2147483648
  %v95 = vxor.u32 %v79, 2147483648
  %v96 = vxor.u32 %v80, 2147483648
  %v97 = vxor.u32 %v81, 2147483648
  %v98 = vxor.u32 %v82, 2147483648
  %v99 = vxor.u32 %v83, 2147483648
  %v100 = vxor.u32 %v84, 2147483648
  %v101 = vxor.u32 %v85, 2147483648
  %v102 = vmul.f32 %v86, 1.442695
  %v103 = vpow.pop %v102
  %v104 = vmul.f32 %v87, 1.442695
  %v105 = vpow.pop %v104
  %v106 = vmul.f32 %v88, 1.442695
  %v107 = vpow.pop %v106
  %v108 = vmul.f32 %v89, 1.442695
  %v109 = vpow.pop %v108
  %v110 = vmul.f32 %v90, 1.442695
  %v111 = vpow.pop %v110
  %v112 = vmul.f32 %v91, 1.442695
  %v113 = vpow.pop %v112
  %v114 = vmul.f32 %v92, 1.442695
  %v115 = vpow.pop %v114
  %v116 = vmul.f32 %v93, 1.442695
  %v117 = vpow.pop %v116
  %v118 = vmul.f32 %v94, 1.442695
  %v119 = vpow.pop %v118
  %v120 = vmul.f32 %v95, 1.442695
  %v121 = vpow.pop %v120
  %v122 = vmul.f32 %v96, 1.442695
  %v123 = vpow.pop %v122
  %v124 = vmul.f32 %v97, 1.442695
  %v125 = vpow.pop %v124
  %v126 = vmul.f32 %v98, 1.442695
  %v127 = vpow.pop %v126
  %v128 = vmul.f32 %v99, 1.442695
  %v129 = vpow.pop %v128
  %v130 = vmul.f32 %v100, 1.442695
  %v131 = vpow.pop %v130
  %v132 = vmul.f32 %v101, 1.442695
  %v133 = vpow.pop %v132
  %v134 = vadd.f32 %v103, 1.0
  %v135 = vadd.f32 %v105, 1.0
  %v136 = vadd.f32 %v107, 1.0
  %v137 = vadd.f32 %v109, 1.0
  %v138 = vadd.f32 %v111, 1.0
  %v139 = vadd.f32 %v113, 1.0
  %v140 = vadd.f32 %v115, 1.0
  %v141 = vadd.f32 %v117, 1.0
  %v142 = vadd.f32 %v119, 1.0
  %v143 = vadd.f32 %v121, 1.0
  %v144 = vadd.f32 %v123, 1.0
  %v145 = vadd.f32 %v125, 1.0
  %v146 = vadd.f32 %v127, 1.0
  %v147 = vadd.f32 %v129, 1.0
  %v148 = vadd.f32 %v131, 1.0
  %v149 = vadd.f32 %v133, 1.0
  %v150 = vrcp.pop %v134
  %v151 = vmul.f32 %v134, %v150
  %v152 = vsub.f32 1.0, %v151
  %v153 = vmul.f32 %v150, %v152
  %v154 = vadd.f32 %v150, %v153
  %vm155 = vweird.f32 %v134
  %vm156 = vweird.f32 %v150
  %vm157 = vmor %vm155, %vm156
  %v158 = vsel %vm157, %v150, %v154
  %v159 = vand.u32 2147483647, %v134
  %vm160 = vcmp.eq.f32.partialorder %v159, 8.507059e+37
  %v161 = vand.u32 %v134, 2147483648
  %v162 = vor.u32 1.1754944e-38, %v161
  %v163 = vsel %vm160, %v162, %v158
  %v164 = vmul.f32 1.0, %v163
  %v165 = vrcp.pop %v135
  %v166 = vmul.f32 %v135, %v165
  %v167 = vsub.f32 1.0, %v166
  %v168 = vmul.f32 %v165, %v167
  %v169 = vadd.f32 %v165, %v168
  %vm170 = vweird.f32 %v135
  %vm171 = vweird.f32 %v165
  %vm172 = vmor %vm170, %vm171
  %v173 = vsel %vm172, %v165, %v169
  %v174 = vand.u32 2147483647, %v135
  %vm175 = vcmp.eq.f32.partialorder %v174, 8.507059e+37
  %v176 = vand.u32 %v135, 2147483648
  %v177 = vor.u32 1.1754944e-38, %v176
  %v178 = vsel %vm175, %v177, %v173
  %v179 = vmul.f32 1.0, %v178
  %v180 = vrcp.pop %v136
  %v181 = vmul.f32 %v136, %v180
  %v182 = vsub.f32 1.0, %v181
  %v183 = vmul.f32 %v180, %v182
  %v184 = vadd.f32 %v180, %v183
  %vm185 = vweird.f32 %v136
  %vm186 = vweird.f32 %v180
  %vm187 = vmor %vm185, %vm186
  %v188 = vsel %vm187, %v180, %v184
  %v189 = vand.u32 2147483647, %v136
  %vm190 = vcmp.eq.f32.partialorder %v189, 8.507059e+37
  %v191 = vand.u32 %v136, 2147483648
  %v192 = vor.u32 1.1754944e-38, %v191
  %v193 = vsel %vm190, %v192, %v188
  %v194 = vmul.f32 1.0, %v193
  %v195 = vrcp.pop %v137
  %v196 = vmul.f32 %v137, %v195
  %v197 = vsub.f32 1.0, %v196
  %v198 = vmul.f32 %v195, %v197
  %v199 = vadd.f32 %v195, %v198
  %vm200 = vweird.f32 %v137
  %vm201 = vweird.f32 %v195
  %vm202 = vmor %vm200, %vm201
  %v203 = vsel %vm202, %v195, %v199
  %v204 = vand.u32 2147483647, %v137
  %vm205 = vcmp.eq.f32.partialorder %v204, 8.507059e+37
  %v206 = vand.u32 %v137, 2147483648
  %v207 = vor.u32 1.1754944e-38, %v206
  %v208 = vsel %vm205, %v207, %v203
  %v209 = vmul.f32 1.0, %v208
  %v210 = vrcp.pop %v138
  %v211 = vmul.f32 %v138, %v210
  %v212 = vsub.f32 1.0, %v211
  %v213 = vmul.f32 %v210, %v212
  %v214 = vadd.f32 %v210, %v213
  %vm215 = vweird.f32 %v138
  %vm216 = vweird.f32 %v210
  %vm217 = vmor %vm215, %vm216
  %v218 = vsel %vm217, %v210, %v214
  %v219 = vand.u32 2147483647, %v138
  %vm220 = vcmp.eq.f32.partialorder %v219, 8.507059e+37
  %v221 = vand.u32 %v138, 2147483648
  %v222 = vor.u32 1.1754944e-38, %v221
  %v223 = vsel %vm220, %v222, %v218
  %v224 = vmul.f32 1.0, %v223
  %v225 = vrcp.pop %v139
  %v226 = vmul.f32 %v139, %v225
  %v227 = vsub.f32 1.0, %v226
  %v228 = vmul.f32 %v225, %v227
  %v229 = vadd.f32 %v225, %v228
  %vm230 = vweird.f32 %v139
  %vm231 = vweird.f32 %v225
  %vm232 = vmor %vm230, %vm231
  %v233 = vsel %vm232, %v225, %v229
  %v234 = vand.u32 2147483647, %v139
  %vm235 = vcmp.eq.f32.partialorder %v234, 8.507059e+37
  %v236 = vand.u32 %v139, 2147483648
  %v237 = vor.u32 1.1754944e-38, %v236
  %v238 = vsel %vm235, %v237, %v233
  %v239 = vmul.f32 1.0, %v238
  %v240 = vrcp.pop %v140
  %v241 = vmul.f32 %v140, %v240
  %v242 = vsub.f32 1.0, %v241
  %v243 = vmul.f32 %v240, %v242
  %v244 = vadd.f32 %v240, %v243
  %vm245 = vweird.f32 %v140
  %vm246 = vweird.f32 %v240
  %vm247 = vmor %vm245, %vm246
  %v248 = vsel %vm247, %v240, %v244
  %v249 = vand.u32 2147483647, %v140
  %vm250 = vcmp.eq.f32.partialorder %v249, 8.507059e+37
  %v251 = vand.u32 %v140, 2147483648
  %v252 = vor.u32 1.1754944e-38, %v251
  %v253 = vsel %vm250, %v252, %v248
  %v254 = vmul.f32 1.0, %v253
  %v255 = vrcp.pop %v141
  %v256 = vmul.f32 %v141, %v255
  %v257 = vsub.f32 1.0, %v256
  %v258 = vmul.f32 %v255, %v257
  %v259 = vadd.f32 %v255, %v258
  %vm260 = vweird.f32 %v141
  %vm261 = vweird.f32 %v255
  %vm262 = vmor %vm260, %vm261
  %v263 = vsel %vm262, %v255, %v259
  %v264 = vand.u32 2147483647, %v141
  %vm265 = vcmp.eq.f32.partialorder %v264, 8.507059e+37
  %v266 = vand.u32 %v141, 2147483648
  %v267 = vor.u32 1.1754944e-38, %v266
  %v268 = vsel %vm265, %v267, %v263
  %v269 = vmul.f32 1.0, %v268
  %v270 = vrcp.pop %v142
  %v271 = vmul.f32 %v142, %v270
  %v272 = vsub.f32 1.0, %v271
  %v273 = vmul.f32 %v270, %v272
  %v274 = vadd.f32 %v270, %v273
  %vm275 = vweird.f32 %v142
  %vm276 = vweird.f32 %v270
  %vm277 = vmor %vm275, %vm276
  %v278 = vsel %vm277, %v270, %v274
  %v279 = vand.u32 2147483647, %v142
  %vm280 = vcmp.eq.f32.partialorder %v279, 8.507059e+37
  %v281 = vand.u32 %v142, 2147483648
  %v282 = vor.u32 1.1754944e-38, %v281
  %v283 = vsel %vm280, %v282, %v278
  %v284 = vmul.f32 1.0, %v283
  %v285 = vrcp.pop %v143
  %v286 = vmul.f32 %v143, %v285
  %v287 = vsub.f32 1.0, %v286
  %v288 = vmul.f32 %v285, %v287
  %v289 = vadd.f32 %v285, %v288
  %vm290 = vweird.f32 %v143
  %vm291 = vweird.f32 %v285
  %vm292 = vmor %vm290, %vm291
  %v293 = vsel %vm292, %v285, %v289
  %v294 = vand.u32 2147483647, %v143
  %vm295 = vcmp.eq.f32.partialorder %v294, 8.507059e+37
  %v296 = vand.u32 %v143, 2147483648
  %v297 = vor.u32 1.1754944e-38, %v296
  %v298 = vsel %vm295, %v297, %v293
  %v299 = vmul.f32 1.0, %v298
  %v300 = vrcp.pop %v144
  %v301 = vmul.f32 %v144, %v300
  %v302 = vsub.f32 1.0, %v301
  %v303 = vmul.f32 %v300, %v302
  %v304 = vadd.f32 %v300, %v303
  %vm305 = vweird.f32 %v144
  %vm306 = vweird.f32 %v300
  %vm307 = vmor %vm305, %vm306
  %v308 = vsel %vm307, %v300, %v304
  %v309 = vand.u32 2147483647, %v144
  %vm310 = vcmp.eq.f32.partialorder %v309, 8.507059e+37
  %v311 = vand.u32 %v144, 2147483648
  %v312 = vor.u32 1.1754944e-38, %v311
  %v313 = vsel %vm310, %v312, %v308
  %v314 = vmul.f32 1.0, %v313
  %v315 = vrcp.pop %v145
  %v316 = vmul.f32 %v145, %v315
  %v317 = vsub.f32 1.0, %v316
  %v318 = vmul.f32 %v315, %v317
  %v319 = vadd.f32 %v315, %v318
  %vm320 = vweird.f32 %v145
  %vm321 = vweird.f32 %v315
  %vm322 = vmor %vm320, %vm321
  %v323 = vsel %vm322, %v315, %v319
  %v324 = vand.u32 2147483647, %v145
  %vm325 = vcmp.eq.f32.partialorder %v324, 8.507059e+37
  %v326 = vand.u32 %v145, 2147483648
  %v327 = vor.u32 1.1754944e-38, %v326
  %v328 = vsel %vm325, %v327, %v323
  %v329 = vmul.f32 1.0, %v328
  %v330 = vrcp.pop %v146
  %v331 = vmul.f32 %v146, %v330
  %v332 = vsub.f32 1.0, %v331
  %v333 = vmul.f32 %v330, %v332
  %v334 = vadd.f32 %v330, %v333
  %vm335 = vweird.f32 %v146
  %vm336 = vweird.f32 %v330
  %vm337 = vmor %vm335, %vm336
  %v338 = vsel %vm337, %v330, %v334
  %v339 = vand.u32 2147483647, %v146
  %vm340 = vcmp.eq.f32.partialorder %v339, 8.507059e+37
  %v341 = vand.u32 %v146, 2147483648
  %v342 = vor.u32 1.1754944e-38, %v341
  %v343 = vsel %vm340, %v342, %v338
  %v344 = vmul.f32 1.0, %v343
  %v345 = vrcp.pop %v147
  %v346 = vmul.f32 %v147, %v345
  %v347 = vsub.f32 1.0, %v346
  %v348 = vmul.f32 %v345, %v347
  %v349 = vadd.f32 %v345, %v348
  %vm350 = vweird.f32 %v147
  %vm351 = vweird.f32 %v345
  %vm352 = vmor %vm350, %vm351
  %v353 = vsel %vm352, %v345, %v349
  %v354 = vand.u32 2147483647, %v147
  %vm355 = vcmp.eq.f32.partialorder %v354, 8.507059e+37
  %v356 = vand.u32 %v147, 2147483648
  %v357 = vor.u32 1.1754944e-38, %v356
  %v358 = vsel %vm355, %v357, %v353
  %v359 = vmul.f32 1.0, %v358
  %v360 = vrcp.pop %v148
  %v361 = vmul.f32 %v148, %v360
  %v362 = vsub.f32 1.0, %v361
  %v363 = vmul.f32 %v360, %v362
  %v364 = vadd.f32 %v360, %v363
  %vm365 = vweird.f32 %v148
  %vm366 = vweird.f32 %v360
  %vm367 = vmor %vm365, %vm366
  %v368 = vsel %vm367, %v360, %v364
  %v369 = vand.u32 2147483647, %v148
  %vm370 = vcmp.eq.f32.partialorder %v369, 8.507059e+37
  %v371 = vand.u32 %v148, 2147483648
  %v372 = vor.u32 1.1754944e-38, %v371
  %v373 = vsel %vm370, %v372, %v368
  %v374 = vmul.f32 1.0, %v373
  %v375 = vrcp.pop %v149
  %v376 = vmul.f32 %v149, %v375
  %v377 = vsub.f32 1.0, %v376
  %v378 = vmul.f32 %v375, %v377
  %v379 = vadd.f32 %v375, %v378
  %vm380 = vweird.f32 %v149
  %vm381 = vweird.f32 %v375
  %vm382 = vmor %vm380, %vm381
  %v383 = vsel %vm382, %v375, %v379
  %v384 = vand.u32 2147483647, %v149
  %vm385 = vcmp.eq.f32.partialorder %v384, 8.507059e+37
  %v386 = vand.u32 %v149, 2147483648
  %v387 = vor.u32 1.1754944e-38, %v386
  %v388 = vsel %vm385, %v387, %v383
  %v389 = vmul.f32 1.0, %v388
  %v390 = vmul.f32 %v70, %v164
  %v391 = vmul.f32 %v71, %v179
  %v392 = vmul.f32 %v72, %v194
  %v393 = vmul.f32 %v73, %v209
  %v394 = vmul.f32 %v74, %v224
  %v395 = vmul.f32 %v75, %v239
  %v396 = vmul.f32 %v76, %v254
  %v397 = vmul.f32 %v77, %v269
  %v398 = vmul.f32 %v78, %v284
  %v399 = vmul.f32 %v79, %v299
  %v400 = vmul.f32 %v80, %v314
  %v401 = vmul.f32 %v81, %v329
  %v402 = vmul.f32 %v82, %v344
  %v403 = vmul.f32 %v83, %v359
  %v404 = vmul.f32 %v84, %v374
  %v405 = vmul.f32 %v85, %v389
  %v406 = vpack.c.bf16 %v390, %v390
  %v407 = vpack.c.bf16 %v391, %v391
  %v408 = vpack.c.bf16 %v392, %v392
  %v409 = vpack.c.bf16 %v393, %v393
  %v410 = vpack.c.bf16 %v394, %v394
  %v411 = vpack.c.bf16 %v395, %v395
  %v412 = vpack.c.bf16 %v396, %v396
  %v413 = vpack.c.bf16 %v397, %v397
  %v414 = vpack.c.bf16 %v398, %v398
  %v415 = vpack.c.bf16 %v399, %v399
  %v416 = vpack.c.bf16 %v400, %v400
  %v417 = vpack.c.bf16 %v401, %v401
  %v418 = vpack.c.bf16 %v402, %v402
  %v419 = vpack.c.bf16 %v403, %v403
  %v420 = vpack.c.bf16 %v404, %v404
  %v421 = vpack.c.bf16 %v405, %v405
  %422 = vst [vmem:[%s3] sm:$0xf] %v406
  %423 = vst [vmem:[%s3 + $0x4] sm:$0xf] %v407
  %424 = vst [vmem:[%s3 + $0x8] sm:$0xf] %v408
  %425 = vst [vmem:[%s3 + $0xc] sm:$0xf] %v409
  %426 = vst [vmem:[%s3 + $0x10] sm:$0xf] %v410
  %427 = vst [vmem:[%s3 + $0x14] sm:$0xf] %v411
  %428 = vst [vmem:[%s3 + $0x18] sm:$0xf] %v412
  %429 = vst [vmem:[%s3 + $0x1c] sm:$0xf] %v413
  %430 = vst [vmem:[%s3 + $0x20] sm:$0xf] %v414
  %431 = vst [vmem:[%s3 + $0x24] sm:$0xf] %v415
  %432 = vst [vmem:[%s3 + $0x28] sm:$0xf] %v416
  %433 = vst [vmem:[%s3 + $0x2c] sm:$0xf] %v417
  %434 = vst [vmem:[%s3 + $0x30] sm:$0xf] %v418
  %435 = vst [vmem:[%s3 + $0x34] sm:$0xf] %v419
  %436 = vst [vmem:[%s3 + $0x38] sm:$0xf] %v420
  %437 = vst [vmem:[%s3 + $0x3c] sm:$0xf] %v421
  // Predicated region
  $region14: #{autoencoder_forward.17} parent=0 // pred_check
    _
  $region15: #{autoencoder_forward.17} parent=0 // pred_check_branch
    %439 = sbr.rel (0) target = $region17
  $region16: #{autoencoder_forward.17} parent=0 // pred_region
    _
  $region17: #{autoencoder_forward.17} parent=0 // pred_fallthru
    _
  // Predicated region
  $region18: #{autoencoder_forward.17} parent=0 // pred_check
    _
  $region19: #{autoencoder_forward.17} parent=0 // pred_check_branch
    %441 = sbr.rel (0) target = $region21
  $region20: #{autoencoder_forward.17} parent=0 // pred_region
    _
  $region21: #{autoencoder_forward.17} parent=0 // pred_fallthru
    _

// kernel: autoencoder_forward.18
$region0: #{autoencoder_forward.18}
  #allocation0 [shape = 'u32[]', space=smem, size = 0x4, offset = 0x4, fixed_abs, tag = 'smem constant byte address 0x4 - core index']
  #allocation1 [shape = 'u32[72,128]{1,0:T(1,128)}', space=vmem, size = 0x9000, scoped, tag = 'internal scratch']
  %s0 = inlined_call_operand.vmem [shape: bf16[32,288], index: 0, kind: input, shape index: {}]
  %s1 = inlined_call_operand.vmem [shape: bf16[288,128], index: 1, kind: input, shape index: {}]
  %s2 = inlined_call_operand.vmem [shape: f32[1,128], index: 2, kind: input, shape index: {}]
  %s3 = inlined_call_operand.vmem [shape: bf16[32,128], index: 3, kind: output, shape index: {0}]
  %s4 = inlined_call_operand.vmem [shape: f32[1,1,128], index: 4, kind: output, shape index: {1}]
  %s5 = inlined_call_operand.vmem [shape: f32[1,1,128], index: 5, kind: output, shape index: {2}]
  %6 = xla_tuple %s3, %s4, %s5
  %s7 = sld [smem:[#allocation0]]
  $region38: #{autoencoder_forward.18} parent=0
    _
  %s9 = ssub.s32 1, %s7
  %s10 = scalar_select 0, %s9, %s7
  // Predicated region
  $region2: #{autoencoder_forward.18} parent=0 // pred_check
    _
  $region3: #{autoencoder_forward.18} parent=0 // pred_check_branch
    %12 = sbr.rel (0) target = $region5
  $region4: #{autoencoder_forward.18} parent=0 // pred_region
    _
  $region5: #{autoencoder_forward.18} parent=0 // pred_fallthru
    _
  // Predicated region
  $region6: #{autoencoder_forward.18} parent=0 // pred_check
    _
  $region7: #{autoencoder_forward.18} parent=0 // pred_check_branch
    %14 = sbr.rel (0) target = $region9
  $region8: #{autoencoder_forward.18} parent=0 // pred_region
    _
  $region9: #{autoencoder_forward.18} parent=0 // pred_fallthru
    _
  // Predicated region
  $region10: #{autoencoder_forward.18} parent=0 // pred_check
    _
  $region11: #{autoencoder_forward.18} parent=0 // pred_check_branch
    %16 = sbr.rel (0) target = $region13
  $region12: #{autoencoder_forward.18} parent=0 // pred_region
    _
  $region13: #{autoencoder_forward.18} parent=0 // pred_fallthru
    _
  %v18 = vld [vmem:[%s0] sm:$0xff]
  %v19 = vld [vmem:[%s0 + $0x8] sm:$0xf]
  %v20 = vld [vmem:[%s0 + $0xc] sm:$0xff]
  %v21 = vld [vmem:[%s0 + $0x14] sm:$0xf]
  %v22 = vld [vmem:[%s0 + $0x18] sm:$0xff]
  %v23 = vld [vmem:[%s0 + $0x20] sm:$0xf]
  %v24 = vld [vmem:[%s0 + $0x24] sm:$0xff]
  %v25 = vld [vmem:[%s0 + $0x2c] sm:$0xf]
  %v26 = vld [vmem:[%s1] sm:$0xf]
  %v27 = vld [vmem:[%s1 + $0x4] sm:$0xf]
  %v28 = vld [vmem:[%s1 + $0x8] sm:$0xf]
  %v29 = vld [vmem:[%s1 + $0xc] sm:$0xf]
  %v30 = vld [vmem:[%s1 + $0x10] sm:$0xf]
  %v31 = vld [vmem:[%s1 + $0x14] sm:$0xf]
  %v32 = vld [vmem:[%s1 + $0x18] sm:$0xf]
  %v33 = vld [vmem:[%s1 + $0x1c] sm:$0xf]
  %v34 = vld [vmem:[%s1 + $0x20] sm:$0xf]
  %v35 = vld [vmem:[%s1 + $0x24] sm:$0xf]
  %v36 = vld [vmem:[%s1 + $0x28] sm:$0xf]
  %v37 = vld [vmem:[%s1 + $0x2c] sm:$0xf]
  %v38 = vld [vmem:[%s1 + $0x30] sm:$0xf]
  %v39 = vld [vmem:[%s1 + $0x34] sm:$0xf]
  %v40 = vld [vmem:[%s1 + $0x38] sm:$0xf]
  %v41 = vld [vmem:[%s1 + $0x3c] sm:$0xf]
  %v42 = vld [vmem:[%s1 + $0x40] sm:$0xf]
  %v43 = vld [vmem:[%s1 + $0x44] sm:$0xf]
  %v44 = vld [vmem:[%s1 + $0x48] sm:$0xf]
  %v45 = vld [vmem:[%s1 + $0x4c] sm:$0xf]
  %v46 = vld [vmem:[%s1 + $0x50] sm:$0xf]
  %v47 = vld [vmem:[%s1 + $0x54] sm:$0xf]
  %v48 = vld [vmem:[%s1 + $0x58] sm:$0xf]
  %v49 = vld [vmem:[%s1 + $0x5c] sm:$0xf]
  %v50 = vld [vmem:[%s1 + $0x60] sm:$0xf]
  %v51 = vld [vmem:[%s1 + $0x64] sm:$0xf]
  %v52 = vld [vmem:[%s1 + $0x68] sm:$0xf]
  %v53 = vld [vmem:[%s1 + $0x6c] sm:$0xf]
  %v54 = vld [vmem:[%s1 + $0x70] sm:$0xf]
  %v55 = vld [vmem:[%s1 + $0x74] sm:$0xf]
  %v56 = vld [vmem:[%s1 + $0x78] sm:$0xf]
  %v57 = vld [vmem:[%s1 + $0x7c] sm:$0xf]
  %v58 = vld [vmem:[%s1 + $0x80] sm:$0xf]
  %v59 = vld [vmem:[%s1 + $0x84] sm:$0xf]
  %v60 = vld [vmem:[%s1 + $0x88] sm:$0xf]
  %v61 = vld [vmem:[%s1 + $0x8c] sm:$0xf]
  %v62 = vld [vmem:[%s2] sm:$0x1]
  %v64 = vperm.slane %v62, 0
  %v74 = vunpack.c.l.b16 %v18
  %v75 = vunpack.c.h.b16 %v18
  %v76 = vunpack.c.l.b16 %v19
  %v77 = vunpack.c.l.b16 %v20
  %v78 = vunpack.c.h.b16 %v20
  %v79 = vunpack.c.l.b16 %v21
  %v80 = vunpack.c.l.b16 %v22
  %v81 = vunpack.c.h.b16 %v22
  %v82 = vunpack.c.l.b16 %v23
  %v83 = vunpack.c.l.b16 %v24
  %v84 = vunpack.c.h.b16 %v24
  %v85 = vunpack.c.l.b16 %v25
  %v86 = vpack.c.b16 %v77, %v74
  %v87 = vpack.c.b16 %v78, %v75
  %v88 = vpack.c.b16 %v79, %v76
  %v89 = vpack.c.b16 %v83, %v80
  %v90 = vpack.c.b16 %v84, %v81
  %v91 = vpack.c.b16 %v85, %v82
  %v132 = vunpack.c.l.b16 %v26
  %v133 = vunpack.c.l.b16 %v27
  %v134 = vunpack.c.l.b16 %v28
  %v135 = vunpack.c.l.b16 %v29
  %v136 = vunpack.c.l.b16 %v30
  %v137 = vunpack.c.l.b16 %v31
  %v138 = vunpack.c.l.b16 %v32
  %v139 = vunpack.c.l.b16 %v33
  %v140 = vunpack.c.l.b16 %v34
  %v141 = vunpack.c.l.b16 %v35
  %v142 = vunpack.c.l.b16 %v36
  %v143 = vunpack.c.l.b16 %v37
  %v144 = vunpack.c.l.b16 %v38
  %v145 = vunpack.c.l.b16 %v39
  %v146 = vunpack.c.l.b16 %v40
  %v147 = vunpack.c.l.b16 %v41
  %v148 = vunpack.c.l.b16 %v42
  %v149 = vunpack.c.l.b16 %v43
  %v150 = vunpack.c.l.b16 %v44
  %v151 = vunpack.c.l.b16 %v45
  %v152 = vunpack.c.l.b16 %v46
  %v153 = vunpack.c.l.b16 %v47
  %v154 = vunpack.c.l.b16 %v48
  %v155 = vunpack.c.l.b16 %v49
  %v156 = vunpack.c.l.b16 %v50
  %v157 = vunpack.c.l.b16 %v51
  %v158 = vunpack.c.l.b16 %v52
  %v159 = vunpack.c.l.b16 %v53
  %v160 = vunpack.c.l.b16 %v54
  %v161 = vunpack.c.l.b16 %v55
  %v162 = vunpack.c.l.b16 %v56
  %v163 = vunpack.c.l.b16 %v57
  %v164 = vunpack.c.l.b16 %v58
  %v165 = vunpack.c.l.b16 %v59
  %v166 = vunpack.c.l.b16 %v60
  %v167 = vunpack.c.l.b16 %v61
  %v168 = vpack.c.b16 %v133, %v132
  %v169 = vpack.c.b16 %v135, %v134
  %v170 = vpack.c.b16 %v137, %v136
  %v171 = vpack.c.b16 %v139, %v138
  %v172 = vpack.c.b16 %v141, %v140
  %v173 = vpack.c.b16 %v143, %v142
  %v174 = vpack.c.b16 %v145, %v144
  %v175 = vpack.c.b16 %v147, %v146
  %v176 = vpack.c.b16 %v149, %v148
  %v177 = vpack.c.b16 %v151, %v150
  %v178 = vpack.c.b16 %v153, %v152
  %v179 = vpack.c.b16 %v155, %v154
  %v180 = vpack.c.b16 %v157, %v156
  %v181 = vpack.c.b16 %v159, %v158
  %v182 = vpack.c.b16 %v161, %v160
  %v183 = vpack.c.b16 %v163, %v162
  %v184 = vpack.c.b16 %v165, %v164
  %v185 = vpack.c.b16 %v167, %v166
  %vm204 = vcmask 261120
  %v206 = vsel %vm204, %v88, 0
  %v209 = vsel %vm204, %v91, 0
  %211 = vmatpush.bf16.msra.mxu0 %v175
  %212 = vmatpush.bf16.msra.mxu0 %v174
  %213 = vmatpush.bf16.msra.mxu0 %v173
  %214 = vmatpush.bf16.msra.mxu0 %v172
  %215 = vmatpush.bf16.msra.mxu0 %v171
  %216 = vmatpush.bf16.msra.mxu0 %v170
  %217 = vmatpush.bf16.msra.mxu0 %v169
  %218 = vmatpush.bf16.msra.mxu0 %v168
  %219 = vmatmul.bf16.gmra.mxu0 %v86
  %v220 = vpop.f32.mrf.mxu0
  %v221 = vadd.f32 %v64, %v220
  %v222 = vpop.f32.mrf.mxu0
  %v223 = vadd.f32 %v64, %v222
  %224 = vmatmul.bf16.gmra.mxu0 %v89
  %v225 = vpop.f32.mrf.mxu0
  %v226 = vadd.f32 %v64, %v225
  %v227 = vpop.f32.mrf.mxu0
  %v228 = vadd.f32 %v64, %v227
  %229 = vdwg.mxu0
  %230 = vmatpush.bf16.msra.mxu0 %v183
  %231 = vmatpush.bf16.msra.mxu0 %v182
  %232 = vmatpush.bf16.msra.mxu0 %v181
  %233 = vmatpush.bf16.msra.mxu0 %v180
  %234 = vmatpush.bf16.msra.mxu0 %v179
  %235 = vmatpush.bf16.msra.mxu0 %v178
  %236 = vmatpush.bf16.msra.mxu0 %v177
  %237 = vmatpush.bf16.msra.mxu0 %v176
  %238 = vmatmul.bf16.gmra.mxu0 %v87
  %v239 = vpop.f32.mrf.mxu0
  %v240 = vadd.f32 %v221, %v239
  %v241 = vpop.f32.mrf.mxu0
  %v242 = vadd.f32 %v223, %v241
  %243 = vmatmul.bf16.gmra.mxu0 %v90
  %v244 = vpop.f32.mrf.mxu0
  %v245 = vadd.f32 %v226, %v244
  %v246 = vpop.f32.mrf.mxu0
  %v247 = vadd.f32 %v228, %v246
  %248 = vdwg.mxu0
  %249 = vmatpush.bf16.msra.mxu0 0
  %250 = vmatpush.bf16.msra.mxu0 0
  %251 = vmatpush.bf16.msra.mxu0 0
  %252 = vmatpush.bf16.msra.mxu0 0
  %253 = vmatpush.bf16.msra.mxu0 0
  %254 = vmatpush.bf16.msra.mxu0 0
  %255 = vmatpush.bf16.msra.mxu0 %v185
  %256 = vmatpush.bf16.msra.mxu0 %v184
  %257 = vmatmul.bf16.gmra.mxu0 %v206
  %v258 = vpop.f32.mrf.mxu0
  %v259 = vadd.f32 %v240, %v258
  %v260 = vpop.f32.mrf.mxu0
  %v261 = vadd.f32 %v242, %v260
  %262 = vmatmul.bf16.gmra.mxu0 %v209
  %v263 = vpop.f32.mrf.mxu0
  %v264 = vadd.f32 %v245, %v263
  %v265 = vpop.f32.mrf.mxu0
  %v266 = vadd.f32 %v247, %v265
  %267 = vdwg.mxu0
  %v268 = vpack.c.bf16 %v259, %v259
  %v269 = vpack.c.bf16 %v261, %v261
  %v270 = vpack.c.bf16 %v264, %v264
  %v271 = vpack.c.bf16 %v266, %v266
  %272 = vst [vmem:[%s3] sm:$0xf] %v268
  %273 = vst [vmem:[%s3 + $0x4] sm:$0xf] %v269
  %274 = vst [vmem:[%s3 + $0x8] sm:$0xf] %v270
  %275 = vst [vmem:[%s3 + $0xc] sm:$0xf] %v271
  %v276 = vadd.f32 %v259, %v261
  %v277 = vadd.f32 %v276, %v264
  %v278 = vadd.f32 %v277, %v266
  %v279 = vrot.slane %v278, 4
  %v280 = vadd.f32 %v278, %v279
  %v281 = vrot.slane %v280, 2
  %v282 = vadd.f32 %v280, %v281
  %v283 = vrot.slane %v282, 1
  %v284 = vadd.f32 %v282, %v283
  %285 = vst [vmem:[%s4] sm:$0x1] %v284
  %v286 = vmul.f32 %v259, %v259
  %v287 = vmul.f32 %v261, %v261
  %v288 = vmul.f32 %v264, %v264
  %v289 = vmul.f32 %v266, %v266
  %v290 = vadd.f32 %v286, %v287
  %v291 = vadd.f32 %v290, %v288
  %v292 = vadd.f32 %v291, %v289
  %v293 = vrot.slane %v292, 4
  %v294 = vadd.f32 %v292, %v293
  %v295 = vrot.slane %v294, 2
  %v296 = vadd.f32 %v294, %v295
  %v297 = vrot.slane %v296, 1
  %v298 = vadd.f32 %v296, %v297
  %299 = vst [vmem:[%s5] sm:$0x1] %v298
  // Predicated region
  $region14: #{autoencoder_forward.18} parent=0 // pred_check
    _
  $region15: #{autoencoder_forward.18} parent=0 // pred_check_branch
    %301 = sbr.rel (0) target = $region17
  $region16: #{autoencoder_forward.18} parent=0 // pred_region
    _
  $region17: #{autoencoder_forward.18} parent=0 // pred_fallthru
    _
  // Predicated region
  $region18: #{autoencoder_forward.18} parent=0 // pred_check
    _
  $region19: #{autoencoder_forward.18} parent=0 // pred_check_branch
    %303 = sbr.rel (0) target = $region21
  $region20: #{autoencoder_forward.18} parent=0 // pred_region
    _
  $region21: #{autoencoder_forward.18} parent=0 // pred_fallthru
    _
  // Predicated region
  $region22: #{autoencoder_forward.18} parent=0 // pred_check
    _
  $region23: #{autoencoder_forward.18} parent=0 // pred_check_branch
    %305 = sbr.rel (0) target = $region25
  $region24: #{autoencoder_forward.18} parent=0 // pred_region
    _
  $region25: #{autoencoder_forward.18} parent=0 // pred_fallthru
    _
  // Predicated region
  $region26: #{autoencoder_forward.18} parent=0 // pred_check
    _
  $region27: #{autoencoder_forward.18} parent=0 // pred_check_branch
    %307 = sbr.rel (0) target = $region29
  $region28: #{autoencoder_forward.18} parent=0 // pred_region
    _
  $region29: #{autoencoder_forward.18} parent=0 // pred_fallthru
    _
  // Predicated region
  $region30: #{autoencoder_forward.18} parent=0 // pred_check
    _
  $region31: #{autoencoder_forward.18} parent=0 // pred_check_branch
    %309 = sbr.rel (0) target = $region33
  $region32: #{autoencoder_forward.18} parent=0 // pred_region
    _
  $region33: #{autoencoder_forward.18} parent=0 // pred_fallthru
    _
  // Predicated region
  $region34: #{autoencoder_forward.18} parent=0 // pred_check
    _
  $region35: #{autoencoder_forward.18} parent=0 // pred_check_branch
    %311 = sbr.rel (0) target = $region37
  $region36: #{autoencoder_forward.18} parent=0 // pred_region
    _
  $region37: #{autoencoder_forward.18} parent=0 // pred_fallthru
    _

// kernel: autoencoder_forward.20
$region0: #{autoencoder_forward.20}
  #allocation0 [shape = 'u32[]', space=smem, size = 0x4, offset = 0x4, fixed_abs, tag = 'smem constant byte address 0x4 - core index']
  #allocation1 [shape = 'u32[72,128]{1,0:T(1,128)}', space=vmem, size = 0x9000, scoped, tag = 'internal scratch']
  %s0 = inlined_call_operand.vmem [shape: bf16[32,128], index: 0, kind: input, shape index: {}]
  %s1 = inlined_call_operand.vmem [shape: f32[1,128], index: 1, kind: input, shape index: {}]
  %s2 = inlined_call_operand.vmem [shape: f32[1,128], index: 2, kind: input, shape index: {}]
  %s3 = inlined_call_operand.vmem [shape: bf16[32,128], index: 3, kind: output, shape index: {}]
  %s4 = sld [smem:[#allocation0]]
  $region22: #{autoencoder_forward.20} parent=0
    _
  %s6 = ssub.s32 1, %s4
  %s7 = scalar_select 0, %s6, %s4
  // Predicated region
  $region2: #{autoencoder_forward.20} parent=0 // pred_check
    _
  $region3: #{autoencoder_forward.20} parent=0 // pred_check_branch
    %9 = sbr.rel (0) target = $region5
  $region4: #{autoencoder_forward.20} parent=0 // pred_region
    _
  $region5: #{autoencoder_forward.20} parent=0 // pred_fallthru
    _
  // Predicated region
  $region6: #{autoencoder_forward.20} parent=0 // pred_check
    _
  $region7: #{autoencoder_forward.20} parent=0 // pred_check_branch
    %11 = sbr.rel (0) target = $region9
  $region8: #{autoencoder_forward.20} parent=0 // pred_region
    _
  $region9: #{autoencoder_forward.20} parent=0 // pred_fallthru
    _
  // Predicated region
  $region10: #{autoencoder_forward.20} parent=0 // pred_check
    _
  $region11: #{autoencoder_forward.20} parent=0 // pred_check_branch
    %13 = sbr.rel (0) target = $region13
  $region12: #{autoencoder_forward.20} parent=0 // pred_region
    _
  $region13: #{autoencoder_forward.20} parent=0 // pred_fallthru
    _
  %v14 = vld [vmem:[%s0] sm:$0xf]
  %v15 = vld [vmem:[%s0 + $0x4] sm:$0xf]
  %v16 = vld [vmem:[%s0 + $0x8] sm:$0xf]
  %v17 = vld [vmem:[%s0 + $0xc] sm:$0xf]
  %v18 = vunpack.c.l.bf16 %v14
  %v19 = vunpack.c.l.bf16 %v15
  %v20 = vunpack.c.l.bf16 %v16
  %v21 = vunpack.c.l.bf16 %v17
  %v22 = vld [vmem:[%s1] sm:$0x1]
  %v24 = vperm.slane %v22, 0
  %v26 = vmul.f32 %v18, %v24
  %v27 = vmul.f32 %v19, %v24
  %v28 = vmul.f32 %v20, %v24
  %v29 = vmul.f32 %v21, %v24
  %v30 = vld [vmem:[%s2] sm:$0x1]
  %v32 = vperm.slane %v30, 0
  %v34 = vadd.f32 %v26, %v32
  %v35 = vadd.f32 %v27, %v32
  %v36 = vadd.f32 %v28, %v32
  %v37 = vadd.f32 %v29, %v32
  %v38 = vxor.u32 %v34, 2147483648
  %v39 = vxor.u32 %v35, 2147483648
  %v40 = vxor.u32 %v36, 2147483648
  %v41 = vxor.u32 %v37, 2147483648
  %v42 = vmul.f32 %v38, 1.442695
  %v43 = vpow.pop %v42
  %v44 = vmul.f32 %v39, 1.442695
  %v45 = vpow.pop %v44
  %v46 = vmul.f32 %v40, 1.442695
  %v47 = vpow.pop %v46
  %v48 = vmul.f32 %v41, 1.442695
  %v49 = vpow.pop %v48
  %v50 = vadd.f32 %v43, 1.0
  %v51 = vadd.f32 %v45, 1.0
  %v52 = vadd.f32 %v47, 1.0
  %v53 = vadd.f32 %v49, 1.0
  %v54 = vrcp.pop %v50
  %v55 = vmul.f32 %v50, %v54
  %v56 = vsub.f32 1.0, %v55
  %v57 = vmul.f32 %v54, %v56
  %v58 = vadd.f32 %v54, %v57
  %vm59 = vweird.f32 %v50
  %vm60 = vweird.f32 %v54
  %vm61 = vmor %vm59, %vm60
  %v62 = vsel %vm61, %v54, %v58
  %v63 = vand.u32 2147483647, %v50
  %vm64 = vcmp.eq.f32.partialorder %v63, 8.507059e+37
  %v65 = vand.u32 %v50, 2147483648
  %v66 = vor.u32 1.1754944e-38, %v65
  %v67 = vsel %vm64, %v66, %v62
  %v68 = vmul.f32 1.0, %v67
  %v69 = vrcp.pop %v51
  %v70 = vmul.f32 %v51, %v69
  %v71 = vsub.f32 1.0, %v70
  %v72 = vmul.f32 %v69, %v71
  %v73 = vadd.f32 %v69, %v72
  %vm74 = vweird.f32 %v51
  %vm75 = vweird.f32 %v69
  %vm76 = vmor %vm74, %vm75
  %v77 = vsel %vm76, %v69, %v73
  %v78 = vand.u32 2147483647, %v51
  %vm79 = vcmp.eq.f32.partialorder %v78, 8.507059e+37
  %v80 = vand.u32 %v51, 2147483648
  %v81 = vor.u32 1.1754944e-38, %v80
  %v82 = vsel %vm79, %v81, %v77
  %v83 = vmul.f32 1.0, %v82
  %v84 = vrcp.pop %v52
  %v85 = vmul.f32 %v52, %v84
  %v86 = vsub.f32 1.0, %v85
  %v87 = vmul.f32 %v84, %v86
  %v88 = vadd.f32 %v84, %v87
  %vm89 = vweird.f32 %v52
  %vm90 = vweird.f32 %v84
  %vm91 = vmor %vm89, %vm90
  %v92 = vsel %vm91, %v84, %v88
  %v93 = vand.u32 2147483647, %v52
  %vm94 = vcmp.eq.f32.partialorder %v93, 8.507059e+37
  %v95 = vand.u32 %v52, 2147483648
  %v96 = vor.u32 1.1754944e-38, %v95
  %v97 = vsel %vm94, %v96, %v92
  %v98 = vmul.f32 1.0, %v97
  %v99 = vrcp.pop %v53
  %v100 = vmul.f32 %v53, %v99
  %v101 = vsub.f32 1.0, %v100
  %v102 = vmul.f32 %v99, %v101
  %v103 = vadd.f32 %v99, %v102
  %vm104 = vweird.f32 %v53
  %vm105 = vweird.f32 %v99
  %vm106 = vmor %vm104, %vm105
  %v107 = vsel %vm106, %v99, %v103
  %v108 = vand.u32 2147483647, %v53
  %vm109 = vcmp.eq.f32.partialorder %v108, 8.507059e+37
  %v110 = vand.u32 %v53, 2147483648
  %v111 = vor.u32 1.1754944e-38, %v110
  %v112 = vsel %vm109, %v111, %v107
  %v113 = vmul.f32 1.0, %v112
  %v114 = vmul.f32 %v34, %v68
  %v115 = vmul.f32 %v35, %v83
  %v116 = vmul.f32 %v36, %v98
  %v117 = vmul.f32 %v37, %v113
  %v118 = vpack.c.bf16 %v114, %v114
  %v119 = vpack.c.bf16 %v115, %v115
  %v120 = vpack.c.bf16 %v116, %v116
  %v121 = vpack.c.bf16 %v117, %v117
  %122 = vst [vmem:[%s3] sm:$0xf] %v118
  %123 = vst [vmem:[%s3 + $0x4] sm:$0xf] %v119
  %124 = vst [vmem:[%s3 + $0x8] sm:$0xf] %v120
  %125 = vst [vmem:[%s3 + $0xc] sm:$0xf] %v121
  // Predicated region
  $region14: #{autoencoder_forward.20} parent=0 // pred_check
    _
  $region15: #{autoencoder_forward.20} parent=0 // pred_check_branch
    %127 = sbr.rel (0) target = $region17
  $region16: #{autoencoder_forward.20} parent=0 // pred_region
    _
  $region17: #{autoencoder_forward.20} parent=0 // pred_fallthru
    _
  // Predicated region
  $region18: #{autoencoder_forward.20} parent=0 // pred_check
    _
  $region19: #{autoencoder_forward.20} parent=0 // pred_check_branch
    %129 = sbr.rel (0) target = $region21
  $region20: #{autoencoder_forward.20} parent=0 // pred_region
    _
  $region21: #{autoencoder_forward.20} parent=0 // pred_fallthru
    _

// kernel: tile.33
$region0: #{tile.33}
  #allocation0 [shape = 's32[1]{0}', space=sflag, size = 0x4, scoped, tag = 'scoped memory for tile.33']
  %s0 = inlined_call_operand.vmem [shape: f32[32], index: 0, kind: input, shape index: {}]
  %s1 = inlined_call_operand.vmem [shape: f32[4,32], index: 1, kind: output, shape index: {}]
  // Predicated region
  $region2: #{tile.33} parent=0 // pred_check
    _
  $region3: #{tile.33} parent=0 // pred_check_branch
    %3 = sbr.rel (0) target = $region5
  $region4: #{tile.33} parent=0 // pred_region
    _
  $region5: #{tile.33} parent=0 // pred_fallthru
    _
  %v4 = vld [vmem:[%s0] ss:$0 sm:$0xff]
  %5 = vst [vmem:[%s1] sm:$0xf] %v4

// kernel: tile.34
$region0: #{tile.34}
  %s0 = inlined_call_operand.vmem [shape: f32[4,32], index: 0, kind: input, shape index: {}]
  %s1 = inlined_call_operand.vmem [shape: f32[1,128], index: 1, kind: output, shape index: {}]
  $region1: #{tile.34} parent=0
    #allocation0 [shape = 'u8[4096]{0}', space=vmem, size = 0x1000, scoped, tag = 'scoped mem for output reshape']
    #allocation1 [shape = 'u8[4096]{0}', space=vmem, size = 0x1000, scoped, tag = 'scoped mem for input reshape']
    %s3 = ssub.s32 16, 1
    %v4 = vld [vmem:[%s0] sm:%s3]
    %5 = vst [vmem:[#allocation1] sm:%s3] %v4
    %v6 = vld [vmem:[#allocation1] sm:$0x1]
    %vm7 = vcmask 261120
    %8 = vst.msk [vmem:[#allocation0] sm:$0x1] %vm7, %v6
    %s9 = scalar_lea.vmem [#allocation1], 3
    %v10 = vld [vmem:[%s9] sm:$0x1]
    %11 = vrot.lane.b32.xlu0 %v10, 96
    %v12 = vpop.permute.xlu0 %11
    %vm13 = vcmask 1048320
    %14 = vst.msk [vmem:[#allocation0] sm:$0x1] %vm13, %v12
    %s15 = scalar_lea.vmem [#allocation1], 2
    %v16 = vld [vmem:[%s15] sm:$0x1]
    %17 = vrot.lane.b32.xlu0 %v16, 64
    %v18 = vpop.permute.xlu0 %17
    %vm19 = vcmask 785920
    %20 = vst.msk [vmem:[#allocation0] sm:$0x1] %vm19, %v18
    %s21 = scalar_lea.vmem [#allocation1], 1
    %v22 = vld [vmem:[%s21] sm:$0x1]
    %23 = vrot.lane.b32.xlu0 %v22, 32
    %v24 = vpop.permute.xlu0 %23
    %vm25 = vcmask 523520
    %26 = vst.msk [vmem:[#allocation0] sm:$0x1] %vm25, %v24
    %s28 = ssub.s32 2, 1
    %v29 = vld [vmem:[#allocation0] sm:%s28]
    %s31 = ssub.s32 2, 1
    %32 = vst [vmem:[%s1] sm:%s31] %v29

// kernel: autoencoder_forward.19
$region0: #{autoencoder_forward.19}
  #allocation0 [shape = 'u32[]', space=smem, size = 0x4, offset = 0x4, fixed_abs, tag = 'smem constant byte address 0x4 - core index']
  #allocation1 [shape = 'u32[72,128]{1,0:T(1,128)}', space=vmem, size = 0x9000, scoped, tag = 'internal scratch']
  %s0 = inlined_call_operand.vmem [shape: bf16[32,576], index: 0, kind: input, shape index: {}]
  %s1 = inlined_call_operand.vmem [shape: bf16[576,128], index: 1, kind: input, shape index: {}]
  %s2 = inlined_call_operand.vmem [shape: f32[1,128], index: 2, kind: input, shape index: {}]
  %s3 = inlined_call_operand.vmem [shape: bf16[32,128], index: 3, kind: output, shape index: {0}]
  %s4 = inlined_call_operand.vmem [shape: f32[1,1,128], index: 4, kind: output, shape index: {1}]
  %s5 = inlined_call_operand.vmem [shape: f32[1,1,128], index: 5, kind: output, shape index: {2}]
  %6 = xla_tuple %s3, %s4, %s5
  %s7 = sld [smem:[#allocation0]]
  $region38: #{autoencoder_forward.19} parent=0
    _
  %s9 = ssub.s32 1, %s7
  %s10 = scalar_select 0, %s9, %s7
  // Predicated region
  $region2: #{autoencoder_forward.19} parent=0 // pred_check
    _
  $region3: #{autoencoder_forward.19} parent=0 // pred_check_branch
    %12 = sbr.rel (0) target = $region5
  $region4: #{autoencoder_forward.19} parent=0 // pred_region
    _
  $region5: #{autoencoder_forward.19} parent=0 // pred_fallthru
    _
  // Predicated region
  $region6: #{autoencoder_forward.19} parent=0 // pred_check
    _
  $region7: #{autoencoder_forward.19} parent=0 // pred_check_branch
    %14 = sbr.rel (0) target = $region9
  $region8: #{autoencoder_forward.19} parent=0 // pred_region
    _
  $region9: #{autoencoder_forward.19} parent=0 // pred_fallthru
    _
  // Predicated region
  $region10: #{autoencoder_forward.19} parent=0 // pred_check
    _
  $region11: #{autoencoder_forward.19} parent=0 // pred_check_branch
    %16 = sbr.rel (0) target = $region13
  $region12: #{autoencoder_forward.19} parent=0 // pred_region
    _
  $region13: #{autoencoder_forward.19} parent=0 // pred_fallthru
    _
  %v18 = vld [vmem:[%s0] sm:$0xff]
  %v19 = vld [vmem:[%s0 + $0x8] sm:$0xff]
  %v20 = vld [vmem:[%s0 + $0x10] sm:$0xf]
  %v21 = vld [vmem:[%s0 + $0x14] sm:$0xff]
  %v22 = vld [vmem:[%s0 + $0x1c] sm:$0xff]
  %v23 = vld [vmem:[%s0 + $0x24] sm:$0xf]
  %v24 = vld [vmem:[%s0 + $0x28] sm:$0xff]
  %v25 = vld [vmem:[%s0 + $0x30] sm:$0xff]
  %v26 = vld [vmem:[%s0 + $0x38] sm:$0xf]
  %v27 = vld [vmem:[%s0 + $0x3c] sm:$0xff]
  %v28 = vld [vmem:[%s0 + $0x44] sm:$0xff]
  %v29 = vld [vmem:[%s0 + $0x4c] sm:$0xf]
  %v30 = vld [vmem:[%s1] sm:$0xf]
  %v31 = vld [vmem:[%s1 + $0x4] sm:$0xf]
  %v32 = vld [vmem:[%s1 + $0x8] sm:$0xf]
  %v33 = vld [vmem:[%s1 + $0xc] sm:$0xf]
  %v34 = vld [vmem:[%s1 + $0x10] sm:$0xf]
  %v35 = vld [vmem:[%s1 + $0x14] sm:$0xf]
  %v36 = vld [vmem:[%s1 + $0x18] sm:$0xf]
  %v37 = vld [vmem:[%s1 + $0x1c] sm:$0xf]
  %v38 = vld [vmem:[%s1 + $0x20] sm:$0xf]
  %v39 = vld [vmem:[%s1 + $0x24] sm:$0xf]
  %v40 = vld [vmem:[%s1 + $0x28] sm:$0xf]
  %v41 = vld [vmem:[%s1 + $0x2c] sm:$0xf]
  %v42 = vld [vmem:[%s1 + $0x30] sm:$0xf]
  %v43 = vld [vmem:[%s1 + $0x34] sm:$0xf]
  %v44 = vld [vmem:[%s1 + $0x38] sm:$0xf]
  %v45 = vld [vmem:[%s1 + $0x3c] sm:$0xf]
  %v46 = vld [vmem:[%s1 + $0x40] sm:$0xf]
  %v47 = vld [vmem:[%s1 + $0x44] sm:$0xf]
  %v48 = vld [vmem:[%s1 + $0x48] sm:$0xf]
  %v49 = vld [vmem:[%s1 + $0x4c] sm:$0xf]
  %v50 = vld [vmem:[%s1 + $0x50] sm:$0xf]
  %v51 = vld [vmem:[%s1 + $0x54] sm:$0xf]
  %v52 = vld [vmem:[%s1 + $0x58] sm:$0xf]
  %v53 = vld [vmem:[%s1 + $0x5c] sm:$0xf]
  %v54 = vld [vmem:[%s1 + $0x60] sm:$0xf]
  %v55 = vld [vmem:[%s1 + $0x64] sm:$0xf]
  %v56 = vld [vmem:[%s1 + $0x68] sm:$0xf]
  %v57 = vld [vmem:[%s1 + $0x6c] sm:$0xf]
  %v58 = vld [vmem:[%s1 + $0x70] sm:$0xf]
  %v59 = vld [vmem:[%s1 + $0x74] sm:$0xf]
  %v60 = vld [vmem:[%s1 + $0x78] sm:$0xf]
  %v61 = vld [vmem:[%s1 + $0x7c] sm:$0xf]
  %v62 = vld [vmem:[%s1 + $0x80] sm:$0xf]
  %v63 = vld [vmem:[%s1 + $0x84] sm:$0xf]
  %v64 = vld [vmem:[%s1 + $0x88] sm:$0xf]
  %v65 = vld [vmem:[%s1 + $0x8c] sm:$0xf]
  %v66 = vld [vmem:[%s1 + $0x90] sm:$0xf]
  %v67 = vld [vmem:[%s1 + $0x94] sm:$0xf]
  %v68 = vld [vmem:[%s1 + $0x98] sm:$0xf]
  %v69 = vld [vmem:[%s1 + $0x9c] sm:$0xf]
  %v70 = vld [vmem:[%s1 + $0xa0] sm:$0xf]
  %v71 = vld [vmem:[%s1 + $0xa4] sm:$0xf]
  %v72 = vld [vmem:[%s1 + $0xa8] sm:$0xf]
  %v73 = vld [vmem:[%s1 + $0xac] sm:$0xf]
  %v74 = vld [vmem:[%s1 + $0xb0] sm:$0xf]
  %v75 = vld [vmem:[%s1 + $0xb4] sm:$0xf]
  %v76 = vld [vmem:[%s1 + $0xb8] sm:$0xf]
  %v77 = vld [vmem:[%s1 + $0xbc] sm:$0xf]
  %v78 = vld [vmem:[%s1 + $0xc0] sm:$0xf]
  %v79 = vld [vmem:[%s1 + $0xc4] sm:$0xf]
  %v80 = vld [vmem:[%s1 + $0xc8] sm:$0xf]
  %v81 = vld [vmem:[%s1 + $0xcc] sm:$0xf]
  %v82 = vld [vmem:[%s1 + $0xd0] sm:$0xf]
  %v83 = vld [vmem:[%s1 + $0xd4] sm:$0xf]
  %v84 = vld [vmem:[%s1 + $0xd8] sm:$0xf]
  %v85 = vld [vmem:[%s1 + $0xdc] sm:$0xf]
  %v86 = vld [vmem:[%s1 + $0xe0] sm:$0xf]
  %v87 = vld [vmem:[%s1 + $0xe4] sm:$0xf]
  %v88 = vld [vmem:[%s1 + $0xe8] sm:$0xf]
  %v89 = vld [vmem:[%s1 + $0xec] sm:$0xf]
  %v90 = vld [vmem:[%s1 + $0xf0] sm:$0xf]
  %v91 = vld [vmem:[%s1 + $0xf4] sm:$0xf]
  %v92 = vld [vmem:[%s1 + $0xf8] sm:$0xf]
  %v93 = vld [vmem:[%s1 + $0xfc] sm:$0xf]
  %v94 = vld [vmem:[%s1 + $0x100] sm:$0xf]
  %v95 = vld [vmem:[%s1 + $0x104] sm:$0xf]
  %v96 = vld [vmem:[%s1 + $0x108] sm:$0xf]
  %v97 = vld [vmem:[%s1 + $0x10c] sm:$0xf]
  %v98 = vld [vmem:[%s1 + $0x110] sm:$0xf]
  %v99 = vld [vmem:[%s1 + $0x114] sm:$0xf]
  %v100 = vld [vmem:[%s1 + $0x118] sm:$0xf]
  %v101 = vld [vmem:[%s1 + $0x11c] sm:$0xf]
  %v102 = vld [vmem:[%s2] sm:$0x1]
  %v104 = vperm.slane %v102, 0
  %v118 = vunpack.c.l.b16 %v18
  %v119 = vunpack.c.h.b16 %v18
  %v120 = vunpack.c.l.b16 %v19
  %v121 = vunpack.c.h.b16 %v19
  %v122 = vunpack.c.l.b16 %v20
  %v123 = vunpack.c.l.b16 %v21
  %v124 = vunpack.c.h.b16 %v21
  %v125 = vunpack.c.l.b16 %v22
  %v126 = vunpack.c.h.b16 %v22
  %v127 = vunpack.c.l.b16 %v23
  %v128 = vunpack.c.l.b16 %v24
  %v129 = vunpack.c.h.b16 %v24
  %v130 = vunpack.c.l.b16 %v25
  %v131 = vunpack.c.h.b16 %v25
  %v132 = vunpack.c.l.b16 %v26
  %v133 = vunpack.c.l.b16 %v27
  %v134 = vunpack.c.h.b16 %v27
  %v135 = vunpack.c.l.b16 %v28
  %v136 = vunpack.c.h.b16 %v28
  %v137 = vunpack.c.l.b16 %v29
  %v138 = vpack.c.b16 %v123, %v118
  %v139 = vpack.c.b16 %v124, %v119
  %v140 = vpack.c.b16 %v125, %v120
  %v141 = vpack.c.b16 %v126, %v121
  %v142 = vpack.c.b16 %v127, %v122
  %v143 = vpack.c.b16 %v133, %v128
  %v144 = vpack.c.b16 %v134, %v129
  %v145 = vpack.c.b16 %v135, %v130
  %v146 = vpack.c.b16 %v136, %v131
  %v147 = vpack.c.b16 %v137, %v132
  %v228 = vunpack.c.l.b16 %v30
  %v229 = vunpack.c.l.b16 %v31
  %v230 = vunpack.c.l.b16 %v32
  %v231 = vunpack.c.l.b16 %v33
  %v232 = vunpack.c.l.b16 %v34
  %v233 = vunpack.c.l.b16 %v35
  %v234 = vunpack.c.l.b16 %v36
  %v235 = vunpack.c.l.b16 %v37
  %v236 = vunpack.c.l.b16 %v38
  %v237 = vunpack.c.l.b16 %v39
  %v238 = vunpack.c.l.b16 %v40
  %v239 = vunpack.c.l.b16 %v41
  %v240 = vunpack.c.l.b16 %v42
  %v241 = vunpack.c.l.b16 %v43
  %v242 = vunpack.c.l.b16 %v44
  %v243 = vunpack.c.l.b16 %v45
  %v244 = vunpack.c.l.b16 %v46
  %v245 = vunpack.c.l.b16 %v47
  %v246 = vunpack.c.l.b16 %v48
  %v247 = vunpack.c.l.b16 %v49
  %v248 = vunpack.c.l.b16 %v50
  %v249 = vunpack.c.l.b16 %v51
  %v250 = vunpack.c.l.b16 %v52
  %v251 = vunpack.c.l.b16 %v53
  %v252 = vunpack.c.l.b16 %v54
  %v253 = vunpack.c.l.b16 %v55
  %v254 = vunpack.c.l.b16 %v56
  %v255 = vunpack.c.l.b16 %v57
  %v256 = vunpack.c.l.b16 %v58
  %v257 = vunpack.c.l.b16 %v59
  %v258 = vunpack.c.l.b16 %v60
  %v259 = vunpack.c.l.b16 %v61
  %v260 = vunpack.c.l.b16 %v62
  %v261 = vunpack.c.l.b16 %v63
  %v262 = vunpack.c.l.b16 %v64
  %v263 = vunpack.c.l.b16 %v65
  %v264 = vunpack.c.l.b16 %v66
  %v265 = vunpack.c.l.b16 %v67
  %v266 = vunpack.c.l.b16 %v68
  %v267 = vunpack.c.l.b16 %v69
  %v268 = vunpack.c.l.b16 %v70
  %v269 = vunpack.c.l.b16 %v71
  %v270 = vunpack.c.l.b16 %v72
  %v271 = vunpack.c.l.b16 %v73
  %v272 = vunpack.c.l.b16 %v74
  %v273 = vunpack.c.l.b16 %v75
  %v274 = vunpack.c.l.b16 %v76
  %v275 = vunpack.c.l.b16 %v77
  %v276 = vunpack.c.l.b16 %v78
  %v277 = vunpack.c.l.b16 %v79
  %v278 = vunpack.c.l.b16 %v80
  %v279 = vunpack.c.l.b16 %v81
  %v280 = vunpack.c.l.b16 %v82
  %v281 = vunpack.c.l.b16 %v83
  %v282 = vunpack.c.l.b16 %v84
  %v283 = vunpack.c.l.b16 %v85
  %v284 = vunpack.c.l.b16 %v86
  %v285 = vunpack.c.l.b16 %v87
  %v286 = vunpack.c.l.b16 %v88
  %v287 = vunpack.c.l.b16 %v89
  %v288 = vunpack.c.l.b16 %v90
  %v289 = vunpack.c.l.b16 %v91
  %v290 = vunpack.c.l.b16 %v92
  %v291 = vunpack.c.l.b16 %v93
  %v292 = vunpack.c.l.b16 %v94
  %v293 = vunpack.c.l.b16 %v95
  %v294 = vunpack.c.l.b16 %v96
  %v295 = vunpack.c.l.b16 %v97
  %v296 = vunpack.c.l.b16 %v98
  %v297 = vunpack.c.l.b16 %v99
  %v298 = vunpack.c.l.b16 %v100
  %v299 = vunpack.c.l.b16 %v101
  %v300 = vpack.c.b16 %v229, %v228
  %v301 = vpack.c.b16 %v231, %v230
  %v302 = vpack.c.b16 %v233, %v232
  %v303 = vpack.c.b16 %v235, %v234
  %v304 = vpack.c.b16 %v237, %v236
  %v305 = vpack.c.b16 %v239, %v238
  %v306 = vpack.c.b16 %v241, %v240
  %v307 = vpack.c.b16 %v243, %v242
  %v308 = vpack.c.b16 %v245, %v244
  %v309 = vpack.c.b16 %v247, %v246
  %v310 = vpack.c.b16 %v249, %v248
  %v311 = vpack.c.b16 %v251, %v250
  %v312 = vpack.c.b16 %v253, %v252
  %v313 = vpack.c.b16 %v255, %v254
  %v314 = vpack.c.b16 %v257, %v256
  %v315 = vpack.c.b16 %v259, %v258
  %v316 = vpack.c.b16 %v261, %v260
  %v317 = vpack.c.b16 %v263, %v262
  %v318 = vpack.c.b16 %v265, %v264
  %v319 = vpack.c.b16 %v267, %v266
  %v320 = vpack.c.b16 %v269, %v268
  %v321 = vpack.c.b16 %v271, %v270
  %v322 = vpack.c.b16 %v273, %v272
  %v323 = vpack.c.b16 %v275, %v274
  %v324 = vpack.c.b16 %v277, %v276
  %v325 = vpack.c.b16 %v279, %v278
  %v326 = vpack.c.b16 %v281, %v280
  %v327 = vpack.c.b16 %v283, %v282
  %v328 = vpack.c.b16 %v285, %v284
  %v329 = vpack.c.b16 %v287, %v286
  %v330 = vpack.c.b16 %v289, %v288
  %v331 = vpack.c.b16 %v291, %v290
  %v332 = vpack.c.b16 %v293, %v292
  %v333 = vpack.c.b16 %v295, %v294
  %v334 = vpack.c.b16 %v297, %v296
  %v335 = vpack.c.b16 %v299, %v298
  %vm372 = vcmask 523264
  %v374 = vsel %vm372, %v142, 0
  %v377 = vsel %vm372, %v147, 0
  %379 = vmatpush.bf16.msra.mxu0 %v307
  %380 = vmatpush.bf16.msra.mxu0 %v306
  %381 = vmatpush.bf16.msra.mxu0 %v305
  %382 = vmatpush.bf16.msra.mxu0 %v304
  %383 = vmatpush.bf16.msra.mxu0 %v303
  %384 = vmatpush.bf16.msra.mxu0 %v302
  %385 = vmatpush.bf16.msra.mxu0 %v301
  %386 = vmatpush.bf16.msra.mxu0 %v300
  %387 = vmatmul.bf16.gmra.mxu0 %v138
  %v388 = vpop.f32.mrf.mxu0
  %v389 = vadd.f32 %v104, %v388
  %v390 = vpop.f32.mrf.mxu0
  %v391 = vadd.f32 %v104, %v390
  %392 = vmatmul.bf16.gmra.mxu0 %v143
  %v393 = vpop.f32.mrf.mxu0
  %v394 = vadd.f32 %v104, %v393
  %v395 = vpop.f32.mrf.mxu0
  %v396 = vadd.f32 %v104, %v395
  %397 = vdwg.mxu0
  %398 = vmatpush.bf16.msra.mxu0 %v315
  %399 = vmatpush.bf16.msra.mxu0 %v314
  %400 = vmatpush.bf16.msra.mxu0 %v313
  %401 = vmatpush.bf16.msra.mxu0 %v312
  %402 = vmatpush.bf16.msra.mxu0 %v311
  %403 = vmatpush.bf16.msra.mxu0 %v310
  %404 = vmatpush.bf16.msra.mxu0 %v309
  %405 = vmatpush.bf16.msra.mxu0 %v308
  %406 = vmatmul.bf16.gmra.mxu0 %v139
  %v407 = vpop.f32.mrf.mxu0
  %v408 = vadd.f32 %v389, %v407
  %v409 = vpop.f32.mrf.mxu0
  %v410 = vadd.f32 %v391, %v409
  %411 = vmatmul.bf16.gmra.mxu0 %v144
  %v412 = vpop.f32.mrf.mxu0
  %v413 = vadd.f32 %v394, %v412
  %v414 = vpop.f32.mrf.mxu0
  %v415 = vadd.f32 %v396, %v414
  %416 = vdwg.mxu0
  %417 = vmatpush.bf16.msra.mxu0 %v323
  %418 = vmatpush.bf16.msra.mxu0 %v322
  %419 = vmatpush.bf16.msra.mxu0 %v321
  %420 = vmatpush.bf16.msra.mxu0 %v320
  %421 = vmatpush.bf16.msra.mxu0 %v319
  %422 = vmatpush.bf16.msra.mxu0 %v318
  %423 = vmatpush.bf16.msra.mxu0 %v317
  %424 = vmatpush.bf16.msra.mxu0 %v316
  %425 = vmatmul.bf16.gmra.mxu0 %v140
  %v426 = vpop.f32.mrf.mxu0
  %v427 = vadd.f32 %v408, %v426
  %v428 = vpop.f32.mrf.mxu0
  %v429 = vadd.f32 %v410, %v428
  %430 = vmatmul.bf16.gmra.mxu0 %v145
  %v431 = vpop.f32.mrf.mxu0
  %v432 = vadd.f32 %v413, %v431
  %v433 = vpop.f32.mrf.mxu0
  %v434 = vadd.f32 %v415, %v433
  %435 = vdwg.mxu0
  %436 = vmatpush.bf16.msra.mxu0 %v331
  %437 = vmatpush.bf16.msra.mxu0 %v330
  %438 = vmatpush.bf16.msra.mxu0 %v329
  %439 = vmatpush.bf16.msra.mxu0 %v328
  %440 = vmatpush.bf16.msra.mxu0 %v327
  %441 = vmatpush.bf16.msra.mxu0 %v326
  %442 = vmatpush.bf16.msra.mxu0 %v325
  %443 = vmatpush.bf16.msra.mxu0 %v324
  %444 = vmatmul.bf16.gmra.mxu0 %v141
  %v445 = vpop.f32.mrf.mxu0
  %v446 = vadd.f32 %v427, %v445
  %v447 = vpop.f32.mrf.mxu0
  %v448 = vadd.f32 %v429, %v447
  %449 = vmatmul.bf16.gmra.mxu0 %v146
  %v450 = vpop.f32.mrf.mxu0
  %v451 = vadd.f32 %v432, %v450
  %v452 = vpop.f32.mrf.mxu0
  %v453 = vadd.f32 %v434, %v452
  %454 = vdwg.mxu0
  %455 = vmatpush.bf16.msra.mxu0 0
  %456 = vmatpush.bf16.msra.mxu0 0
  %457 = vmatpush.bf16.msra.mxu0 0
  %458 = vmatpush.bf16.msra.mxu0 0
  %459 = vmatpush.bf16.msra.mxu0 %v335
  %460 = vmatpush.bf16.msra.mxu0 %v334
  %461 = vmatpush.bf16.msra.mxu0 %v333
  %462 = vmatpush.bf16.msra.mxu0 %v332
  %463 = vmatmul.bf16.gmra.mxu0 %v374
  %v464 = vpop.f32.mrf.mxu0
  %v465 = vadd.f32 %v446, %v464
  %v466 = vpop.f32.mrf.mxu0
  %v467 = vadd.f32 %v448, %v466
  %468 = vmatmul.bf16.gmra.mxu0 %v377
  %v469 = vpop.f32.mrf.mxu0
  %v470 = vadd.f32 %v451, %v469
  %v471 = vpop.f32.mrf.mxu0
  %v472 = vadd.f32 %v453, %v471
  %473 = vdwg.mxu0
  %v474 = vpack.c.bf16 %v465, %v465
  %v475 = vpack.c.bf16 %v467, %v467
  %v476 = vpack.c.bf16 %v470, %v470
  %v477 = vpack.c.bf16 %v472, %v472
  %478 = vst [vmem:[%s3] sm:$0xf] %v474
  %479 = vst [vmem:[%s3 + $0x4] sm:$0xf] %v475
  %480 = vst [vmem:[%s3 + $0x8] sm:$0xf] %v476
  %481 = vst [vmem:[%s3 + $0xc] sm:$0xf] %v477
  %v482 = vadd.f32 %v465, %v467
  %v483 = vadd.f32 %v482, %v470
  %v484 = vadd.f32 %v483, %v472
  %v485 = vrot.slane %v484, 4
  %v486 = vadd.f32 %v484, %v485
  %v487 = vrot.slane %v486, 2
  %v488 = vadd.f32 %v486, %v487
  %v489 = vrot.slane %v488, 1
  %v490 = vadd.f32 %v488, %v489
  %491 = vst [vmem:[%s4] sm:$0x1] %v490
  %v492 = vmul.f32 %v465, %v465
  %v493 = vmul.f32 %v467, %v467
  %v494 = vmul.f32 %v470, %v470
  %v495 = vmul.f32 %v472, %v472
  %v496 = vadd.f32 %v492, %v493
  %v497 = vadd.f32 %v496, %v494
  %v498 = vadd.f32 %v497, %v495
  %v499 = vrot.slane %v498, 4
  %v500 = vadd.f32 %v498, %v499
  %v501 = vrot.slane %v500, 2
  %v502 = vadd.f32 %v500, %v501
  %v503 = vrot.slane %v502, 1
  %v504 = vadd.f32 %v502, %v503
  %505 = vst [vmem:[%s5] sm:$0x1] %v504
  // Predicated region
  $region14: #{autoencoder_forward.19} parent=0 // pred_check
    _
  $region15: #{autoencoder_forward.19} parent=0 // pred_check_branch
    %507 = sbr.rel (0) target = $region17
  $region16: #{autoencoder_forward.19} parent=0 // pred_region
    _
  $region17: #{autoencoder_forward.19} parent=0 // pred_fallthru
    _
  // Predicated region
  $region18: #{autoencoder_forward.19} parent=0 // pred_check
    _
  $region19: #{autoencoder_forward.19} parent=0 // pred_check_branch
    %509 = sbr.rel (0) target = $region21
  $region20: #{autoencoder_forward.19} parent=0 // pred_region
    _
  $region21: #{autoencoder_forward.19} parent=0 // pred_fallthru
    _
  // Predicated region
  $region22: #{autoencoder_forward.19} parent=0 // pred_check
    _
  $region23: #{autoencoder_forward.19} parent=0 // pred_check_branch
    %511 = sbr.rel (0) target = $region25
  $region24: #{autoencoder_forward.19} parent=0 // pred_region
    _
  $region25: #{autoencoder_forward.19} parent=0 // pred_fallthru
    _
  // Predicated region
  $region26: #{autoencoder_forward.19} parent=0 // pred_check
    _
  $region27: #{autoencoder_forward.19} parent=0 // pred_check_branch
    %513 = sbr.rel (0) target = $region29
  $region28: #{autoencoder_forward.19} parent=0 // pred_region
    _
  $region29: #{autoencoder_forward.19} parent=0 // pred_fallthru
    _
  // Predicated region
  $region30: #{autoencoder_forward.19} parent=0 // pred_check
    _
  $region31: #{autoencoder_forward.19} parent=0 // pred_check_branch
    %515 = sbr.rel (0) target = $region33
  $region32: #{autoencoder_forward.19} parent=0 // pred_region
    _
  $region33: #{autoencoder_forward.19} parent=0 // pred_fallthru
    _
  // Predicated region
  $region34: #{autoencoder_forward.19} parent=0 // pred_check
    _
  $region35: #{autoencoder_forward.19} parent=0 // pred_check_branch
    %517 = sbr.rel (0) target = $region37
  $region36: #{autoencoder_forward.19} parent=0 // pred_region
    _
  $region37: #{autoencoder_forward.19} parent=0 // pred_fallthru
    _

// kernel: autoencoder_forward.21
$region0: #{autoencoder_forward.21}
  #allocation0 [shape = 'u32[]', space=smem, size = 0x4, offset = 0x4, fixed_abs, tag = 'smem constant byte address 0x4 - core index']
  #allocation1 [shape = 'u32[72,128]{1,0:T(1,128)}', space=vmem, size = 0x9000, scoped, tag = 'internal scratch']
  %s0 = inlined_call_operand.vmem [shape: bf16[32,256], index: 0, kind: input, shape index: {}]
  %s1 = inlined_call_operand.vmem [shape: bf16[256,128], index: 1, kind: input, shape index: {}]
  %s2 = inlined_call_operand.vmem [shape: f32[1,128], index: 2, kind: input, shape index: {}]
  %s3 = inlined_call_operand.vmem [shape: bf16[32,128], index: 3, kind: output, shape index: {0}]
  %s4 = inlined_call_operand.vmem [shape: f32[1,1,128], index: 4, kind: output, shape index: {1}]
  %s5 = inlined_call_operand.vmem [shape: f32[1,1,128], index: 5, kind: output, shape index: {2}]
  %6 = xla_tuple %s3, %s4, %s5
  %s7 = sld [smem:[#allocation0]]
  $region38: #{autoencoder_forward.21} parent=0
    _
  %s9 = ssub.s32 1, %s7
  %s10 = scalar_select 0, %s9, %s7
  // Predicated region
  $region2: #{autoencoder_forward.21} parent=0 // pred_check
    _
  $region3: #{autoencoder_forward.21} parent=0 // pred_check_branch
    %12 = sbr.rel (0) target = $region5
  $region4: #{autoencoder_forward.21} parent=0 // pred_region
    _
  $region5: #{autoencoder_forward.21} parent=0 // pred_fallthru
    _
  // Predicated region
  $region6: #{autoencoder_forward.21} parent=0 // pred_check
    _
  $region7: #{autoencoder_forward.21} parent=0 // pred_check_branch
    %14 = sbr.rel (0) target = $region9
  $region8: #{autoencoder_forward.21} parent=0 // pred_region
    _
  $region9: #{autoencoder_forward.21} parent=0 // pred_fallthru
    _
  // Predicated region
  $region10: #{autoencoder_forward.21} parent=0 // pred_check
    _
  $region11: #{autoencoder_forward.21} parent=0 // pred_check_branch
    %16 = sbr.rel (0) target = $region13
  $region12: #{autoencoder_forward.21} parent=0 // pred_region
    _
  $region13: #{autoencoder_forward.21} parent=0 // pred_fallthru
    _
  %v17 = vld [vmem:[%s0] sm:$0xff]
  %v18 = vld [vmem:[%s0 + $0x8] sm:$0xff]
  %v19 = vld [vmem:[%s0 + $0x10] sm:$0xff]
  %v20 = vld [vmem:[%s0 + $0x18] sm:$0xff]
  %v21 = vld [vmem:[%s1] sm:$0xf]
  %v22 = vld [vmem:[%s1 + $0x4] sm:$0xf]
  %v23 = vld [vmem:[%s1 + $0x8] sm:$0xf]
  %v24 = vld [vmem:[%s1 + $0xc] sm:$0xf]
  %v25 = vld [vmem:[%s1 + $0x10] sm:$0xf]
  %v26 = vld [vmem:[%s1 + $0x14] sm:$0xf]
  %v27 = vld [vmem:[%s1 + $0x18] sm:$0xf]
  %v28 = vld [vmem:[%s1 + $0x1c] sm:$0xf]
  %v29 = vld [vmem:[%s1 + $0x20] sm:$0xf]
  %v30 = vld [vmem:[%s1 + $0x24] sm:$0xf]
  %v31 = vld [vmem:[%s1 + $0x28] sm:$0xf]
  %v32 = vld [vmem:[%s1 + $0x2c] sm:$0xf]
  %v33 = vld [vmem:[%s1 + $0x30] sm:$0xf]
  %v34 = vld [vmem:[%s1 + $0x34] sm:$0xf]
  %v35 = vld [vmem:[%s1 + $0x38] sm:$0xf]
  %v36 = vld [vmem:[%s1 + $0x3c] sm:$0xf]
  %v37 = vld [vmem:[%s1 + $0x40] sm:$0xf]
  %v38 = vld [vmem:[%s1 + $0x44] sm:$0xf]
  %v39 = vld [vmem:[%s1 + $0x48] sm:$0xf]
  %v40 = vld [vmem:[%s1 + $0x4c] sm:$0xf]
  %v41 = vld [vmem:[%s1 + $0x50] sm:$0xf]
  %v42 = vld [vmem:[%s1 + $0x54] sm:$0xf]
  %v43 = vld [vmem:[%s1 + $0x58] sm:$0xf]
  %v44 = vld [vmem:[%s1 + $0x5c] sm:$0xf]
  %v45 = vld [vmem:[%s1 + $0x60] sm:$0xf]
  %v46 = vld [vmem:[%s1 + $0x64] sm:$0xf]
  %v47 = vld [vmem:[%s1 + $0x68] sm:$0xf]
  %v48 = vld [vmem:[%s1 + $0x6c] sm:$0xf]
  %v49 = vld [vmem:[%s1 + $0x70] sm:$0xf]
  %v50 = vld [vmem:[%s1 + $0x74] sm:$0xf]
  %v51 = vld [vmem:[%s1 + $0x78] sm:$0xf]
  %v52 = vld [vmem:[%s1 + $0x7c] sm:$0xf]
  %v53 = vld [vmem:[%s2] sm:$0x1]
  %v55 = vperm.slane %v53, 0
  %v61 = vunpack.c.l.b16 %v17
  %v62 = vunpack.c.h.b16 %v17
  %v63 = vunpack.c.l.b16 %v18
  %v64 = vunpack.c.h.b16 %v18
  %v65 = vunpack.c.l.b16 %v19
  %v66 = vunpack.c.h.b16 %v19
  %v67 = vunpack.c.l.b16 %v20
  %v68 = vunpack.c.h.b16 %v20
  %v69 = vpack.c.b16 %v63, %v61
  %v70 = vpack.c.b16 %v64, %v62
  %v71 = vpack.c.b16 %v67, %v65
  %v72 = vpack.c.b16 %v68, %v66
  %v109 = vunpack.c.l.b16 %v21
  %v110 = vunpack.c.l.b16 %v22
  %v111 = vunpack.c.l.b16 %v23
  %v112 = vunpack.c.l.b16 %v24
  %v113 = vunpack.c.l.b16 %v25
  %v114 = vunpack.c.l.b16 %v26
  %v115 = vunpack.c.l.b16 %v27
  %v116 = vunpack.c.l.b16 %v28
  %v117 = vunpack.c.l.b16 %v29
  %v118 = vunpack.c.l.b16 %v30
  %v119 = vunpack.c.l.b16 %v31
  %v120 = vunpack.c.l.b16 %v32
  %v121 = vunpack.c.l.b16 %v33
  %v122 = vunpack.c.l.b16 %v34
  %v123 = vunpack.c.l.b16 %v35
  %v124 = vunpack.c.l.b16 %v36
  %v125 = vunpack.c.l.b16 %v37
  %v126 = vunpack.c.l.b16 %v38
  %v127 = vunpack.c.l.b16 %v39
  %v128 = vunpack.c.l.b16 %v40
  %v129 = vunpack.c.l.b16 %v41
  %v130 = vunpack.c.l.b16 %v42
  %v131 = vunpack.c.l.b16 %v43
  %v132 = vunpack.c.l.b16 %v44
  %v133 = vunpack.c.l.b16 %v45
  %v134 = vunpack.c.l.b16 %v46
  %v135 = vunpack.c.l.b16 %v47
  %v136 = vunpack.c.l.b16 %v48
  %v137 = vunpack.c.l.b16 %v49
  %v138 = vunpack.c.l.b16 %v50
  %v139 = vunpack.c.l.b16 %v51
  %v140 = vunpack.c.l.b16 %v52
  %v141 = vpack.c.b16 %v110, %v109
  %v142 = vpack.c.b16 %v112, %v111
  %v143 = vpack.c.b16 %v114, %v113
  %v144 = vpack.c.b16 %v116, %v115
  %v145 = vpack.c.b16 %v118, %v117
  %v146 = vpack.c.b16 %v120, %v119
  %v147 = vpack.c.b16 %v122, %v121
  %v148 = vpack.c.b16 %v124, %v123
  %v149 = vpack.c.b16 %v126, %v125
  %v150 = vpack.c.b16 %v128, %v127
  %v151 = vpack.c.b16 %v130, %v129
  %v152 = vpack.c.b16 %v132, %v131
  %v153 = vpack.c.b16 %v134, %v133
  %v154 = vpack.c.b16 %v136, %v135
  %v155 = vpack.c.b16 %v138, %v137
  %v156 = vpack.c.b16 %v140, %v139
  %173 = vmatpush.bf16.msra.mxu0 %v148
  %174 = vmatpush.bf16.msra.mxu0 %v147
  %175 = vmatpush.bf16.msra.mxu0 %v146
  %176 = vmatpush.bf16.msra.mxu0 %v145
  %177 = vmatpush.bf16.msra.mxu0 %v144
  %178 = vmatpush.bf16.msra.mxu0 %v143
  %179 = vmatpush.bf16.msra.mxu0 %v142
  %180 = vmatpush.bf16.msra.mxu0 %v141
  %181 = vmatmul.bf16.gmra.mxu0 %v69
  %v182 = vpop.f32.mrf.mxu0
  %v183 = vadd.f32 %v55, %v182
  %v184 = vpop.f32.mrf.mxu0
  %v185 = vadd.f32 %v55, %v184
  %186 = vmatmul.bf16.gmra.mxu0 %v71
  %v187 = vpop.f32.mrf.mxu0
  %v188 = vadd.f32 %v55, %v187
  %v189 = vpop.f32.mrf.mxu0
  %v190 = vadd.f32 %v55, %v189
  %191 = vdwg.mxu0
  %192 = vmatpush.bf16.msra.mxu0 %v156
  %193 = vmatpush.bf16.msra.mxu0 %v155
  %194 = vmatpush.bf16.msra.mxu0 %v154
  %195 = vmatpush.bf16.msra.mxu0 %v153
  %196 = vmatpush.bf16.msra.mxu0 %v152
  %197 = vmatpush.bf16.msra.mxu0 %v151
  %198 = vmatpush.bf16.msra.mxu0 %v150
  %199 = vmatpush.bf16.msra.mxu0 %v149
  %200 = vmatmul.bf16.gmra.mxu0 %v70
  %v201 = vpop.f32.mrf.mxu0
  %v202 = vadd.f32 %v183, %v201
  %v203 = vpop.f32.mrf.mxu0
  %v204 = vadd.f32 %v185, %v203
  %205 = vmatmul.bf16.gmra.mxu0 %v72
  %v206 = vpop.f32.mrf.mxu0
  %v207 = vadd.f32 %v188, %v206
  %v208 = vpop.f32.mrf.mxu0
  %v209 = vadd.f32 %v190, %v208
  %210 = vdwg.mxu0
  %v211 = vpack.c.bf16 %v202, %v202
  %v212 = vpack.c.bf16 %v204, %v204
  %v213 = vpack.c.bf16 %v207, %v207
  %v214 = vpack.c.bf16 %v209, %v209
  %215 = vst [vmem:[%s3] sm:$0xf] %v211
  %216 = vst [vmem:[%s3 + $0x4] sm:$0xf] %v212
  %217 = vst [vmem:[%s3 + $0x8] sm:$0xf] %v213
  %218 = vst [vmem:[%s3 + $0xc] sm:$0xf] %v214
  %v219 = vadd.f32 %v202, %v204
  %v220 = vadd.f32 %v219, %v207
  %v221 = vadd.f32 %v220, %v209
  %v222 = vrot.slane %v221, 4
  %v223 = vadd.f32 %v221, %v222
  %v224 = vrot.slane %v223, 2
  %v225 = vadd.f32 %v223, %v224
  %v226 = vrot.slane %v225, 1
  %v227 = vadd.f32 %v225, %v226
  %228 = vst [vmem:[%s4] sm:$0x1] %v227
  %v229 = vmul.f32 %v202, %v202
  %v230 = vmul.f32 %v204, %v204
  %v231 = vmul.f32 %v207, %v207
  %v232 = vmul.f32 %v209, %v209
  %v233 = vadd.f32 %v229, %v230
  %v234 = vadd.f32 %v233, %v231
  %v235 = vadd.f32 %v234, %v232
  %v236 = vrot.slane %v235, 4
  %v237 = vadd.f32 %v235, %v236
  %v238 = vrot.slane %v237, 2
  %v239 = vadd.f32 %v237, %v238
  %v240 = vrot.slane %v239, 1
  %v241 = vadd.f32 %v239, %v240
  %242 = vst [vmem:[%s5] sm:$0x1] %v241
  // Predicated region
  $region14: #{autoencoder_forward.21} parent=0 // pred_check
    _
  $region15: #{autoencoder_forward.21} parent=0 // pred_check_branch
    %244 = sbr.rel (0) target = $region17
  $region16: #{autoencoder_forward.21} parent=0 // pred_region
    _
  $region17: #{autoencoder_forward.21} parent=0 // pred_fallthru
    _
  // Predicated region
  $region18: #{autoencoder_forward.21} parent=0 // pred_check
    _
  $region19: #{autoencoder_forward.21} parent=0 // pred_check_branch
    %246 = sbr.rel (0) target = $region21
  $region20: #{autoencoder_forward.21} parent=0 // pred_region
    _
  $region21: #{autoencoder_forward.21} parent=0 // pred_fallthru
    _
  // Predicated region
  $region22: #{autoencoder_forward.21} parent=0 // pred_check
    _
  $region23: #{autoencoder_forward.21} parent=0 // pred_check_branch
    %248 = sbr.rel (0) target = $region25
  $region24: #{autoencoder_forward.21} parent=0 // pred_region
    _
  $region25: #{autoencoder_forward.21} parent=0 // pred_fallthru
    _
  // Predicated region
  $region26: #{autoencoder_forward.21} parent=0 // pred_check
    _
  $region27: #{autoencoder_forward.21} parent=0 // pred_check_branch
    %250 = sbr.rel (0) target = $region29
  $region28: #{autoencoder_forward.21} parent=0 // pred_region
    _
  $region29: #{autoencoder_forward.21} parent=0 // pred_fallthru
    _
  // Predicated region
  $region30: #{autoencoder_forward.21} parent=0 // pred_check
    _
  $region31: #{autoencoder_forward.21} parent=0 // pred_check_branch
    %252 = sbr.rel (0) target = $region33
  $region32: #{autoencoder_forward.21} parent=0 // pred_region
    _
  $region33: #{autoencoder_forward.21} parent=0 // pred_fallthru
    _
  // Predicated region
  $region34: #{autoencoder_forward.21} parent=0 // pred_check
    _
  $region35: #{autoencoder_forward.21} parent=0 // pred_check_branch
    %254 = sbr.rel (0) target = $region37
  $region36: #{autoencoder_forward.21} parent=0 // pred_region
    _
  $region37: #{autoencoder_forward.21} parent=0 // pred_fallthru
    _

// kernel: tile.48
$region0: #{tile.48}
  #allocation0 [shape = 's32[1]{0}', space=sflag, size = 0x4, scoped, tag = 'scoped memory for tile.48']
  %s0 = inlined_call_operand.vmem [shape: f32[16], index: 0, kind: input, shape index: {}]
  %s1 = inlined_call_operand.vmem [shape: f32[4,16], index: 1, kind: output, shape index: {}]
  // Predicated region
  $region2: #{tile.48} parent=0 // pred_check
    _
  $region3: #{tile.48} parent=0 // pred_check_branch
    %3 = sbr.rel (0) target = $region5
  $region4: #{tile.48} parent=0 // pred_region
    _
  $region5: #{tile.48} parent=0 // pred_fallthru
    _
  %v4 = vld [vmem:[%s0] ss:$0 sm:$0xff]
  %5 = vst [vmem:[%s1] sm:$0xf] %v4

// kernel: tile.49
$region0: #{tile.49}
  %s0 = inlined_call_operand.vmem [shape: f32[4,16], index: 0, kind: input, shape index: {}]
  %s1 = inlined_call_operand.vmem [shape: f32[1,64], index: 1, kind: output, shape index: {}]
  $region1: #{tile.49} parent=0
    #allocation0 [shape = 'u8[4096]{0}', space=vmem, size = 0x1000, scoped, tag = 'scoped mem for output reshape']
    #allocation1 [shape = 'u8[4096]{0}', space=vmem, size = 0x1000, scoped, tag = 'scoped mem for input reshape']
    %s3 = ssub.s32 16, 1
    %v4 = vld [vmem:[%s0] sm:%s3]
    %5 = vst [vmem:[#allocation1] sm:%s3] %v4
    %v6 = vld [vmem:[#allocation1] sm:$0x1]
    %vm7 = vcmask 130048
    %8 = vst.msk [vmem:[#allocation0] sm:$0x1] %vm7, %v6
    %s9 = scalar_lea.vmem [#allocation1], 3
    %v10 = vld [vmem:[%s9] sm:$0x1]
    %11 = vrot.lane.b32.xlu0 %v10, 48
    %v12 = vpop.permute.xlu0 %11
    %vm13 = vcmask 523648
    %14 = vst.msk [vmem:[#allocation0] sm:$0x1] %vm13, %v12
    %s15 = scalar_lea.vmem [#allocation1], 2
    %v16 = vld [vmem:[%s15] sm:$0x1]
    %17 = vrot.lane.b32.xlu0 %v16, 32
    %v18 = vpop.permute.xlu0 %17
    %vm19 = vcmask 392448
    %20 = vst.msk [vmem:[#allocation0] sm:$0x1] %vm19, %v18
    %s21 = scalar_lea.vmem [#allocation1], 1
    %v22 = vld [vmem:[%s21] sm:$0x1]
    %23 = vrot.lane.b32.xlu0 %v22, 16
    %v24 = vpop.permute.xlu0 %23
    %vm25 = vcmask 261248
    %26 = vst.msk [vmem:[#allocation0] sm:$0x1] %vm25, %v24
    %s28 = ssub.s32 2, 1
    %v29 = vld [vmem:[#allocation0] sm:%s28]
    %s31 = ssub.s32 2, 1
    %32 = vst [vmem:[%s1] sm:%s31] %v29

// kernel: tile.59
$region0: #{tile.59}
  %s0 = inlined_call_operand.vmem [shape: f32[4,16], index: 0, kind: input, shape index: {}]
  %s1 = inlined_call_operand.vmem [shape: f32[64], index: 1, kind: output, shape index: {}]
  $region1: #{tile.59} parent=0
    #allocation0 [shape = 'u8[4096]{0}', space=vmem, size = 0x1000, scoped, tag = 'scoped mem for output reshape']
    #allocation1 [shape = 'u8[4096]{0}', space=vmem, size = 0x1000, scoped, tag = 'scoped mem for input reshape']
    %s3 = ssub.s32 16, 1
    %v4 = vld [vmem:[%s0] sm:%s3]
    %5 = vst [vmem:[#allocation1] sm:%s3] %v4
    %v6 = vld [vmem:[#allocation1] sm:$0x1]
    %vm7 = vcmask 130048
    %8 = vst.msk [vmem:[#allocation0] sm:$0x1] %vm7, %v6
    %s9 = scalar_lea.vmem [#allocation1], 3
    %v10 = vld [vmem:[%s9] sm:$0x1]
    %11 = vrot.lane.b32.xlu0 %v10, 48
    %v12 = vpop.permute.xlu0 %11
    %vm13 = vcmask 523648
    %14 = vst.msk [vmem:[#allocation0] sm:$0x1] %vm13, %v12
    %s15 = scalar_lea.vmem [#allocation1], 2
    %v16 = vld [vmem:[%s15] sm:$0x1]
    %17 = vrot.lane.b32.xlu0 %v16, 32
    %v18 = vpop.permute.xlu0 %17
    %vm19 = vcmask 392448
    %20 = vst.msk [vmem:[#allocation0] sm:$0x1] %vm19, %v18
    %s21 = scalar_lea.vmem [#allocation1], 1
    %v22 = vld [vmem:[%s21] sm:$0x1]
    %23 = vrot.lane.b32.xlu0 %v22, 16
    %v24 = vpop.permute.xlu0 %23
    %vm25 = vcmask 261248
    %26 = vst.msk [vmem:[#allocation0] sm:$0x1] %vm25, %v24
    %s28 = ssub.s32 2, 1
    %v29 = vld [vmem:[#allocation0] sm:%s28]
    %s31 = ssub.s32 2, 1
    %32 = vst [vmem:[%s1] sm:%s31] %v29

// kernel: autoencoder_forward.23
$region0: #{autoencoder_forward.23}
  #allocation0 [shape = 'u32[]', space=smem, size = 0x4, offset = 0x4, fixed_abs, tag = 'smem constant byte address 0x4 - core index']
  #allocation1 [shape = 'u32[72,128]{1,0:T(1,128)}', space=vmem, size = 0x9000, scoped, tag = 'internal scratch']
  %s0 = inlined_call_operand.vmem [shape: bf16[128,128], index: 0, kind: input, shape index: {}]
  %s1 = inlined_call_operand.vmem [shape: bf16[128,128], index: 1, kind: input, shape index: {}]
  %s2 = inlined_call_operand.vmem [shape: f32[1,128], index: 2, kind: input, shape index: {}]
  %s3 = inlined_call_operand.vmem [shape: bf16[128,128], index: 3, kind: output, shape index: {0}]
  %s4 = inlined_call_operand.vmem [shape: f32[1,1,128], index: 4, kind: output, shape index: {1}]
  %s5 = inlined_call_operand.vmem [shape: f32[1,1,128], index: 5, kind: output, shape index: {2}]
  %6 = xla_tuple %s3, %s4, %s5
  %s7 = sld [smem:[#allocation0]]
  $region38: #{autoencoder_forward.23} parent=0
    _
  %s9 = ssub.s32 1, %s7
  %s10 = scalar_select 0, %s9, %s7
  // Predicated region
  $region2: #{autoencoder_forward.23} parent=0 // pred_check
    _
  $region3: #{autoencoder_forward.23} parent=0 // pred_check_branch
    %12 = sbr.rel (0) target = $region5
  $region4: #{autoencoder_forward.23} parent=0 // pred_region
    _
  $region5: #{autoencoder_forward.23} parent=0 // pred_fallthru
    _
  // Predicated region
  $region6: #{autoencoder_forward.23} parent=0 // pred_check
    _
  $region7: #{autoencoder_forward.23} parent=0 // pred_check_branch
    %14 = sbr.rel (0) target = $region9
  $region8: #{autoencoder_forward.23} parent=0 // pred_region
    _
  $region9: #{autoencoder_forward.23} parent=0 // pred_fallthru
    _
  // Predicated region
  $region10: #{autoencoder_forward.23} parent=0 // pred_check
    _
  $region11: #{autoencoder_forward.23} parent=0 // pred_check_branch
    %16 = sbr.rel (0) target = $region13
  $region12: #{autoencoder_forward.23} parent=0 // pred_region
    _
  $region13: #{autoencoder_forward.23} parent=0 // pred_fallthru
    _
  %v17 = vld [vmem:[%s0] sm:$0xf]
  %v18 = vld [vmem:[%s0 + $0x4] sm:$0xf]
  %v19 = vld [vmem:[%s0 + $0x8] sm:$0xf]
  %v20 = vld [vmem:[%s0 + $0xc] sm:$0xf]
  %v21 = vld [vmem:[%s0 + $0x10] sm:$0xf]
  %v22 = vld [vmem:[%s0 + $0x14] sm:$0xf]
  %v23 = vld [vmem:[%s0 + $0x18] sm:$0xf]
  %v24 = vld [vmem:[%s0 + $0x1c] sm:$0xf]
  %v25 = vld [vmem:[%s0 + $0x20] sm:$0xf]
  %v26 = vld [vmem:[%s0 + $0x24] sm:$0xf]
  %v27 = vld [vmem:[%s0 + $0x28] sm:$0xf]
  %v28 = vld [vmem:[%s0 + $0x2c] sm:$0xf]
  %v29 = vld [vmem:[%s0 + $0x30] sm:$0xf]
  %v30 = vld [vmem:[%s0 + $0x34] sm:$0xf]
  %v31 = vld [vmem:[%s0 + $0x38] sm:$0xf]
  %v32 = vld [vmem:[%s0 + $0x3c] sm:$0xf]
  %v33 = vld [vmem:[%s1] sm:$0xf]
  %v34 = vld [vmem:[%s1 + $0x4] sm:$0xf]
  %v35 = vld [vmem:[%s1 + $0x8] sm:$0xf]
  %v36 = vld [vmem:[%s1 + $0xc] sm:$0xf]
  %v37 = vld [vmem:[%s1 + $0x10] sm:$0xf]
  %v38 = vld [vmem:[%s1 + $0x14] sm:$0xf]
  %v39 = vld [vmem:[%s1 + $0x18] sm:$0xf]
  %v40 = vld [vmem:[%s1 + $0x1c] sm:$0xf]
  %v41 = vld [vmem:[%s1 + $0x20] sm:$0xf]
  %v42 = vld [vmem:[%s1 + $0x24] sm:$0xf]
  %v43 = vld [vmem:[%s1 + $0x28] sm:$0xf]
  %v44 = vld [vmem:[%s1 + $0x2c] sm:$0xf]
  %v45 = vld [vmem:[%s1 + $0x30] sm:$0xf]
  %v46 = vld [vmem:[%s1 + $0x34] sm:$0xf]
  %v47 = vld [vmem:[%s1 + $0x38] sm:$0xf]
  %v48 = vld [vmem:[%s1 + $0x3c] sm:$0xf]
  %v49 = vld [vmem:[%s2] sm:$0x1]
  %v51 = vperm.slane %v49, 0
  %v69 = vunpack.c.l.b16 %v17
  %v70 = vunpack.c.l.b16 %v18
  %v71 = vunpack.c.l.b16 %v19
  %v72 = vunpack.c.l.b16 %v20
  %v73 = vunpack.c.l.b16 %v21
  %v74 = vunpack.c.l.b16 %v22
  %v75 = vunpack.c.l.b16 %v23
  %v76 = vunpack.c.l.b16 %v24
  %v77 = vunpack.c.l.b16 %v25
  %v78 = vunpack.c.l.b16 %v26
  %v79 = vunpack.c.l.b16 %v27
  %v80 = vunpack.c.l.b16 %v28
  %v81 = vunpack.c.l.b16 %v29
  %v82 = vunpack.c.l.b16 %v30
  %v83 = vunpack.c.l.b16 %v31
  %v84 = vunpack.c.l.b16 %v32
  %v85 = vpack.c.b16 %v70, %v69
  %v86 = vpack.c.b16 %v72, %v71
  %v87 = vpack.c.b16 %v74, %v73
  %v88 = vpack.c.b16 %v76, %v75
  %v89 = vpack.c.b16 %v78, %v77
  %v90 = vpack.c.b16 %v80, %v79
  %v91 = vpack.c.b16 %v82, %v81
  %v92 = vpack.c.b16 %v84, %v83
  %v117 = vunpack.c.l.b16 %v33
  %v118 = vunpack.c.l.b16 %v34
  %v119 = vunpack.c.l.b16 %v35
  %v120 = vunpack.c.l.b16 %v36
  %v121 = vunpack.c.l.b16 %v37
  %v122 = vunpack.c.l.b16 %v38
  %v123 = vunpack.c.l.b16 %v39
  %v124 = vunpack.c.l.b16 %v40
  %v125 = vunpack.c.l.b16 %v41
  %v126 = vunpack.c.l.b16 %v42
  %v127 = vunpack.c.l.b16 %v43
  %v128 = vunpack.c.l.b16 %v44
  %v129 = vunpack.c.l.b16 %v45
  %v130 = vunpack.c.l.b16 %v46
  %v131 = vunpack.c.l.b16 %v47
  %v132 = vunpack.c.l.b16 %v48
  %v133 = vpack.c.b16 %v118, %v117
  %v134 = vpack.c.b16 %v120, %v119
  %v135 = vpack.c.b16 %v122, %v121
  %v136 = vpack.c.b16 %v124, %v123
  %v137 = vpack.c.b16 %v126, %v125
  %v138 = vpack.c.b16 %v128, %v127
  %v139 = vpack.c.b16 %v130, %v129
  %v140 = vpack.c.b16 %v132, %v131
  %149 = vmatpush.bf16.msra.mxu0 %v140
  %150 = vmatpush.bf16.msra.mxu0 %v139
  %151 = vmatpush.bf16.msra.mxu0 %v138
  %152 = vmatpush.bf16.msra.mxu0 %v137
  %153 = vmatpush.bf16.msra.mxu0 %v136
  %154 = vmatpush.bf16.msra.mxu0 %v135
  %155 = vmatpush.bf16.msra.mxu0 %v134
  %156 = vmatpush.bf16.msra.mxu0 %v133
  %157 = vmatmul.bf16.gmra.mxu0 %v85
  %v158 = vpop.f32.mrf.mxu0
  %v159 = vadd.f32 %v51, %v158
  %v160 = vpop.f32.mrf.mxu0
  %v161 = vadd.f32 %v51, %v160
  %162 = vmatmul.bf16.gmra.mxu0 %v86
  %v163 = vpop.f32.mrf.mxu0
  %v164 = vadd.f32 %v51, %v163
  %v165 = vpop.f32.mrf.mxu0
  %v166 = vadd.f32 %v51, %v165
  %167 = vmatmul.bf16.gmra.mxu0 %v87
  %v168 = vpop.f32.mrf.mxu0
  %v169 = vadd.f32 %v51, %v168
  %v170 = vpop.f32.mrf.mxu0
  %v171 = vadd.f32 %v51, %v170
  %172 = vmatmul.bf16.gmra.mxu0 %v88
  %v173 = vpop.f32.mrf.mxu0
  %v174 = vadd.f32 %v51, %v173
  %v175 = vpop.f32.mrf.mxu0
  %v176 = vadd.f32 %v51, %v175
  %177 = vmatmul.bf16.gmra.mxu0 %v89
  %v178 = vpop.f32.mrf.mxu0
  %v179 = vadd.f32 %v51, %v178
  %v180 = vpop.f32.mrf.mxu0
  %v181 = vadd.f32 %v51, %v180
  %182 = vmatmul.bf16.gmra.mxu0 %v90
  %v183 = vpop.f32.mrf.mxu0
  %v184 = vadd.f32 %v51, %v183
  %v185 = vpop.f32.mrf.mxu0
  %v186 = vadd.f32 %v51, %v185
  %187 = vmatmul.bf16.gmra.mxu0 %v91
  %v188 = vpop.f32.mrf.mxu0
  %v189 = vadd.f32 %v51, %v188
  %v190 = vpop.f32.mrf.mxu0
  %v191 = vadd.f32 %v51, %v190
  %192 = vmatmul.bf16.gmra.mxu0 %v92
  %v193 = vpop.f32.mrf.mxu0
  %v194 = vadd.f32 %v51, %v193
  %v195 = vpop.f32.mrf.mxu0
  %v196 = vadd.f32 %v51, %v195
  %197 = vdwg.mxu0
  %v198 = vpack.c.bf16 %v159, %v159
  %v199 = vpack.c.bf16 %v161, %v161
  %v200 = vpack.c.bf16 %v164, %v164
  %v201 = vpack.c.bf16 %v166, %v166
  %v202 = vpack.c.bf16 %v169, %v169
  %v203 = vpack.c.bf16 %v171, %v171
  %v204 = vpack.c.bf16 %v174, %v174
  %v205 = vpack.c.bf16 %v176, %v176
  %v206 = vpack.c.bf16 %v179, %v179
  %v207 = vpack.c.bf16 %v181, %v181
  %v208 = vpack.c.bf16 %v184, %v184
  %v209 = vpack.c.bf16 %v186, %v186
  %v210 = vpack.c.bf16 %v189, %v189
  %v211 = vpack.c.bf16 %v191, %v191
  %v212 = vpack.c.bf16 %v194, %v194
  %v213 = vpack.c.bf16 %v196, %v196
  %214 = vst [vmem:[%s3] sm:$0xf] %v198
  %215 = vst [vmem:[%s3 + $0x4] sm:$0xf] %v199
  %216 = vst [vmem:[%s3 + $0x8] sm:$0xf] %v200
  %217 = vst [vmem:[%s3 + $0xc] sm:$0xf] %v201
  %218 = vst [vmem:[%s3 + $0x10] sm:$0xf] %v202
  %219 = vst [vmem:[%s3 + $0x14] sm:$0xf] %v203
  %220 = vst [vmem:[%s3 + $0x18] sm:$0xf] %v204
  %221 = vst [vmem:[%s3 + $0x1c] sm:$0xf] %v205
  %222 = vst [vmem:[%s3 + $0x20] sm:$0xf] %v206
  %223 = vst [vmem:[%s3 + $0x24] sm:$0xf] %v207
  %224 = vst [vmem:[%s3 + $0x28] sm:$0xf] %v208
  %225 = vst [vmem:[%s3 + $0x2c] sm:$0xf] %v209
  %226 = vst [vmem:[%s3 + $0x30] sm:$0xf] %v210
  %227 = vst [vmem:[%s3 + $0x34] sm:$0xf] %v211
  %228 = vst [vmem:[%s3 + $0x38] sm:$0xf] %v212
  %229 = vst [vmem:[%s3 + $0x3c] sm:$0xf] %v213
  %v230 = vadd.f32 %v159, %v161
  %v231 = vadd.f32 %v230, %v164
  %v232 = vadd.f32 %v231, %v166
  %v233 = vadd.f32 %v232, %v169
  %v234 = vadd.f32 %v233, %v171
  %v235 = vadd.f32 %v234, %v174
  %v236 = vadd.f32 %v235, %v176
  %v237 = vadd.f32 %v236, %v179
  %v238 = vadd.f32 %v237, %v181
  %v239 = vadd.f32 %v238, %v184
  %v240 = vadd.f32 %v239, %v186
  %v241 = vadd.f32 %v240, %v189
  %v242 = vadd.f32 %v241, %v191
  %v243 = vadd.f32 %v242, %v194
  %v244 = vadd.f32 %v243, %v196
  %v245 = vrot.slane %v244, 4
  %v246 = vadd.f32 %v244, %v245
  %v247 = vrot.slane %v246, 2
  %v248 = vadd.f32 %v246, %v247
  %v249 = vrot.slane %v248, 1
  %v250 = vadd.f32 %v248, %v249
  %251 = vst [vmem:[%s4] sm:$0x1] %v250
  %v252 = vmul.f32 %v159, %v159
  %v253 = vmul.f32 %v161, %v161
  %v254 = vmul.f32 %v164, %v164
  %v255 = vmul.f32 %v166, %v166
  %v256 = vmul.f32 %v169, %v169
  %v257 = vmul.f32 %v171, %v171
  %v258 = vmul.f32 %v174, %v174
  %v259 = vmul.f32 %v176, %v176
  %v260 = vmul.f32 %v179, %v179
  %v261 = vmul.f32 %v181, %v181
  %v262 = vmul.f32 %v184, %v184
  %v263 = vmul.f32 %v186, %v186
  %v264 = vmul.f32 %v189, %v189
  %v265 = vmul.f32 %v191, %v191
  %v266 = vmul.f32 %v194, %v194
  %v267 = vmul.f32 %v196, %v196
  %v268 = vadd.f32 %v252, %v253
  %v269 = vadd.f32 %v268, %v254
  %v270 = vadd.f32 %v269, %v255
  %v271 = vadd.f32 %v270, %v256
  %v272 = vadd.f32 %v271, %v257
  %v273 = vadd.f32 %v272, %v258
  %v274 = vadd.f32 %v273, %v259
  %v275 = vadd.f32 %v274, %v260
  %v276 = vadd.f32 %v275, %v261
  %v277 = vadd.f32 %v276, %v262
  %v278 = vadd.f32 %v277, %v263
  %v279 = vadd.f32 %v278, %v264
  %v280 = vadd.f32 %v279, %v265
  %v281 = vadd.f32 %v280, %v266
  %v282 = vadd.f32 %v281, %v267
  %v283 = vrot.slane %v282, 4
  %v284 = vadd.f32 %v282, %v283
  %v285 = vrot.slane %v284, 2
  %v286 = vadd.f32 %v284, %v285
  %v287 = vrot.slane %v286, 1
  %v288 = vadd.f32 %v286, %v287
  %289 = vst [vmem:[%s5] sm:$0x1] %v288
  // Predicated region
  $region14: #{autoencoder_forward.23} parent=0 // pred_check
    _
  $region15: #{autoencoder_forward.23} parent=0 // pred_check_branch
    %291 = sbr.rel (0) target = $region17
  $region16: #{autoencoder_forward.23} parent=0 // pred_region
    _
  $region17: #{autoencoder_forward.23} parent=0 // pred_fallthru
    _
  // Predicated region
  $region18: #{autoencoder_forward.23} parent=0 // pred_check
    _
  $region19: #{autoencoder_forward.23} parent=0 // pred_check_branch
    %293 = sbr.rel (0) target = $region21
  $region20: #{autoencoder_forward.23} parent=0 // pred_region
    _
  $region21: #{autoencoder_forward.23} parent=0 // pred_fallthru
    _
  // Predicated region
  $region22: #{autoencoder_forward.23} parent=0 // pred_check
    _
  $region23: #{autoencoder_forward.23} parent=0 // pred_check_branch
    %295 = sbr.rel (0) target = $region25
  $region24: #{autoencoder_forward.23} parent=0 // pred_region
    _
  $region25: #{autoencoder_forward.23} parent=0 // pred_fallthru
    _
  // Predicated region
  $region26: #{autoencoder_forward.23} parent=0 // pred_check
    _
  $region27: #{autoencoder_forward.23} parent=0 // pred_check_branch
    %297 = sbr.rel (0) target = $region29
  $region28: #{autoencoder_forward.23} parent=0 // pred_region
    _
  $region29: #{autoencoder_forward.23} parent=0 // pred_fallthru
    _
  // Predicated region
  $region30: #{autoencoder_forward.23} parent=0 // pred_check
    _
  $region31: #{autoencoder_forward.23} parent=0 // pred_check_branch
    %299 = sbr.rel (0) target = $region33
  $region32: #{autoencoder_forward.23} parent=0 // pred_region
    _
  $region33: #{autoencoder_forward.23} parent=0 // pred_fallthru
    _
  // Predicated region
  $region34: #{autoencoder_forward.23} parent=0 // pred_check
    _
  $region35: #{autoencoder_forward.23} parent=0 // pred_check_branch
    %301 = sbr.rel (0) target = $region37
  $region36: #{autoencoder_forward.23} parent=0 // pred_region
    _
  $region37: #{autoencoder_forward.23} parent=0 // pred_fallthru
    _

// kernel: autoencoder_forward.25
$region0: #{autoencoder_forward.25}
  #allocation0 [shape = 'u32[]', space=smem, size = 0x4, offset = 0x4, fixed_abs, tag = 'smem constant byte address 0x4 - core index']
  #allocation1 [shape = 'u32[72,128]{1,0:T(1,128)}', space=vmem, size = 0x9000, scoped, tag = 'internal scratch']
  %s0 = inlined_call_operand.vmem [shape: bf16[512,144], index: 0, kind: input, shape index: {}]
  %s1 = inlined_call_operand.vmem [shape: bf16[144,128], index: 1, kind: input, shape index: {}]
  %s2 = inlined_call_operand.vmem [shape: f32[1,128], index: 2, kind: input, shape index: {}]
  %s3 = inlined_call_operand.vmem [shape: f32[512,128], index: 3, kind: output, shape index: {}]
  %s4 = sld [smem:[#allocation0]]
  $region45: #{autoencoder_forward.25} parent=0
    _
  %s6 = ssub.s32 1, %s4
  %s7 = scalar_select 0, %s6, %s4
  loop: start=0, step=1, limit=4
  $region2: #{autoencoder_forward.25} parent=0 // loop_pre_header
    _
  $region3: #{autoencoder_forward.25} parent=0 // loop_header
    %s9 = sphi 0, %s13
    %p10 = scmp.ge.s32.totalorder %s9, 4
    %s16 = sphi 0, %s28
    %s17 = sphi 0, %s24
    %s18 = sphi 0, %s16
    %s19 = sphi 0, %s17
    %s20 = sphi 0, %s18
    %s21 = sphi 0, %s19
    %s31 = sphi 0, %s33
    %s34 = sphi 0, %s31
    %s35 = sphi 0, %s34
    %s51 = sphi 0, %s35
    %s57 = sphi 0, %s59
    %s60 = sphi 0, %s57
    %s61 = sphi 0, %s60
    %s77 = sphi 0, %s61
    %s83 = sphi 0, %s85
    %s86 = sphi 0, %s83
    %s87 = sphi 0, %s86
    %s103 = sphi 0, %s87
    %s111 = sphi 0, %s113
    %s114 = sphi 0, %s111
    %s115 = sphi 0, %s114
    %s131 = sphi 0, %s115
  $region4: #{autoencoder_forward.25} parent=0 // loop_header_branch
    %12 = sbr.rel (%p10) target = $region8
  $region5: #{autoencoder_forward.25} parent=0 // loop_body
    %s14 = ssub.s32 %s9, 1
    %s15 = ssub.s32 %s9, 2
    %s22 = sadd.s32 1, %s17
    %p23 = scmp.ge.s32.totalorder %s22, 1
    %s24 = scalar_select %p23, 0, %s22
    %s25 = sadd.s32 1, %s16
    %s26 = scalar_select %p23, %s25, %s16
    %p27 = scmp.ge.s32.totalorder %s26, 2
    %s28 = scalar_select %p27, 0, %s26
    %s29 = ssub.s32 %s16, %s28
    %p30 = scmp.eq.s32.totalorder %s29, 0
    %s32 = sadd.s32 %s31, 1
    %s33 = scalar_select %p30, %s31, %s32
    %p36 = pneg %p30
    %p37 = scmp.eq.s32.totalorder %s9, 1
    %p38 = por %p36, %p37
    %p39 = scmp.ne.s32.totalorder %s31, %s34
    %p40 = scmp.eq.s32.totalorder %s9, 0
    %p41 = por %p39, %p40
    %p42 = scmp.ne.s32.totalorder %s31, %s34
    %p43 = scmp.eq.s32.totalorder %s14, 1
    %p44 = por %p42, %p43
    %p45 = scmp.ne.s32.totalorder %s34, %s35
    %p46 = scmp.eq.s32.totalorder %s14, 0
    %p47 = por %p45, %p46
    %p48 = scmp.ne.s32.totalorder %s34, %s35
    %p49 = scmp.eq.s32.totalorder %s15, 1
    %p50 = por %p48, %p49
    %p52 = scmp.ne.s32.totalorder %s35, %s51
    %p53 = scmp.eq.s32.totalorder %s15, 0
    %p54 = por %p52, %p53
    %s55 = ssub.s32 %s17, %s24
    %p56 = scmp.eq.s32.totalorder %s55, 0
    %s58 = sadd.s32 %s57, 1
    %s59 = scalar_select %p56, %s57, %s58
    %p62 = pneg %p56
    %p63 = scmp.eq.s32.totalorder %s9, 1
    %p64 = por %p62, %p63
    %p65 = scmp.ne.s32.totalorder %s57, %s60
    %p66 = scmp.eq.s32.totalorder %s9, 0
    %p67 = por %p65, %p66
    %p68 = scmp.ne.s32.totalorder %s57, %s60
    %p69 = scmp.eq.s32.totalorder %s14, 1
    %p70 = por %p68, %p69
    %p71 = scmp.ne.s32.totalorder %s60, %s61
    %p72 = scmp.eq.s32.totalorder %s14, 0
    %p73 = por %p71, %p72
    %p74 = scmp.ne.s32.totalorder %s60, %s61
    %p75 = scmp.eq.s32.totalorder %s15, 1
    %p76 = por %p74, %p75
    %p78 = scmp.ne.s32.totalorder %s61, %s77
    %p79 = scmp.eq.s32.totalorder %s15, 0
    %p80 = por %p78, %p79
    %s81 = ssub.s32 %s17, %s24
    %p82 = scmp.eq.s32.totalorder %s81, 0
    %s84 = sadd.s32 %s83, 1
    %s85 = scalar_select %p82, %s83, %s84
    %p88 = pneg %p82
    %p89 = scmp.eq.s32.totalorder %s9, 1
    %p90 = por %p88, %p89
    %p91 = scmp.ne.s32.totalorder %s83, %s86
    %p92 = scmp.eq.s32.totalorder %s9, 0
    %p93 = por %p91, %p92
    %p94 = scmp.ne.s32.totalorder %s83, %s86
    %p95 = scmp.eq.s32.totalorder %s14, 1
    %p96 = por %p94, %p95
    %p97 = scmp.ne.s32.totalorder %s86, %s87
    %p98 = scmp.eq.s32.totalorder %s14, 0
    %p99 = por %p97, %p98
    %p100 = scmp.ne.s32.totalorder %s86, %s87
    %p101 = scmp.eq.s32.totalorder %s15, 1
    %p102 = por %p100, %p101
    %p104 = scmp.ne.s32.totalorder %s87, %s103
    %p105 = scmp.eq.s32.totalorder %s15, 0
    %p106 = por %p104, %p105
    %s107 = ssub.s32 %s16, %s28
    %s108 = ssub.s32 %s17, %s24
    %s109 = sor.u32 %s107, %s108
    %p110 = scmp.eq.s32.totalorder %s109, 0
    %s112 = sadd.s32 %s111, 1
    %s113 = scalar_select %p110, %s111, %s112
    %p116 = pneg %p110
    %p117 = scmp.eq.s32.totalorder %s9, 1
    %p118 = por %p116, %p117
    %p119 = scmp.ne.s32.totalorder %s111, %s114
    %p120 = scmp.eq.s32.totalorder %s9, 0
    %p121 = por %p119, %p120
    %p122 = scmp.ne.s32.totalorder %s111, %s114
    %p123 = scmp.eq.s32.totalorder %s14, 1
    %p124 = por %p122, %p123
    %p125 = scmp.ne.s32.totalorder %s114, %s115
    %p126 = scmp.eq.s32.totalorder %s14, 0
    %p127 = por %p125, %p126
    %p128 = scmp.ne.s32.totalorder %s114, %s115
    %p129 = scmp.eq.s32.totalorder %s15, 1
    %p130 = por %p128, %p129
    %p132 = scmp.ne.s32.totalorder %s115, %s131
    %p133 = scmp.eq.s32.totalorder %s15, 0
    %p134 = por %p132, %p133
    %p135 = scmp.le.s32.totalorder 1, %s9
    %p136 = scmp.lt.s32.totalorder %s9, 3
    %p137 = pnand %p135, %p136
    %p138 = pneg %p137
    // Predicated region
    $region9: #{autoencoder_forward.25} parent=5 // pred_check
      _
    $region10: #{autoencoder_forward.25} parent=5 // pred_check_branch
      %140 = sbr.rel (%p137) target = $region12
    $region11: #{autoencoder_forward.25} parent=5 // pred_region
      %s141 = ssub.s32 %s9, 1
      // Predicated region
      $region13: #{autoencoder_forward.25} parent=11 // pred_check
        %p142 = pneg %p73
      $region14: #{autoencoder_forward.25} parent=11 // pred_check_branch
        %144 = sbr.rel (%p142) target = $region16
      $region15: #{autoencoder_forward.25} parent=11 // pred_region
        %p145 = scmp.lt.s32.totalorder %s19, 0
        %s146 = scalar_select %p145, %s19, 0
        %s147 = smul.addr %s146, 4
        %s148 = scalar_lea.vmem %s1, %s147
      $region16: #{autoencoder_forward.25} parent=11 // pred_fallthru
        _
      // Predicated region
      $region17: #{autoencoder_forward.25} parent=11 // pred_check
        %p149 = pneg %p99
      $region18: #{autoencoder_forward.25} parent=11 // pred_check_branch
        %151 = sbr.rel (%p149) target = $region20
      $region19: #{autoencoder_forward.25} parent=11 // pred_region
        %p152 = scmp.lt.s32.totalorder %s19, 0
        %s153 = scalar_select %p152, %s19, 0
        %s154 = scalar_lea.vmem %s2, %s153
      $region20: #{autoencoder_forward.25} parent=11 // pred_fallthru
        _
    $region12: #{autoencoder_forward.25} parent=5 // pred_fallthru
      _
    %p155 = scmp.lt.s32.totalorder %s9, 2
    // Predicated region
    $region21: #{autoencoder_forward.25} parent=5 // pred_check
      %p156 = pneg %p155
    $region22: #{autoencoder_forward.25} parent=5 // pred_check_branch
      %158 = sbr.rel (%p156) target = $region24
    $region23: #{autoencoder_forward.25} parent=5 // pred_region
      // Predicated region
      $region25: #{autoencoder_forward.25} parent=23 // pred_check
        %p159 = pneg %p41
      $region26: #{autoencoder_forward.25} parent=23 // pred_check_branch
        %161 = sbr.rel (%p159) target = $region28
      $region27: #{autoencoder_forward.25} parent=23 // pred_region
        %s162 = smul.u32 32, %s16
        %p163 = scmp.lt.s32.totalorder %s162, 63
        %s164 = scalar_select %p163, %s162, 63
        %s165 = smul.addr %s164, 2
        %s166 = smul.addr %s165, 4
        %s167 = scalar_lea.vmem %s0, %s166
        %s168 = smul.u32 32, %s16
      $region28: #{autoencoder_forward.25} parent=23 // pred_fallthru
        _
    $region24: #{autoencoder_forward.25} parent=5 // pred_fallthru
      _
    %p169 = scmp.le.s32.totalorder 1, %s9
    %p170 = scmp.lt.s32.totalorder %s9, 3
    %p171 = pnand %p169, %p170
    %p172 = pneg %p171
    // Predicated region
    $region29: #{autoencoder_forward.25} parent=5 // pred_check
      _
    $region30: #{autoencoder_forward.25} parent=5 // pred_check_branch
      %174 = sbr.rel (%p171) target = $region32
    $region31: #{autoencoder_forward.25} parent=5 // pred_region
      %s175 = ssub.s32 %s9, 1
      %s176 = smul.u32 32, %s18
      %p177 = scmp.lt.s32.totalorder %s176, 63
      %s178 = scalar_select %p177, %s176, 63
      %s179 = smul.addr %s178, 2
      %s180 = smul.addr %s179, 4
      %s181 = scalar_lea.vmem %s0, %s180
      %p182 = pneg %p47
      %p183 = pneg %p44
      %p184 = scmp.lt.s32.totalorder %s19, 0
      %s185 = scalar_select %p184, %s19, 0
      %s186 = smul.addr %s185, 4
      %s187 = scalar_lea.vmem %s1, %s186
      %p188 = pneg %p73
      %p189 = pneg %p70
      %p190 = scmp.lt.s32.totalorder %s19, 0
      %s191 = scalar_select %p190, %s19, 0
      %s192 = scalar_lea.vmem %s2, %s191
      %p193 = pneg %p99
      %p194 = pneg %p96
      %p195 = pneg %p127
      %p196 = pneg %p124
      %s197 = smul.u32 32, %s18
      %p198 = scmp.lt.s32.totalorder %s197, 63
      %s199 = scalar_select %p198, %s197, 63
      %p200 = scmp.lt.s32.totalorder %s19, 0
      %s201 = scalar_select %p200, %s19, 0
      %s202 = sadd.s32 %s201, %s199
      %s203 = smul.addr %s202, 8
      %s204 = scalar_lea.vmem %s3, %s203
      %s205 = smul.u32 32, %s18
      %p206 = scmp.lt.s32.totalorder %s205, 63
      %s207 = scalar_select %p206, %s205, 63
      %s208 = smul.addr %s207, 2
      %s209 = smul.addr %s208, 4
      %s210 = scalar_lea.vmem %s0, %s209
      %s211 = smul.u32 32, %s18
      %p212 = scmp.lt.s32.totalorder %s19, 0
      %s213 = scalar_select %p212, %s19, 0
      %s214 = smul.addr %s213, 4
      %s215 = scalar_lea.vmem %s1, %s214
      %p216 = scmp.lt.s32.totalorder %s19, 0
      %s217 = scalar_select %p216, %s19, 0
      %s218 = scalar_lea.vmem %s2, %s217
      %s219 = smul.u32 32, %s18
      %p220 = scmp.lt.s32.totalorder %s219, 63
      %s221 = scalar_select %p220, %s219, 63
      %p222 = scmp.lt.s32.totalorder %s19, 0
      %s223 = scalar_select %p222, %s19, 0
      %s224 = sadd.s32 %s223, %s221
      %s225 = smul.addr %s224, 8
      %s226 = scalar_lea.vmem %s3, %s225
      %s227 = smul.u32 32, %s18
      %v229 = vld [vmem:[%s210] sm:$0xff]
      %v230 = vld [vmem:[%s210 + $0x8] sm:$0xff]
      %v231 = vld [vmem:[%s210 + $0x10] sm:$0xff]
      %v232 = vld [vmem:[%s210 + $0x18] sm:$0xff]
      %v233 = vld [vmem:[%s210 + $0x20] sm:$0xff]
      %v234 = vld [vmem:[%s210 + $0x28] sm:$0xff]
      %v235 = vld [vmem:[%s210 + $0x30] sm:$0xff]
      %v236 = vld [vmem:[%s210 + $0x38] sm:$0xff]
      %v237 = vld [vmem:[%s210 + $0x40] sm:$0xff]
      %v238 = vld [vmem:[%s210 + $0x48] sm:$0xff]
      %v239 = vld [vmem:[%s210 + $0x50] sm:$0xff]
      %v240 = vld [vmem:[%s210 + $0x58] sm:$0xff]
      %v241 = vld [vmem:[%s210 + $0x60] sm:$0xff]
      %v242 = vld [vmem:[%s210 + $0x68] sm:$0xff]
      %v243 = vld [vmem:[%s210 + $0x70] sm:$0xff]
      %v244 = vld [vmem:[%s210 + $0x78] sm:$0xff]
      %v245 = vld [vmem:[%s210 + $0x80] sm:$0xff]
      %v246 = vld [vmem:[%s210 + $0x88] sm:$0xff]
      %v247 = vld [vmem:[%s210 + $0x90] sm:$0xff]
      %v248 = vld [vmem:[%s210 + $0x98] sm:$0xff]
      %v249 = vld [vmem:[%s210 + $0xa0] sm:$0xff]
      %v250 = vld [vmem:[%s210 + $0xa8] sm:$0xff]
      %v251 = vld [vmem:[%s210 + $0xb0] sm:$0xff]
      %v252 = vld [vmem:[%s210 + $0xb8] sm:$0xff]
      %v253 = vld [vmem:[%s210 + $0xc0] sm:$0xff]
      %v254 = vld [vmem:[%s210 + $0xc8] sm:$0xff]
      %v255 = vld [vmem:[%s210 + $0xd0] sm:$0xff]
      %v256 = vld [vmem:[%s210 + $0xd8] sm:$0xff]
      %v257 = vld [vmem:[%s210 + $0xe0] sm:$0xff]
      %v258 = vld [vmem:[%s210 + $0xe8] sm:$0xff]
      %v259 = vld [vmem:[%s210 + $0xf0] sm:$0xff]
      %v260 = vld [vmem:[%s210 + $0xf8] sm:$0xff]
      %v261 = vld [vmem:[%s215] sm:$0xf]
      %v262 = vld [vmem:[%s215 + $0x4] sm:$0xf]
      %v263 = vld [vmem:[%s215 + $0x8] sm:$0xf]
      %v264 = vld [vmem:[%s215 + $0xc] sm:$0xf]
      %v265 = vld [vmem:[%s215 + $0x10] sm:$0xf]
      %v266 = vld [vmem:[%s215 + $0x14] sm:$0xf]
      %v267 = vld [vmem:[%s215 + $0x18] sm:$0xf]
      %v268 = vld [vmem:[%s215 + $0x1c] sm:$0xf]
      %v269 = vld [vmem:[%s215 + $0x20] sm:$0xf]
      %v270 = vld [vmem:[%s215 + $0x24] sm:$0xf]
      %v271 = vld [vmem:[%s215 + $0x28] sm:$0xf]
      %v272 = vld [vmem:[%s215 + $0x2c] sm:$0xf]
      %v273 = vld [vmem:[%s215 + $0x30] sm:$0xf]
      %v274 = vld [vmem:[%s215 + $0x34] sm:$0xf]
      %v275 = vld [vmem:[%s215 + $0x38] sm:$0xf]
      %v276 = vld [vmem:[%s215 + $0x3c] sm:$0xf]
      %v277 = vld [vmem:[%s215 + $0x40] sm:$0xf]
      %v278 = vld [vmem:[%s215 + $0x44] sm:$0xf]
      %v279 = vld [vmem:[%s218] sm:$0x1]
      %v281 = vperm.slane %v279, 0
      %v315 = vunpack.c.l.b16 %v229
      %v316 = vunpack.c.h.b16 %v229
      %v317 = vunpack.c.l.b16 %v230
      %v318 = vunpack.c.h.b16 %v230
      %v319 = vunpack.c.l.b16 %v231
      %v320 = vunpack.c.h.b16 %v231
      %v321 = vunpack.c.l.b16 %v232
      %v322 = vunpack.c.h.b16 %v232
      %v323 = vunpack.c.l.b16 %v233
      %v324 = vunpack.c.h.b16 %v233
      %v325 = vunpack.c.l.b16 %v234
      %v326 = vunpack.c.h.b16 %v234
      %v327 = vunpack.c.l.b16 %v235
      %v328 = vunpack.c.h.b16 %v235
      %v329 = vunpack.c.l.b16 %v236
      %v330 = vunpack.c.h.b16 %v236
      %v331 = vunpack.c.l.b16 %v237
      %v332 = vunpack.c.h.b16 %v237
      %v333 = vunpack.c.l.b16 %v238
      %v334 = vunpack.c.h.b16 %v238
      %v335 = vunpack.c.l.b16 %v239
      %v336 = vunpack.c.h.b16 %v239
      %v337 = vunpack.c.l.b16 %v240
      %v338 = vunpack.c.h.b16 %v240
      %v339 = vunpack.c.l.b16 %v241
      %v340 = vunpack.c.h.b16 %v241
      %v341 = vunpack.c.l.b16 %v242
      %v342 = vunpack.c.h.b16 %v242
      %v343 = vunpack.c.l.b16 %v243
      %v344 = vunpack.c.h.b16 %v243
      %v345 = vunpack.c.l.b16 %v244
      %v346 = vunpack.c.h.b16 %v244
      %v347 = vunpack.c.l.b16 %v245
      %v348 = vunpack.c.h.b16 %v245
      %v349 = vunpack.c.l.b16 %v246
      %v350 = vunpack.c.h.b16 %v246
      %v351 = vunpack.c.l.b16 %v247
      %v352 = vunpack.c.h.b16 %v247
      %v353 = vunpack.c.l.b16 %v248
      %v354 = vunpack.c.h.b16 %v248
      %v355 = vunpack.c.l.b16 %v249
      %v356 = vunpack.c.h.b16 %v249
      %v357 = vunpack.c.l.b16 %v250
      %v358 = vunpack.c.h.b16 %v250
      %v359 = vunpack.c.l.b16 %v251
      %v360 = vunpack.c.h.b16 %v251
      %v361 = vunpack.c.l.b16 %v252
      %v362 = vunpack.c.h.b16 %v252
      %v363 = vunpack.c.l.b16 %v253
      %v364 = vunpack.c.h.b16 %v253
      %v365 = vunpack.c.l.b16 %v254
      %v366 = vunpack.c.h.b16 %v254
      %v367 = vunpack.c.l.b16 %v255
      %v368 = vunpack.c.h.b16 %v255
      %v369 = vunpack.c.l.b16 %v256
      %v370 = vunpack.c.h.b16 %v256
      %v371 = vunpack.c.l.b16 %v257
      %v372 = vunpack.c.h.b16 %v257
      %v373 = vunpack.c.l.b16 %v258
      %v374 = vunpack.c.h.b16 %v258
      %v375 = vunpack.c.l.b16 %v259
      %v376 = vunpack.c.h.b16 %v259
      %v377 = vunpack.c.l.b16 %v260
      %v378 = vunpack.c.h.b16 %v260
      %v379 = vpack.c.b16 %v317, %v315
      %v380 = vpack.c.b16 %v318, %v316
      %v381 = vpack.c.b16 %v321, %v319
      %v382 = vpack.c.b16 %v322, %v320
      %v383 = vpack.c.b16 %v325, %v323
      %v384 = vpack.c.b16 %v326, %v324
      %v385 = vpack.c.b16 %v329, %v327
      %v386 = vpack.c.b16 %v330, %v328
      %v387 = vpack.c.b16 %v333, %v331
      %v388 = vpack.c.b16 %v334, %v332
      %v389 = vpack.c.b16 %v337, %v335
      %v390 = vpack.c.b16 %v338, %v336
      %v391 = vpack.c.b16 %v341, %v339
      %v392 = vpack.c.b16 %v342, %v340
      %v393 = vpack.c.b16 %v345, %v343
      %v394 = vpack.c.b16 %v346, %v344
      %v395 = vpack.c.b16 %v349, %v347
      %v396 = vpack.c.b16 %v350, %v348
      %v397 = vpack.c.b16 %v353, %v351
      %v398 = vpack.c.b16 %v354, %v352
      %v399 = vpack.c.b16 %v357, %v355
      %v400 = vpack.c.b16 %v358, %v356
      %v401 = vpack.c.b16 %v361, %v359
      %v402 = vpack.c.b16 %v362, %v360
      %v403 = vpack.c.b16 %v365, %v363
      %v404 = vpack.c.b16 %v366, %v364
      %v405 = vpack.c.b16 %v369, %v367
      %v406 = vpack.c.b16 %v370, %v368
      %v407 = vpack.c.b16 %v373, %v371
      %v408 = vpack.c.b16 %v374, %v372
      %v409 = vpack.c.b16 %v377, %v375
      %v410 = vpack.c.b16 %v378, %v376
      %v445 = vunpack.c.l.b16 %v261
      %v446 = vunpack.c.l.b16 %v262
      %v447 = vunpack.c.l.b16 %v263
      %v448 = vunpack.c.l.b16 %v264
      %v449 = vunpack.c.l.b16 %v265
      %v450 = vunpack.c.l.b16 %v266
      %v451 = vunpack.c.l.b16 %v267
      %v452 = vunpack.c.l.b16 %v268
      %v453 = vunpack.c.l.b16 %v269
      %v454 = vunpack.c.l.b16 %v270
      %v455 = vunpack.c.l.b16 %v271
      %v456 = vunpack.c.l.b16 %v272
      %v457 = vunpack.c.l.b16 %v273
      %v458 = vunpack.c.l.b16 %v274
      %v459 = vunpack.c.l.b16 %v275
      %v460 = vunpack.c.l.b16 %v276
      %v461 = vunpack.c.l.b16 %v277
      %v462 = vunpack.c.l.b16 %v278
      %v463 = vpack.c.b16 %v446, %v445
      %v464 = vpack.c.b16 %v448, %v447
      %v465 = vpack.c.b16 %v450, %v449
      %v466 = vpack.c.b16 %v452, %v451
      %v467 = vpack.c.b16 %v454, %v453
      %v468 = vpack.c.b16 %v456, %v455
      %v469 = vpack.c.b16 %v458, %v457
      %v470 = vpack.c.b16 %v460, %v459
      %v471 = vpack.c.b16 %v462, %v461
      %vm481 = vcmask 130048
      %v483 = vsel %vm481, %v380, 0
      %v486 = vsel %vm481, %v382, 0
      %v489 = vsel %vm481, %v384, 0
      %v492 = vsel %vm481, %v386, 0
      %v495 = vsel %vm481, %v388, 0
      %v498 = vsel %vm481, %v390, 0
      %v501 = vsel %vm481, %v392, 0
      %v504 = vsel %vm481, %v394, 0
      %v507 = vsel %vm481, %v396, 0
      %v510 = vsel %vm481, %v398, 0
      %v513 = vsel %vm481, %v400, 0
      %v516 = vsel %vm481, %v402, 0
      %v519 = vsel %vm481, %v404, 0
      %v522 = vsel %vm481, %v406, 0
      %v525 = vsel %vm481, %v408, 0
      %v528 = vsel %vm481, %v410, 0
      %530 = vmatpush.bf16.msra.mxu0 %v470
      %531 = vmatpush.bf16.msra.mxu0 %v469
      %532 = vmatpush.bf16.msra.mxu0 %v468
      %533 = vmatpush.bf16.msra.mxu0 %v467
      %534 = vmatpush.bf16.msra.mxu0 %v466
      %535 = vmatpush.bf16.msra.mxu0 %v465
      %536 = vmatpush.bf16.msra.mxu0 %v464
      %537 = vmatpush.bf16.msra.mxu0 %v463
      %538 = vmatmul.bf16.gmra.mxu0 %v379
      %v539 = vpop.f32.mrf.mxu0
      %v540 = vadd.f32 %v281, %v539
      %v541 = vpop.f32.mrf.mxu0
      %v542 = vadd.f32 %v281, %v541
      %543 = vmatmul.bf16.gmra.mxu0 %v381
      %v544 = vpop.f32.mrf.mxu0
      %v545 = vadd.f32 %v281, %v544
      %v546 = vpop.f32.mrf.mxu0
      %v547 = vadd.f32 %v281, %v546
      %548 = vmatmul.bf16.gmra.mxu0 %v383
      %v549 = vpop.f32.mrf.mxu0
      %v550 = vadd.f32 %v281, %v549
      %v551 = vpop.f32.mrf.mxu0
      %v552 = vadd.f32 %v281, %v551
      %553 = vmatmul.bf16.gmra.mxu0 %v385
      %v554 = vpop.f32.mrf.mxu0
      %v555 = vadd.f32 %v281, %v554
      %v556 = vpop.f32.mrf.mxu0
      %v557 = vadd.f32 %v281, %v556
      %558 = vmatmul.bf16.gmra.mxu0 %v387
      %v559 = vpop.f32.mrf.mxu0
      %v560 = vadd.f32 %v281, %v559
      %v561 = vpop.f32.mrf.mxu0
      %v562 = vadd.f32 %v281, %v561
      %563 = vmatmul.bf16.gmra.mxu0 %v389
      %v564 = vpop.f32.mrf.mxu0
      %v565 = vadd.f32 %v281, %v564
      %v566 = vpop.f32.mrf.mxu0
      %v567 = vadd.f32 %v281, %v566
      %568 = vmatmul.bf16.gmra.mxu0 %v391
      %v569 = vpop.f32.mrf.mxu0
      %v570 = vadd.f32 %v281, %v569
      %v571 = vpop.f32.mrf.mxu0
      %v572 = vadd.f32 %v281, %v571
      %573 = vmatmul.bf16.gmra.mxu0 %v393
      %v574 = vpop.f32.mrf.mxu0
      %v575 = vadd.f32 %v281, %v574
      %v576 = vpop.f32.mrf.mxu0
      %v577 = vadd.f32 %v281, %v576
      %578 = vmatmul.bf16.gmra.mxu0 %v395
      %v579 = vpop.f32.mrf.mxu0
      %v580 = vadd.f32 %v281, %v579
      %v581 = vpop.f32.mrf.mxu0
      %v582 = vadd.f32 %v281, %v581
      %583 = vmatmul.bf16.gmra.mxu0 %v397
      %v584 = vpop.f32.mrf.mxu0
      %v585 = vadd.f32 %v281, %v584
      %v586 = vpop.f32.mrf.mxu0
      %v587 = vadd.f32 %v281, %v586
      %588 = vmatmul.bf16.gmra.mxu0 %v399
      %v589 = vpop.f32.mrf.mxu0
      %v590 = vadd.f32 %v281, %v589
      %v591 = vpop.f32.mrf.mxu0
      %v592 = vadd.f32 %v281, %v591
      %593 = vmatmul.bf16.gmra.mxu0 %v401
      %v594 = vpop.f32.mrf.mxu0
      %v595 = vadd.f32 %v281, %v594
      %v596 = vpop.f32.mrf.mxu0
      %v597 = vadd.f32 %v281, %v596
      %598 = vmatmul.bf16.gmra.mxu0 %v403
      %v599 = vpop.f32.mrf.mxu0
      %v600 = vadd.f32 %v281, %v599
      %v601 = vpop.f32.mrf.mxu0
      %v602 = vadd.f32 %v281, %v601
      %603 = vmatmul.bf16.gmra.mxu0 %v405
      %v604 = vpop.f32.mrf.mxu0
      %v605 = vadd.f32 %v281, %v604
      %v606 = vpop.f32.mrf.mxu0
      %v607 = vadd.f32 %v281, %v606
      %608 = vmatmul.bf16.gmra.mxu0 %v407
      %v609 = vpop.f32.mrf.mxu0
      %v610 = vadd.f32 %v281, %v609
      %v611 = vpop.f32.mrf.mxu0
      %v612 = vadd.f32 %v281, %v611
      %613 = vmatmul.bf16.gmra.mxu0 %v409
      %v614 = vpop.f32.mrf.mxu0
      %v615 = vadd.f32 %v281, %v614
      %v616 = vpop.f32.mrf.mxu0
      %v617 = vadd.f32 %v281, %v616
      %618 = vdwg.mxu0
      %619 = vmatpush.bf16.msra.mxu0 0
      %620 = vmatpush.bf16.msra.mxu0 0
      %621 = vmatpush.bf16.msra.mxu0 0
      %622 = vmatpush.bf16.msra.mxu0 0
      %623 = vmatpush.bf16.msra.mxu0 0
      %624 = vmatpush.bf16.msra.mxu0 0
      %625 = vmatpush.bf16.msra.mxu0 0
      %626 = vmatpush.bf16.msra.mxu0 %v471
      %627 = vmatmul.bf16.gmra.mxu0 %v483
      %v628 = vpop.f32.mrf.mxu0
      %v629 = vadd.f32 %v540, %v628
      %v630 = vpop.f32.mrf.mxu0
      %v631 = vadd.f32 %v542, %v630
      %632 = vmatmul.bf16.gmra.mxu0 %v486
      %v633 = vpop.f32.mrf.mxu0
      %v634 = vadd.f32 %v545, %v633
      %v635 = vpop.f32.mrf.mxu0
      %v636 = vadd.f32 %v547, %v635
      %637 = vmatmul.bf16.gmra.mxu0 %v489
      %v638 = vpop.f32.mrf.mxu0
      %v639 = vadd.f32 %v550, %v638
      %v640 = vpop.f32.mrf.mxu0
      %v641 = vadd.f32 %v552, %v640
      %642 = vmatmul.bf16.gmra.mxu0 %v492
      %v643 = vpop.f32.mrf.mxu0
      %v644 = vadd.f32 %v555, %v643
      %v645 = vpop.f32.mrf.mxu0
      %v646 = vadd.f32 %v557, %v645
      %647 = vmatmul.bf16.gmra.mxu0 %v495
      %v648 = vpop.f32.mrf.mxu0
      %v649 = vadd.f32 %v560, %v648
      %v650 = vpop.f32.mrf.mxu0
      %v651 = vadd.f32 %v562, %v650
      %652 = vmatmul.bf16.gmra.mxu0 %v498
      %v653 = vpop.f32.mrf.mxu0
      %v654 = vadd.f32 %v565, %v653
      %v655 = vpop.f32.mrf.mxu0
      %v656 = vadd.f32 %v567, %v655
      %657 = vmatmul.bf16.gmra.mxu0 %v501
      %v658 = vpop.f32.mrf.mxu0
      %v659 = vadd.f32 %v570, %v658
      %v660 = vpop.f32.mrf.mxu0
      %v661 = vadd.f32 %v572, %v660
      %662 = vmatmul.bf16.gmra.mxu0 %v504
      %v663 = vpop.f32.mrf.mxu0
      %v664 = vadd.f32 %v575, %v663
      %v665 = vpop.f32.mrf.mxu0
      %v666 = vadd.f32 %v577, %v665
      %667 = vmatmul.bf16.gmra.mxu0 %v507
      %v668 = vpop.f32.mrf.mxu0
      %v669 = vadd.f32 %v580, %v668
      %v670 = vpop.f32.mrf.mxu0
      %v671 = vadd.f32 %v582, %v670
      %672 = vmatmul.bf16.gmra.mxu0 %v510
      %v673 = vpop.f32.mrf.mxu0
      %v674 = vadd.f32 %v585, %v673
      %v675 = vpop.f32.mrf.mxu0
      %v676 = vadd.f32 %v587, %v675
      %677 = vmatmul.bf16.gmra.mxu0 %v513
      %v678 = vpop.f32.mrf.mxu0
      %v679 = vadd.f32 %v590, %v678
      %v680 = vpop.f32.mrf.mxu0
      %v681 = vadd.f32 %v592, %v680
      %682 = vmatmul.bf16.gmra.mxu0 %v516
      %v683 = vpop.f32.mrf.mxu0
      %v684 = vadd.f32 %v595, %v683
      %v685 = vpop.f32.mrf.mxu0
      %v686 = vadd.f32 %v597, %v685
      %687 = vmatmul.bf16.gmra.mxu0 %v519
      %v688 = vpop.f32.mrf.mxu0
      %v689 = vadd.f32 %v600, %v688
      %v690 = vpop.f32.mrf.mxu0
      %v691 = vadd.f32 %v602, %v690
      %692 = vmatmul.bf16.gmra.mxu0 %v522
      %v693 = vpop.f32.mrf.mxu0
      %v694 = vadd.f32 %v605, %v693
      %v695 = vpop.f32.mrf.mxu0
      %v696 = vadd.f32 %v607, %v695
      %697 = vmatmul.bf16.gmra.mxu0 %v525
      %v698 = vpop.f32.mrf.mxu0
      %v699 = vadd.f32 %v610, %v698
      %v700 = vpop.f32.mrf.mxu0
      %v701 = vadd.f32 %v612, %v700
      %702 = vmatmul.bf16.gmra.mxu0 %v528
      %v703 = vpop.f32.mrf.mxu0
      %v704 = vadd.f32 %v615, %v703
      %v705 = vpop.f32.mrf.mxu0
      %v706 = vadd.f32 %v617, %v705
      %707 = vdwg.mxu0
      %v708 = vxor.u32 %v629, 2147483648
      %v709 = vxor.u32 %v631, 2147483648
      %v710 = vxor.u32 %v634, 2147483648
      %v711 = vxor.u32 %v636, 2147483648
      %v712 = vxor.u32 %v639, 2147483648
      %v713 = vxor.u32 %v641, 2147483648
      %v714 = vxor.u32 %v644, 2147483648
      %v715 = vxor.u32 %v646, 2147483648
      %v716 = vxor.u32 %v649, 2147483648
      %v717 = vxor.u32 %v651, 2147483648
      %v718 = vxor.u32 %v654, 2147483648
      %v719 = vxor.u32 %v656, 2147483648
      %v720 = vxor.u32 %v659, 2147483648
      %v721 = vxor.u32 %v661, 2147483648
      %v722 = vxor.u32 %v664, 2147483648
      %v723 = vxor.u32 %v666, 2147483648
      %v724 = vxor.u32 %v669, 2147483648
      %v725 = vxor.u32 %v671, 2147483648
      %v726 = vxor.u32 %v674, 2147483648
      %v727 = vxor.u32 %v676, 2147483648
      %v728 = vxor.u32 %v679, 2147483648
      %v729 = vxor.u32 %v681, 2147483648
      %v730 = vxor.u32 %v684, 2147483648
      %v731 = vxor.u32 %v686, 2147483648
      %v732 = vxor.u32 %v689, 2147483648
      %v733 = vxor.u32 %v691, 2147483648
      %v734 = vxor.u32 %v694, 2147483648
      %v735 = vxor.u32 %v696, 2147483648
      %v736 = vxor.u32 %v699, 2147483648
      %v737 = vxor.u32 %v701, 2147483648
      %v738 = vxor.u32 %v704, 2147483648
      %v739 = vxor.u32 %v706, 2147483648
      %v740 = vmul.f32 %v708, 1.442695
      %v741 = vpow.pop %v740
      %v742 = vmul.f32 %v709, 1.442695
      %v743 = vpow.pop %v742
      %v744 = vmul.f32 %v710, 1.442695
      %v745 = vpow.pop %v744
      %v746 = vmul.f32 %v711, 1.442695
      %v747 = vpow.pop %v746
      %v748 = vmul.f32 %v712, 1.442695
      %v749 = vpow.pop %v748
      %v750 = vmul.f32 %v713, 1.442695
      %v751 = vpow.pop %v750
      %v752 = vmul.f32 %v714, 1.442695
      %v753 = vpow.pop %v752
      %v754 = vmul.f32 %v715, 1.442695
      %v755 = vpow.pop %v754
      %v756 = vmul.f32 %v716, 1.442695
      %v757 = vpow.pop %v756
      %v758 = vmul.f32 %v717, 1.442695
      %v759 = vpow.pop %v758
      %v760 = vmul.f32 %v718, 1.442695
      %v761 = vpow.pop %v760
      %v762 = vmul.f32 %v719, 1.442695
      %v763 = vpow.pop %v762
      %v764 = vmul.f32 %v720, 1.442695
      %v765 = vpow.pop %v764
      %v766 = vmul.f32 %v721, 1.442695
      %v767 = vpow.pop %v766
      %v768 = vmul.f32 %v722, 1.442695
      %v769 = vpow.pop %v768
      %v770 = vmul.f32 %v723, 1.442695
      %v771 = vpow.pop %v770
      %v772 = vmul.f32 %v724, 1.442695
      %v773 = vpow.pop %v772
      %v774 = vmul.f32 %v725, 1.442695
      %v775 = vpow.pop %v774
      %v776 = vmul.f32 %v726, 1.442695
      %v777 = vpow.pop %v776
      %v778 = vmul.f32 %v727, 1.442695
      %v779 = vpow.pop %v778
      %v780 = vmul.f32 %v728, 1.442695
      %v781 = vpow.pop %v780
      %v782 = vmul.f32 %v729, 1.442695
      %v783 = vpow.pop %v782
      %v784 = vmul.f32 %v730, 1.442695
      %v785 = vpow.pop %v784
      %v786 = vmul.f32 %v731, 1.442695
      %v787 = vpow.pop %v786
      %v788 = vmul.f32 %v732, 1.442695
      %v789 = vpow.pop %v788
      %v790 = vmul.f32 %v733, 1.442695
      %v791 = vpow.pop %v790
      %v792 = vmul.f32 %v734, 1.442695
      %v793 = vpow.pop %v792
      %v794 = vmul.f32 %v735, 1.442695
      %v795 = vpow.pop %v794
      %v796 = vmul.f32 %v736, 1.442695
      %v797 = vpow.pop %v796
      %v798 = vmul.f32 %v737, 1.442695
      %v799 = vpow.pop %v798
      %v800 = vmul.f32 %v738, 1.442695
      %v801 = vpow.pop %v800
      %v802 = vmul.f32 %v739, 1.442695
      %v803 = vpow.pop %v802
      %v804 = vadd.f32 %v741, 1.0
      %v805 = vadd.f32 %v743, 1.0
      %v806 = vadd.f32 %v745, 1.0
      %v807 = vadd.f32 %v747, 1.0
      %v808 = vadd.f32 %v749, 1.0
      %v809 = vadd.f32 %v751, 1.0
      %v810 = vadd.f32 %v753, 1.0
      %v811 = vadd.f32 %v755, 1.0
      %v812 = vadd.f32 %v757, 1.0
      %v813 = vadd.f32 %v759, 1.0
      %v814 = vadd.f32 %v761, 1.0
      %v815 = vadd.f32 %v763, 1.0
      %v816 = vadd.f32 %v765, 1.0
      %v817 = vadd.f32 %v767, 1.0
      %v818 = vadd.f32 %v769, 1.0
      %v819 = vadd.f32 %v771, 1.0
      %v820 = vadd.f32 %v773, 1.0
      %v821 = vadd.f32 %v775, 1.0
      %v822 = vadd.f32 %v777, 1.0
      %v823 = vadd.f32 %v779, 1.0
      %v824 = vadd.f32 %v781, 1.0
      %v825 = vadd.f32 %v783, 1.0
      %v826 = vadd.f32 %v785, 1.0
      %v827 = vadd.f32 %v787, 1.0
      %v828 = vadd.f32 %v789, 1.0
      %v829 = vadd.f32 %v791, 1.0
      %v830 = vadd.f32 %v793, 1.0
      %v831 = vadd.f32 %v795, 1.0
      %v832 = vadd.f32 %v797, 1.0
      %v833 = vadd.f32 %v799, 1.0
      %v834 = vadd.f32 %v801, 1.0
      %v835 = vadd.f32 %v803, 1.0
      %v836 = vrcp.pop %v804
      %v837 = vmul.f32 %v804, %v836
      %v838 = vsub.f32 1.0, %v837
      %v839 = vmul.f32 %v836, %v838
      %v840 = vadd.f32 %v836, %v839
      %vm841 = vweird.f32 %v804
      %vm842 = vweird.f32 %v836
      %vm843 = vmor %vm841, %vm842
      %v844 = vsel %vm843, %v836, %v840
      %v845 = vand.u32 2147483647, %v804
      %vm846 = vcmp.eq.f32.partialorder %v845, 8.507059e+37
      %v847 = vand.u32 %v804, 2147483648
      %v848 = vor.u32 1.1754944e-38, %v847
      %v849 = vsel %vm846, %v848, %v844
      %v850 = vmul.f32 1.0, %v849
      %v851 = vrcp.pop %v805
      %v852 = vmul.f32 %v805, %v851
      %v853 = vsub.f32 1.0, %v852
      %v854 = vmul.f32 %v851, %v853
      %v855 = vadd.f32 %v851, %v854
      %vm856 = vweird.f32 %v805
      %vm857 = vweird.f32 %v851
      %vm858 = vmor %vm856, %vm857
      %v859 = vsel %vm858, %v851, %v855
      %v860 = vand.u32 2147483647, %v805
      %vm861 = vcmp.eq.f32.partialorder %v860, 8.507059e+37
      %v862 = vand.u32 %v805, 2147483648
      %v863 = vor.u32 1.1754944e-38, %v862
      %v864 = vsel %vm861, %v863, %v859
      %v865 = vmul.f32 1.0, %v864
      %v866 = vrcp.pop %v806
      %v867 = vmul.f32 %v806, %v866
      %v868 = vsub.f32 1.0, %v867
      %v869 = vmul.f32 %v866, %v868
      %v870 = vadd.f32 %v866, %v869
      %vm871 = vweird.f32 %v806
      %vm872 = vweird.f32 %v866
      %vm873 = vmor %vm871, %vm872
      %v874 = vsel %vm873, %v866, %v870
      %v875 = vand.u32 2147483647, %v806
      %vm876 = vcmp.eq.f32.partialorder %v875, 8.507059e+37
      %v877 = vand.u32 %v806, 2147483648
      %v878 = vor.u32 1.1754944e-38, %v877
      %v879 = vsel %vm876, %v878, %v874
      %v880 = vmul.f32 1.0, %v879
      %v881 = vrcp.pop %v807
      %v882 = vmul.f32 %v807, %v881
      %v883 = vsub.f32 1.0, %v882
      %v884 = vmul.f32 %v881, %v883
      %v885 = vadd.f32 %v881, %v884
      %vm886 = vweird.f32 %v807
      %vm887 = vweird.f32 %v881
      %vm888 = vmor %vm886, %vm887
      %v889 = vsel %vm888, %v881, %v885
      %v890 = vand.u32 2147483647, %v807
      %vm891 = vcmp.eq.f32.partialorder %v890, 8.507059e+37
      %v892 = vand.u32 %v807, 2147483648
      %v893 = vor.u32 1.1754944e-38, %v892
      %v894 = vsel %vm891, %v893, %v889
      %v895 = vmul.f32 1.0, %v894
      %v896 = vrcp.pop %v808
      %v897 = vmul.f32 %v808, %v896
      %v898 = vsub.f32 1.0, %v897
      %v899 = vmul.f32 %v896, %v898
      %v900 = vadd.f32 %v896, %v899
      %vm901 = vweird.f32 %v808
      %vm902 = vweird.f32 %v896
      %vm903 = vmor %vm901, %vm902
      %v904 = vsel %vm903, %v896, %v900
      %v905 = vand.u32 2147483647, %v808
      %vm906 = vcmp.eq.f32.partialorder %v905, 8.507059e+37
      %v907 = vand.u32 %v808, 2147483648
      %v908 = vor.u32 1.1754944e-38, %v907
      %v909 = vsel %vm906, %v908, %v904
      %v910 = vmul.f32 1.0, %v909
      %v911 = vrcp.pop %v809
      %v912 = vmul.f32 %v809, %v911
      %v913 = vsub.f32 1.0, %v912
      %v914 = vmul.f32 %v911, %v913
      %v915 = vadd.f32 %v911, %v914
      %vm916 = vweird.f32 %v809
      %vm917 = vweird.f32 %v911
      %vm918 = vmor %vm916, %vm917
      %v919 = vsel %vm918, %v911, %v915
      %v920 = vand.u32 2147483647, %v809
      %vm921 = vcmp.eq.f32.partialorder %v920, 8.507059e+37
      %v922 = vand.u32 %v809, 2147483648
      %v923 = vor.u32 1.1754944e-38, %v922
      %v924 = vsel %vm921, %v923, %v919
      %v925 = vmul.f32 1.0, %v924
      %v926 = vrcp.pop %v810
      %v927 = vmul.f32 %v810, %v926
      %v928 = vsub.f32 1.0, %v927
      %v929 = vmul.f32 %v926, %v928
      %v930 = vadd.f32 %v926, %v929
      %vm931 = vweird.f32 %v810
      %vm932 = vweird.f32 %v926
      %vm933 = vmor %vm931, %vm932
      %v934 = vsel %vm933, %v926, %v930
      %v935 = vand.u32 2147483647, %v810
      %vm936 = vcmp.eq.f32.partialorder %v935, 8.507059e+37
      %v937 = vand.u32 %v810, 2147483648
      %v938 = vor.u32 1.1754944e-38, %v937
      %v939 = vsel %vm936, %v938, %v934
      %v940 = vmul.f32 1.0, %v939
      %v941 = vrcp.pop %v811
      %v942 = vmul.f32 %v811, %v941
      %v943 = vsub.f32 1.0, %v942
      %v944 = vmul.f32 %v941, %v943
      %v945 = vadd.f32 %v941, %v944
      %vm946 = vweird.f32 %v811
      %vm947 = vweird.f32 %v941
      %vm948 = vmor %vm946, %vm947
      %v949 = vsel %vm948, %v941, %v945
      %v950 = vand.u32 2147483647, %v811
      %vm951 = vcmp.eq.f32.partialorder %v950, 8.507059e+37
      %v952 = vand.u32 %v811, 2147483648
      %v953 = vor.u32 1.1754944e-38, %v952
      %v954 = vsel %vm951, %v953, %v949
      %v955 = vmul.f32 1.0, %v954
      %v956 = vrcp.pop %v812
      %v957 = vmul.f32 %v812, %v956
      %v958 = vsub.f32 1.0, %v957
      %v959 = vmul.f32 %v956, %v958
      %v960 = vadd.f32 %v956, %v959
      %vm961 = vweird.f32 %v812
      %vm962 = vweird.f32 %v956
      %vm963 = vmor %vm961, %vm962
      %v964 = vsel %vm963, %v956, %v960
      %v965 = vand.u32 2147483647, %v812
      %vm966 = vcmp.eq.f32.partialorder %v965, 8.507059e+37
      %v967 = vand.u32 %v812, 2147483648
      %v968 = vor.u32 1.1754944e-38, %v967
      %v969 = vsel %vm966, %v968, %v964
      %v970 = vmul.f32 1.0, %v969
      %v971 = vrcp.pop %v813
      %v972 = vmul.f32 %v813, %v971
      %v973 = vsub.f32 1.0, %v972
      %v974 = vmul.f32 %v971, %v973
      %v975 = vadd.f32 %v971, %v974
      %vm976 = vweird.f32 %v813
      %vm977 = vweird.f32 %v971
      %vm978 = vmor %vm976, %vm977
      %v979 = vsel %vm978, %v971, %v975
      %v980 = vand.u32 2147483647, %v813
      %vm981 = vcmp.eq.f32.partialorder %v980, 8.507059e+37
      %v982 = vand.u32 %v813, 2147483648
      %v983 = vor.u32 1.1754944e-38, %v982
      %v984 = vsel %vm981, %v983, %v979
      %v985 = vmul.f32 1.0, %v984
      %v986 = vrcp.pop %v814
      %v987 = vmul.f32 %v814, %v986
      %v988 = vsub.f32 1.0, %v987
      %v989 = vmul.f32 %v986, %v988
      %v990 = vadd.f32 %v986, %v989
      %vm991 = vweird.f32 %v814
      %vm992 = vweird.f32 %v986
      %vm993 = vmor %vm991, %vm992
      %v994 = vsel %vm993, %v986, %v990
      %v995 = vand.u32 2147483647, %v814
      %vm996 = vcmp.eq.f32.partialorder %v995, 8.507059e+37
      %v997 = vand.u32 %v814, 2147483648
      %v998 = vor.u32 1.1754944e-38, %v997
      %v999 = vsel %vm996, %v998, %v994
      %v1000 = vmul.f32 1.0, %v999
      %v1001 = vrcp.pop %v815
      %v1002 = vmul.f32 %v815, %v1001
      %v1003 = vsub.f32 1.0, %v1002
      %v1004 = vmul.f32 %v1001, %v1003
      %v1005 = vadd.f32 %v1001, %v1004
      %vm1006 = vweird.f32 %v815
      %vm1007 = vweird.f32 %v1001
      %vm1008 = vmor %vm1006, %vm1007
      %v1009 = vsel %vm1008, %v1001, %v1005
      %v1010 = vand.u32 2147483647, %v815
      %vm1011 = vcmp.eq.f32.partialorder %v1010, 8.507059e+37
      %v1012 = vand.u32 %v815, 2147483648
      %v1013 = vor.u32 1.1754944e-38, %v1012
      %v1014 = vsel %vm1011, %v1013, %v1009
      %v1015 = vmul.f32 1.0, %v1014
      %v1016 = vrcp.pop %v816
      %v1017 = vmul.f32 %v816, %v1016
      %v1018 = vsub.f32 1.0, %v1017
      %v1019 = vmul.f32 %v1016, %v1018
      %v1020 = vadd.f32 %v1016, %v1019
      %vm1021 = vweird.f32 %v816
      %vm1022 = vweird.f32 %v1016
      %vm1023 = vmor %vm1021, %vm1022
      %v1024 = vsel %vm1023, %v1016, %v1020
      %v1025 = vand.u32 2147483647, %v816
      %vm1026 = vcmp.eq.f32.partialorder %v1025, 8.507059e+37
      %v1027 = vand.u32 %v816, 2147483648
      %v1028 = vor.u32 1.1754944e-38, %v1027
      %v1029 = vsel %vm1026, %v1028, %v1024
      %v1030 = vmul.f32 1.0, %v1029
      %v1031 = vrcp.pop %v817
      %v1032 = vmul.f32 %v817, %v1031
      %v1033 = vsub.f32 1.0, %v1032
      %v1034 = vmul.f32 %v1031, %v1033
      %v1035 = vadd.f32 %v1031, %v1034
      %vm1036 = vweird.f32 %v817
      %vm1037 = vweird.f32 %v1031
      %vm1038 = vmor %vm1036, %vm1037
      %v1039 = vsel %vm1038, %v1031, %v1035
      %v1040 = vand.u32 2147483647, %v817
      %vm1041 = vcmp.eq.f32.partialorder %v1040, 8.507059e+37
      %v1042 = vand.u32 %v817, 2147483648
      %v1043 = vor.u32 1.1754944e-38, %v1042
      %v1044 = vsel %vm1041, %v1043, %v1039
      %v1045 = vmul.f32 1.0, %v1044
      %v1046 = vrcp.pop %v818
      %v1047 = vmul.f32 %v818, %v1046
      %v1048 = vsub.f32 1.0, %v1047
      %v1049 = vmul.f32 %v1046, %v1048
      %v1050 = vadd.f32 %v1046, %v1049
      %vm1051 = vweird.f32 %v818
      %vm1052 = vweird.f32 %v1046
      %vm1053 = vmor %vm1051, %vm1052
      %v1054 = vsel %vm1053, %v1046, %v1050
      %v1055 = vand.u32 2147483647, %v818
      %vm1056 = vcmp.eq.f32.partialorder %v1055, 8.507059e+37
      %v1057 = vand.u32 %v818, 2147483648
      %v1058 = vor.u32 1.1754944e-38, %v1057
      %v1059 = vsel %vm1056, %v1058, %v1054
      %v1060 = vmul.f32 1.0, %v1059
      %v1061 = vrcp.pop %v819
      %v1062 = vmul.f32 %v819, %v1061
      %v1063 = vsub.f32 1.0, %v1062
      %v1064 = vmul.f32 %v1061, %v1063
      %v1065 = vadd.f32 %v1061, %v1064
      %vm1066 = vweird.f32 %v819
      %vm1067 = vweird.f32 %v1061
      %vm1068 = vmor %vm1066, %vm1067
      %v1069 = vsel %vm1068, %v1061, %v1065
      %v1070 = vand.u32 2147483647, %v819
      %vm1071 = vcmp.eq.f32.partialorder %v1070, 8.507059e+37
      %v1072 = vand.u32 %v819, 2147483648
      %v1073 = vor.u32 1.1754944e-38, %v1072
      %v1074 = vsel %vm1071, %v1073, %v1069
      %v1075 = vmul.f32 1.0, %v1074
      %v1076 = vrcp.pop %v820
      %v1077 = vmul.f32 %v820, %v1076
      %v1078 = vsub.f32 1.0, %v1077
      %v1079 = vmul.f32 %v1076, %v1078
      %v1080 = vadd.f32 %v1076, %v1079
      %vm1081 = vweird.f32 %v820
      %vm1082 = vweird.f32 %v1076
      %vm1083 = vmor %vm1081, %vm1082
      %v1084 = vsel %vm1083, %v1076, %v1080
      %v1085 = vand.u32 2147483647, %v820
      %vm1086 = vcmp.eq.f32.partialorder %v1085, 8.507059e+37
      %v1087 = vand.u32 %v820, 2147483648
      %v1088 = vor.u32 1.1754944e-38, %v1087
      %v1089 = vsel %vm1086, %v1088, %v1084
      %v1090 = vmul.f32 1.0, %v1089
      %v1091 = vrcp.pop %v821
      %v1092 = vmul.f32 %v821, %v1091
      %v1093 = vsub.f32 1.0, %v1092
      %v1094 = vmul.f32 %v1091, %v1093
      %v1095 = vadd.f32 %v1091, %v1094
      %vm1096 = vweird.f32 %v821
      %vm1097 = vweird.f32 %v1091
      %vm1098 = vmor %vm1096, %vm1097
      %v1099 = vsel %vm1098, %v1091, %v1095
      %v1100 = vand.u32 2147483647, %v821
      %vm1101 = vcmp.eq.f32.partialorder %v1100, 8.507059e+37
      %v1102 = vand.u32 %v821, 2147483648
      %v1103 = vor.u32 1.1754944e-38, %v1102
      %v1104 = vsel %vm1101, %v1103, %v1099
      %v1105 = vmul.f32 1.0, %v1104
      %v1106 = vrcp.pop %v822
      %v1107 = vmul.f32 %v822, %v1106
      %v1108 = vsub.f32 1.0, %v1107
      %v1109 = vmul.f32 %v1106, %v1108
      %v1110 = vadd.f32 %v1106, %v1109
      %vm1111 = vweird.f32 %v822
      %vm1112 = vweird.f32 %v1106
      %vm1113 = vmor %vm1111, %vm1112
      %v1114 = vsel %vm1113, %v1106, %v1110
      %v1115 = vand.u32 2147483647, %v822
      %vm1116 = vcmp.eq.f32.partialorder %v1115, 8.507059e+37
      %v1117 = vand.u32 %v822, 2147483648
      %v1118 = vor.u32 1.1754944e-38, %v1117
      %v1119 = vsel %vm1116, %v1118, %v1114
      %v1120 = vmul.f32 1.0, %v1119
      %v1121 = vrcp.pop %v823
      %v1122 = vmul.f32 %v823, %v1121
      %v1123 = vsub.f32 1.0, %v1122
      %v1124 = vmul.f32 %v1121, %v1123
      %v1125 = vadd.f32 %v1121, %v1124
      %vm1126 = vweird.f32 %v823
      %vm1127 = vweird.f32 %v1121
      %vm1128 = vmor %vm1126, %vm1127
      %v1129 = vsel %vm1128, %v1121, %v1125
      %v1130 = vand.u32 2147483647, %v823
      %vm1131 = vcmp.eq.f32.partialorder %v1130, 8.507059e+37
      %v1132 = vand.u32 %v823, 2147483648
      %v1133 = vor.u32 1.1754944e-38, %v1132
      %v1134 = vsel %vm1131, %v1133, %v1129
      %v1135 = vmul.f32 1.0, %v1134
      %v1136 = vrcp.pop %v824
      %v1137 = vmul.f32 %v824, %v1136
      %v1138 = vsub.f32 1.0, %v1137
      %v1139 = vmul.f32 %v1136, %v1138
      %v1140 = vadd.f32 %v1136, %v1139
      %vm1141 = vweird.f32 %v824
      %vm1142 = vweird.f32 %v1136
      %vm1143 = vmor %vm1141, %vm1142
      %v1144 = vsel %vm1143, %v1136, %v1140
      %v1145 = vand.u32 2147483647, %v824
      %vm1146 = vcmp.eq.f32.partialorder %v1145, 8.507059e+37
      %v1147 = vand.u32 %v824, 2147483648
      %v1148 = vor.u32 1.1754944e-38, %v1147
      %v1149 = vsel %vm1146, %v1148, %v1144
      %v1150 = vmul.f32 1.0, %v1149
      %v1151 = vrcp.pop %v825
      %v1152 = vmul.f32 %v825, %v1151
      %v1153 = vsub.f32 1.0, %v1152
      %v1154 = vmul.f32 %v1151, %v1153
      %v1155 = vadd.f32 %v1151, %v1154
      %vm1156 = vweird.f32 %v825
      %vm1157 = vweird.f32 %v1151
      %vm1158 = vmor %vm1156, %vm1157
      %v1159 = vsel %vm1158, %v1151, %v1155
      %v1160 = vand.u32 2147483647, %v825
      %vm1161 = vcmp.eq.f32.partialorder %v1160, 8.507059e+37
      %v1162 = vand.u32 %v825, 2147483648
      %v1163 = vor.u32 1.1754944e-38, %v1162
      %v1164 = vsel %vm1161, %v1163, %v1159
      %v1165 = vmul.f32 1.0, %v1164
      %v1166 = vrcp.pop %v826
      %v1167 = vmul.f32 %v826, %v1166
      %v1168 = vsub.f32 1.0, %v1167
      %v1169 = vmul.f32 %v1166, %v1168
      %v1170 = vadd.f32 %v1166, %v1169
      %vm1171 = vweird.f32 %v826
      %vm1172 = vweird.f32 %v1166
      %vm1173 = vmor %vm1171, %vm1172
      %v1174 = vsel %vm1173, %v1166, %v1170
      %v1175 = vand.u32 2147483647, %v826
      %vm1176 = vcmp.eq.f32.partialorder %v1175, 8.507059e+37
      %v1177 = vand.u32 %v826, 2147483648
      %v1178 = vor.u32 1.1754944e-38, %v1177
      %v1179 = vsel %vm1176, %v1178, %v1174
      %v1180 = vmul.f32 1.0, %v1179
      %v1181 = vrcp.pop %v827
      %v1182 = vmul.f32 %v827, %v1181
      %v1183 = vsub.f32 1.0, %v1182
      %v1184 = vmul.f32 %v1181, %v1183
      %v1185 = vadd.f32 %v1181, %v1184
      %vm1186 = vweird.f32 %v827
      %vm1187 = vweird.f32 %v1181
      %vm1188 = vmor %vm1186, %vm1187
      %v1189 = vsel %vm1188, %v1181, %v1185
      %v1190 = vand.u32 2147483647, %v827
      %vm1191 = vcmp.eq.f32.partialorder %v1190, 8.507059e+37
      %v1192 = vand.u32 %v827, 2147483648
      %v1193 = vor.u32 1.1754944e-38, %v1192
      %v1194 = vsel %vm1191, %v1193, %v1189
      %v1195 = vmul.f32 1.0, %v1194
      %v1196 = vrcp.pop %v828
      %v1197 = vmul.f32 %v828, %v1196
      %v1198 = vsub.f32 1.0, %v1197
      %v1199 = vmul.f32 %v1196, %v1198
      %v1200 = vadd.f32 %v1196, %v1199
      %vm1201 = vweird.f32 %v828
      %vm1202 = vweird.f32 %v1196
      %vm1203 = vmor %vm1201, %vm1202
      %v1204 = vsel %vm1203, %v1196, %v1200
      %v1205 = vand.u32 2147483647, %v828
      %vm1206 = vcmp.eq.f32.partialorder %v1205, 8.507059e+37
      %v1207 = vand.u32 %v828, 2147483648
      %v1208 = vor.u32 1.1754944e-38, %v1207
      %v1209 = vsel %vm1206, %v1208, %v1204
      %v1210 = vmul.f32 1.0, %v1209
      %v1211 = vrcp.pop %v829
      %v1212 = vmul.f32 %v829, %v1211
      %v1213 = vsub.f32 1.0, %v1212
      %v1214 = vmul.f32 %v1211, %v1213
      %v1215 = vadd.f32 %v1211, %v1214
      %vm1216 = vweird.f32 %v829
      %vm1217 = vweird.f32 %v1211
      %vm1218 = vmor %vm1216, %vm1217
      %v1219 = vsel %vm1218, %v1211, %v1215
      %v1220 = vand.u32 2147483647, %v829
      %vm1221 = vcmp.eq.f32.partialorder %v1220, 8.507059e+37
      %v1222 = vand.u32 %v829, 2147483648
      %v1223 = vor.u32 1.1754944e-38, %v1222
      %v1224 = vsel %vm1221, %v1223, %v1219
      %v1225 = vmul.f32 1.0, %v1224
      %v1226 = vrcp.pop %v830
      %v1227 = vmul.f32 %v830, %v1226
      %v1228 = vsub.f32 1.0, %v1227
      %v1229 = vmul.f32 %v1226, %v1228
      %v1230 = vadd.f32 %v1226, %v1229
      %vm1231 = vweird.f32 %v830
      %vm1232 = vweird.f32 %v1226
      %vm1233 = vmor %vm1231, %vm1232
      %v1234 = vsel %vm1233, %v1226, %v1230
      %v1235 = vand.u32 2147483647, %v830
      %vm1236 = vcmp.eq.f32.partialorder %v1235, 8.507059e+37
      %v1237 = vand.u32 %v830, 2147483648
      %v1238 = vor.u32 1.1754944e-38, %v1237
      %v1239 = vsel %vm1236, %v1238, %v1234
      %v1240 = vmul.f32 1.0, %v1239
      %v1241 = vrcp.pop %v831
      %v1242 = vmul.f32 %v831, %v1241
      %v1243 = vsub.f32 1.0, %v1242
      %v1244 = vmul.f32 %v1241, %v1243
      %v1245 = vadd.f32 %v1241, %v1244
      %vm1246 = vweird.f32 %v831
      %vm1247 = vweird.f32 %v1241
      %vm1248 = vmor %vm1246, %vm1247
      %v1249 = vsel %vm1248, %v1241, %v1245
      %v1250 = vand.u32 2147483647, %v831
      %vm1251 = vcmp.eq.f32.partialorder %v1250, 8.507059e+37
      %v1252 = vand.u32 %v831, 2147483648
      %v1253 = vor.u32 1.1754944e-38, %v1252
      %v1254 = vsel %vm1251, %v1253, %v1249
      %v1255 = vmul.f32 1.0, %v1254
      %v1256 = vrcp.pop %v832
      %v1257 = vmul.f32 %v832, %v1256
      %v1258 = vsub.f32 1.0, %v1257
      %v1259 = vmul.f32 %v1256, %v1258
      %v1260 = vadd.f32 %v1256, %v1259
      %vm1261 = vweird.f32 %v832
      %vm1262 = vweird.f32 %v1256
      %vm1263 = vmor %vm1261, %vm1262
      %v1264 = vsel %vm1263, %v1256, %v1260
      %v1265 = vand.u32 2147483647, %v832
      %vm1266 = vcmp.eq.f32.partialorder %v1265, 8.507059e+37
      %v1267 = vand.u32 %v832, 2147483648
      %v1268 = vor.u32 1.1754944e-38, %v1267
      %v1269 = vsel %vm1266, %v1268, %v1264
      %v1270 = vmul.f32 1.0, %v1269
      %v1271 = vrcp.pop %v833
      %v1272 = vmul.f32 %v833, %v1271
      %v1273 = vsub.f32 1.0, %v1272
      %v1274 = vmul.f32 %v1271, %v1273
      %v1275 = vadd.f32 %v1271, %v1274
      %vm1276 = vweird.f32 %v833
      %vm1277 = vweird.f32 %v1271
      %vm1278 = vmor %vm1276, %vm1277
      %v1279 = vsel %vm1278, %v1271, %v1275
      %v1280 = vand.u32 2147483647, %v833
      %vm1281 = vcmp.eq.f32.partialorder %v1280, 8.507059e+37
      %v1282 = vand.u32 %v833, 2147483648
      %v1283 = vor.u32 1.1754944e-38, %v1282
      %v1284 = vsel %vm1281, %v1283, %v1279
      %v1285 = vmul.f32 1.0, %v1284
      %v1286 = vrcp.pop %v834
      %v1287 = vmul.f32 %v834, %v1286
      %v1288 = vsub.f32 1.0, %v1287
      %v1289 = vmul.f32 %v1286, %v1288
      %v1290 = vadd.f32 %v1286, %v1289
      %vm1291 = vweird.f32 %v834
      %vm1292 = vweird.f32 %v1286
      %vm1293 = vmor %vm1291, %vm1292
      %v1294 = vsel %vm1293, %v1286, %v1290
      %v1295 = vand.u32 2147483647, %v834
      %vm1296 = vcmp.eq.f32.partialorder %v1295, 8.507059e+37
      %v1297 = vand.u32 %v834, 2147483648
      %v1298 = vor.u32 1.1754944e-38, %v1297
      %v1299 = vsel %vm1296, %v1298, %v1294
      %v1300 = vmul.f32 1.0, %v1299
      %v1301 = vrcp.pop %v835
      %v1302 = vmul.f32 %v835, %v1301
      %v1303 = vsub.f32 1.0, %v1302
      %v1304 = vmul.f32 %v1301, %v1303
      %v1305 = vadd.f32 %v1301, %v1304
      %vm1306 = vweird.f32 %v835
      %vm1307 = vweird.f32 %v1301
      %vm1308 = vmor %vm1306, %vm1307
      %v1309 = vsel %vm1308, %v1301, %v1305
      %v1310 = vand.u32 2147483647, %v835
      %vm1311 = vcmp.eq.f32.partialorder %v1310, 8.507059e+37
      %v1312 = vand.u32 %v835, 2147483648
      %v1313 = vor.u32 1.1754944e-38, %v1312
      %v1314 = vsel %vm1311, %v1313, %v1309
      %v1315 = vmul.f32 1.0, %v1314
      %1316 = vst [vmem:[%s226] sm:$0xff] %v850
      %1317 = vst [vmem:[%s226 + $0x8] sm:$0xff] %v865
      %1318 = vst [vmem:[%s226 + $0x10] sm:$0xff] %v880
      %1319 = vst [vmem:[%s226 + $0x18] sm:$0xff] %v895
      %1320 = vst [vmem:[%s226 + $0x20] sm:$0xff] %v910
      %1321 = vst [vmem:[%s226 + $0x28] sm:$0xff] %v925
      %1322 = vst [vmem:[%s226 + $0x30] sm:$0xff] %v940
      %1323 = vst [vmem:[%s226 + $0x38] sm:$0xff] %v955
      %1324 = vst [vmem:[%s226 + $0x40] sm:$0xff] %v970
      %1325 = vst [vmem:[%s226 + $0x48] sm:$0xff] %v985
      %1326 = vst [vmem:[%s226 + $0x50] sm:$0xff] %v1000
      %1327 = vst [vmem:[%s226 + $0x58] sm:$0xff] %v1015
      %1328 = vst [vmem:[%s226 + $0x60] sm:$0xff] %v1030
      %1329 = vst [vmem:[%s226 + $0x68] sm:$0xff] %v1045
      %1330 = vst [vmem:[%s226 + $0x70] sm:$0xff] %v1060
      %1331 = vst [vmem:[%s226 + $0x78] sm:$0xff] %v1075
      %1332 = vst [vmem:[%s226 + $0x80] sm:$0xff] %v1090
      %1333 = vst [vmem:[%s226 + $0x88] sm:$0xff] %v1105
      %1334 = vst [vmem:[%s226 + $0x90] sm:$0xff] %v1120
      %1335 = vst [vmem:[%s226 + $0x98] sm:$0xff] %v1135
      %1336 = vst [vmem:[%s226 + $0xa0] sm:$0xff] %v1150
      %1337 = vst [vmem:[%s226 + $0xa8] sm:$0xff] %v1165
      %1338 = vst [vmem:[%s226 + $0xb0] sm:$0xff] %v1180
      %1339 = vst [vmem:[%s226 + $0xb8] sm:$0xff] %v1195
      %1340 = vst [vmem:[%s226 + $0xc0] sm:$0xff] %v1210
      %1341 = vst [vmem:[%s226 + $0xc8] sm:$0xff] %v1225
      %1342 = vst [vmem:[%s226 + $0xd0] sm:$0xff] %v1240
      %1343 = vst [vmem:[%s226 + $0xd8] sm:$0xff] %v1255
      %1344 = vst [vmem:[%s226 + $0xe0] sm:$0xff] %v1270
      %1345 = vst [vmem:[%s226 + $0xe8] sm:$0xff] %v1285
      %1346 = vst [vmem:[%s226 + $0xf0] sm:$0xff] %v1300
      %1347 = vst [vmem:[%s226 + $0xf8] sm:$0xff] %v1315
      %s1348 = smul.u32 32, %s18
      %p1349 = scmp.lt.s32.totalorder %s1348, 63
      %s1350 = scalar_select %p1349, %s1348, 63
      %p1351 = scmp.lt.s32.totalorder %s19, 0
      %s1352 = scalar_select %p1351, %s19, 0
      %s1353 = sadd.s32 %s1352, %s1350
      %s1354 = smul.addr %s1353, 8
      %s1355 = scalar_lea.vmem %s3, %s1354
      // Predicated region
      $region33: #{autoencoder_forward.25} parent=31 // pred_check
        %p1356 = pneg %p124
      $region34: #{autoencoder_forward.25} parent=31 // pred_check_branch
        %1358 = sbr.rel (%p1356) target = $region36
      $region35: #{autoencoder_forward.25} parent=31 // pred_region
        %s1359 = smul.u32 32, %s18
      $region36: #{autoencoder_forward.25} parent=31 // pred_fallthru
        _
    $region32: #{autoencoder_forward.25} parent=5 // pred_fallthru
      _
    %p1360 = scmp.le.s32.totalorder 2, %s9
    // Predicated region
    $region37: #{autoencoder_forward.25} parent=5 // pred_check
      %p1361 = pneg %p1360
    $region38: #{autoencoder_forward.25} parent=5 // pred_check_branch
      %1363 = sbr.rel (%p1361) target = $region40
    $region39: #{autoencoder_forward.25} parent=5 // pred_region
      %s1364 = ssub.s32 %s9, 2
      // Predicated region
      $region41: #{autoencoder_forward.25} parent=39 // pred_check
        %p1365 = pneg %p130
      $region42: #{autoencoder_forward.25} parent=39 // pred_check_branch
        %1367 = sbr.rel (%p1365) target = $region44
      $region43: #{autoencoder_forward.25} parent=39 // pred_region
        %s1368 = smul.u32 32, %s20
        %p1369 = scmp.lt.s32.totalorder %s1368, 63
        %s1370 = scalar_select %p1369, %s1368, 63
        %p1371 = scmp.lt.s32.totalorder %s21, 0
        %s1372 = scalar_select %p1371, %s21, 0
        %s1373 = sadd.s32 %s1372, %s1370
        %s1374 = smul.addr %s1373, 8
        %s1375 = scalar_lea.vmem %s3, %s1374
      $region44: #{autoencoder_forward.25} parent=39 // pred_fallthru
        _
    $region40: #{autoencoder_forward.25} parent=5 // pred_fallthru
      _
  $region6: #{autoencoder_forward.25} parent=0 // loop_footer
    %s13 = sadd.s32 1, %s9
  $region7: #{autoencoder_forward.25} parent=0 // loop_footer_branch
    %8 = sbr.rel target = $region3
  $region8: #{autoencoder_forward.25} parent=0 // loop_exit
    _

</llo_original>
